<compile_context>
chip_gen: v7x
topology: tpu7x:2x2x1
jax: 0.10.0
libtpu: 0.0.40
codegen_flags: <defaults>
</compile_context>

<pallas_src>
import functools

import jax
import jax.numpy as jnp
from jax import lax
from jax.experimental import pallas as pl
from jax.experimental.pallas import tpu as pltpu


def _residual_block_kernel(xpad_ref, w1_ref, b1_ref, w2_ref, b2_ref, o_ref,
                           *, H, W, compute_dtype):
    # xpad_ref: (1, (H+2)*(W+2)+2, C) reflect-padded sample, channels-last,
    #           spatial flattened, +2 slack rows so every tap slice is in-bounds
    # w*_ref:   (9, C_in, C_out)  tap-major conv weights (t = 3*dy + dx)
    # b*_ref:   (1, C)            lane-dense biases
    # o_ref:    (1, H*(W+2), C)   width-padded output (cols W, W+1 are junk)
    Wp = W + 2
    HWp = H * Wp
    eps = 1e-5
    inv_count = 1.0 / float(H * W)

    xp = xpad_ref[0]                       # ((H+2)*Wp + 2, C), f32
    C = xp.shape[-1]

    # Validity mask: columns W and W+1 of every width-padded row are junk.
    colmask = lax.broadcasted_iota(jnp.int32, (H, Wp, 1), 1) < W
    mask = colmask.astype(jnp.float32).reshape(HWp, 1)

    def conv3x3(src, w_ref, b_ref):
        # src: flattened width-padded source with >= H*Wp + 2*Wp + 2 rows.
        # Each tap is a contiguous row-offset slice; the contraction runs on
        # the MXU as (H*Wp, C_in) x (C_in, C_out) with an f32 accumulator.
        acc = None
        for dy in range(3):
            for dx in range(3):
                off = dy * Wp + dx
                patch = src[off:off + HWp, :].astype(compute_dtype)
                part = jnp.dot(patch, w_ref[3 * dy + dx],
                               preferred_element_type=jnp.float32)
                acc = part if acc is None else acc + part
        return acc + b_ref[...].astype(jnp.float32)

    def instance_norm(y):
        # Per-channel stats over the H*W valid positions (biased variance).
        mean = jnp.sum(y * mask, axis=0, keepdims=True) * inv_count
        cen = y - mean
        var = jnp.sum(cen * cen * mask, axis=0, keepdims=True) * inv_count
        return cen * lax.rsqrt(var + eps)

    # --- first G_DownBlock: conv -> InstanceNorm -> ReLU ---
    h = conv3x3(xp, w1_ref, b1_ref)                  # (H*Wp, C) f32
    h = jnp.maximum(instance_norm(h), 0.0)

    # Reflect-pad the valid (H, W) region of h for the second conv; append one
    # duplicate bottom row so the tap slices stay in-bounds (feeds junk only).
    h3 = h.reshape(H, Wp, C)[:, :W, :]                               # (H, W, C)
    h3 = jnp.concatenate([h3[:, 1:2, :], h3, h3[:, W - 2:W - 1, :]], axis=1)
    h3 = jnp.concatenate([h3[1:2], h3, h3[H - 2:H - 1], h3[H - 2:H - 1]],
                         axis=0)                                     # (H+3, Wp, C)
    hpad = h3.reshape((H + 3) * Wp, C)

    # --- second G_DownBlock: conv -> InstanceNorm (no ReLU) ---
    z = instance_norm(conv3x3(hpad, w2_ref, b2_ref))

    # --- residual add: interior of the padded input = contiguous row slice ---
    xres = xp[Wp + 1:Wp + 1 + HWp, :]
    o_ref[0] = (z + xres).astype(o_ref.dtype)


def residual_block(x, w1, b1, w2, b2, *, compute_dtype=jnp.float32):
    """x: (N, C, H, W) float32; w*: (C, C, 3, 3); b*: (C,)."""
    N, C, H, W = x.shape
    Hp, Wp = H + 2, W + 2
    HWp = H * Wp
    R = Hp * Wp + 2          # +2 slack rows for the last tap slices

    # Glue: NHWC, reflect pad, flatten spatial, +2 zero slack rows.
    x_nhwc = jnp.transpose(x, (0, 2, 3, 1))
    xpad = jnp.pad(x_nhwc, ((0, 0), (1, 1), (1, 1), (0, 0)), mode="reflect")
    xpad = jnp.pad(xpad.reshape(N, Hp * Wp, C), ((0, 0), (0, 2), (0, 0)))

    # Weights tap-major (9, C_in, C_out) in the MXU dtype; biases lane-dense.
    w1_k = jnp.transpose(w1, (2, 3, 1, 0)).reshape(9, C, C).astype(compute_dtype)
    w2_k = jnp.transpose(w2, (2, 3, 1, 0)).reshape(9, C, C).astype(compute_dtype)
    b1_k = b1.reshape(1, C).astype(jnp.float32)
    b2_k = b2.reshape(1, C).astype(jnp.float32)

    kernel = functools.partial(_residual_block_kernel, H=H, W=W,
                               compute_dtype=compute_dtype)

    # Explicit VMEM budget sized from the working set (double-buffered I/O
    # blocks + resident weights + live f32 intermediates), clamped to 100 MiB.
    w_bytes = jnp.dtype(compute_dtype).itemsize
    est = 4 * (2 * R * C + 2 * HWp * C + 10 * HWp * C) \
        + 2 * 2 * 9 * C * C * w_bytes + 4 * 4 * C
    vmem_limit = int(min(max(2 * est, 32 * 2 ** 20), 100 * 2 ** 20))

    out_flat = pl.pallas_call(
        kernel,
        out_shape=jax.ShapeDtypeStruct((N, HWp, C), x.dtype),
        grid_spec=pltpu.PrefetchScalarGridSpec(
            num_scalar_prefetch=0,
            grid=(N,),
            in_specs=[
                pl.BlockSpec((1, R, C), lambda n: (n, 0, 0)),
                pl.BlockSpec((9, C, C), lambda n: (0, 0, 0)),
                pl.BlockSpec((1, C), lambda n: (0, 0)),
                pl.BlockSpec((9, C, C), lambda n: (0, 0, 0)),
                pl.BlockSpec((1, C), lambda n: (0, 0)),
            ],
            out_specs=pl.BlockSpec((1, HWp, C), lambda n: (n, 0, 0)),
        ),
        compiler_params=pltpu.CompilerParams(
            dimension_semantics=("parallel",),
            vmem_limit_bytes=vmem_limit),
    )(xpad, w1_k, b1_k, w2_k, b2_k)

    # Drop the 2 junk columns per row and go back to NCHW.
    out = out_flat.reshape(N, H, Wp, C)[:, :, :W, :]
    return jnp.transpose(out, (0, 3, 1, 2))


def residual_block_ref(x, w1, b1, w2, b2):
    """Pure-JAX reference mirroring PyTorch semantics."""
    def g_down_block(x, w, b, use_relu):
        xp = jnp.pad(x, ((0, 0), (0, 0), (1, 1), (1, 1)), mode="reflect")
        y = lax.conv_general_dilated(
            xp, w, window_strides=(1, 1), padding="VALID",
            dimension_numbers=("NCHW", "OIHW", "NCHW"))
        y = y + b[None, :, None, None]
        mean = jnp.mean(y, axis=(2, 3), keepdims=True)
        var = jnp.mean((y - mean) ** 2, axis=(2, 3), keepdims=True)
        y = (y - mean) / jnp.sqrt(var + 1e-5)
        return jnp.maximum(y, 0.0) if use_relu else y

    h = g_down_block(x, w1, b1, True)
    h = g_down_block(h, w2, b2, False)
    return x + h


if __name__ == "__main__":
    N, C, H, W = 2, 4, 16, 16
    key = jax.random.PRNGKey(0)
    kx, kw1, kb1, kw2, kb2 = jax.random.split(key, 5)

    x = jax.random.normal(kx, (N, C, H, W), dtype=jnp.float32)
    # deterministic "synthetic" conv parameters (Conv2d default has bias=True)
    fan_in = C * 3 * 3
    bound = 1.0 / (fan_in ** 0.5)
    w1 = jax.random.uniform(kw1, (C, C, 3, 3), jnp.float32, -bound, bound)
    b1 = jax.random.uniform(kb1, (C,), jnp.float32, -bound, bound)
    w2 = jax.random.uniform(kw2, (C, C, 3, 3), jnp.float32, -bound, bound)
    b2 = jax.random.uniform(kb2, (C,), jnp.float32, -bound, bound)

    ref = residual_block_ref(x, w1, b1, w2, b2)

    # f32 MXU inputs: tight check against the reference.
    out = jax.block_until_ready(residual_block(x, w1, b1, w2, b2))
    assert out.shape == (N, C, H, W)
    assert jnp.max(jnp.abs(out - ref)) < 1e-4

    # bf16 MXU inputs (v6e/v7x fast path), f32 accumulation/norm: looser check.
    out_bf16 = jax.block_until_ready(
        residual_block(x, w1, b1, w2, b2, compute_dtype=jnp.bfloat16))
    assert jnp.max(jnp.abs(out_bf16 - ref)) < 1e-1

    print("KERNEL_OK")
</pallas_src>

<mosaic_0001>
module attributes {stable_mosaic.version = 11 : i64} {
  func.func @_residual_block_kernel(%arg0: i32, %arg1: memref<1x326x4xf32, #tpu.memory_space<vmem>>, %arg2: memref<9x4x4xf32, #tpu.memory_space<vmem>>, %arg3: memref<1x4xf32, #tpu.memory_space<vmem>>, %arg4: memref<9x4x4xf32, #tpu.memory_space<vmem>>, %arg5: memref<1x4xf32, #tpu.memory_space<vmem>>, %arg6: memref<1x288x4xf32, #tpu.memory_space<vmem>>) attributes {dimension_semantics = [#tpu.dimension_semantics<parallel>], iteration_bounds = array<i64: 2>, scalar_prefetch = 0 : i64, scratch_operands = 0 : i64, tpu.core_type = #tpu.core_type<tc>, window_params = [{transform_indices = @transform_0, window_bounds = array<i64: 1, 326, 4>}, {pipeline_mode = #tpu.pipeline_mode<synchronous>, transform_indices = @transform_1, window_bounds = array<i64: 9, 4, 4>}, {pipeline_mode = #tpu.pipeline_mode<synchronous>, transform_indices = @transform_2, window_bounds = array<i64: 1, 4>}, {pipeline_mode = #tpu.pipeline_mode<synchronous>, transform_indices = @transform_3, window_bounds = array<i64: 9, 4, 4>}, {pipeline_mode = #tpu.pipeline_mode<synchronous>, transform_indices = @transform_4, window_bounds = array<i64: 1, 4>}, {transform_indices = @transform_5, window_bounds = array<i64: 1, 288, 4>}]} {
    %c0 = arith.constant 0 : index
    %c0_0 = arith.constant 0 : index
    %c0_1 = arith.constant 0 : index
    %0 = vector.load %arg1[%c0, %c0_0, %c0_1] : memref<1x326x4xf32, #tpu.memory_space<vmem>>, vector<1x326x4xf32>
    %1 = vector.shape_cast %0 : vector<1x326x4xf32> to vector<326x4xf32>
    %2 = tpu.iota {dimensions = array<i32: 1>} : vector<16x18x1xi32>
    %c16_i32 = arith.constant 16 : i32
    %3 = vector.broadcast %c16_i32 : i32 to vector<16x18x1xi32>
    %4 = arith.cmpi slt, %2, %3 : vector<16x18x1xi32>
    %5 = arith.extui %4 : vector<16x18x1xi1> to vector<16x18x1xi32>
    %6 = arith.sitofp %5 : vector<16x18x1xi32> to vector<16x18x1xf32>
    %7 = vector.shape_cast %6 : vector<16x18x1xf32> to vector<288x1xf32>
    %8 = vector.extract_strided_slice %1 {offsets = [0, 0], sizes = [288, 4], strides = [1, 1]} : vector<326x4xf32> to vector<288x4xf32>
    %c0_2 = arith.constant 0 : index
    %c0_3 = arith.constant 0 : index
    %c0_4 = arith.constant 0 : index
    %9 = vector.load %arg2[%c0_2, %c0_3, %c0_4] : memref<9x4x4xf32, #tpu.memory_space<vmem>>, vector<1x4x4xf32>
    %10 = vector.shape_cast %9 : vector<1x4x4xf32> to vector<4x4xf32>
    %cst = arith.constant dense<0.000000e+00> : vector<288x4xf32>
    %11 = tpu.matmul %8, %10, %cst {dimension_numbers = #tpu.dot_dimension_numbers<[1], [0], [0], [1], [0, 0, 1, 1], [], []>} : vector<288x4xf32>, vector<4x4xf32>, vector<288x4xf32> -> vector<288x4xf32>
    %12 = vector.extract_strided_slice %1 {offsets = [1, 0], sizes = [288, 4], strides = [1, 1]} : vector<326x4xf32> to vector<288x4xf32>
    %c1 = arith.constant 1 : index
    %c0_5 = arith.constant 0 : index
    %c0_6 = arith.constant 0 : index
    %13 = vector.load %arg2[%c1, %c0_5, %c0_6] : memref<9x4x4xf32, #tpu.memory_space<vmem>>, vector<1x4x4xf32>
    %14 = vector.shape_cast %13 : vector<1x4x4xf32> to vector<4x4xf32>
    %cst_7 = arith.constant dense<0.000000e+00> : vector<288x4xf32>
    %15 = tpu.matmul %12, %14, %cst_7 {dimension_numbers = #tpu.dot_dimension_numbers<[1], [0], [0], [1], [0, 0, 1, 1], [], []>} : vector<288x4xf32>, vector<4x4xf32>, vector<288x4xf32> -> vector<288x4xf32>
    %16 = arith.addf %11, %15 : vector<288x4xf32>
    %17 = vector.extract_strided_slice %1 {offsets = [2, 0], sizes = [288, 4], strides = [1, 1]} : vector<326x4xf32> to vector<288x4xf32>
    %c2 = arith.constant 2 : index
    %c0_8 = arith.constant 0 : index
    %c0_9 = arith.constant 0 : index
    %18 = vector.load %arg2[%c2, %c0_8, %c0_9] : memref<9x4x4xf32, #tpu.memory_space<vmem>>, vector<1x4x4xf32>
    %19 = vector.shape_cast %18 : vector<1x4x4xf32> to vector<4x4xf32>
    %cst_10 = arith.constant dense<0.000000e+00> : vector<288x4xf32>
    %20 = tpu.matmul %17, %19, %cst_10 {dimension_numbers = #tpu.dot_dimension_numbers<[1], [0], [0], [1], [0, 0, 1, 1], [], []>} : vector<288x4xf32>, vector<4x4xf32>, vector<288x4xf32> -> vector<288x4xf32>
    %21 = arith.addf %16, %20 : vector<288x4xf32>
    %22 = vector.extract_strided_slice %1 {offsets = [18, 0], sizes = [288, 4], strides = [1, 1]} : vector<326x4xf32> to vector<288x4xf32>
    %c3 = arith.constant 3 : index
    %c0_11 = arith.constant 0 : index
    %c0_12 = arith.constant 0 : index
    %23 = vector.load %arg2[%c3, %c0_11, %c0_12] : memref<9x4x4xf32, #tpu.memory_space<vmem>>, vector<1x4x4xf32>
    %24 = vector.shape_cast %23 : vector<1x4x4xf32> to vector<4x4xf32>
    %cst_13 = arith.constant dense<0.000000e+00> : vector<288x4xf32>
    %25 = tpu.matmul %22, %24, %cst_13 {dimension_numbers = #tpu.dot_dimension_numbers<[1], [0], [0], [1], [0, 0, 1, 1], [], []>} : vector<288x4xf32>, vector<4x4xf32>, vector<288x4xf32> -> vector<288x4xf32>
    %26 = arith.addf %21, %25 : vector<288x4xf32>
    %27 = vector.extract_strided_slice %1 {offsets = [19, 0], sizes = [288, 4], strides = [1, 1]} : vector<326x4xf32> to vector<288x4xf32>
    %c4 = arith.constant 4 : index
    %c0_14 = arith.constant 0 : index
    %c0_15 = arith.constant 0 : index
    %28 = vector.load %arg2[%c4, %c0_14, %c0_15] : memref<9x4x4xf32, #tpu.memory_space<vmem>>, vector<1x4x4xf32>
    %29 = vector.shape_cast %28 : vector<1x4x4xf32> to vector<4x4xf32>
    %cst_16 = arith.constant dense<0.000000e+00> : vector<288x4xf32>
    %30 = tpu.matmul %27, %29, %cst_16 {dimension_numbers = #tpu.dot_dimension_numbers<[1], [0], [0], [1], [0, 0, 1, 1], [], []>} : vector<288x4xf32>, vector<4x4xf32>, vector<288x4xf32> -> vector<288x4xf32>
    %31 = arith.addf %26, %30 : vector<288x4xf32>
    %32 = vector.extract_strided_slice %1 {offsets = [20, 0], sizes = [288, 4], strides = [1, 1]} : vector<326x4xf32> to vector<288x4xf32>
    %c5 = arith.constant 5 : index
    %c0_17 = arith.constant 0 : index
    %c0_18 = arith.constant 0 : index
    %33 = vector.load %arg2[%c5, %c0_17, %c0_18] : memref<9x4x4xf32, #tpu.memory_space<vmem>>, vector<1x4x4xf32>
    %34 = vector.shape_cast %33 : vector<1x4x4xf32> to vector<4x4xf32>
    %cst_19 = arith.constant dense<0.000000e+00> : vector<288x4xf32>
    %35 = tpu.matmul %32, %34, %cst_19 {dimension_numbers = #tpu.dot_dimension_numbers<[1], [0], [0], [1], [0, 0, 1, 1], [], []>} : vector<288x4xf32>, vector<4x4xf32>, vector<288x4xf32> -> vector<288x4xf32>
    %36 = arith.addf %31, %35 : vector<288x4xf32>
    %37 = vector.extract_strided_slice %1 {offsets = [36, 0], sizes = [288, 4], strides = [1, 1]} : vector<326x4xf32> to vector<288x4xf32>
    %c6 = arith.constant 6 : index
    %c0_20 = arith.constant 0 : index
    %c0_21 = arith.constant 0 : index
    %38 = vector.load %arg2[%c6, %c0_20, %c0_21] : memref<9x4x4xf32, #tpu.memory_space<vmem>>, vector<1x4x4xf32>
    %39 = vector.shape_cast %38 : vector<1x4x4xf32> to vector<4x4xf32>
    %cst_22 = arith.constant dense<0.000000e+00> : vector<288x4xf32>
    %40 = tpu.matmul %37, %39, %cst_22 {dimension_numbers = #tpu.dot_dimension_numbers<[1], [0], [0], [1], [0, 0, 1, 1], [], []>} : vector<288x4xf32>, vector<4x4xf32>, vector<288x4xf32> -> vector<288x4xf32>
    %41 = arith.addf %36, %40 : vector<288x4xf32>
    %42 = vector.extract_strided_slice %1 {offsets = [37, 0], sizes = [288, 4], strides = [1, 1]} : vector<326x4xf32> to vector<288x4xf32>
    %c7 = arith.constant 7 : index
    %c0_23 = arith.constant 0 : index
    %c0_24 = arith.constant 0 : index
    %43 = vector.load %arg2[%c7, %c0_23, %c0_24] : memref<9x4x4xf32, #tpu.memory_space<vmem>>, vector<1x4x4xf32>
    %44 = vector.shape_cast %43 : vector<1x4x4xf32> to vector<4x4xf32>
    %cst_25 = arith.constant dense<0.000000e+00> : vector<288x4xf32>
    %45 = tpu.matmul %42, %44, %cst_25 {dimension_numbers = #tpu.dot_dimension_numbers<[1], [0], [0], [1], [0, 0, 1, 1], [], []>} : vector<288x4xf32>, vector<4x4xf32>, vector<288x4xf32> -> vector<288x4xf32>
    %46 = arith.addf %41, %45 : vector<288x4xf32>
    %47 = vector.extract_strided_slice %1 {offsets = [38, 0], sizes = [288, 4], strides = [1, 1]} : vector<326x4xf32> to vector<288x4xf32>
    %c8 = arith.constant 8 : index
    %c0_26 = arith.constant 0 : index
    %c0_27 = arith.constant 0 : index
    %48 = vector.load %arg2[%c8, %c0_26, %c0_27] : memref<9x4x4xf32, #tpu.memory_space<vmem>>, vector<1x4x4xf32>
    %49 = vector.shape_cast %48 : vector<1x4x4xf32> to vector<4x4xf32>
    %cst_28 = arith.constant dense<0.000000e+00> : vector<288x4xf32>
    %50 = tpu.matmul %47, %49, %cst_28 {dimension_numbers = #tpu.dot_dimension_numbers<[1], [0], [0], [1], [0, 0, 1, 1], [], []>} : vector<288x4xf32>, vector<4x4xf32>, vector<288x4xf32> -> vector<288x4xf32>
    %51 = arith.addf %46, %50 : vector<288x4xf32>
    %c0_29 = arith.constant 0 : index
    %c0_30 = arith.constant 0 : index
    %52 = vector.load %arg3[%c0_29, %c0_30] : memref<1x4xf32, #tpu.memory_space<vmem>>, vector<1x4xf32>
    %53 = vector.broadcast %52 : vector<1x4xf32> to vector<288x4xf32>
    %54 = arith.addf %51, %53 : vector<288x4xf32>
    %55 = vector.broadcast %7 : vector<288x1xf32> to vector<288x4xf32>
    %56 = arith.mulf %54, %55 : vector<288x4xf32>
    %cst_31 = arith.constant dense<0.000000e+00> : vector<4xf32>
    %57 = vector.multi_reduction <add>, %56, %cst_31 [0] : vector<288x4xf32> to vector<4xf32>
    %58 = vector.shape_cast %57 : vector<4xf32> to vector<1x4xf32>
    %cst_32 = arith.constant 3.906250e-03 : f32
    %59 = vector.broadcast %cst_32 : f32 to vector<1x4xf32>
    %60 = arith.mulf %58, %59 : vector<1x4xf32>
    %61 = vector.broadcast %60 : vector<1x4xf32> to vector<288x4xf32>
    %62 = arith.subf %54, %61 : vector<288x4xf32>
    %63 = arith.mulf %62, %62 : vector<288x4xf32>
    %64 = vector.broadcast %7 : vector<288x1xf32> to vector<288x4xf32>
    %65 = arith.mulf %63, %64 : vector<288x4xf32>
    %cst_33 = arith.constant dense<0.000000e+00> : vector<4xf32>
    %66 = vector.multi_reduction <add>, %65, %cst_33 [0] : vector<288x4xf32> to vector<4xf32>
    %67 = vector.shape_cast %66 : vector<4xf32> to vector<1x4xf32>
    %cst_34 = arith.constant 3.906250e-03 : f32
    %68 = vector.broadcast %cst_34 : f32 to vector<1x4xf32>
    %69 = arith.mulf %67, %68 : vector<1x4xf32>
    %cst_35 = arith.constant 9.99999974E-6 : f32
    %70 = vector.broadcast %cst_35 : f32 to vector<1x4xf32>
    %71 = arith.addf %69, %70 : vector<1x4xf32>
    %72 = math.rsqrt %71 : vector<1x4xf32>
    %73 = vector.broadcast %72 : vector<1x4xf32> to vector<288x4xf32>
    %74 = arith.mulf %62, %73 : vector<288x4xf32>
    %cst_36 = arith.constant 0.000000e+00 : f32
    %75 = vector.broadcast %cst_36 : f32 to vector<288x4xf32>
    %76 = arith.maximumf %74, %75 : vector<288x4xf32>
    %77 = vector.shape_cast %76 : vector<288x4xf32> to vector<16x18x4xf32>
    %78 = vector.extract_strided_slice %77 {offsets = [0, 0, 0], sizes = [16, 16, 4], strides = [1, 1, 1]} : vector<16x18x4xf32> to vector<16x16x4xf32>
    %79 = vector.extract_strided_slice %78 {offsets = [0, 1, 0], sizes = [16, 1, 4], strides = [1, 1, 1]} : vector<16x16x4xf32> to vector<16x1x4xf32>
    %80 = vector.extract_strided_slice %78 {offsets = [0, 14, 0], sizes = [16, 1, 4], strides = [1, 1, 1]} : vector<16x16x4xf32> to vector<16x1x4xf32>
    %81 = tpu.concatenate %79, %78, %80 in 1 : vector<16x1x4xf32>, vector<16x16x4xf32>, vector<16x1x4xf32> -> vector<16x18x4xf32>
    %82 = vector.extract_strided_slice %81 {offsets = [1, 0, 0], sizes = [1, 18, 4], strides = [1, 1, 1]} : vector<16x18x4xf32> to vector<1x18x4xf32>
    %83 = vector.extract_strided_slice %81 {offsets = [14, 0, 0], sizes = [1, 18, 4], strides = [1, 1, 1]} : vector<16x18x4xf32> to vector<1x18x4xf32>
    %84 = vector.extract_strided_slice %81 {offsets = [14, 0, 0], sizes = [1, 18, 4], strides = [1, 1, 1]} : vector<16x18x4xf32> to vector<1x18x4xf32>
    %85 = tpu.concatenate %82, %81, %83, %84 in 0 : vector<1x18x4xf32>, vector<16x18x4xf32>, vector<1x18x4xf32>, vector<1x18x4xf32> -> vector<19x18x4xf32>
    %86 = vector.shape_cast %85 : vector<19x18x4xf32> to vector<342x4xf32>
    %87 = vector.extract_strided_slice %86 {offsets = [0, 0], sizes = [288, 4], strides = [1, 1]} : vector<342x4xf32> to vector<288x4xf32>
    %c0_37 = arith.constant 0 : index
    %c0_38 = arith.constant 0 : index
    %c0_39 = arith.constant 0 : index
    %88 = vector.load %arg4[%c0_37, %c0_38, %c0_39] : memref<9x4x4xf32, #tpu.memory_space<vmem>>, vector<1x4x4xf32>
    %89 = vector.shape_cast %88 : vector<1x4x4xf32> to vector<4x4xf32>
    %cst_40 = arith.constant dense<0.000000e+00> : vector<288x4xf32>
    %90 = tpu.matmul %87, %89, %cst_40 {dimension_numbers = #tpu.dot_dimension_numbers<[1], [0], [0], [1], [0, 0, 1, 1], [], []>} : vector<288x4xf32>, vector<4x4xf32>, vector<288x4xf32> -> vector<288x4xf32>
    %91 = vector.extract_strided_slice %86 {offsets = [1, 0], sizes = [288, 4], strides = [1, 1]} : vector<342x4xf32> to vector<288x4xf32>
    %c1_41 = arith.constant 1 : index
    %c0_42 = arith.constant 0 : index
    %c0_43 = arith.constant 0 : index
    %92 = vector.load %arg4[%c1_41, %c0_42, %c0_43] : memref<9x4x4xf32, #tpu.memory_space<vmem>>, vector<1x4x4xf32>
    %93 = vector.shape_cast %92 : vector<1x4x4xf32> to vector<4x4xf32>
    %cst_44 = arith.constant dense<0.000000e+00> : vector<288x4xf32>
    %94 = tpu.matmul %91, %93, %cst_44 {dimension_numbers = #tpu.dot_dimension_numbers<[1], [0], [0], [1], [0, 0, 1, 1], [], []>} : vector<288x4xf32>, vector<4x4xf32>, vector<288x4xf32> -> vector<288x4xf32>
    %95 = arith.addf %90, %94 : vector<288x4xf32>
    %96 = vector.extract_strided_slice %86 {offsets = [2, 0], sizes = [288, 4], strides = [1, 1]} : vector<342x4xf32> to vector<288x4xf32>
    %c2_45 = arith.constant 2 : index
    %c0_46 = arith.constant 0 : index
    %c0_47 = arith.constant 0 : index
    %97 = vector.load %arg4[%c2_45, %c0_46, %c0_47] : memref<9x4x4xf32, #tpu.memory_space<vmem>>, vector<1x4x4xf32>
    %98 = vector.shape_cast %97 : vector<1x4x4xf32> to vector<4x4xf32>
    %cst_48 = arith.constant dense<0.000000e+00> : vector<288x4xf32>
    %99 = tpu.matmul %96, %98, %cst_48 {dimension_numbers = #tpu.dot_dimension_numbers<[1], [0], [0], [1], [0, 0, 1, 1], [], []>} : vector<288x4xf32>, vector<4x4xf32>, vector<288x4xf32> -> vector<288x4xf32>
    %100 = arith.addf %95, %99 : vector<288x4xf32>
    %101 = vector.extract_strided_slice %86 {offsets = [18, 0], sizes = [288, 4], strides = [1, 1]} : vector<342x4xf32> to vector<288x4xf32>
    %c3_49 = arith.constant 3 : index
    %c0_50 = arith.constant 0 : index
    %c0_51 = arith.constant 0 : index
    %102 = vector.load %arg4[%c3_49, %c0_50, %c0_51] : memref<9x4x4xf32, #tpu.memory_space<vmem>>, vector<1x4x4xf32>
    %103 = vector.shape_cast %102 : vector<1x4x4xf32> to vector<4x4xf32>
    %cst_52 = arith.constant dense<0.000000e+00> : vector<288x4xf32>
    %104 = tpu.matmul %101, %103, %cst_52 {dimension_numbers = #tpu.dot_dimension_numbers<[1], [0], [0], [1], [0, 0, 1, 1], [], []>} : vector<288x4xf32>, vector<4x4xf32>, vector<288x4xf32> -> vector<288x4xf32>
    %105 = arith.addf %100, %104 : vector<288x4xf32>
    %106 = vector.extract_strided_slice %86 {offsets = [19, 0], sizes = [288, 4], strides = [1, 1]} : vector<342x4xf32> to vector<288x4xf32>
    %c4_53 = arith.constant 4 : index
    %c0_54 = arith.constant 0 : index
    %c0_55 = arith.constant 0 : index
    %107 = vector.load %arg4[%c4_53, %c0_54, %c0_55] : memref<9x4x4xf32, #tpu.memory_space<vmem>>, vector<1x4x4xf32>
    %108 = vector.shape_cast %107 : vector<1x4x4xf32> to vector<4x4xf32>
    %cst_56 = arith.constant dense<0.000000e+00> : vector<288x4xf32>
    %109 = tpu.matmul %106, %108, %cst_56 {dimension_numbers = #tpu.dot_dimension_numbers<[1], [0], [0], [1], [0, 0, 1, 1], [], []>} : vector<288x4xf32>, vector<4x4xf32>, vector<288x4xf32> -> vector<288x4xf32>
    %110 = arith.addf %105, %109 : vector<288x4xf32>
    %111 = vector.extract_strided_slice %86 {offsets = [20, 0], sizes = [288, 4], strides = [1, 1]} : vector<342x4xf32> to vector<288x4xf32>
    %c5_57 = arith.constant 5 : index
    %c0_58 = arith.constant 0 : index
    %c0_59 = arith.constant 0 : index
    %112 = vector.load %arg4[%c5_57, %c0_58, %c0_59] : memref<9x4x4xf32, #tpu.memory_space<vmem>>, vector<1x4x4xf32>
    %113 = vector.shape_cast %112 : vector<1x4x4xf32> to vector<4x4xf32>
    %cst_60 = arith.constant dense<0.000000e+00> : vector<288x4xf32>
    %114 = tpu.matmul %111, %113, %cst_60 {dimension_numbers = #tpu.dot_dimension_numbers<[1], [0], [0], [1], [0, 0, 1, 1], [], []>} : vector<288x4xf32>, vector<4x4xf32>, vector<288x4xf32> -> vector<288x4xf32>
    %115 = arith.addf %110, %114 : vector<288x4xf32>
    %116 = vector.extract_strided_slice %86 {offsets = [36, 0], sizes = [288, 4], strides = [1, 1]} : vector<342x4xf32> to vector<288x4xf32>
    %c6_61 = arith.constant 6 : index
    %c0_62 = arith.constant 0 : index
    %c0_63 = arith.constant 0 : index
    %117 = vector.load %arg4[%c6_61, %c0_62, %c0_63] : memref<9x4x4xf32, #tpu.memory_space<vmem>>, vector<1x4x4xf32>
    %118 = vector.shape_cast %117 : vector<1x4x4xf32> to vector<4x4xf32>
    %cst_64 = arith.constant dense<0.000000e+00> : vector<288x4xf32>
    %119 = tpu.matmul %116, %118, %cst_64 {dimension_numbers = #tpu.dot_dimension_numbers<[1], [0], [0], [1], [0, 0, 1, 1], [], []>} : vector<288x4xf32>, vector<4x4xf32>, vector<288x4xf32> -> vector<288x4xf32>
    %120 = arith.addf %115, %119 : vector<288x4xf32>
    %121 = vector.extract_strided_slice %86 {offsets = [37, 0], sizes = [288, 4], strides = [1, 1]} : vector<342x4xf32> to vector<288x4xf32>
    %c7_65 = arith.constant 7 : index
    %c0_66 = arith.constant 0 : index
    %c0_67 = arith.constant 0 : index
    %122 = vector.load %arg4[%c7_65, %c0_66, %c0_67] : memref<9x4x4xf32, #tpu.memory_space<vmem>>, vector<1x4x4xf32>
    %123 = vector.shape_cast %122 : vector<1x4x4xf32> to vector<4x4xf32>
    %cst_68 = arith.constant dense<0.000000e+00> : vector<288x4xf32>
    %124 = tpu.matmul %121, %123, %cst_68 {dimension_numbers = #tpu.dot_dimension_numbers<[1], [0], [0], [1], [0, 0, 1, 1], [], []>} : vector<288x4xf32>, vector<4x4xf32>, vector<288x4xf32> -> vector<288x4xf32>
    %125 = arith.addf %120, %124 : vector<288x4xf32>
    %126 = vector.extract_strided_slice %86 {offsets = [38, 0], sizes = [288, 4], strides = [1, 1]} : vector<342x4xf32> to vector<288x4xf32>
    %c8_69 = arith.constant 8 : index
    %c0_70 = arith.constant 0 : index
    %c0_71 = arith.constant 0 : index
    %127 = vector.load %arg4[%c8_69, %c0_70, %c0_71] : memref<9x4x4xf32, #tpu.memory_space<vmem>>, vector<1x4x4xf32>
    %128 = vector.shape_cast %127 : vector<1x4x4xf32> to vector<4x4xf32>
    %cst_72 = arith.constant dense<0.000000e+00> : vector<288x4xf32>
    %129 = tpu.matmul %126, %128, %cst_72 {dimension_numbers = #tpu.dot_dimension_numbers<[1], [0], [0], [1], [0, 0, 1, 1], [], []>} : vector<288x4xf32>, vector<4x4xf32>, vector<288x4xf32> -> vector<288x4xf32>
    %130 = arith.addf %125, %129 : vector<288x4xf32>
    %c0_73 = arith.constant 0 : index
    %c0_74 = arith.constant 0 : index
    %131 = vector.load %arg5[%c0_73, %c0_74] : memref<1x4xf32, #tpu.memory_space<vmem>>, vector<1x4xf32>
    %132 = vector.broadcast %131 : vector<1x4xf32> to vector<288x4xf32>
    %133 = arith.addf %130, %132 : vector<288x4xf32>
    %134 = vector.broadcast %7 : vector<288x1xf32> to vector<288x4xf32>
    %135 = arith.mulf %133, %134 : vector<288x4xf32>
    %cst_75 = arith.constant dense<0.000000e+00> : vector<4xf32>
    %136 = vector.multi_reduction <add>, %135, %cst_75 [0] : vector<288x4xf32> to vector<4xf32>
    %137 = vector.shape_cast %136 : vector<4xf32> to vector<1x4xf32>
    %cst_76 = arith.constant 3.906250e-03 : f32
    %138 = vector.broadcast %cst_76 : f32 to vector<1x4xf32>
    %139 = arith.mulf %137, %138 : vector<1x4xf32>
    %140 = vector.broadcast %139 : vector<1x4xf32> to vector<288x4xf32>
    %141 = arith.subf %133, %140 : vector<288x4xf32>
    %142 = arith.mulf %141, %141 : vector<288x4xf32>
    %143 = vector.broadcast %7 : vector<288x1xf32> to vector<288x4xf32>
    %144 = arith.mulf %142, %143 : vector<288x4xf32>
    %cst_77 = arith.constant dense<0.000000e+00> : vector<4xf32>
    %145 = vector.multi_reduction <add>, %144, %cst_77 [0] : vector<288x4xf32> to vector<4xf32>
    %146 = vector.shape_cast %145 : vector<4xf32> to vector<1x4xf32>
    %cst_78 = arith.constant 3.906250e-03 : f32
    %147 = vector.broadcast %cst_78 : f32 to vector<1x4xf32>
    %148 = arith.mulf %146, %147 : vector<1x4xf32>
    %cst_79 = arith.constant 9.99999974E-6 : f32
    %149 = vector.broadcast %cst_79 : f32 to vector<1x4xf32>
    %150 = arith.addf %148, %149 : vector<1x4xf32>
    %151 = math.rsqrt %150 : vector<1x4xf32>
    %152 = vector.broadcast %151 : vector<1x4xf32> to vector<288x4xf32>
    %153 = arith.mulf %141, %152 : vector<288x4xf32>
    %154 = vector.extract_strided_slice %1 {offsets = [19, 0], sizes = [288, 4], strides = [1, 1]} : vector<326x4xf32> to vector<288x4xf32>
    %155 = arith.addf %153, %154 : vector<288x4xf32>
    %c0_80 = arith.constant 0 : index
    %c0_81 = arith.constant 0 : index
    %c0_82 = arith.constant 0 : index
    %156 = vector.load %arg6[%c0_80, %c0_81, %c0_82] : memref<1x288x4xf32, #tpu.memory_space<vmem>>, vector<1x288x4xf32>
    %157 = vector.shape_cast %156 : vector<1x288x4xf32> to vector<288x4xf32>
    %158 = vector.shape_cast %155 : vector<288x4xf32> to vector<1x288x4xf32>
    tpu.vector_store %arg6[%c0_80, %c0_81, %c0_82], %158 {strides = array<i32>} : memref<1x288x4xf32, #tpu.memory_space<vmem>>, vector<1x288x4xf32>,
    return
  }
  func.func @transform_0(%arg0: i32) -> (i32, i32, i32) {
    %c0_i32 = arith.constant 0 : i32
    %c0_i32_0 = arith.constant 0 : i32
    %c0_i32_1 = arith.constant 0 : i32
    return %arg0, %c0_i32, %c0_i32_0 : i32, i32, i32
  }
  func.func @transform_1(%arg0: i32) -> (i32, i32, i32) {
    %c0_i32 = arith.constant 0 : i32
    %c0_i32_0 = arith.constant 0 : i32
    %c0_i32_1 = arith.constant 0 : i32
    %c0_i32_2 = arith.constant 0 : i32
    return %c0_i32, %c0_i32_0, %c0_i32_1 : i32, i32, i32
  }
  func.func @transform_2(%arg0: i32) -> (i32, i32) {
    %c0_i32 = arith.constant 0 : i32
    %c0_i32_0 = arith.constant 0 : i32
    %c0_i32_1 = arith.constant 0 : i32
    return %c0_i32, %c0_i32_0 : i32, i32
  }
  func.func @transform_3(%arg0: i32) -> (i32, i32, i32) {
    %c0_i32 = arith.constant 0 : i32
    %c0_i32_0 = arith.constant 0 : i32
    %c0_i32_1 = arith.constant 0 : i32
    %c0_i32_2 = arith.constant 0 : i32
    return %c0_i32, %c0_i32_0, %c0_i32_1 : i32, i32, i32
  }
  func.func @transform_4(%arg0: i32) -> (i32, i32) {
    %c0_i32 = arith.constant 0 : i32
    %c0_i32_0 = arith.constant 0 : i32
    %c0_i32_1 = arith.constant 0 : i32
    return %c0_i32, %c0_i32_0 : i32, i32
  }
  func.func @transform_5(%arg0: i32) -> (i32, i32, i32) {
    %c0_i32 = arith.constant 0 : i32
    %c0_i32_0 = arith.constant 0 : i32
    %c0_i32_1 = arith.constant 0 : i32
    return %arg0, %c0_i32, %c0_i32_0 : i32, i32, i32
  }
}

</mosaic_0001>

<llo_original>
// kernel: tpu_custom_call.1
$region0: #{tpu_custom_call.1}
  #allocation0 [shape = 'u32[]', space=smem, size = 0x4, offset = 0x4, fixed_abs, tag = 'smem constant byte address 0x4 - core index']
  #allocation1 [shape = 'u32[144,128]{1,0:T(1,128)}', space=vmem, size = 0x12000, scoped, tag = 'internal scratch']
  %s0 = inlined_call_operand.vmem [shape: f32[2,326,4], index: 0, kind: input, shape index: {}]
  %s1 = inlined_call_operand.vmem [shape: f32[9,4,4], index: 1, kind: input, shape index: {}]
  %s2 = inlined_call_operand.vmem [shape: f32[1,4], index: 2, kind: input, shape index: {}]
  %s3 = inlined_call_operand.vmem [shape: f32[9,4,4], index: 3, kind: input, shape index: {}]
  %s4 = inlined_call_operand.vmem [shape: f32[1,4], index: 4, kind: input, shape index: {}]
  %s5 = inlined_call_operand.vmem [shape: f32[2,288,4], index: 5, kind: output, shape index: {}]
  %s6 = sld [smem:[#allocation0]]
  $region53: #{tpu_custom_call.1} parent=0
    _
  %s8 = ssub.s32 1, %s6
  %s9 = scalar_select 0, %s8, %s6
  loop: start=0, step=1, limit=4
  $region2: #{tpu_custom_call.1} parent=0 // loop_pre_header
    _
  $region3: #{tpu_custom_call.1} parent=0 // loop_header
    %s11 = sphi 0, %s15
    %p12 = scmp.ge.s32.totalorder %s11, 4
    %s21 = sphi 0, %s23
    %s24 = sphi 0, %s21
    %s25 = sphi 0, %s24
    %s41 = sphi 0, %s25
    %s45 = sphi 0, %s45
    %s47 = sphi 0, %s45
    %s48 = sphi 0, %s47
    %s62 = sphi 0, %s48
    %s66 = sphi 0, %s66
    %s68 = sphi 0, %s66
    %s69 = sphi 0, %s68
    %s83 = sphi 0, %s69
    %s87 = sphi 0, %s87
    %s89 = sphi 0, %s87
    %s90 = sphi 0, %s89
    %s104 = sphi 0, %s90
    %s108 = sphi 0, %s108
    %s110 = sphi 0, %s108
    %s111 = sphi 0, %s110
    %s125 = sphi 0, %s111
    %s131 = sphi 0, %s133
    %s134 = sphi 0, %s131
    %s135 = sphi 0, %s134
    %s151 = sphi 0, %s135
  $region4: #{tpu_custom_call.1} parent=0 // loop_header_branch
    %14 = sbr.rel (%p12) target = $region8
  $region5: #{tpu_custom_call.1} parent=0 // loop_body
    %s16 = ssub.s32 %s11, 1
    %s17 = ssub.s32 %s11, 2
    %s18 = sadd.s32 %s11, 1
    %s19 = ssub.s32 %s11, %s18
    %p20 = scmp.eq.s32.totalorder %s19, 0
    %s22 = sadd.s32 %s21, 1
    %s23 = scalar_select %p20, %s21, %s22
    %p26 = pneg %p20
    %p27 = scmp.eq.s32.totalorder %s11, 1
    %p28 = por %p26, %p27
    %p29 = scmp.ne.s32.totalorder %s21, %s24
    %p30 = scmp.eq.s32.totalorder %s11, 0
    %p31 = por %p29, %p30
    %p32 = scmp.ne.s32.totalorder %s21, %s24
    %p33 = scmp.eq.s32.totalorder %s16, 1
    %p34 = por %p32, %p33
    %p35 = scmp.ne.s32.totalorder %s24, %s25
    %p36 = scmp.eq.s32.totalorder %s16, 0
    %p37 = por %p35, %p36
    %p38 = scmp.ne.s32.totalorder %s24, %s25
    %p39 = scmp.eq.s32.totalorder %s17, 1
    %p40 = por %p38, %p39
    %p42 = scmp.ne.s32.totalorder %s25, %s41
    %p43 = scmp.eq.s32.totalorder %s17, 0
    %p44 = por %p42, %p43
    %s46 = sadd.s32 %s45, 1
    %p49 = scmp.eq.s32.totalorder %s11, 1
    %p50 = scmp.ne.s32.totalorder %s45, %s47
    %p51 = scmp.eq.s32.totalorder %s11, 0
    %p52 = por %p50, %p51
    %p53 = scmp.ne.s32.totalorder %s45, %s47
    %p54 = scmp.eq.s32.totalorder %s16, 1
    %p55 = por %p53, %p54
    %p56 = scmp.ne.s32.totalorder %s47, %s48
    %p57 = scmp.eq.s32.totalorder %s16, 0
    %p58 = por %p56, %p57
    %p59 = scmp.ne.s32.totalorder %s47, %s48
    %p60 = scmp.eq.s32.totalorder %s17, 1
    %p61 = por %p59, %p60
    %p63 = scmp.ne.s32.totalorder %s48, %s62
    %p64 = scmp.eq.s32.totalorder %s17, 0
    %p65 = por %p63, %p64
    %s67 = sadd.s32 %s66, 1
    %p70 = scmp.eq.s32.totalorder %s11, 1
    %p71 = scmp.ne.s32.totalorder %s66, %s68
    %p72 = scmp.eq.s32.totalorder %s11, 0
    %p73 = por %p71, %p72
    %p74 = scmp.ne.s32.totalorder %s66, %s68
    %p75 = scmp.eq.s32.totalorder %s16, 1
    %p76 = por %p74, %p75
    %p77 = scmp.ne.s32.totalorder %s68, %s69
    %p78 = scmp.eq.s32.totalorder %s16, 0
    %p79 = por %p77, %p78
    %p80 = scmp.ne.s32.totalorder %s68, %s69
    %p81 = scmp.eq.s32.totalorder %s17, 1
    %p82 = por %p80, %p81
    %p84 = scmp.ne.s32.totalorder %s69, %s83
    %p85 = scmp.eq.s32.totalorder %s17, 0
    %p86 = por %p84, %p85
    %s88 = sadd.s32 %s87, 1
    %p91 = scmp.eq.s32.totalorder %s11, 1
    %p92 = scmp.ne.s32.totalorder %s87, %s89
    %p93 = scmp.eq.s32.totalorder %s11, 0
    %p94 = por %p92, %p93
    %p95 = scmp.ne.s32.totalorder %s87, %s89
    %p96 = scmp.eq.s32.totalorder %s16, 1
    %p97 = por %p95, %p96
    %p98 = scmp.ne.s32.totalorder %s89, %s90
    %p99 = scmp.eq.s32.totalorder %s16, 0
    %p100 = por %p98, %p99
    %p101 = scmp.ne.s32.totalorder %s89, %s90
    %p102 = scmp.eq.s32.totalorder %s17, 1
    %p103 = por %p101, %p102
    %p105 = scmp.ne.s32.totalorder %s90, %s104
    %p106 = scmp.eq.s32.totalorder %s17, 0
    %p107 = por %p105, %p106
    %s109 = sadd.s32 %s108, 1
    %p112 = scmp.eq.s32.totalorder %s11, 1
    %p113 = scmp.ne.s32.totalorder %s108, %s110
    %p114 = scmp.eq.s32.totalorder %s11, 0
    %p115 = por %p113, %p114
    %p116 = scmp.ne.s32.totalorder %s108, %s110
    %p117 = scmp.eq.s32.totalorder %s16, 1
    %p118 = por %p116, %p117
    %p119 = scmp.ne.s32.totalorder %s110, %s111
    %p120 = scmp.eq.s32.totalorder %s16, 0
    %p121 = por %p119, %p120
    %p122 = scmp.ne.s32.totalorder %s110, %s111
    %p123 = scmp.eq.s32.totalorder %s17, 1
    %p124 = por %p122, %p123
    %p126 = scmp.ne.s32.totalorder %s111, %s125
    %p127 = scmp.eq.s32.totalorder %s17, 0
    %p128 = por %p126, %p127
    %s129 = ssub.s32 %s11, %s18
    %p130 = scmp.eq.s32.totalorder %s129, 0
    %s132 = sadd.s32 %s131, 1
    %s133 = scalar_select %p130, %s131, %s132
    %p136 = pneg %p130
    %p137 = scmp.eq.s32.totalorder %s11, 1
    %p138 = por %p136, %p137
    %p139 = scmp.ne.s32.totalorder %s131, %s134
    %p140 = scmp.eq.s32.totalorder %s11, 0
    %p141 = por %p139, %p140
    %p142 = scmp.ne.s32.totalorder %s131, %s134
    %p143 = scmp.eq.s32.totalorder %s16, 1
    %p144 = por %p142, %p143
    %p145 = scmp.ne.s32.totalorder %s134, %s135
    %p146 = scmp.eq.s32.totalorder %s16, 0
    %p147 = por %p145, %p146
    %p148 = scmp.ne.s32.totalorder %s134, %s135
    %p149 = scmp.eq.s32.totalorder %s17, 1
    %p150 = por %p148, %p149
    %p152 = scmp.ne.s32.totalorder %s135, %s151
    %p153 = scmp.eq.s32.totalorder %s17, 0
    %p154 = por %p152, %p153
    %p155 = scmp.le.s32.totalorder 1, %s11
    %p156 = scmp.lt.s32.totalorder %s11, 3
    %p157 = pnand %p155, %p156
    %p158 = pneg %p157
    // Predicated region
    $region9: #{tpu_custom_call.1} parent=5 // pred_check
      _
    $region10: #{tpu_custom_call.1} parent=5 // pred_check_branch
      %160 = sbr.rel (%p157) target = $region12
    $region11: #{tpu_custom_call.1} parent=5 // pred_region
      %s161 = ssub.s32 %s11, 1
      // Predicated region
      $region13: #{tpu_custom_call.1} parent=11 // pred_check
        %p162 = pneg %p58
      $region14: #{tpu_custom_call.1} parent=11 // pred_check_branch
        %164 = sbr.rel (%p162) target = $region16
      $region15: #{tpu_custom_call.1} parent=11 // pred_region
        _
      $region16: #{tpu_custom_call.1} parent=11 // pred_fallthru
        _
      // Predicated region
      $region17: #{tpu_custom_call.1} parent=11 // pred_check
        %p165 = pneg %p79
      $region18: #{tpu_custom_call.1} parent=11 // pred_check_branch
        %167 = sbr.rel (%p165) target = $region20
      $region19: #{tpu_custom_call.1} parent=11 // pred_region
        _
      $region20: #{tpu_custom_call.1} parent=11 // pred_fallthru
        _
      // Predicated region
      $region21: #{tpu_custom_call.1} parent=11 // pred_check
        %p168 = pneg %p100
      $region22: #{tpu_custom_call.1} parent=11 // pred_check_branch
        %170 = sbr.rel (%p168) target = $region24
      $region23: #{tpu_custom_call.1} parent=11 // pred_region
        _
      $region24: #{tpu_custom_call.1} parent=11 // pred_fallthru
        _
      // Predicated region
      $region25: #{tpu_custom_call.1} parent=11 // pred_check
        %p171 = pneg %p121
      $region26: #{tpu_custom_call.1} parent=11 // pred_check_branch
        %173 = sbr.rel (%p171) target = $region28
      $region27: #{tpu_custom_call.1} parent=11 // pred_region
        _
      $region28: #{tpu_custom_call.1} parent=11 // pred_fallthru
        _
    $region12: #{tpu_custom_call.1} parent=5 // pred_fallthru
      _
    %p174 = scmp.lt.s32.totalorder %s11, 2
    // Predicated region
    $region29: #{tpu_custom_call.1} parent=5 // pred_check
      %p175 = pneg %p174
    $region30: #{tpu_custom_call.1} parent=5 // pred_check_branch
      %177 = sbr.rel (%p175) target = $region32
    $region31: #{tpu_custom_call.1} parent=5 // pred_region
      // Predicated region
      $region33: #{tpu_custom_call.1} parent=31 // pred_check
        %p178 = pneg %p31
      $region34: #{tpu_custom_call.1} parent=31 // pred_check_branch
        %180 = sbr.rel (%p178) target = $region36
      $region35: #{tpu_custom_call.1} parent=31 // pred_region
        %p181 = scmp.lt.s32.totalorder %s11, 1
        %s182 = scalar_select %p181, %s11, 1
        %s183 = smul.addr %s182, 41
        %s184 = smul.addr %s183, 8
        %s185 = scalar_lea.vmem %s0, %s184
      $region36: #{tpu_custom_call.1} parent=31 // pred_fallthru
        _
    $region32: #{tpu_custom_call.1} parent=5 // pred_fallthru
      _
    %p186 = scmp.le.s32.totalorder 1, %s11
    %p187 = scmp.lt.s32.totalorder %s11, 3
    %p188 = pnand %p186, %p187
    %p189 = pneg %p188
    // Predicated region
    $region37: #{tpu_custom_call.1} parent=5 // pred_check
      _
    $region38: #{tpu_custom_call.1} parent=5 // pred_check_branch
      %191 = sbr.rel (%p188) target = $region40
    $region39: #{tpu_custom_call.1} parent=5 // pred_region
      %s192 = ssub.s32 %s11, 1
      %p193 = scmp.lt.s32.totalorder %s16, 1
      %s194 = scalar_select %p193, %s16, 1
      %s195 = smul.addr %s194, 41
      %s196 = smul.addr %s195, 8
      %s197 = scalar_lea.vmem %s0, %s196
      %p198 = pneg %p37
      %p199 = pneg %p34
      %p200 = pneg %p58
      %p201 = pneg %p55
      %p202 = pneg %p79
      %p203 = pneg %p76
      %p204 = pneg %p100
      %p205 = pneg %p97
      %p206 = pneg %p121
      %p207 = pneg %p118
      %p208 = pneg %p147
      %p209 = pneg %p144
      %p210 = scmp.lt.s32.totalorder %s16, 1
      %s211 = scalar_select %p210, %s16, 1
      %s212 = smul.addr %s211, 36
      %s213 = smul.addr %s212, 8
      %s214 = scalar_lea.vmem %s5, %s213
      %p215 = scmp.lt.s32.totalorder %s16, 1
      %s216 = scalar_select %p215, %s16, 1
      %s217 = smul.addr %s216, 41
      %s218 = smul.addr %s217, 8
      %s219 = scalar_lea.vmem %s0, %s218
      %p220 = scmp.lt.s32.totalorder %s16, 1
      %s221 = scalar_select %p220, %s16, 1
      %s222 = smul.addr %s221, 36
      %s223 = smul.addr %s222, 8
      %s224 = scalar_lea.vmem %s5, %s223
      %v225 = vld [vmem:[%s219] sm:$0xff]
      %v226 = vld [vmem:[%s219 + $0x8] sm:$0xff]
      %v227 = vld [vmem:[%s219 + $0x10] sm:$0xff]
      %v228 = vld [vmem:[%s219 + $0x18] sm:$0xff]
      %v229 = vld [vmem:[%s219 + $0x20] sm:$0xff]
      %v230 = vld [vmem:[%s219 + $0x28] sm:$0xff]
      %v231 = vld [vmem:[%s219 + $0x30] sm:$0xff]
      %v232 = vld [vmem:[%s219 + $0x38] sm:$0xff]
      %v233 = vld [vmem:[%s219 + $0x40] sm:$0xff]
      %v234 = vld [vmem:[%s219 + $0x48] sm:$0xff]
      %v235 = vld [vmem:[%s219 + $0x50] sm:$0xff]
      %v236 = vld [vmem:[%s219 + $0x58] sm:$0xff]
      %v237 = vld [vmem:[%s219 + $0x60] sm:$0xff]
      %v238 = vld [vmem:[%s219 + $0x68] sm:$0xff]
      %v239 = vld [vmem:[%s219 + $0x70] sm:$0xff]
      %v240 = vld [vmem:[%s219 + $0x78] sm:$0xff]
      %v241 = vld [vmem:[%s219 + $0x80] sm:$0xff]
      %v242 = vld [vmem:[%s219 + $0x88] sm:$0xff]
      %v243 = vld [vmem:[%s219 + $0x90] sm:$0xff]
      %v244 = vld [vmem:[%s219 + $0x98] sm:$0xff]
      %v245 = vld [vmem:[%s219 + $0xa0] sm:$0xff]
      %v246 = vld [vmem:[%s219 + $0xa8] sm:$0xff]
      %v247 = vld [vmem:[%s219 + $0xb0] sm:$0xff]
      %v248 = vld [vmem:[%s219 + $0xb8] sm:$0xff]
      %v249 = vld [vmem:[%s219 + $0xc0] sm:$0xff]
      %v250 = vld [vmem:[%s219 + $0xc8] sm:$0xff]
      %v251 = vld [vmem:[%s219 + $0xd0] sm:$0xff]
      %v252 = vld [vmem:[%s219 + $0xd8] sm:$0xff]
      %v253 = vld [vmem:[%s219 + $0xe0] sm:$0xff]
      %v254 = vld [vmem:[%s219 + $0xe8] sm:$0xff]
      %v255 = vld [vmem:[%s219 + $0xf0] sm:$0xff]
      %v256 = vld [vmem:[%s219 + $0xf8] sm:$0xff]
      %v257 = vld [vmem:[%s219 + $0x100] sm:$0xff]
      %v258 = vld [vmem:[%s219 + $0x108] sm:$0xff]
      %v259 = vld [vmem:[%s219 + $0x110] sm:$0xff]
      %v260 = vld [vmem:[%s219 + $0x118] sm:$0xff]
      %v261 = vld [vmem:[%s219 + $0x120] sm:$0xff]
      %v262 = vld [vmem:[%s219 + $0x128] sm:$0xff]
      %v263 = vld [vmem:[%s219 + $0x130] sm:$0xff]
      %v264 = vld [vmem:[%s219 + $0x138] sm:$0xff]
      %v265 = vld [vmem:[%s219 + $0x140] sm:$0x3f]
      %v266 = vlaneseq
      %v267 = vshrl.u32 %v266, 7
      %v268 = vadd.s32 %v267, 8
      %v269 = vadd.s32 %v267, 16
      %vm270 = vcmp.lt.s32.totalorder %v267, 16
      %vm271 = vcmp.lt.s32.totalorder %v268, 16
      %vm272 = vcmp.lt.s32.totalorder %v269, 16
      %v273 = vsel %vm270, 1, 0
      %v274 = vsel %vm271, 1, 0
      %v275 = vsel %vm272, 1, 0
      %v276 = vcvt.s32.f32 %v273
      %v277 = vcvt.s32.f32 %v274
      %v278 = vcvt.s32.f32 %v275
      %v283 = vunpack.c.l.s4 269488144
      %v284 = vunpack.c.0.s8 %v283
      %v285 = vlaneseq
      %v286 = vshrl.u32 %v285, 7
      %v287 = vsub.s32 %v284, %v286
      %v288 = vrot.slane %v276, %v287
      %v290 = vunpack.c.l.s4 842150450
      %v291 = vunpack.c.0.s8 %v290
      %v292 = vlaneseq
      %v293 = vshrl.u32 %v292, 7
      %v294 = vsub.s32 %v291, %v293
      %v295 = vrot.slane %v276, %v294
      %v297 = vunpack.c.l.s4 1414812756
      %v298 = vunpack.c.0.s8 %v297
      %v299 = vlaneseq
      %v300 = vshrl.u32 %v299, 7
      %v301 = vsub.s32 %v298, %v300
      %v302 = vrot.slane %v276, %v301
      %v304 = vunpack.c.l.s4 1987475062
      %v305 = vunpack.c.0.s8 %v304
      %v306 = vlaneseq
      %v307 = vshrl.u32 %v306, 7
      %v308 = vsub.s32 %v305, %v307
      %v309 = vrot.slane %v276, %v308
      %v311 = vunpack.c.l.s4 269488144
      %v312 = vunpack.c.0.s8 %v311
      %v313 = vlaneseq
      %v314 = vshrl.u32 %v313, 7
      %v315 = vsub.s32 %v312, %v314
      %v316 = vrot.slane %v277, %v315
      %v318 = vunpack.c.l.s4 842150450
      %v319 = vunpack.c.0.s8 %v318
      %v320 = vlaneseq
      %v321 = vshrl.u32 %v320, 7
      %v322 = vsub.s32 %v319, %v321
      %v323 = vrot.slane %v277, %v322
      %v325 = vunpack.c.l.s4 1414812756
      %v326 = vunpack.c.0.s8 %v325
      %v327 = vlaneseq
      %v328 = vshrl.u32 %v327, 7
      %v329 = vsub.s32 %v326, %v328
      %v330 = vrot.slane %v277, %v329
      %v332 = vunpack.c.l.s4 1987475062
      %v333 = vunpack.c.0.s8 %v332
      %v334 = vlaneseq
      %v335 = vshrl.u32 %v334, 7
      %v336 = vsub.s32 %v333, %v335
      %v337 = vrot.slane %v277, %v336
      %v339 = vunpack.c.l.s4 269488144
      %v340 = vunpack.c.0.s8 %v339
      %v341 = vlaneseq
      %v342 = vshrl.u32 %v341, 7
      %v343 = vsub.s32 %v340, %v342
      %v344 = vrot.slane %v278, %v343
      %v345 = vld [vmem:[%s1] sm:$0xf]
      %s346 = scalar_lea.vmem %s1, 4
      %v347 = vld [vmem:[%s346] sm:$0xf]
      %vm385 = vcmask 1046528
      %v386 = vrot.slane %v225, 1
      %v387 = vrot.slane %v226, 1
      %v388 = vsel %vm385, %v386, %v387
      %v389 = vrot.slane %v227, 1
      %v390 = vsel %vm385, %v387, %v389
      %v391 = vrot.slane %v228, 1
      %v392 = vsel %vm385, %v389, %v391
      %v393 = vrot.slane %v229, 1
      %v394 = vsel %vm385, %v391, %v393
      %v395 = vrot.slane %v230, 1
      %v396 = vsel %vm385, %v393, %v395
      %v397 = vrot.slane %v231, 1
      %v398 = vsel %vm385, %v395, %v397
      %v399 = vrot.slane %v232, 1
      %v400 = vsel %vm385, %v397, %v399
      %v401 = vrot.slane %v233, 1
      %v402 = vsel %vm385, %v399, %v401
      %v403 = vrot.slane %v234, 1
      %v404 = vsel %vm385, %v401, %v403
      %v405 = vrot.slane %v235, 1
      %v406 = vsel %vm385, %v403, %v405
      %v407 = vrot.slane %v236, 1
      %v408 = vsel %vm385, %v405, %v407
      %v409 = vrot.slane %v237, 1
      %v410 = vsel %vm385, %v407, %v409
      %v411 = vrot.slane %v238, 1
      %v412 = vsel %vm385, %v409, %v411
      %v413 = vrot.slane %v239, 1
      %v414 = vsel %vm385, %v411, %v413
      %v415 = vrot.slane %v240, 1
      %v416 = vsel %vm385, %v413, %v415
      %v417 = vrot.slane %v241, 1
      %v418 = vsel %vm385, %v415, %v417
      %v419 = vrot.slane %v242, 1
      %v420 = vsel %vm385, %v417, %v419
      %v421 = vrot.slane %v243, 1
      %v422 = vsel %vm385, %v419, %v421
      %v423 = vrot.slane %v244, 1
      %v424 = vsel %vm385, %v421, %v423
      %v425 = vrot.slane %v245, 1
      %v426 = vsel %vm385, %v423, %v425
      %v427 = vrot.slane %v246, 1
      %v428 = vsel %vm385, %v425, %v427
      %v429 = vrot.slane %v247, 1
      %v430 = vsel %vm385, %v427, %v429
      %v431 = vrot.slane %v248, 1
      %v432 = vsel %vm385, %v429, %v431
      %v433 = vrot.slane %v249, 1
      %v434 = vsel %vm385, %v431, %v433
      %v435 = vrot.slane %v250, 1
      %v436 = vsel %vm385, %v433, %v435
      %v437 = vrot.slane %v251, 1
      %v438 = vsel %vm385, %v435, %v437
      %v439 = vrot.slane %v252, 1
      %v440 = vsel %vm385, %v437, %v439
      %v441 = vrot.slane %v253, 1
      %v442 = vsel %vm385, %v439, %v441
      %v443 = vrot.slane %v254, 1
      %v444 = vsel %vm385, %v441, %v443
      %v445 = vrot.slane %v255, 1
      %v446 = vsel %vm385, %v443, %v445
      %v447 = vrot.slane %v256, 1
      %v448 = vsel %vm385, %v445, %v447
      %v449 = vrot.slane %v257, 1
      %v450 = vsel %vm385, %v447, %v449
      %v451 = vrot.slane %v258, 1
      %v452 = vsel %vm385, %v449, %v451
      %v453 = vrot.slane %v259, 1
      %v454 = vsel %vm385, %v451, %v453
      %v455 = vrot.slane %v260, 1
      %v456 = vsel %vm385, %v453, %v455
      %v457 = vrot.slane %v261, 1
      %v458 = vsel %vm385, %v455, %v457
      %vm459 = vcmask 31744
      %v460 = vsel %vm459, %v388, 0
      %v462 = vsel %vm459, %v390, 0
      %v464 = vsel %vm459, %v392, 0
      %v466 = vsel %vm459, %v394, 0
      %v468 = vsel %vm459, %v396, 0
      %v470 = vsel %vm459, %v398, 0
      %v472 = vsel %vm459, %v400, 0
      %v474 = vsel %vm459, %v402, 0
      %v476 = vsel %vm459, %v404, 0
      %v478 = vsel %vm459, %v406, 0
      %v480 = vsel %vm459, %v408, 0
      %v482 = vsel %vm459, %v410, 0
      %v484 = vsel %vm459, %v412, 0
      %v486 = vsel %vm459, %v414, 0
      %v488 = vsel %vm459, %v416, 0
      %v490 = vsel %vm459, %v418, 0
      %v492 = vsel %vm459, %v420, 0
      %v494 = vsel %vm459, %v422, 0
      %v496 = vsel %vm459, %v424, 0
      %v498 = vsel %vm459, %v426, 0
      %v500 = vsel %vm459, %v428, 0
      %v502 = vsel %vm459, %v430, 0
      %v504 = vsel %vm459, %v432, 0
      %v506 = vsel %vm459, %v434, 0
      %v508 = vsel %vm459, %v436, 0
      %v510 = vsel %vm459, %v438, 0
      %v512 = vsel %vm459, %v440, 0
      %v514 = vsel %vm459, %v442, 0
      %v516 = vsel %vm459, %v444, 0
      %v518 = vsel %vm459, %v446, 0
      %v520 = vsel %vm459, %v448, 0
      %v522 = vsel %vm459, %v450, 0
      %v524 = vsel %vm459, %v452, 0
      %v526 = vsel %vm459, %v454, 0
      %v528 = vsel %vm459, %v456, 0
      %v530 = vsel %vm459, %v458, 0
      %vm532 = vcmask 1043456
      %v534 = vsel %vm532, %v347, 0
      %536 = vmatprep.subr.mxu0 0.0
      %537 = vmatpush1.msra.mxu0 %v534
      %538 = vmatprep.subr.mxu0 0.0
      %539 = vmatpush1.msra.mxu0 0.0
      %540 = vmatprep.subr.mxu0 0.0
      %541 = vmatpush1.msra.mxu0 0.0
      %542 = vmatprep.subr.mxu0 0.0
      %543 = vmatpush1.msra.mxu0 0.0
      %544 = vmatprep.subr.mxu0 0.0
      %545 = vmatpush1.msra.mxu0 0.0
      %546 = vmatprep.subr.mxu0 0.0
      %547 = vmatpush1.msra.mxu0 0.0
      %548 = vmatprep.subr.mxu0 0.0
      %549 = vmatpush1.msra.mxu0 0.0
      %550 = vmatprep.subr.mxu0 0.0
      %551 = vmatpush1.msra.mxu0 0.0
      %552 = vmatprep.subr.mxu0 0.0
      %553 = vmatpush1.msra.mxu0 0.0
      %554 = vmatprep.subr.mxu0 0.0
      %555 = vmatpush1.msra.mxu0 0.0
      %556 = vmatprep.subr.mxu0 0.0
      %557 = vmatpush1.msra.mxu0 0.0
      %558 = vmatprep.subr.mxu0 0.0
      %559 = vmatpush1.msra.mxu0 0.0
      %560 = vmatprep.subr.mxu0 0.0
      %561 = vmatpush1.msra.mxu0 0.0
      %562 = vmatprep.subr.mxu0 0.0
      %563 = vmatpush1.msra.mxu0 0.0
      %564 = vmatprep.subr.mxu0 0.0
      %565 = vmatpush1.msra.mxu0 0.0
      %566 = vmatprep.subr.mxu0 0.0
      %567 = vmatpush1.msra.mxu0 0.0
      %568 = vmatprep.subr.mxu0 0.0
      %569 = vmatpush1.msra.mxu0 0.0
      %570 = vmatprep.subr.mxu0 0.0
      %571 = vmatpush1.msra.mxu0 0.0
      %572 = vmatprep.subr.mxu0 0.0
      %573 = vmatpush1.msra.mxu0 0.0
      %574 = vmatprep.subr.mxu0 0.0
      %575 = vmatpush1.msra.mxu0 0.0
      %576 = vmatprep.subr.mxu0 0.0
      %577 = vmatpush1.msra.mxu0 0.0
      %578 = vmatprep.subr.mxu0 0.0
      %579 = vmatpush1.msra.mxu0 0.0
      %580 = vmatprep.subr.mxu0 0.0
      %581 = vmatpush1.msra.mxu0 0.0
      %582 = vmatprep.subr.mxu0 0.0
      %583 = vmatpush1.msra.mxu0 0.0
      %584 = vmatprep.subr.mxu0 0.0
      %585 = vmatpush1.msra.mxu0 0.0
      %586 = vmatprep.subr.mxu0 0.0
      %587 = vmatpush1.msra.mxu0 0.0
      %588 = vmatprep.subr.mxu0 0.0
      %589 = vmatpush1.msra.mxu0 0.0
      %590 = vmatprep.subr.mxu0 0.0
      %591 = vmatpush1.msra.mxu0 0.0
      %592 = vmatprep.subr.mxu0 0.0
      %593 = vmatpush1.msra.mxu0 0.0
      %594 = vmatprep.subr.mxu0 0.0
      %595 = vmatpush1.msra.mxu0 0.0
      %596 = vmatprep.subr.mxu0 0.0
      %597 = vmatpush1.msra.mxu0 0.0
      %598 = vmatprep.subr.mxu0 0.0
      %599 = vmatpush1.msra.mxu0 0.0
      %600 = vmatprep.mubr.f32.mxu0 0.0
      %601 = vmatmul.mubr.f32.gmra.mrb[0].mxu0 %v460
      %v602 = vpop.f32.mrb[0].mxu0
      %v603 = vadd.f32 0.0, %v602
      %v604 = vpop.f32.mrb[0].mxu0
      %605 = vmatprep.mubr.f32.mxu0 0.0
      %606 = vmatmul.mubr.f32.gmra.mrb[0].mxu0 %v462
      %v607 = vpop.f32.mrb[0].mxu0
      %v608 = vadd.f32 0.0, %v607
      %v609 = vpop.f32.mrb[0].mxu0
      %610 = vmatprep.mubr.f32.mxu0 0.0
      %611 = vmatmul.mubr.f32.gmra.mrb[0].mxu0 %v464
      %v612 = vpop.f32.mrb[0].mxu0
      %v613 = vadd.f32 0.0, %v612
      %v614 = vpop.f32.mrb[0].mxu0
      %615 = vmatprep.mubr.f32.mxu0 0.0
      %616 = vmatmul.mubr.f32.gmra.mrb[0].mxu0 %v466
      %v617 = vpop.f32.mrb[0].mxu0
      %v618 = vadd.f32 0.0, %v617
      %v619 = vpop.f32.mrb[0].mxu0
      %620 = vmatprep.mubr.f32.mxu0 0.0
      %621 = vmatmul.mubr.f32.gmra.mrb[0].mxu0 %v468
      %v622 = vpop.f32.mrb[0].mxu0
      %v623 = vadd.f32 0.0, %v622
      %v624 = vpop.f32.mrb[0].mxu0
      %625 = vmatprep.mubr.f32.mxu0 0.0
      %626 = vmatmul.mubr.f32.gmra.mrb[0].mxu0 %v470
      %v627 = vpop.f32.mrb[0].mxu0
      %v628 = vadd.f32 0.0, %v627
      %v629 = vpop.f32.mrb[0].mxu0
      %630 = vmatprep.mubr.f32.mxu0 0.0
      %631 = vmatmul.mubr.f32.gmra.mrb[0].mxu0 %v472
      %v632 = vpop.f32.mrb[0].mxu0
      %v633 = vadd.f32 0.0, %v632
      %v634 = vpop.f32.mrb[0].mxu0
      %635 = vmatprep.mubr.f32.mxu0 0.0
      %636 = vmatmul.mubr.f32.gmra.mrb[0].mxu0 %v474
      %v637 = vpop.f32.mrb[0].mxu0
      %v638 = vadd.f32 0.0, %v637
      %v639 = vpop.f32.mrb[0].mxu0
      %640 = vmatprep.mubr.f32.mxu0 0.0
      %641 = vmatmul.mubr.f32.gmra.mrb[0].mxu0 %v476
      %v642 = vpop.f32.mrb[0].mxu0
      %v643 = vadd.f32 0.0, %v642
      %v644 = vpop.f32.mrb[0].mxu0
      %645 = vmatprep.mubr.f32.mxu0 0.0
      %646 = vmatmul.mubr.f32.gmra.mrb[0].mxu0 %v478
      %v647 = vpop.f32.mrb[0].mxu0
      %v648 = vadd.f32 0.0, %v647
      %v649 = vpop.f32.mrb[0].mxu0
      %650 = vmatprep.mubr.f32.mxu0 0.0
      %651 = vmatmul.mubr.f32.gmra.mrb[0].mxu0 %v480
      %v652 = vpop.f32.mrb[0].mxu0
      %v653 = vadd.f32 0.0, %v652
      %v654 = vpop.f32.mrb[0].mxu0
      %655 = vmatprep.mubr.f32.mxu0 0.0
      %656 = vmatmul.mubr.f32.gmra.mrb[0].mxu0 %v482
      %v657 = vpop.f32.mrb[0].mxu0
      %v658 = vadd.f32 0.0, %v657
      %v659 = vpop.f32.mrb[0].mxu0
      %660 = vmatprep.mubr.f32.mxu0 0.0
      %661 = vmatmul.mubr.f32.gmra.mrb[0].mxu0 %v484
      %v662 = vpop.f32.mrb[0].mxu0
      %v663 = vadd.f32 0.0, %v662
      %v664 = vpop.f32.mrb[0].mxu0
      %665 = vmatprep.mubr.f32.mxu0 0.0
      %666 = vmatmul.mubr.f32.gmra.mrb[0].mxu0 %v486
      %v667 = vpop.f32.mrb[0].mxu0
      %v668 = vadd.f32 0.0, %v667
      %v669 = vpop.f32.mrb[0].mxu0
      %670 = vmatprep.mubr.f32.mxu0 0.0
      %671 = vmatmul.mubr.f32.gmra.mrb[0].mxu0 %v488
      %v672 = vpop.f32.mrb[0].mxu0
      %v673 = vadd.f32 0.0, %v672
      %v674 = vpop.f32.mrb[0].mxu0
      %675 = vmatprep.mubr.f32.mxu0 0.0
      %676 = vmatmul.mubr.f32.gmra.mrb[0].mxu0 %v490
      %v677 = vpop.f32.mrb[0].mxu0
      %v678 = vadd.f32 0.0, %v677
      %v679 = vpop.f32.mrb[0].mxu0
      %680 = vmatprep.mubr.f32.mxu0 0.0
      %681 = vmatmul.mubr.f32.gmra.mrb[0].mxu0 %v492
      %v682 = vpop.f32.mrb[0].mxu0
      %v683 = vadd.f32 0.0, %v682
      %v684 = vpop.f32.mrb[0].mxu0
      %685 = vmatprep.mubr.f32.mxu0 0.0
      %686 = vmatmul.mubr.f32.gmra.mrb[0].mxu0 %v494
      %v687 = vpop.f32.mrb[0].mxu0
      %v688 = vadd.f32 0.0, %v687
      %v689 = vpop.f32.mrb[0].mxu0
      %690 = vmatprep.mubr.f32.mxu0 0.0
      %691 = vmatmul.mubr.f32.gmra.mrb[0].mxu0 %v496
      %v692 = vpop.f32.mrb[0].mxu0
      %v693 = vadd.f32 0.0, %v692
      %v694 = vpop.f32.mrb[0].mxu0
      %695 = vmatprep.mubr.f32.mxu0 0.0
      %696 = vmatmul.mubr.f32.gmra.mrb[0].mxu0 %v498
      %v697 = vpop.f32.mrb[0].mxu0
      %v698 = vadd.f32 0.0, %v697
      %v699 = vpop.f32.mrb[0].mxu0
      %700 = vmatprep.mubr.f32.mxu0 0.0
      %701 = vmatmul.mubr.f32.gmra.mrb[0].mxu0 %v500
      %v702 = vpop.f32.mrb[0].mxu0
      %v703 = vadd.f32 0.0, %v702
      %v704 = vpop.f32.mrb[0].mxu0
      %705 = vmatprep.mubr.f32.mxu0 0.0
      %706 = vmatmul.mubr.f32.gmra.mrb[0].mxu0 %v502
      %v707 = vpop.f32.mrb[0].mxu0
      %v708 = vadd.f32 0.0, %v707
      %v709 = vpop.f32.mrb[0].mxu0
      %710 = vmatprep.mubr.f32.mxu0 0.0
      %711 = vmatmul.mubr.f32.gmra.mrb[0].mxu0 %v504
      %v712 = vpop.f32.mrb[0].mxu0
      %v713 = vadd.f32 0.0, %v712
      %v714 = vpop.f32.mrb[0].mxu0
      %715 = vmatprep.mubr.f32.mxu0 0.0
      %716 = vmatmul.mubr.f32.gmra.mrb[0].mxu0 %v506
      %v717 = vpop.f32.mrb[0].mxu0
      %v718 = vadd.f32 0.0, %v717
      %v719 = vpop.f32.mrb[0].mxu0
      %720 = vmatprep.mubr.f32.mxu0 0.0
      %721 = vmatmul.mubr.f32.gmra.mrb[0].mxu0 %v508
      %v722 = vpop.f32.mrb[0].mxu0
      %v723 = vadd.f32 0.0, %v722
      %v724 = vpop.f32.mrb[0].mxu0
      %725 = vmatprep.mubr.f32.mxu0 0.0
      %726 = vmatmul.mubr.f32.gmra.mrb[0].mxu0 %v510
      %v727 = vpop.f32.mrb[0].mxu0
      %v728 = vadd.f32 0.0, %v727
      %v729 = vpop.f32.mrb[0].mxu0
      %730 = vmatprep.mubr.f32.mxu0 0.0
      %731 = vmatmul.mubr.f32.gmra.mrb[0].mxu0 %v512
      %v732 = vpop.f32.mrb[0].mxu0
      %v733 = vadd.f32 0.0, %v732
      %v734 = vpop.f32.mrb[0].mxu0
      %735 = vmatprep.mubr.f32.mxu0 0.0
      %736 = vmatmul.mubr.f32.gmra.mrb[0].mxu0 %v514
      %v737 = vpop.f32.mrb[0].mxu0
      %v738 = vadd.f32 0.0, %v737
      %v739 = vpop.f32.mrb[0].mxu0
      %740 = vmatprep.mubr.f32.mxu0 0.0
      %741 = vmatmul.mubr.f32.gmra.mrb[0].mxu0 %v516
      %v742 = vpop.f32.mrb[0].mxu0
      %v743 = vadd.f32 0.0, %v742
      %v744 = vpop.f32.mrb[0].mxu0
      %745 = vmatprep.mubr.f32.mxu0 0.0
      %746 = vmatmul.mubr.f32.gmra.mrb[0].mxu0 %v518
      %v747 = vpop.f32.mrb[0].mxu0
      %v748 = vadd.f32 0.0, %v747
      %v749 = vpop.f32.mrb[0].mxu0
      %750 = vmatprep.mubr.f32.mxu0 0.0
      %751 = vmatmul.mubr.f32.gmra.mrb[0].mxu0 %v520
      %v752 = vpop.f32.mrb[0].mxu0
      %v753 = vadd.f32 0.0, %v752
      %v754 = vpop.f32.mrb[0].mxu0
      %755 = vmatprep.mubr.f32.mxu0 0.0
      %756 = vmatmul.mubr.f32.gmra.mrb[0].mxu0 %v522
      %v757 = vpop.f32.mrb[0].mxu0
      %v758 = vadd.f32 0.0, %v757
      %v759 = vpop.f32.mrb[0].mxu0
      %760 = vmatprep.mubr.f32.mxu0 0.0
      %761 = vmatmul.mubr.f32.gmra.mrb[0].mxu0 %v524
      %v762 = vpop.f32.mrb[0].mxu0
      %v763 = vadd.f32 0.0, %v762
      %v764 = vpop.f32.mrb[0].mxu0
      %765 = vmatprep.mubr.f32.mxu0 0.0
      %766 = vmatmul.mubr.f32.gmra.mrb[0].mxu0 %v526
      %v767 = vpop.f32.mrb[0].mxu0
      %v768 = vadd.f32 0.0, %v767
      %v769 = vpop.f32.mrb[0].mxu0
      %770 = vmatprep.mubr.f32.mxu0 0.0
      %771 = vmatmul.mubr.f32.gmra.mrb[0].mxu0 %v528
      %v772 = vpop.f32.mrb[0].mxu0
      %v773 = vadd.f32 0.0, %v772
      %v774 = vpop.f32.mrb[0].mxu0
      %775 = vmatprep.mubr.f32.mxu0 0.0
      %776 = vmatmul.mubr.f32.gmra.mrb[0].mxu0 %v530
      %v777 = vpop.f32.mrb[0].mxu0
      %v778 = vadd.f32 0.0, %v777
      %v779 = vpop.f32.mrb[0].mxu0
      %780 = vdwg.mxu0
      %v781 = vsel %vm459, %v225, 0
      %v783 = vsel %vm459, %v226, 0
      %v785 = vsel %vm459, %v227, 0
      %v787 = vsel %vm459, %v228, 0
      %v789 = vsel %vm459, %v229, 0
      %v791 = vsel %vm459, %v230, 0
      %v793 = vsel %vm459, %v231, 0
      %v795 = vsel %vm459, %v232, 0
      %v797 = vsel %vm459, %v233, 0
      %v799 = vsel %vm459, %v234, 0
      %v801 = vsel %vm459, %v235, 0
      %v803 = vsel %vm459, %v236, 0
      %v805 = vsel %vm459, %v237, 0
      %v807 = vsel %vm459, %v238, 0
      %v809 = vsel %vm459, %v239, 0
      %v811 = vsel %vm459, %v240, 0
      %v813 = vsel %vm459, %v241, 0
      %v815 = vsel %vm459, %v242, 0
      %v817 = vsel %vm459, %v243, 0
      %v819 = vsel %vm459, %v244, 0
      %v821 = vsel %vm459, %v245, 0
      %v823 = vsel %vm459, %v246, 0
      %v825 = vsel %vm459, %v247, 0
      %v827 = vsel %vm459, %v248, 0
      %v829 = vsel %vm459, %v249, 0
      %v831 = vsel %vm459, %v250, 0
      %v833 = vsel %vm459, %v251, 0
      %v835 = vsel %vm459, %v252, 0
      %v837 = vsel %vm459, %v253, 0
      %v839 = vsel %vm459, %v254, 0
      %v841 = vsel %vm459, %v255, 0
      %v843 = vsel %vm459, %v256, 0
      %v845 = vsel %vm459, %v257, 0
      %v847 = vsel %vm459, %v258, 0
      %v849 = vsel %vm459, %v259, 0
      %v851 = vsel %vm459, %v260, 0
      %v854 = vsel %vm532, %v345, 0
      %856 = vmatprep.subr.mxu0 0.0
      %857 = vmatpush1.msra.mxu0 %v854
      %858 = vmatprep.subr.mxu0 0.0
      %859 = vmatpush1.msra.mxu0 0.0
      %860 = vmatprep.subr.mxu0 0.0
      %861 = vmatpush1.msra.mxu0 0.0
      %862 = vmatprep.subr.mxu0 0.0
      %863 = vmatpush1.msra.mxu0 0.0
      %864 = vmatprep.subr.mxu0 0.0
      %865 = vmatpush1.msra.mxu0 0.0
      %866 = vmatprep.subr.mxu0 0.0
      %867 = vmatpush1.msra.mxu0 0.0
      %868 = vmatprep.subr.mxu0 0.0
      %869 = vmatpush1.msra.mxu0 0.0
      %870 = vmatprep.subr.mxu0 0.0
      %871 = vmatpush1.msra.mxu0 0.0
      %872 = vmatprep.subr.mxu0 0.0
      %873 = vmatpush1.msra.mxu0 0.0
      %874 = vmatprep.subr.mxu0 0.0
      %875 = vmatpush1.msra.mxu0 0.0
      %876 = vmatprep.subr.mxu0 0.0
      %877 = vmatpush1.msra.mxu0 0.0
      %878 = vmatprep.subr.mxu0 0.0
      %879 = vmatpush1.msra.mxu0 0.0
      %880 = vmatprep.subr.mxu0 0.0
      %881 = vmatpush1.msra.mxu0 0.0
      %882 = vmatprep.subr.mxu0 0.0
      %883 = vmatpush1.msra.mxu0 0.0
      %884 = vmatprep.subr.mxu0 0.0
      %885 = vmatpush1.msra.mxu0 0.0
      %886 = vmatprep.subr.mxu0 0.0
      %887 = vmatpush1.msra.mxu0 0.0
      %888 = vmatprep.subr.mxu0 0.0
      %889 = vmatpush1.msra.mxu0 0.0
      %890 = vmatprep.subr.mxu0 0.0
      %891 = vmatpush1.msra.mxu0 0.0
      %892 = vmatprep.subr.mxu0 0.0
      %893 = vmatpush1.msra.mxu0 0.0
      %894 = vmatprep.subr.mxu0 0.0
      %895 = vmatpush1.msra.mxu0 0.0
      %896 = vmatprep.subr.mxu0 0.0
      %897 = vmatpush1.msra.mxu0 0.0
      %898 = vmatprep.subr.mxu0 0.0
      %899 = vmatpush1.msra.mxu0 0.0
      %900 = vmatprep.subr.mxu0 0.0
      %901 = vmatpush1.msra.mxu0 0.0
      %902 = vmatprep.subr.mxu0 0.0
      %903 = vmatpush1.msra.mxu0 0.0
      %904 = vmatprep.subr.mxu0 0.0
      %905 = vmatpush1.msra.mxu0 0.0
      %906 = vmatprep.subr.mxu0 0.0
      %907 = vmatpush1.msra.mxu0 0.0
      %908 = vmatprep.subr.mxu0 0.0
      %909 = vmatpush1.msra.mxu0 0.0
      %910 = vmatprep.subr.mxu0 0.0
      %911 = vmatpush1.msra.mxu0 0.0
      %912 = vmatprep.subr.mxu0 0.0
      %913 = vmatpush1.msra.mxu0 0.0
      %914 = vmatprep.subr.mxu0 0.0
      %915 = vmatpush1.msra.mxu0 0.0
      %916 = vmatprep.subr.mxu0 0.0
      %917 = vmatpush1.msra.mxu0 0.0
      %918 = vmatprep.subr.mxu0 0.0
      %919 = vmatpush1.msra.mxu0 0.0
      %920 = vmatprep.mubr.f32.mxu0 0.0
      %921 = vmatmul.mubr.f32.gmra.mrb[0].mxu0 %v781
      %v922 = vpop.f32.mrb[0].mxu0
      %v923 = vadd.f32 %v603, %v922
      %v924 = vpop.f32.mrb[0].mxu0
      %925 = vmatprep.mubr.f32.mxu0 0.0
      %926 = vmatmul.mubr.f32.gmra.mrb[0].mxu0 %v783
      %v927 = vpop.f32.mrb[0].mxu0
      %v928 = vadd.f32 %v608, %v927
      %v929 = vpop.f32.mrb[0].mxu0
      %930 = vmatprep.mubr.f32.mxu0 0.0
      %931 = vmatmul.mubr.f32.gmra.mrb[0].mxu0 %v785
      %v932 = vpop.f32.mrb[0].mxu0
      %v933 = vadd.f32 %v613, %v932
      %v934 = vpop.f32.mrb[0].mxu0
      %935 = vmatprep.mubr.f32.mxu0 0.0
      %936 = vmatmul.mubr.f32.gmra.mrb[0].mxu0 %v787
      %v937 = vpop.f32.mrb[0].mxu0
      %v938 = vadd.f32 %v618, %v937
      %v939 = vpop.f32.mrb[0].mxu0
      %940 = vmatprep.mubr.f32.mxu0 0.0
      %941 = vmatmul.mubr.f32.gmra.mrb[0].mxu0 %v789
      %v942 = vpop.f32.mrb[0].mxu0
      %v943 = vadd.f32 %v623, %v942
      %v944 = vpop.f32.mrb[0].mxu0
      %945 = vmatprep.mubr.f32.mxu0 0.0
      %946 = vmatmul.mubr.f32.gmra.mrb[0].mxu0 %v791
      %v947 = vpop.f32.mrb[0].mxu0
      %v948 = vadd.f32 %v628, %v947
      %v949 = vpop.f32.mrb[0].mxu0
      %950 = vmatprep.mubr.f32.mxu0 0.0
      %951 = vmatmul.mubr.f32.gmra.mrb[0].mxu0 %v793
      %v952 = vpop.f32.mrb[0].mxu0
      %v953 = vadd.f32 %v633, %v952
      %v954 = vpop.f32.mrb[0].mxu0
      %955 = vmatprep.mubr.f32.mxu0 0.0
      %956 = vmatmul.mubr.f32.gmra.mrb[0].mxu0 %v795
      %v957 = vpop.f32.mrb[0].mxu0
      %v958 = vadd.f32 %v638, %v957
      %v959 = vpop.f32.mrb[0].mxu0
      %960 = vmatprep.mubr.f32.mxu0 0.0
      %961 = vmatmul.mubr.f32.gmra.mrb[0].mxu0 %v797
      %v962 = vpop.f32.mrb[0].mxu0
      %v963 = vadd.f32 %v643, %v962
      %v964 = vpop.f32.mrb[0].mxu0
      %965 = vmatprep.mubr.f32.mxu0 0.0
      %966 = vmatmul.mubr.f32.gmra.mrb[0].mxu0 %v799
      %v967 = vpop.f32.mrb[0].mxu0
      %v968 = vadd.f32 %v648, %v967
      %v969 = vpop.f32.mrb[0].mxu0
      %970 = vmatprep.mubr.f32.mxu0 0.0
      %971 = vmatmul.mubr.f32.gmra.mrb[0].mxu0 %v801
      %v972 = vpop.f32.mrb[0].mxu0
      %v973 = vadd.f32 %v653, %v972
      %v974 = vpop.f32.mrb[0].mxu0
      %975 = vmatprep.mubr.f32.mxu0 0.0
      %976 = vmatmul.mubr.f32.gmra.mrb[0].mxu0 %v803
      %v977 = vpop.f32.mrb[0].mxu0
      %v978 = vadd.f32 %v658, %v977
      %v979 = vpop.f32.mrb[0].mxu0
      %980 = vmatprep.mubr.f32.mxu0 0.0
      %981 = vmatmul.mubr.f32.gmra.mrb[0].mxu0 %v805
      %v982 = vpop.f32.mrb[0].mxu0
      %v983 = vadd.f32 %v663, %v982
      %v984 = vpop.f32.mrb[0].mxu0
      %985 = vmatprep.mubr.f32.mxu0 0.0
      %986 = vmatmul.mubr.f32.gmra.mrb[0].mxu0 %v807
      %v987 = vpop.f32.mrb[0].mxu0
      %v988 = vadd.f32 %v668, %v987
      %v989 = vpop.f32.mrb[0].mxu0
      %990 = vmatprep.mubr.f32.mxu0 0.0
      %991 = vmatmul.mubr.f32.gmra.mrb[0].mxu0 %v809
      %v992 = vpop.f32.mrb[0].mxu0
      %v993 = vadd.f32 %v673, %v992
      %v994 = vpop.f32.mrb[0].mxu0
      %995 = vmatprep.mubr.f32.mxu0 0.0
      %996 = vmatmul.mubr.f32.gmra.mrb[0].mxu0 %v811
      %v997 = vpop.f32.mrb[0].mxu0
      %v998 = vadd.f32 %v678, %v997
      %v999 = vpop.f32.mrb[0].mxu0
      %1000 = vmatprep.mubr.f32.mxu0 0.0
      %1001 = vmatmul.mubr.f32.gmra.mrb[0].mxu0 %v813
      %v1002 = vpop.f32.mrb[0].mxu0
      %v1003 = vadd.f32 %v683, %v1002
      %v1004 = vpop.f32.mrb[0].mxu0
      %1005 = vmatprep.mubr.f32.mxu0 0.0
      %1006 = vmatmul.mubr.f32.gmra.mrb[0].mxu0 %v815
      %v1007 = vpop.f32.mrb[0].mxu0
      %v1008 = vadd.f32 %v688, %v1007
      %v1009 = vpop.f32.mrb[0].mxu0
      %1010 = vmatprep.mubr.f32.mxu0 0.0
      %1011 = vmatmul.mubr.f32.gmra.mrb[0].mxu0 %v817
      %v1012 = vpop.f32.mrb[0].mxu0
      %v1013 = vadd.f32 %v693, %v1012
      %v1014 = vpop.f32.mrb[0].mxu0
      %1015 = vmatprep.mubr.f32.mxu0 0.0
      %1016 = vmatmul.mubr.f32.gmra.mrb[0].mxu0 %v819
      %v1017 = vpop.f32.mrb[0].mxu0
      %v1018 = vadd.f32 %v698, %v1017
      %v1019 = vpop.f32.mrb[0].mxu0
      %1020 = vmatprep.mubr.f32.mxu0 0.0
      %1021 = vmatmul.mubr.f32.gmra.mrb[0].mxu0 %v821
      %v1022 = vpop.f32.mrb[0].mxu0
      %v1023 = vadd.f32 %v703, %v1022
      %v1024 = vpop.f32.mrb[0].mxu0
      %1025 = vmatprep.mubr.f32.mxu0 0.0
      %1026 = vmatmul.mubr.f32.gmra.mrb[0].mxu0 %v823
      %v1027 = vpop.f32.mrb[0].mxu0
      %v1028 = vadd.f32 %v708, %v1027
      %v1029 = vpop.f32.mrb[0].mxu0
      %1030 = vmatprep.mubr.f32.mxu0 0.0
      %1031 = vmatmul.mubr.f32.gmra.mrb[0].mxu0 %v825
      %v1032 = vpop.f32.mrb[0].mxu0
      %v1033 = vadd.f32 %v713, %v1032
      %v1034 = vpop.f32.mrb[0].mxu0
      %1035 = vmatprep.mubr.f32.mxu0 0.0
      %1036 = vmatmul.mubr.f32.gmra.mrb[0].mxu0 %v827
      %v1037 = vpop.f32.mrb[0].mxu0
      %v1038 = vadd.f32 %v718, %v1037
      %v1039 = vpop.f32.mrb[0].mxu0
      %1040 = vmatprep.mubr.f32.mxu0 0.0
      %1041 = vmatmul.mubr.f32.gmra.mrb[0].mxu0 %v829
      %v1042 = vpop.f32.mrb[0].mxu0
      %v1043 = vadd.f32 %v723, %v1042
      %v1044 = vpop.f32.mrb[0].mxu0
      %1045 = vmatprep.mubr.f32.mxu0 0.0
      %1046 = vmatmul.mubr.f32.gmra.mrb[0].mxu0 %v831
      %v1047 = vpop.f32.mrb[0].mxu0
      %v1048 = vadd.f32 %v728, %v1047
      %v1049 = vpop.f32.mrb[0].mxu0
      %1050 = vmatprep.mubr.f32.mxu0 0.0
      %1051 = vmatmul.mubr.f32.gmra.mrb[0].mxu0 %v833
      %v1052 = vpop.f32.mrb[0].mxu0
      %v1053 = vadd.f32 %v733, %v1052
      %v1054 = vpop.f32.mrb[0].mxu0
      %1055 = vmatprep.mubr.f32.mxu0 0.0
      %1056 = vmatmul.mubr.f32.gmra.mrb[0].mxu0 %v835
      %v1057 = vpop.f32.mrb[0].mxu0
      %v1058 = vadd.f32 %v738, %v1057
      %v1059 = vpop.f32.mrb[0].mxu0
      %1060 = vmatprep.mubr.f32.mxu0 0.0
      %1061 = vmatmul.mubr.f32.gmra.mrb[0].mxu0 %v837
      %v1062 = vpop.f32.mrb[0].mxu0
      %v1063 = vadd.f32 %v743, %v1062
      %v1064 = vpop.f32.mrb[0].mxu0
      %1065 = vmatprep.mubr.f32.mxu0 0.0
      %1066 = vmatmul.mubr.f32.gmra.mrb[0].mxu0 %v839
      %v1067 = vpop.f32.mrb[0].mxu0
      %v1068 = vadd.f32 %v748, %v1067
      %v1069 = vpop.f32.mrb[0].mxu0
      %1070 = vmatprep.mubr.f32.mxu0 0.0
      %1071 = vmatmul.mubr.f32.gmra.mrb[0].mxu0 %v841
      %v1072 = vpop.f32.mrb[0].mxu0
      %v1073 = vadd.f32 %v753, %v1072
      %v1074 = vpop.f32.mrb[0].mxu0
      %1075 = vmatprep.mubr.f32.mxu0 0.0
      %1076 = vmatmul.mubr.f32.gmra.mrb[0].mxu0 %v843
      %v1077 = vpop.f32.mrb[0].mxu0
      %v1078 = vadd.f32 %v758, %v1077
      %v1079 = vpop.f32.mrb[0].mxu0
      %1080 = vmatprep.mubr.f32.mxu0 0.0
      %1081 = vmatmul.mubr.f32.gmra.mrb[0].mxu0 %v845
      %v1082 = vpop.f32.mrb[0].mxu0
      %v1083 = vadd.f32 %v763, %v1082
      %v1084 = vpop.f32.mrb[0].mxu0
      %1085 = vmatprep.mubr.f32.mxu0 0.0
      %1086 = vmatmul.mubr.f32.gmra.mrb[0].mxu0 %v847
      %v1087 = vpop.f32.mrb[0].mxu0
      %v1088 = vadd.f32 %v768, %v1087
      %v1089 = vpop.f32.mrb[0].mxu0
      %1090 = vmatprep.mubr.f32.mxu0 0.0
      %1091 = vmatmul.mubr.f32.gmra.mrb[0].mxu0 %v849
      %v1092 = vpop.f32.mrb[0].mxu0
      %v1093 = vadd.f32 %v773, %v1092
      %v1094 = vpop.f32.mrb[0].mxu0
      %1095 = vmatprep.mubr.f32.mxu0 0.0
      %1096 = vmatmul.mubr.f32.gmra.mrb[0].mxu0 %v851
      %v1097 = vpop.f32.mrb[0].mxu0
      %v1098 = vadd.f32 %v778, %v1097
      %v1099 = vpop.f32.mrb[0].mxu0
      %1100 = vdwg.mxu0
      %s1101 = scalar_lea.vmem %s1, 8
      %v1102 = vld [vmem:[%s1101] sm:$0xf]
      %vm1103 = vcmask 1045504
      %v1104 = vrot.slane %v225, 2
      %v1105 = vrot.slane %v226, 2
      %v1106 = vsel %vm1103, %v1104, %v1105
      %v1107 = vrot.slane %v227, 2
      %v1108 = vsel %vm1103, %v1105, %v1107
      %v1109 = vrot.slane %v228, 2
      %v1110 = vsel %vm1103, %v1107, %v1109
      %v1111 = vrot.slane %v229, 2
      %v1112 = vsel %vm1103, %v1109, %v1111
      %v1113 = vrot.slane %v230, 2
      %v1114 = vsel %vm1103, %v1111, %v1113
      %v1115 = vrot.slane %v231, 2
      %v1116 = vsel %vm1103, %v1113, %v1115
      %v1117 = vrot.slane %v232, 2
      %v1118 = vsel %vm1103, %v1115, %v1117
      %v1119 = vrot.slane %v233, 2
      %v1120 = vsel %vm1103, %v1117, %v1119
      %v1121 = vrot.slane %v234, 2
      %v1122 = vsel %vm1103, %v1119, %v1121
      %v1123 = vrot.slane %v235, 2
      %v1124 = vsel %vm1103, %v1121, %v1123
      %v1125 = vrot.slane %v236, 2
      %v1126 = vsel %vm1103, %v1123, %v1125
      %v1127 = vrot.slane %v237, 2
      %v1128 = vsel %vm1103, %v1125, %v1127
      %v1129 = vrot.slane %v238, 2
      %v1130 = vsel %vm1103, %v1127, %v1129
      %v1131 = vrot.slane %v239, 2
      %v1132 = vsel %vm1103, %v1129, %v1131
      %v1133 = vrot.slane %v240, 2
      %v1134 = vsel %vm1103, %v1131, %v1133
      %v1135 = vrot.slane %v241, 2
      %v1136 = vsel %vm1103, %v1133, %v1135
      %v1137 = vrot.slane %v242, 2
      %v1138 = vsel %vm1103, %v1135, %v1137
      %v1139 = vrot.slane %v243, 2
      %v1140 = vsel %vm1103, %v1137, %v1139
      %v1141 = vrot.slane %v244, 2
      %v1142 = vsel %vm1103, %v1139, %v1141
      %v1143 = vrot.slane %v245, 2
      %v1144 = vsel %vm1103, %v1141, %v1143
      %v1145 = vrot.slane %v246, 2
      %v1146 = vsel %vm1103, %v1143, %v1145
      %v1147 = vrot.slane %v247, 2
      %v1148 = vsel %vm1103, %v1145, %v1147
      %v1149 = vrot.slane %v248, 2
      %v1150 = vsel %vm1103, %v1147, %v1149
      %v1151 = vrot.slane %v249, 2
      %v1152 = vsel %vm1103, %v1149, %v1151
      %v1153 = vrot.slane %v250, 2
      %v1154 = vsel %vm1103, %v1151, %v1153
      %v1155 = vrot.slane %v251, 2
      %v1156 = vsel %vm1103, %v1153, %v1155
      %v1157 = vrot.slane %v252, 2
      %v1158 = vsel %vm1103, %v1155, %v1157
      %v1159 = vrot.slane %v253, 2
      %v1160 = vsel %vm1103, %v1157, %v1159
      %v1161 = vrot.slane %v254, 2
      %v1162 = vsel %vm1103, %v1159, %v1161
      %v1163 = vrot.slane %v255, 2
      %v1164 = vsel %vm1103, %v1161, %v1163
      %v1165 = vrot.slane %v256, 2
      %v1166 = vsel %vm1103, %v1163, %v1165
      %v1167 = vrot.slane %v257, 2
      %v1168 = vsel %vm1103, %v1165, %v1167
      %v1169 = vrot.slane %v258, 2
      %v1170 = vsel %vm1103, %v1167, %v1169
      %v1171 = vrot.slane %v259, 2
      %v1172 = vsel %vm1103, %v1169, %v1171
      %v1173 = vrot.slane %v260, 2
      %v1174 = vsel %vm1103, %v1171, %v1173
      %v1175 = vrot.slane %v261, 2
      %v1176 = vsel %vm1103, %v1173, %v1175
      %v1177 = vsel %vm459, %v1106, 0
      %v1179 = vsel %vm459, %v1108, 0
      %v1181 = vsel %vm459, %v1110, 0
      %v1183 = vsel %vm459, %v1112, 0
      %v1185 = vsel %vm459, %v1114, 0
      %v1187 = vsel %vm459, %v1116, 0
      %v1189 = vsel %vm459, %v1118, 0
      %v1191 = vsel %vm459, %v1120, 0
      %v1193 = vsel %vm459, %v1122, 0
      %v1195 = vsel %vm459, %v1124, 0
      %v1197 = vsel %vm459, %v1126, 0
      %v1199 = vsel %vm459, %v1128, 0
      %v1201 = vsel %vm459, %v1130, 0
      %v1203 = vsel %vm459, %v1132, 0
      %v1205 = vsel %vm459, %v1134, 0
      %v1207 = vsel %vm459, %v1136, 0
      %v1209 = vsel %vm459, %v1138, 0
      %v1211 = vsel %vm459, %v1140, 0
      %v1213 = vsel %vm459, %v1142, 0
      %v1215 = vsel %vm459, %v1144, 0
      %v1217 = vsel %vm459, %v1146, 0
      %v1219 = vsel %vm459, %v1148, 0
      %v1221 = vsel %vm459, %v1150, 0
      %v1223 = vsel %vm459, %v1152, 0
      %v1225 = vsel %vm459, %v1154, 0
      %v1227 = vsel %vm459, %v1156, 0
      %v1229 = vsel %vm459, %v1158, 0
      %v1231 = vsel %vm459, %v1160, 0
      %v1233 = vsel %vm459, %v1162, 0
      %v1235 = vsel %vm459, %v1164, 0
      %v1237 = vsel %vm459, %v1166, 0
      %v1239 = vsel %vm459, %v1168, 0
      %v1241 = vsel %vm459, %v1170, 0
      %v1243 = vsel %vm459, %v1172, 0
      %v1245 = vsel %vm459, %v1174, 0
      %v1247 = vsel %vm459, %v1176, 0
      %v1250 = vsel %vm532, %v1102, 0
      %1252 = vmatprep.subr.mxu0 0.0
      %1253 = vmatpush1.msra.mxu0 %v1250
      %1254 = vmatprep.subr.mxu0 0.0
      %1255 = vmatpush1.msra.mxu0 0.0
      %1256 = vmatprep.subr.mxu0 0.0
      %1257 = vmatpush1.msra.mxu0 0.0
      %1258 = vmatprep.subr.mxu0 0.0
      %1259 = vmatpush1.msra.mxu0 0.0
      %1260 = vmatprep.subr.mxu0 0.0
      %1261 = vmatpush1.msra.mxu0 0.0
      %1262 = vmatprep.subr.mxu0 0.0
      %1263 = vmatpush1.msra.mxu0 0.0
      %1264 = vmatprep.subr.mxu0 0.0
      %1265 = vmatpush1.msra.mxu0 0.0
      %1266 = vmatprep.subr.mxu0 0.0
      %1267 = vmatpush1.msra.mxu0 0.0
      %1268 = vmatprep.subr.mxu0 0.0
      %1269 = vmatpush1.msra.mxu0 0.0
      %1270 = vmatprep.subr.mxu0 0.0
      %1271 = vmatpush1.msra.mxu0 0.0
      %1272 = vmatprep.subr.mxu0 0.0
      %1273 = vmatpush1.msra.mxu0 0.0
      %1274 = vmatprep.subr.mxu0 0.0
      %1275 = vmatpush1.msra.mxu0 0.0
      %1276 = vmatprep.subr.mxu0 0.0
      %1277 = vmatpush1.msra.mxu0 0.0
      %1278 = vmatprep.subr.mxu0 0.0
      %1279 = vmatpush1.msra.mxu0 0.0
      %1280 = vmatprep.subr.mxu0 0.0
      %1281 = vmatpush1.msra.mxu0 0.0
      %1282 = vmatprep.subr.mxu0 0.0
      %1283 = vmatpush1.msra.mxu0 0.0
      %1284 = vmatprep.subr.mxu0 0.0
      %1285 = vmatpush1.msra.mxu0 0.0
      %1286 = vmatprep.subr.mxu0 0.0
      %1287 = vmatpush1.msra.mxu0 0.0
      %1288 = vmatprep.subr.mxu0 0.0
      %1289 = vmatpush1.msra.mxu0 0.0
      %1290 = vmatprep.subr.mxu0 0.0
      %1291 = vmatpush1.msra.mxu0 0.0
      %1292 = vmatprep.subr.mxu0 0.0
      %1293 = vmatpush1.msra.mxu0 0.0
      %1294 = vmatprep.subr.mxu0 0.0
      %1295 = vmatpush1.msra.mxu0 0.0
      %1296 = vmatprep.subr.mxu0 0.0
      %1297 = vmatpush1.msra.mxu0 0.0
      %1298 = vmatprep.subr.mxu0 0.0
      %1299 = vmatpush1.msra.mxu0 0.0
      %1300 = vmatprep.subr.mxu0 0.0
      %1301 = vmatpush1.msra.mxu0 0.0
      %1302 = vmatprep.subr.mxu0 0.0
      %1303 = vmatpush1.msra.mxu0 0.0
      %1304 = vmatprep.subr.mxu0 0.0
      %1305 = vmatpush1.msra.mxu0 0.0
      %1306 = vmatprep.subr.mxu0 0.0
      %1307 = vmatpush1.msra.mxu0 0.0
      %1308 = vmatprep.subr.mxu0 0.0
      %1309 = vmatpush1.msra.mxu0 0.0
      %1310 = vmatprep.subr.mxu0 0.0
      %1311 = vmatpush1.msra.mxu0 0.0
      %1312 = vmatprep.subr.mxu0 0.0
      %1313 = vmatpush1.msra.mxu0 0.0
      %1314 = vmatprep.subr.mxu0 0.0
      %1315 = vmatpush1.msra.mxu0 0.0
      %1316 = vmatprep.mubr.f32.mxu0 0.0
      %1317 = vmatmul.mubr.f32.gmra.mrb[0].mxu0 %v1177
      %v1318 = vpop.f32.mrb[0].mxu0
      %v1319 = vadd.f32 0.0, %v1318
      %v1320 = vpop.f32.mrb[0].mxu0
      %1321 = vmatprep.mubr.f32.mxu0 0.0
      %1322 = vmatmul.mubr.f32.gmra.mrb[0].mxu0 %v1179
      %v1323 = vpop.f32.mrb[0].mxu0
      %v1324 = vadd.f32 0.0, %v1323
      %v1325 = vpop.f32.mrb[0].mxu0
      %1326 = vmatprep.mubr.f32.mxu0 0.0
      %1327 = vmatmul.mubr.f32.gmra.mrb[0].mxu0 %v1181
      %v1328 = vpop.f32.mrb[0].mxu0
      %v1329 = vadd.f32 0.0, %v1328
      %v1330 = vpop.f32.mrb[0].mxu0
      %1331 = vmatprep.mubr.f32.mxu0 0.0
      %1332 = vmatmul.mubr.f32.gmra.mrb[0].mxu0 %v1183
      %v1333 = vpop.f32.mrb[0].mxu0
      %v1334 = vadd.f32 0.0, %v1333
      %v1335 = vpop.f32.mrb[0].mxu0
      %1336 = vmatprep.mubr.f32.mxu0 0.0
      %1337 = vmatmul.mubr.f32.gmra.mrb[0].mxu0 %v1185
      %v1338 = vpop.f32.mrb[0].mxu0
      %v1339 = vadd.f32 0.0, %v1338
      %v1340 = vpop.f32.mrb[0].mxu0
      %1341 = vmatprep.mubr.f32.mxu0 0.0
      %1342 = vmatmul.mubr.f32.gmra.mrb[0].mxu0 %v1187
      %v1343 = vpop.f32.mrb[0].mxu0
      %v1344 = vadd.f32 0.0, %v1343
      %v1345 = vpop.f32.mrb[0].mxu0
      %1346 = vmatprep.mubr.f32.mxu0 0.0
      %1347 = vmatmul.mubr.f32.gmra.mrb[0].mxu0 %v1189
      %v1348 = vpop.f32.mrb[0].mxu0
      %v1349 = vadd.f32 0.0, %v1348
      %v1350 = vpop.f32.mrb[0].mxu0
      %1351 = vmatprep.mubr.f32.mxu0 0.0
      %1352 = vmatmul.mubr.f32.gmra.mrb[0].mxu0 %v1191
      %v1353 = vpop.f32.mrb[0].mxu0
      %v1354 = vadd.f32 0.0, %v1353
      %v1355 = vpop.f32.mrb[0].mxu0
      %1356 = vmatprep.mubr.f32.mxu0 0.0
      %1357 = vmatmul.mubr.f32.gmra.mrb[0].mxu0 %v1193
      %v1358 = vpop.f32.mrb[0].mxu0
      %v1359 = vadd.f32 0.0, %v1358
      %v1360 = vpop.f32.mrb[0].mxu0
      %1361 = vmatprep.mubr.f32.mxu0 0.0
      %1362 = vmatmul.mubr.f32.gmra.mrb[0].mxu0 %v1195
      %v1363 = vpop.f32.mrb[0].mxu0
      %v1364 = vadd.f32 0.0, %v1363
      %v1365 = vpop.f32.mrb[0].mxu0
      %1366 = vmatprep.mubr.f32.mxu0 0.0
      %1367 = vmatmul.mubr.f32.gmra.mrb[0].mxu0 %v1197
      %v1368 = vpop.f32.mrb[0].mxu0
      %v1369 = vadd.f32 0.0, %v1368
      %v1370 = vpop.f32.mrb[0].mxu0
      %1371 = vmatprep.mubr.f32.mxu0 0.0
      %1372 = vmatmul.mubr.f32.gmra.mrb[0].mxu0 %v1199
      %v1373 = vpop.f32.mrb[0].mxu0
      %v1374 = vadd.f32 0.0, %v1373
      %v1375 = vpop.f32.mrb[0].mxu0
      %1376 = vmatprep.mubr.f32.mxu0 0.0
      %1377 = vmatmul.mubr.f32.gmra.mrb[0].mxu0 %v1201
      %v1378 = vpop.f32.mrb[0].mxu0
      %v1379 = vadd.f32 0.0, %v1378
      %v1380 = vpop.f32.mrb[0].mxu0
      %1381 = vmatprep.mubr.f32.mxu0 0.0
      %1382 = vmatmul.mubr.f32.gmra.mrb[0].mxu0 %v1203
      %v1383 = vpop.f32.mrb[0].mxu0
      %v1384 = vadd.f32 0.0, %v1383
      %v1385 = vpop.f32.mrb[0].mxu0
      %1386 = vmatprep.mubr.f32.mxu0 0.0
      %1387 = vmatmul.mubr.f32.gmra.mrb[0].mxu0 %v1205
      %v1388 = vpop.f32.mrb[0].mxu0
      %v1389 = vadd.f32 0.0, %v1388
      %v1390 = vpop.f32.mrb[0].mxu0
      %1391 = vmatprep.mubr.f32.mxu0 0.0
      %1392 = vmatmul.mubr.f32.gmra.mrb[0].mxu0 %v1207
      %v1393 = vpop.f32.mrb[0].mxu0
      %v1394 = vadd.f32 0.0, %v1393
      %v1395 = vpop.f32.mrb[0].mxu0
      %1396 = vmatprep.mubr.f32.mxu0 0.0
      %1397 = vmatmul.mubr.f32.gmra.mrb[0].mxu0 %v1209
      %v1398 = vpop.f32.mrb[0].mxu0
      %v1399 = vadd.f32 0.0, %v1398
      %v1400 = vpop.f32.mrb[0].mxu0
      %1401 = vmatprep.mubr.f32.mxu0 0.0
      %1402 = vmatmul.mubr.f32.gmra.mrb[0].mxu0 %v1211
      %v1403 = vpop.f32.mrb[0].mxu0
      %v1404 = vadd.f32 0.0, %v1403
      %v1405 = vpop.f32.mrb[0].mxu0
      %1406 = vmatprep.mubr.f32.mxu0 0.0
      %1407 = vmatmul.mubr.f32.gmra.mrb[0].mxu0 %v1213
      %v1408 = vpop.f32.mrb[0].mxu0
      %v1409 = vadd.f32 0.0, %v1408
      %v1410 = vpop.f32.mrb[0].mxu0
      %1411 = vmatprep.mubr.f32.mxu0 0.0
      %1412 = vmatmul.mubr.f32.gmra.mrb[0].mxu0 %v1215
      %v1413 = vpop.f32.mrb[0].mxu0
      %v1414 = vadd.f32 0.0, %v1413
      %v1415 = vpop.f32.mrb[0].mxu0
      %1416 = vmatprep.mubr.f32.mxu0 0.0
      %1417 = vmatmul.mubr.f32.gmra.mrb[0].mxu0 %v1217
      %v1418 = vpop.f32.mrb[0].mxu0
      %v1419 = vadd.f32 0.0, %v1418
      %v1420 = vpop.f32.mrb[0].mxu0
      %1421 = vmatprep.mubr.f32.mxu0 0.0
      %1422 = vmatmul.mubr.f32.gmra.mrb[0].mxu0 %v1219
      %v1423 = vpop.f32.mrb[0].mxu0
      %v1424 = vadd.f32 0.0, %v1423
      %v1425 = vpop.f32.mrb[0].mxu0
      %1426 = vmatprep.mubr.f32.mxu0 0.0
      %1427 = vmatmul.mubr.f32.gmra.mrb[0].mxu0 %v1221
      %v1428 = vpop.f32.mrb[0].mxu0
      %v1429 = vadd.f32 0.0, %v1428
      %v1430 = vpop.f32.mrb[0].mxu0
      %1431 = vmatprep.mubr.f32.mxu0 0.0
      %1432 = vmatmul.mubr.f32.gmra.mrb[0].mxu0 %v1223
      %v1433 = vpop.f32.mrb[0].mxu0
      %v1434 = vadd.f32 0.0, %v1433
      %v1435 = vpop.f32.mrb[0].mxu0
      %1436 = vmatprep.mubr.f32.mxu0 0.0
      %1437 = vmatmul.mubr.f32.gmra.mrb[0].mxu0 %v1225
      %v1438 = vpop.f32.mrb[0].mxu0
      %v1439 = vadd.f32 0.0, %v1438
      %v1440 = vpop.f32.mrb[0].mxu0
      %1441 = vmatprep.mubr.f32.mxu0 0.0
      %1442 = vmatmul.mubr.f32.gmra.mrb[0].mxu0 %v1227
      %v1443 = vpop.f32.mrb[0].mxu0
      %v1444 = vadd.f32 0.0, %v1443
      %v1445 = vpop.f32.mrb[0].mxu0
      %1446 = vmatprep.mubr.f32.mxu0 0.0
      %1447 = vmatmul.mubr.f32.gmra.mrb[0].mxu0 %v1229
      %v1448 = vpop.f32.mrb[0].mxu0
      %v1449 = vadd.f32 0.0, %v1448
      %v1450 = vpop.f32.mrb[0].mxu0
      %1451 = vmatprep.mubr.f32.mxu0 0.0
      %1452 = vmatmul.mubr.f32.gmra.mrb[0].mxu0 %v1231
      %v1453 = vpop.f32.mrb[0].mxu0
      %v1454 = vadd.f32 0.0, %v1453
      %v1455 = vpop.f32.mrb[0].mxu0
      %1456 = vmatprep.mubr.f32.mxu0 0.0
      %1457 = vmatmul.mubr.f32.gmra.mrb[0].mxu0 %v1233
      %v1458 = vpop.f32.mrb[0].mxu0
      %v1459 = vadd.f32 0.0, %v1458
      %v1460 = vpop.f32.mrb[0].mxu0
      %1461 = vmatprep.mubr.f32.mxu0 0.0
      %1462 = vmatmul.mubr.f32.gmra.mrb[0].mxu0 %v1235
      %v1463 = vpop.f32.mrb[0].mxu0
      %v1464 = vadd.f32 0.0, %v1463
      %v1465 = vpop.f32.mrb[0].mxu0
      %1466 = vmatprep.mubr.f32.mxu0 0.0
      %1467 = vmatmul.mubr.f32.gmra.mrb[0].mxu0 %v1237
      %v1468 = vpop.f32.mrb[0].mxu0
      %v1469 = vadd.f32 0.0, %v1468
      %v1470 = vpop.f32.mrb[0].mxu0
      %1471 = vmatprep.mubr.f32.mxu0 0.0
      %1472 = vmatmul.mubr.f32.gmra.mrb[0].mxu0 %v1239
      %v1473 = vpop.f32.mrb[0].mxu0
      %v1474 = vadd.f32 0.0, %v1473
      %v1475 = vpop.f32.mrb[0].mxu0
      %1476 = vmatprep.mubr.f32.mxu0 0.0
      %1477 = vmatmul.mubr.f32.gmra.mrb[0].mxu0 %v1241
      %v1478 = vpop.f32.mrb[0].mxu0
      %v1479 = vadd.f32 0.0, %v1478
      %v1480 = vpop.f32.mrb[0].mxu0
      %1481 = vmatprep.mubr.f32.mxu0 0.0
      %1482 = vmatmul.mubr.f32.gmra.mrb[0].mxu0 %v1243
      %v1483 = vpop.f32.mrb[0].mxu0
      %v1484 = vadd.f32 0.0, %v1483
      %v1485 = vpop.f32.mrb[0].mxu0
      %1486 = vmatprep.mubr.f32.mxu0 0.0
      %1487 = vmatmul.mubr.f32.gmra.mrb[0].mxu0 %v1245
      %v1488 = vpop.f32.mrb[0].mxu0
      %v1489 = vadd.f32 0.0, %v1488
      %v1490 = vpop.f32.mrb[0].mxu0
      %1491 = vmatprep.mubr.f32.mxu0 0.0
      %1492 = vmatmul.mubr.f32.gmra.mrb[0].mxu0 %v1247
      %v1493 = vpop.f32.mrb[0].mxu0
      %v1494 = vadd.f32 0.0, %v1493
      %v1495 = vpop.f32.mrb[0].mxu0
      %1496 = vdwg.mxu0
      %v1497 = vadd.f32 %v923, %v1319
      %v1498 = vadd.f32 %v928, %v1324
      %v1499 = vadd.f32 %v933, %v1329
      %v1500 = vadd.f32 %v938, %v1334
      %v1501 = vadd.f32 %v943, %v1339
      %v1502 = vadd.f32 %v948, %v1344
      %v1503 = vadd.f32 %v953, %v1349
      %v1504 = vadd.f32 %v958, %v1354
      %v1505 = vadd.f32 %v963, %v1359
      %v1506 = vadd.f32 %v968, %v1364
      %v1507 = vadd.f32 %v973, %v1369
      %v1508 = vadd.f32 %v978, %v1374
      %v1509 = vadd.f32 %v983, %v1379
      %v1510 = vadd.f32 %v988, %v1384
      %v1511 = vadd.f32 %v993, %v1389
      %v1512 = vadd.f32 %v998, %v1394
      %v1513 = vadd.f32 %v1003, %v1399
      %v1514 = vadd.f32 %v1008, %v1404
      %v1515 = vadd.f32 %v1013, %v1409
      %v1516 = vadd.f32 %v1018, %v1414
      %v1517 = vadd.f32 %v1023, %v1419
      %v1518 = vadd.f32 %v1028, %v1424
      %v1519 = vadd.f32 %v1033, %v1429
      %v1520 = vadd.f32 %v1038, %v1434
      %v1521 = vadd.f32 %v1043, %v1439
      %v1522 = vadd.f32 %v1048, %v1444
      %v1523 = vadd.f32 %v1053, %v1449
      %v1524 = vadd.f32 %v1058, %v1454
      %v1525 = vadd.f32 %v1063, %v1459
      %v1526 = vadd.f32 %v1068, %v1464
      %v1527 = vadd.f32 %v1073, %v1469
      %v1528 = vadd.f32 %v1078, %v1474
      %v1529 = vadd.f32 %v1083, %v1479
      %v1530 = vadd.f32 %v1088, %v1484
      %v1531 = vadd.f32 %v1093, %v1489
      %v1532 = vadd.f32 %v1098, %v1494
      %s1533 = scalar_lea.vmem %s1, 12
      %v1534 = vld [vmem:[%s1533] sm:$0xf]
      %v1537 = vrot.slane %v262, 2
      %v1538 = vsel %vm1103, %v1175, %v1537
      %v1539 = vrot.slane %v263, 2
      %v1540 = vsel %vm1103, %v1537, %v1539
      %v1541 = vsel %vm459, %v1538, 0
      %v1543 = vsel %vm459, %v1540, 0
      %v1546 = vsel %vm532, %v1534, 0
      %1548 = vmatprep.subr.mxu0 0.0
      %1549 = vmatpush1.msra.mxu0 %v1546
      %1550 = vmatprep.subr.mxu0 0.0
      %1551 = vmatpush1.msra.mxu0 0.0
      %1552 = vmatprep.subr.mxu0 0.0
      %1553 = vmatpush1.msra.mxu0 0.0
      %1554 = vmatprep.subr.mxu0 0.0
      %1555 = vmatpush1.msra.mxu0 0.0
      %1556 = vmatprep.subr.mxu0 0.0
      %1557 = vmatpush1.msra.mxu0 0.0
      %1558 = vmatprep.subr.mxu0 0.0
      %1559 = vmatpush1.msra.mxu0 0.0
      %1560 = vmatprep.subr.mxu0 0.0
      %1561 = vmatpush1.msra.mxu0 0.0
      %1562 = vmatprep.subr.mxu0 0.0
      %1563 = vmatpush1.msra.mxu0 0.0
      %1564 = vmatprep.subr.mxu0 0.0
      %1565 = vmatpush1.msra.mxu0 0.0
      %1566 = vmatprep.subr.mxu0 0.0
      %1567 = vmatpush1.msra.mxu0 0.0
      %1568 = vmatprep.subr.mxu0 0.0
      %1569 = vmatpush1.msra.mxu0 0.0
      %1570 = vmatprep.subr.mxu0 0.0
      %1571 = vmatpush1.msra.mxu0 0.0
      %1572 = vmatprep.subr.mxu0 0.0
      %1573 = vmatpush1.msra.mxu0 0.0
      %1574 = vmatprep.subr.mxu0 0.0
      %1575 = vmatpush1.msra.mxu0 0.0
      %1576 = vmatprep.subr.mxu0 0.0
      %1577 = vmatpush1.msra.mxu0 0.0
      %1578 = vmatprep.subr.mxu0 0.0
      %1579 = vmatpush1.msra.mxu0 0.0
      %1580 = vmatprep.subr.mxu0 0.0
      %1581 = vmatpush1.msra.mxu0 0.0
      %1582 = vmatprep.subr.mxu0 0.0
      %1583 = vmatpush1.msra.mxu0 0.0
      %1584 = vmatprep.subr.mxu0 0.0
      %1585 = vmatpush1.msra.mxu0 0.0
      %1586 = vmatprep.subr.mxu0 0.0
      %1587 = vmatpush1.msra.mxu0 0.0
      %1588 = vmatprep.subr.mxu0 0.0
      %1589 = vmatpush1.msra.mxu0 0.0
      %1590 = vmatprep.subr.mxu0 0.0
      %1591 = vmatpush1.msra.mxu0 0.0
      %1592 = vmatprep.subr.mxu0 0.0
      %1593 = vmatpush1.msra.mxu0 0.0
      %1594 = vmatprep.subr.mxu0 0.0
      %1595 = vmatpush1.msra.mxu0 0.0
      %1596 = vmatprep.subr.mxu0 0.0
      %1597 = vmatpush1.msra.mxu0 0.0
      %1598 = vmatprep.subr.mxu0 0.0
      %1599 = vmatpush1.msra.mxu0 0.0
      %1600 = vmatprep.subr.mxu0 0.0
      %1601 = vmatpush1.msra.mxu0 0.0
      %1602 = vmatprep.subr.mxu0 0.0
      %1603 = vmatpush1.msra.mxu0 0.0
      %1604 = vmatprep.subr.mxu0 0.0
      %1605 = vmatpush1.msra.mxu0 0.0
      %1606 = vmatprep.subr.mxu0 0.0
      %1607 = vmatpush1.msra.mxu0 0.0
      %1608 = vmatprep.subr.mxu0 0.0
      %1609 = vmatpush1.msra.mxu0 0.0
      %1610 = vmatprep.subr.mxu0 0.0
      %1611 = vmatpush1.msra.mxu0 0.0
      %1612 = vmatprep.mubr.f32.mxu0 0.0
      %1613 = vmatmul.mubr.f32.gmra.mrb[0].mxu0 %v1181
      %v1614 = vpop.f32.mrb[0].mxu0
      %v1615 = vadd.f32 0.0, %v1614
      %v1616 = vpop.f32.mrb[0].mxu0
      %1617 = vmatprep.mubr.f32.mxu0 0.0
      %1618 = vmatmul.mubr.f32.gmra.mrb[0].mxu0 %v1183
      %v1619 = vpop.f32.mrb[0].mxu0
      %v1620 = vadd.f32 0.0, %v1619
      %v1621 = vpop.f32.mrb[0].mxu0
      %1622 = vmatprep.mubr.f32.mxu0 0.0
      %1623 = vmatmul.mubr.f32.gmra.mrb[0].mxu0 %v1185
      %v1624 = vpop.f32.mrb[0].mxu0
      %v1625 = vadd.f32 0.0, %v1624
      %v1626 = vpop.f32.mrb[0].mxu0
      %1627 = vmatprep.mubr.f32.mxu0 0.0
      %1628 = vmatmul.mubr.f32.gmra.mrb[0].mxu0 %v1187
      %v1629 = vpop.f32.mrb[0].mxu0
      %v1630 = vadd.f32 0.0, %v1629
      %v1631 = vpop.f32.mrb[0].mxu0
      %1632 = vmatprep.mubr.f32.mxu0 0.0
      %1633 = vmatmul.mubr.f32.gmra.mrb[0].mxu0 %v1189
      %v1634 = vpop.f32.mrb[0].mxu0
      %v1635 = vadd.f32 0.0, %v1634
      %v1636 = vpop.f32.mrb[0].mxu0
      %1637 = vmatprep.mubr.f32.mxu0 0.0
      %1638 = vmatmul.mubr.f32.gmra.mrb[0].mxu0 %v1191
      %v1639 = vpop.f32.mrb[0].mxu0
      %v1640 = vadd.f32 0.0, %v1639
      %v1641 = vpop.f32.mrb[0].mxu0
      %1642 = vmatprep.mubr.f32.mxu0 0.0
      %1643 = vmatmul.mubr.f32.gmra.mrb[0].mxu0 %v1193
      %v1644 = vpop.f32.mrb[0].mxu0
      %v1645 = vadd.f32 0.0, %v1644
      %v1646 = vpop.f32.mrb[0].mxu0
      %1647 = vmatprep.mubr.f32.mxu0 0.0
      %1648 = vmatmul.mubr.f32.gmra.mrb[0].mxu0 %v1195
      %v1649 = vpop.f32.mrb[0].mxu0
      %v1650 = vadd.f32 0.0, %v1649
      %v1651 = vpop.f32.mrb[0].mxu0
      %1652 = vmatprep.mubr.f32.mxu0 0.0
      %1653 = vmatmul.mubr.f32.gmra.mrb[0].mxu0 %v1197
      %v1654 = vpop.f32.mrb[0].mxu0
      %v1655 = vadd.f32 0.0, %v1654
      %v1656 = vpop.f32.mrb[0].mxu0
      %1657 = vmatprep.mubr.f32.mxu0 0.0
      %1658 = vmatmul.mubr.f32.gmra.mrb[0].mxu0 %v1199
      %v1659 = vpop.f32.mrb[0].mxu0
      %v1660 = vadd.f32 0.0, %v1659
      %v1661 = vpop.f32.mrb[0].mxu0
      %1662 = vmatprep.mubr.f32.mxu0 0.0
      %1663 = vmatmul.mubr.f32.gmra.mrb[0].mxu0 %v1201
      %v1664 = vpop.f32.mrb[0].mxu0
      %v1665 = vadd.f32 0.0, %v1664
      %v1666 = vpop.f32.mrb[0].mxu0
      %1667 = vmatprep.mubr.f32.mxu0 0.0
      %1668 = vmatmul.mubr.f32.gmra.mrb[0].mxu0 %v1203
      %v1669 = vpop.f32.mrb[0].mxu0
      %v1670 = vadd.f32 0.0, %v1669
      %v1671 = vpop.f32.mrb[0].mxu0
      %1672 = vmatprep.mubr.f32.mxu0 0.0
      %1673 = vmatmul.mubr.f32.gmra.mrb[0].mxu0 %v1205
      %v1674 = vpop.f32.mrb[0].mxu0
      %v1675 = vadd.f32 0.0, %v1674
      %v1676 = vpop.f32.mrb[0].mxu0
      %1677 = vmatprep.mubr.f32.mxu0 0.0
      %1678 = vmatmul.mubr.f32.gmra.mrb[0].mxu0 %v1207
      %v1679 = vpop.f32.mrb[0].mxu0
      %v1680 = vadd.f32 0.0, %v1679
      %v1681 = vpop.f32.mrb[0].mxu0
      %1682 = vmatprep.mubr.f32.mxu0 0.0
      %1683 = vmatmul.mubr.f32.gmra.mrb[0].mxu0 %v1209
      %v1684 = vpop.f32.mrb[0].mxu0
      %v1685 = vadd.f32 0.0, %v1684
      %v1686 = vpop.f32.mrb[0].mxu0
      %1687 = vmatprep.mubr.f32.mxu0 0.0
      %1688 = vmatmul.mubr.f32.gmra.mrb[0].mxu0 %v1211
      %v1689 = vpop.f32.mrb[0].mxu0
      %v1690 = vadd.f32 0.0, %v1689
      %v1691 = vpop.f32.mrb[0].mxu0
      %1692 = vmatprep.mubr.f32.mxu0 0.0
      %1693 = vmatmul.mubr.f32.gmra.mrb[0].mxu0 %v1213
      %v1694 = vpop.f32.mrb[0].mxu0
      %v1695 = vadd.f32 0.0, %v1694
      %v1696 = vpop.f32.mrb[0].mxu0
      %1697 = vmatprep.mubr.f32.mxu0 0.0
      %1698 = vmatmul.mubr.f32.gmra.mrb[0].mxu0 %v1215
      %v1699 = vpop.f32.mrb[0].mxu0
      %v1700 = vadd.f32 0.0, %v1699
      %v1701 = vpop.f32.mrb[0].mxu0
      %1702 = vmatprep.mubr.f32.mxu0 0.0
      %1703 = vmatmul.mubr.f32.gmra.mrb[0].mxu0 %v1217
      %v1704 = vpop.f32.mrb[0].mxu0
      %v1705 = vadd.f32 0.0, %v1704
      %v1706 = vpop.f32.mrb[0].mxu0
      %1707 = vmatprep.mubr.f32.mxu0 0.0
      %1708 = vmatmul.mubr.f32.gmra.mrb[0].mxu0 %v1219
      %v1709 = vpop.f32.mrb[0].mxu0
      %v1710 = vadd.f32 0.0, %v1709
      %v1711 = vpop.f32.mrb[0].mxu0
      %1712 = vmatprep.mubr.f32.mxu0 0.0
      %1713 = vmatmul.mubr.f32.gmra.mrb[0].mxu0 %v1221
      %v1714 = vpop.f32.mrb[0].mxu0
      %v1715 = vadd.f32 0.0, %v1714
      %v1716 = vpop.f32.mrb[0].mxu0
      %1717 = vmatprep.mubr.f32.mxu0 0.0
      %1718 = vmatmul.mubr.f32.gmra.mrb[0].mxu0 %v1223
      %v1719 = vpop.f32.mrb[0].mxu0
      %v1720 = vadd.f32 0.0, %v1719
      %v1721 = vpop.f32.mrb[0].mxu0
      %1722 = vmatprep.mubr.f32.mxu0 0.0
      %1723 = vmatmul.mubr.f32.gmra.mrb[0].mxu0 %v1225
      %v1724 = vpop.f32.mrb[0].mxu0
      %v1725 = vadd.f32 0.0, %v1724
      %v1726 = vpop.f32.mrb[0].mxu0
      %1727 = vmatprep.mubr.f32.mxu0 0.0
      %1728 = vmatmul.mubr.f32.gmra.mrb[0].mxu0 %v1227
      %v1729 = vpop.f32.mrb[0].mxu0
      %v1730 = vadd.f32 0.0, %v1729
      %v1731 = vpop.f32.mrb[0].mxu0
      %1732 = vmatprep.mubr.f32.mxu0 0.0
      %1733 = vmatmul.mubr.f32.gmra.mrb[0].mxu0 %v1229
      %v1734 = vpop.f32.mrb[0].mxu0
      %v1735 = vadd.f32 0.0, %v1734
      %v1736 = vpop.f32.mrb[0].mxu0
      %1737 = vmatprep.mubr.f32.mxu0 0.0
      %1738 = vmatmul.mubr.f32.gmra.mrb[0].mxu0 %v1231
      %v1739 = vpop.f32.mrb[0].mxu0
      %v1740 = vadd.f32 0.0, %v1739
      %v1741 = vpop.f32.mrb[0].mxu0
      %1742 = vmatprep.mubr.f32.mxu0 0.0
      %1743 = vmatmul.mubr.f32.gmra.mrb[0].mxu0 %v1233
      %v1744 = vpop.f32.mrb[0].mxu0
      %v1745 = vadd.f32 0.0, %v1744
      %v1746 = vpop.f32.mrb[0].mxu0
      %1747 = vmatprep.mubr.f32.mxu0 0.0
      %1748 = vmatmul.mubr.f32.gmra.mrb[0].mxu0 %v1235
      %v1749 = vpop.f32.mrb[0].mxu0
      %v1750 = vadd.f32 0.0, %v1749
      %v1751 = vpop.f32.mrb[0].mxu0
      %1752 = vmatprep.mubr.f32.mxu0 0.0
      %1753 = vmatmul.mubr.f32.gmra.mrb[0].mxu0 %v1237
      %v1754 = vpop.f32.mrb[0].mxu0
      %v1755 = vadd.f32 0.0, %v1754
      %v1756 = vpop.f32.mrb[0].mxu0
      %1757 = vmatprep.mubr.f32.mxu0 0.0
      %1758 = vmatmul.mubr.f32.gmra.mrb[0].mxu0 %v1239
      %v1759 = vpop.f32.mrb[0].mxu0
      %v1760 = vadd.f32 0.0, %v1759
      %v1761 = vpop.f32.mrb[0].mxu0
      %1762 = vmatprep.mubr.f32.mxu0 0.0
      %1763 = vmatmul.mubr.f32.gmra.mrb[0].mxu0 %v1241
      %v1764 = vpop.f32.mrb[0].mxu0
      %v1765 = vadd.f32 0.0, %v1764
      %v1766 = vpop.f32.mrb[0].mxu0
      %1767 = vmatprep.mubr.f32.mxu0 0.0
      %1768 = vmatmul.mubr.f32.gmra.mrb[0].mxu0 %v1243
      %v1769 = vpop.f32.mrb[0].mxu0
      %v1770 = vadd.f32 0.0, %v1769
      %v1771 = vpop.f32.mrb[0].mxu0
      %1772 = vmatprep.mubr.f32.mxu0 0.0
      %1773 = vmatmul.mubr.f32.gmra.mrb[0].mxu0 %v1245
      %v1774 = vpop.f32.mrb[0].mxu0
      %v1775 = vadd.f32 0.0, %v1774
      %v1776 = vpop.f32.mrb[0].mxu0
      %1777 = vmatprep.mubr.f32.mxu0 0.0
      %1778 = vmatmul.mubr.f32.gmra.mrb[0].mxu0 %v1247
      %v1779 = vpop.f32.mrb[0].mxu0
      %v1780 = vadd.f32 0.0, %v1779
      %v1781 = vpop.f32.mrb[0].mxu0
      %1782 = vmatprep.mubr.f32.mxu0 0.0
      %1783 = vmatmul.mubr.f32.gmra.mrb[0].mxu0 %v1541
      %v1784 = vpop.f32.mrb[0].mxu0
      %v1785 = vadd.f32 0.0, %v1784
      %v1786 = vpop.f32.mrb[0].mxu0
      %1787 = vmatprep.mubr.f32.mxu0 0.0
      %1788 = vmatmul.mubr.f32.gmra.mrb[0].mxu0 %v1543
      %v1789 = vpop.f32.mrb[0].mxu0
      %v1790 = vadd.f32 0.0, %v1789
      %v1791 = vpop.f32.mrb[0].mxu0
      %1792 = vdwg.mxu0
      %v1793 = vadd.f32 %v1497, %v1615
      %v1794 = vadd.f32 %v1498, %v1620
      %v1795 = vadd.f32 %v1499, %v1625
      %v1796 = vadd.f32 %v1500, %v1630
      %v1797 = vadd.f32 %v1501, %v1635
      %v1798 = vadd.f32 %v1502, %v1640
      %v1799 = vadd.f32 %v1503, %v1645
      %v1800 = vadd.f32 %v1504, %v1650
      %v1801 = vadd.f32 %v1505, %v1655
      %v1802 = vadd.f32 %v1506, %v1660
      %v1803 = vadd.f32 %v1507, %v1665
      %v1804 = vadd.f32 %v1508, %v1670
      %v1805 = vadd.f32 %v1509, %v1675
      %v1806 = vadd.f32 %v1510, %v1680
      %v1807 = vadd.f32 %v1511, %v1685
      %v1808 = vadd.f32 %v1512, %v1690
      %v1809 = vadd.f32 %v1513, %v1695
      %v1810 = vadd.f32 %v1514, %v1700
      %v1811 = vadd.f32 %v1515, %v1705
      %v1812 = vadd.f32 %v1516, %v1710
      %v1813 = vadd.f32 %v1517, %v1715
      %v1814 = vadd.f32 %v1518, %v1720
      %v1815 = vadd.f32 %v1519, %v1725
      %v1816 = vadd.f32 %v1520, %v1730
      %v1817 = vadd.f32 %v1521, %v1735
      %v1818 = vadd.f32 %v1522, %v1740
      %v1819 = vadd.f32 %v1523, %v1745
      %v1820 = vadd.f32 %v1524, %v1750
      %v1821 = vadd.f32 %v1525, %v1755
      %v1822 = vadd.f32 %v1526, %v1760
      %v1823 = vadd.f32 %v1527, %v1765
      %v1824 = vadd.f32 %v1528, %v1770
      %v1825 = vadd.f32 %v1529, %v1775
      %v1826 = vadd.f32 %v1530, %v1780
      %v1827 = vadd.f32 %v1531, %v1785
      %v1828 = vadd.f32 %v1532, %v1790
      %s1829 = scalar_lea.vmem %s1, 16
      %v1830 = vld [vmem:[%s1829] sm:$0xf]
      %vm1831 = vcmask 1044480
      %v1832 = vrot.slane %v227, 3
      %v1833 = vrot.slane %v228, 3
      %v1834 = vsel %vm1831, %v1832, %v1833
      %v1835 = vrot.slane %v229, 3
      %v1836 = vsel %vm1831, %v1833, %v1835
      %v1837 = vrot.slane %v230, 3
      %v1838 = vsel %vm1831, %v1835, %v1837
      %v1839 = vrot.slane %v231, 3
      %v1840 = vsel %vm1831, %v1837, %v1839
      %v1841 = vrot.slane %v232, 3
      %v1842 = vsel %vm1831, %v1839, %v1841
      %v1843 = vrot.slane %v233, 3
      %v1844 = vsel %vm1831, %v1841, %v1843
      %v1845 = vrot.slane %v234, 3
      %v1846 = vsel %vm1831, %v1843, %v1845
      %v1847 = vrot.slane %v235, 3
      %v1848 = vsel %vm1831, %v1845, %v1847
      %v1849 = vrot.slane %v236, 3
      %v1850 = vsel %vm1831, %v1847, %v1849
      %v1851 = vrot.slane %v237, 3
      %v1852 = vsel %vm1831, %v1849, %v1851
      %v1853 = vrot.slane %v238, 3
      %v1854 = vsel %vm1831, %v1851, %v1853
      %v1855 = vrot.slane %v239, 3
      %v1856 = vsel %vm1831, %v1853, %v1855
      %v1857 = vrot.slane %v240, 3
      %v1858 = vsel %vm1831, %v1855, %v1857
      %v1859 = vrot.slane %v241, 3
      %v1860 = vsel %vm1831, %v1857, %v1859
      %v1861 = vrot.slane %v242, 3
      %v1862 = vsel %vm1831, %v1859, %v1861
      %v1863 = vrot.slane %v243, 3
      %v1864 = vsel %vm1831, %v1861, %v1863
      %v1865 = vrot.slane %v244, 3
      %v1866 = vsel %vm1831, %v1863, %v1865
      %v1867 = vrot.slane %v245, 3
      %v1868 = vsel %vm1831, %v1865, %v1867
      %v1869 = vrot.slane %v246, 3
      %v1870 = vsel %vm1831, %v1867, %v1869
      %v1871 = vrot.slane %v247, 3
      %v1872 = vsel %vm1831, %v1869, %v1871
      %v1873 = vrot.slane %v248, 3
      %v1874 = vsel %vm1831, %v1871, %v1873
      %v1875 = vrot.slane %v249, 3
      %v1876 = vsel %vm1831, %v1873, %v1875
      %v1877 = vrot.slane %v250, 3
      %v1878 = vsel %vm1831, %v1875, %v1877
      %v1879 = vrot.slane %v251, 3
      %v1880 = vsel %vm1831, %v1877, %v1879
      %v1881 = vrot.slane %v252, 3
      %v1882 = vsel %vm1831, %v1879, %v1881
      %v1883 = vrot.slane %v253, 3
      %v1884 = vsel %vm1831, %v1881, %v1883
      %v1885 = vrot.slane %v254, 3
      %v1886 = vsel %vm1831, %v1883, %v1885
      %v1887 = vrot.slane %v255, 3
      %v1888 = vsel %vm1831, %v1885, %v1887
      %v1889 = vrot.slane %v256, 3
      %v1890 = vsel %vm1831, %v1887, %v1889
      %v1891 = vrot.slane %v257, 3
      %v1892 = vsel %vm1831, %v1889, %v1891
      %v1893 = vrot.slane %v258, 3
      %v1894 = vsel %vm1831, %v1891, %v1893
      %v1895 = vrot.slane %v259, 3
      %v1896 = vsel %vm1831, %v1893, %v1895
      %v1897 = vrot.slane %v260, 3
      %v1898 = vsel %vm1831, %v1895, %v1897
      %v1899 = vrot.slane %v261, 3
      %v1900 = vsel %vm1831, %v1897, %v1899
      %v1901 = vrot.slane %v262, 3
      %v1902 = vsel %vm1831, %v1899, %v1901
      %v1903 = vrot.slane %v263, 3
      %v1904 = vsel %vm1831, %v1901, %v1903
      %v1905 = vsel %vm459, %v1834, 0
      %v1907 = vsel %vm459, %v1836, 0
      %v1909 = vsel %vm459, %v1838, 0
      %v1911 = vsel %vm459, %v1840, 0
      %v1913 = vsel %vm459, %v1842, 0
      %v1915 = vsel %vm459, %v1844, 0
      %v1917 = vsel %vm459, %v1846, 0
      %v1919 = vsel %vm459, %v1848, 0
      %v1921 = vsel %vm459, %v1850, 0
      %v1923 = vsel %vm459, %v1852, 0
      %v1925 = vsel %vm459, %v1854, 0
      %v1927 = vsel %vm459, %v1856, 0
      %v1929 = vsel %vm459, %v1858, 0
      %v1931 = vsel %vm459, %v1860, 0
      %v1933 = vsel %vm459, %v1862, 0
      %v1935 = vsel %vm459, %v1864, 0
      %v1937 = vsel %vm459, %v1866, 0
      %v1939 = vsel %vm459, %v1868, 0
      %v1941 = vsel %vm459, %v1870, 0
      %v1943 = vsel %vm459, %v1872, 0
      %v1945 = vsel %vm459, %v1874, 0
      %v1947 = vsel %vm459, %v1876, 0
      %v1949 = vsel %vm459, %v1878, 0
      %v1951 = vsel %vm459, %v1880, 0
      %v1953 = vsel %vm459, %v1882, 0
      %v1955 = vsel %vm459, %v1884, 0
      %v1957 = vsel %vm459, %v1886, 0
      %v1959 = vsel %vm459, %v1888, 0
      %v1961 = vsel %vm459, %v1890, 0
      %v1963 = vsel %vm459, %v1892, 0
      %v1965 = vsel %vm459, %v1894, 0
      %v1967 = vsel %vm459, %v1896, 0
      %v1969 = vsel %vm459, %v1898, 0
      %v1971 = vsel %vm459, %v1900, 0
      %v1973 = vsel %vm459, %v1902, 0
      %v1975 = vsel %vm459, %v1904, 0
      %v1978 = vsel %vm532, %v1830, 0
      %1980 = vmatprep.subr.mxu0 0.0
      %1981 = vmatpush1.msra.mxu0 %v1978
      %1982 = vmatprep.subr.mxu0 0.0
      %1983 = vmatpush1.msra.mxu0 0.0
      %1984 = vmatprep.subr.mxu0 0.0
      %1985 = vmatpush1.msra.mxu0 0.0
      %1986 = vmatprep.subr.mxu0 0.0
      %1987 = vmatpush1.msra.mxu0 0.0
      %1988 = vmatprep.subr.mxu0 0.0
      %1989 = vmatpush1.msra.mxu0 0.0
      %1990 = vmatprep.subr.mxu0 0.0
      %1991 = vmatpush1.msra.mxu0 0.0
      %1992 = vmatprep.subr.mxu0 0.0
      %1993 = vmatpush1.msra.mxu0 0.0
      %1994 = vmatprep.subr.mxu0 0.0
      %1995 = vmatpush1.msra.mxu0 0.0
      %1996 = vmatprep.subr.mxu0 0.0
      %1997 = vmatpush1.msra.mxu0 0.0
      %1998 = vmatprep.subr.mxu0 0.0
      %1999 = vmatpush1.msra.mxu0 0.0
      %2000 = vmatprep.subr.mxu0 0.0
      %2001 = vmatpush1.msra.mxu0 0.0
      %2002 = vmatprep.subr.mxu0 0.0
      %2003 = vmatpush1.msra.mxu0 0.0
      %2004 = vmatprep.subr.mxu0 0.0
      %2005 = vmatpush1.msra.mxu0 0.0
      %2006 = vmatprep.subr.mxu0 0.0
      %2007 = vmatpush1.msra.mxu0 0.0
      %2008 = vmatprep.subr.mxu0 0.0
      %2009 = vmatpush1.msra.mxu0 0.0
      %2010 = vmatprep.subr.mxu0 0.0
      %2011 = vmatpush1.msra.mxu0 0.0
      %2012 = vmatprep.subr.mxu0 0.0
      %2013 = vmatpush1.msra.mxu0 0.0
      %2014 = vmatprep.subr.mxu0 0.0
      %2015 = vmatpush1.msra.mxu0 0.0
      %2016 = vmatprep.subr.mxu0 0.0
      %2017 = vmatpush1.msra.mxu0 0.0
      %2018 = vmatprep.subr.mxu0 0.0
      %2019 = vmatpush1.msra.mxu0 0.0
      %2020 = vmatprep.subr.mxu0 0.0
      %2021 = vmatpush1.msra.mxu0 0.0
      %2022 = vmatprep.subr.mxu0 0.0
      %2023 = vmatpush1.msra.mxu0 0.0
      %2024 = vmatprep.subr.mxu0 0.0
      %2025 = vmatpush1.msra.mxu0 0.0
      %2026 = vmatprep.subr.mxu0 0.0
      %2027 = vmatpush1.msra.mxu0 0.0
      %2028 = vmatprep.subr.mxu0 0.0
      %2029 = vmatpush1.msra.mxu0 0.0
      %2030 = vmatprep.subr.mxu0 0.0
      %2031 = vmatpush1.msra.mxu0 0.0
      %2032 = vmatprep.subr.mxu0 0.0
      %2033 = vmatpush1.msra.mxu0 0.0
      %2034 = vmatprep.subr.mxu0 0.0
      %2035 = vmatpush1.msra.mxu0 0.0
      %2036 = vmatprep.subr.mxu0 0.0
      %2037 = vmatpush1.msra.mxu0 0.0
      %2038 = vmatprep.subr.mxu0 0.0
      %2039 = vmatpush1.msra.mxu0 0.0
      %2040 = vmatprep.subr.mxu0 0.0
      %2041 = vmatpush1.msra.mxu0 0.0
      %2042 = vmatprep.subr.mxu0 0.0
      %2043 = vmatpush1.msra.mxu0 0.0
      %2044 = vmatprep.mubr.f32.mxu0 0.0
      %2045 = vmatmul.mubr.f32.gmra.mrb[0].mxu0 %v1905
      %v2046 = vpop.f32.mrb[0].mxu0
      %v2047 = vadd.f32 0.0, %v2046
      %v2048 = vpop.f32.mrb[0].mxu0
      %2049 = vmatprep.mubr.f32.mxu0 0.0
      %2050 = vmatmul.mubr.f32.gmra.mrb[0].mxu0 %v1907
      %v2051 = vpop.f32.mrb[0].mxu0
      %v2052 = vadd.f32 0.0, %v2051
      %v2053 = vpop.f32.mrb[0].mxu0
      %2054 = vmatprep.mubr.f32.mxu0 0.0
      %2055 = vmatmul.mubr.f32.gmra.mrb[0].mxu0 %v1909
      %v2056 = vpop.f32.mrb[0].mxu0
      %v2057 = vadd.f32 0.0, %v2056
      %v2058 = vpop.f32.mrb[0].mxu0
      %2059 = vmatprep.mubr.f32.mxu0 0.0
      %2060 = vmatmul.mubr.f32.gmra.mrb[0].mxu0 %v1911
      %v2061 = vpop.f32.mrb[0].mxu0
      %v2062 = vadd.f32 0.0, %v2061
      %v2063 = vpop.f32.mrb[0].mxu0
      %2064 = vmatprep.mubr.f32.mxu0 0.0
      %2065 = vmatmul.mubr.f32.gmra.mrb[0].mxu0 %v1913
      %v2066 = vpop.f32.mrb[0].mxu0
      %v2067 = vadd.f32 0.0, %v2066
      %v2068 = vpop.f32.mrb[0].mxu0
      %2069 = vmatprep.mubr.f32.mxu0 0.0
      %2070 = vmatmul.mubr.f32.gmra.mrb[0].mxu0 %v1915
      %v2071 = vpop.f32.mrb[0].mxu0
      %v2072 = vadd.f32 0.0, %v2071
      %v2073 = vpop.f32.mrb[0].mxu0
      %2074 = vmatprep.mubr.f32.mxu0 0.0
      %2075 = vmatmul.mubr.f32.gmra.mrb[0].mxu0 %v1917
      %v2076 = vpop.f32.mrb[0].mxu0
      %v2077 = vadd.f32 0.0, %v2076
      %v2078 = vpop.f32.mrb[0].mxu0
      %2079 = vmatprep.mubr.f32.mxu0 0.0
      %2080 = vmatmul.mubr.f32.gmra.mrb[0].mxu0 %v1919
      %v2081 = vpop.f32.mrb[0].mxu0
      %v2082 = vadd.f32 0.0, %v2081
      %v2083 = vpop.f32.mrb[0].mxu0
      %2084 = vmatprep.mubr.f32.mxu0 0.0
      %2085 = vmatmul.mubr.f32.gmra.mrb[0].mxu0 %v1921
      %v2086 = vpop.f32.mrb[0].mxu0
      %v2087 = vadd.f32 0.0, %v2086
      %v2088 = vpop.f32.mrb[0].mxu0
      %2089 = vmatprep.mubr.f32.mxu0 0.0
      %2090 = vmatmul.mubr.f32.gmra.mrb[0].mxu0 %v1923
      %v2091 = vpop.f32.mrb[0].mxu0
      %v2092 = vadd.f32 0.0, %v2091
      %v2093 = vpop.f32.mrb[0].mxu0
      %2094 = vmatprep.mubr.f32.mxu0 0.0
      %2095 = vmatmul.mubr.f32.gmra.mrb[0].mxu0 %v1925
      %v2096 = vpop.f32.mrb[0].mxu0
      %v2097 = vadd.f32 0.0, %v2096
      %v2098 = vpop.f32.mrb[0].mxu0
      %2099 = vmatprep.mubr.f32.mxu0 0.0
      %2100 = vmatmul.mubr.f32.gmra.mrb[0].mxu0 %v1927
      %v2101 = vpop.f32.mrb[0].mxu0
      %v2102 = vadd.f32 0.0, %v2101
      %v2103 = vpop.f32.mrb[0].mxu0
      %2104 = vmatprep.mubr.f32.mxu0 0.0
      %2105 = vmatmul.mubr.f32.gmra.mrb[0].mxu0 %v1929
      %v2106 = vpop.f32.mrb[0].mxu0
      %v2107 = vadd.f32 0.0, %v2106
      %v2108 = vpop.f32.mrb[0].mxu0
      %2109 = vmatprep.mubr.f32.mxu0 0.0
      %2110 = vmatmul.mubr.f32.gmra.mrb[0].mxu0 %v1931
      %v2111 = vpop.f32.mrb[0].mxu0
      %v2112 = vadd.f32 0.0, %v2111
      %v2113 = vpop.f32.mrb[0].mxu0
      %2114 = vmatprep.mubr.f32.mxu0 0.0
      %2115 = vmatmul.mubr.f32.gmra.mrb[0].mxu0 %v1933
      %v2116 = vpop.f32.mrb[0].mxu0
      %v2117 = vadd.f32 0.0, %v2116
      %v2118 = vpop.f32.mrb[0].mxu0
      %2119 = vmatprep.mubr.f32.mxu0 0.0
      %2120 = vmatmul.mubr.f32.gmra.mrb[0].mxu0 %v1935
      %v2121 = vpop.f32.mrb[0].mxu0
      %v2122 = vadd.f32 0.0, %v2121
      %v2123 = vpop.f32.mrb[0].mxu0
      %2124 = vmatprep.mubr.f32.mxu0 0.0
      %2125 = vmatmul.mubr.f32.gmra.mrb[0].mxu0 %v1937
      %v2126 = vpop.f32.mrb[0].mxu0
      %v2127 = vadd.f32 0.0, %v2126
      %v2128 = vpop.f32.mrb[0].mxu0
      %2129 = vmatprep.mubr.f32.mxu0 0.0
      %2130 = vmatmul.mubr.f32.gmra.mrb[0].mxu0 %v1939
      %v2131 = vpop.f32.mrb[0].mxu0
      %v2132 = vadd.f32 0.0, %v2131
      %v2133 = vpop.f32.mrb[0].mxu0
      %2134 = vmatprep.mubr.f32.mxu0 0.0
      %2135 = vmatmul.mubr.f32.gmra.mrb[0].mxu0 %v1941
      %v2136 = vpop.f32.mrb[0].mxu0
      %v2137 = vadd.f32 0.0, %v2136
      %v2138 = vpop.f32.mrb[0].mxu0
      %2139 = vmatprep.mubr.f32.mxu0 0.0
      %2140 = vmatmul.mubr.f32.gmra.mrb[0].mxu0 %v1943
      %v2141 = vpop.f32.mrb[0].mxu0
      %v2142 = vadd.f32 0.0, %v2141
      %v2143 = vpop.f32.mrb[0].mxu0
      %2144 = vmatprep.mubr.f32.mxu0 0.0
      %2145 = vmatmul.mubr.f32.gmra.mrb[0].mxu0 %v1945
      %v2146 = vpop.f32.mrb[0].mxu0
      %v2147 = vadd.f32 0.0, %v2146
      %v2148 = vpop.f32.mrb[0].mxu0
      %2149 = vmatprep.mubr.f32.mxu0 0.0
      %2150 = vmatmul.mubr.f32.gmra.mrb[0].mxu0 %v1947
      %v2151 = vpop.f32.mrb[0].mxu0
      %v2152 = vadd.f32 0.0, %v2151
      %v2153 = vpop.f32.mrb[0].mxu0
      %2154 = vmatprep.mubr.f32.mxu0 0.0
      %2155 = vmatmul.mubr.f32.gmra.mrb[0].mxu0 %v1949
      %v2156 = vpop.f32.mrb[0].mxu0
      %v2157 = vadd.f32 0.0, %v2156
      %v2158 = vpop.f32.mrb[0].mxu0
      %2159 = vmatprep.mubr.f32.mxu0 0.0
      %2160 = vmatmul.mubr.f32.gmra.mrb[0].mxu0 %v1951
      %v2161 = vpop.f32.mrb[0].mxu0
      %v2162 = vadd.f32 0.0, %v2161
      %v2163 = vpop.f32.mrb[0].mxu0
      %2164 = vmatprep.mubr.f32.mxu0 0.0
      %2165 = vmatmul.mubr.f32.gmra.mrb[0].mxu0 %v1953
      %v2166 = vpop.f32.mrb[0].mxu0
      %v2167 = vadd.f32 0.0, %v2166
      %v2168 = vpop.f32.mrb[0].mxu0
      %2169 = vmatprep.mubr.f32.mxu0 0.0
      %2170 = vmatmul.mubr.f32.gmra.mrb[0].mxu0 %v1955
      %v2171 = vpop.f32.mrb[0].mxu0
      %v2172 = vadd.f32 0.0, %v2171
      %v2173 = vpop.f32.mrb[0].mxu0
      %2174 = vmatprep.mubr.f32.mxu0 0.0
      %2175 = vmatmul.mubr.f32.gmra.mrb[0].mxu0 %v1957
      %v2176 = vpop.f32.mrb[0].mxu0
      %v2177 = vadd.f32 0.0, %v2176
      %v2178 = vpop.f32.mrb[0].mxu0
      %2179 = vmatprep.mubr.f32.mxu0 0.0
      %2180 = vmatmul.mubr.f32.gmra.mrb[0].mxu0 %v1959
      %v2181 = vpop.f32.mrb[0].mxu0
      %v2182 = vadd.f32 0.0, %v2181
      %v2183 = vpop.f32.mrb[0].mxu0
      %2184 = vmatprep.mubr.f32.mxu0 0.0
      %2185 = vmatmul.mubr.f32.gmra.mrb[0].mxu0 %v1961
      %v2186 = vpop.f32.mrb[0].mxu0
      %v2187 = vadd.f32 0.0, %v2186
      %v2188 = vpop.f32.mrb[0].mxu0
      %2189 = vmatprep.mubr.f32.mxu0 0.0
      %2190 = vmatmul.mubr.f32.gmra.mrb[0].mxu0 %v1963
      %v2191 = vpop.f32.mrb[0].mxu0
      %v2192 = vadd.f32 0.0, %v2191
      %v2193 = vpop.f32.mrb[0].mxu0
      %2194 = vmatprep.mubr.f32.mxu0 0.0
      %2195 = vmatmul.mubr.f32.gmra.mrb[0].mxu0 %v1965
      %v2196 = vpop.f32.mrb[0].mxu0
      %v2197 = vadd.f32 0.0, %v2196
      %v2198 = vpop.f32.mrb[0].mxu0
      %2199 = vmatprep.mubr.f32.mxu0 0.0
      %2200 = vmatmul.mubr.f32.gmra.mrb[0].mxu0 %v1967
      %v2201 = vpop.f32.mrb[0].mxu0
      %v2202 = vadd.f32 0.0, %v2201
      %v2203 = vpop.f32.mrb[0].mxu0
      %2204 = vmatprep.mubr.f32.mxu0 0.0
      %2205 = vmatmul.mubr.f32.gmra.mrb[0].mxu0 %v1969
      %v2206 = vpop.f32.mrb[0].mxu0
      %v2207 = vadd.f32 0.0, %v2206
      %v2208 = vpop.f32.mrb[0].mxu0
      %2209 = vmatprep.mubr.f32.mxu0 0.0
      %2210 = vmatmul.mubr.f32.gmra.mrb[0].mxu0 %v1971
      %v2211 = vpop.f32.mrb[0].mxu0
      %v2212 = vadd.f32 0.0, %v2211
      %v2213 = vpop.f32.mrb[0].mxu0
      %2214 = vmatprep.mubr.f32.mxu0 0.0
      %2215 = vmatmul.mubr.f32.gmra.mrb[0].mxu0 %v1973
      %v2216 = vpop.f32.mrb[0].mxu0
      %v2217 = vadd.f32 0.0, %v2216
      %v2218 = vpop.f32.mrb[0].mxu0
      %2219 = vmatprep.mubr.f32.mxu0 0.0
      %2220 = vmatmul.mubr.f32.gmra.mrb[0].mxu0 %v1975
      %v2221 = vpop.f32.mrb[0].mxu0
      %v2222 = vadd.f32 0.0, %v2221
      %v2223 = vpop.f32.mrb[0].mxu0
      %2224 = vdwg.mxu0
      %v2225 = vadd.f32 %v1793, %v2047
      %v2226 = vadd.f32 %v1794, %v2052
      %v2227 = vadd.f32 %v1795, %v2057
      %v2228 = vadd.f32 %v1796, %v2062
      %v2229 = vadd.f32 %v1797, %v2067
      %v2230 = vadd.f32 %v1798, %v2072
      %v2231 = vadd.f32 %v1799, %v2077
      %v2232 = vadd.f32 %v1800, %v2082
      %v2233 = vadd.f32 %v1801, %v2087
      %v2234 = vadd.f32 %v1802, %v2092
      %v2235 = vadd.f32 %v1803, %v2097
      %v2236 = vadd.f32 %v1804, %v2102
      %v2237 = vadd.f32 %v1805, %v2107
      %v2238 = vadd.f32 %v1806, %v2112
      %v2239 = vadd.f32 %v1807, %v2117
      %v2240 = vadd.f32 %v1808, %v2122
      %v2241 = vadd.f32 %v1809, %v2127
      %v2242 = vadd.f32 %v1810, %v2132
      %v2243 = vadd.f32 %v1811, %v2137
      %v2244 = vadd.f32 %v1812, %v2142
      %v2245 = vadd.f32 %v1813, %v2147
      %v2246 = vadd.f32 %v1814, %v2152
      %v2247 = vadd.f32 %v1815, %v2157
      %v2248 = vadd.f32 %v1816, %v2162
      %v2249 = vadd.f32 %v1817, %v2167
      %v2250 = vadd.f32 %v1818, %v2172
      %v2251 = vadd.f32 %v1819, %v2177
      %v2252 = vadd.f32 %v1820, %v2182
      %v2253 = vadd.f32 %v1821, %v2187
      %v2254 = vadd.f32 %v1822, %v2192
      %v2255 = vadd.f32 %v1823, %v2197
      %v2256 = vadd.f32 %v1824, %v2202
      %v2257 = vadd.f32 %v1825, %v2207
      %v2258 = vadd.f32 %v1826, %v2212
      %v2259 = vadd.f32 %v1827, %v2217
      %v2260 = vadd.f32 %v1828, %v2222
      %s2261 = scalar_lea.vmem %s1, 20
      %v2262 = vld [vmem:[%s2261] sm:$0xf]
      %v2263 = vrot.slane %v227, 4
      %v2264 = vrot.slane %v228, 4
      %v2265 = vsel %vm532, %v2263, %v2264
      %v2266 = vrot.slane %v229, 4
      %v2267 = vsel %vm532, %v2264, %v2266
      %v2268 = vrot.slane %v230, 4
      %v2269 = vsel %vm532, %v2266, %v2268
      %v2270 = vrot.slane %v231, 4
      %v2271 = vsel %vm532, %v2268, %v2270
      %v2272 = vrot.slane %v232, 4
      %v2273 = vsel %vm532, %v2270, %v2272
      %v2274 = vrot.slane %v233, 4
      %v2275 = vsel %vm532, %v2272, %v2274
      %v2276 = vrot.slane %v234, 4
      %v2277 = vsel %vm532, %v2274, %v2276
      %v2278 = vrot.slane %v235, 4
      %v2279 = vsel %vm532, %v2276, %v2278
      %v2280 = vrot.slane %v236, 4
      %v2281 = vsel %vm532, %v2278, %v2280
      %v2282 = vrot.slane %v237, 4
      %v2283 = vsel %vm532, %v2280, %v2282
      %v2284 = vrot.slane %v238, 4
      %v2285 = vsel %vm532, %v2282, %v2284
      %v2286 = vrot.slane %v239, 4
      %v2287 = vsel %vm532, %v2284, %v2286
      %v2288 = vrot.slane %v240, 4
      %v2289 = vsel %vm532, %v2286, %v2288
      %v2290 = vrot.slane %v241, 4
      %v2291 = vsel %vm532, %v2288, %v2290
      %v2292 = vrot.slane %v242, 4
      %v2293 = vsel %vm532, %v2290, %v2292
      %v2294 = vrot.slane %v243, 4
      %v2295 = vsel %vm532, %v2292, %v2294
      %v2296 = vrot.slane %v244, 4
      %v2297 = vsel %vm532, %v2294, %v2296
      %v2298 = vrot.slane %v245, 4
      %v2299 = vsel %vm532, %v2296, %v2298
      %v2300 = vrot.slane %v246, 4
      %v2301 = vsel %vm532, %v2298, %v2300
      %v2302 = vrot.slane %v247, 4
      %v2303 = vsel %vm532, %v2300, %v2302
      %v2304 = vrot.slane %v248, 4
      %v2305 = vsel %vm532, %v2302, %v2304
      %v2306 = vrot.slane %v249, 4
      %v2307 = vsel %vm532, %v2304, %v2306
      %v2308 = vrot.slane %v250, 4
      %v2309 = vsel %vm532, %v2306, %v2308
      %v2310 = vrot.slane %v251, 4
      %v2311 = vsel %vm532, %v2308, %v2310
      %v2312 = vrot.slane %v252, 4
      %v2313 = vsel %vm532, %v2310, %v2312
      %v2314 = vrot.slane %v253, 4
      %v2315 = vsel %vm532, %v2312, %v2314
      %v2316 = vrot.slane %v254, 4
      %v2317 = vsel %vm532, %v2314, %v2316
      %v2318 = vrot.slane %v255, 4
      %v2319 = vsel %vm532, %v2316, %v2318
      %v2320 = vrot.slane %v256, 4
      %v2321 = vsel %vm532, %v2318, %v2320
      %v2322 = vrot.slane %v257, 4
      %v2323 = vsel %vm532, %v2320, %v2322
      %v2324 = vrot.slane %v258, 4
      %v2325 = vsel %vm532, %v2322, %v2324
      %v2326 = vrot.slane %v259, 4
      %v2327 = vsel %vm532, %v2324, %v2326
      %v2328 = vrot.slane %v260, 4
      %v2329 = vsel %vm532, %v2326, %v2328
      %v2330 = vrot.slane %v261, 4
      %v2331 = vsel %vm532, %v2328, %v2330
      %v2332 = vrot.slane %v262, 4
      %v2333 = vsel %vm532, %v2330, %v2332
      %v2334 = vrot.slane %v263, 4
      %v2335 = vsel %vm532, %v2332, %v2334
      %v2336 = vsel %vm459, %v2265, 0
      %v2338 = vsel %vm459, %v2267, 0
      %v2340 = vsel %vm459, %v2269, 0
      %v2342 = vsel %vm459, %v2271, 0
      %v2344 = vsel %vm459, %v2273, 0
      %v2346 = vsel %vm459, %v2275, 0
      %v2348 = vsel %vm459, %v2277, 0
      %v2350 = vsel %vm459, %v2279, 0
      %v2352 = vsel %vm459, %v2281, 0
      %v2354 = vsel %vm459, %v2283, 0
      %v2356 = vsel %vm459, %v2285, 0
      %v2358 = vsel %vm459, %v2287, 0
      %v2360 = vsel %vm459, %v2289, 0
      %v2362 = vsel %vm459, %v2291, 0
      %v2364 = vsel %vm459, %v2293, 0
      %v2366 = vsel %vm459, %v2295, 0
      %v2368 = vsel %vm459, %v2297, 0
      %v2370 = vsel %vm459, %v2299, 0
      %v2372 = vsel %vm459, %v2301, 0
      %v2374 = vsel %vm459, %v2303, 0
      %v2376 = vsel %vm459, %v2305, 0
      %v2378 = vsel %vm459, %v2307, 0
      %v2380 = vsel %vm459, %v2309, 0
      %v2382 = vsel %vm459, %v2311, 0
      %v2384 = vsel %vm459, %v2313, 0
      %v2386 = vsel %vm459, %v2315, 0
      %v2388 = vsel %vm459, %v2317, 0
      %v2390 = vsel %vm459, %v2319, 0
      %v2392 = vsel %vm459, %v2321, 0
      %v2394 = vsel %vm459, %v2323, 0
      %v2396 = vsel %vm459, %v2325, 0
      %v2398 = vsel %vm459, %v2327, 0
      %v2400 = vsel %vm459, %v2329, 0
      %v2402 = vsel %vm459, %v2331, 0
      %v2404 = vsel %vm459, %v2333, 0
      %v2406 = vsel %vm459, %v2335, 0
      %v2409 = vsel %vm532, %v2262, 0
      %2411 = vmatprep.subr.mxu0 0.0
      %2412 = vmatpush1.msra.mxu0 %v2409
      %2413 = vmatprep.subr.mxu0 0.0
      %2414 = vmatpush1.msra.mxu0 0.0
      %2415 = vmatprep.subr.mxu0 0.0
      %2416 = vmatpush1.msra.mxu0 0.0
      %2417 = vmatprep.subr.mxu0 0.0
      %2418 = vmatpush1.msra.mxu0 0.0
      %2419 = vmatprep.subr.mxu0 0.0
      %2420 = vmatpush1.msra.mxu0 0.0
      %2421 = vmatprep.subr.mxu0 0.0
      %2422 = vmatpush1.msra.mxu0 0.0
      %2423 = vmatprep.subr.mxu0 0.0
      %2424 = vmatpush1.msra.mxu0 0.0
      %2425 = vmatprep.subr.mxu0 0.0
      %2426 = vmatpush1.msra.mxu0 0.0
      %2427 = vmatprep.subr.mxu0 0.0
      %2428 = vmatpush1.msra.mxu0 0.0
      %2429 = vmatprep.subr.mxu0 0.0
      %2430 = vmatpush1.msra.mxu0 0.0
      %2431 = vmatprep.subr.mxu0 0.0
      %2432 = vmatpush1.msra.mxu0 0.0
      %2433 = vmatprep.subr.mxu0 0.0
      %2434 = vmatpush1.msra.mxu0 0.0
      %2435 = vmatprep.subr.mxu0 0.0
      %2436 = vmatpush1.msra.mxu0 0.0
      %2437 = vmatprep.subr.mxu0 0.0
      %2438 = vmatpush1.msra.mxu0 0.0
      %2439 = vmatprep.subr.mxu0 0.0
      %2440 = vmatpush1.msra.mxu0 0.0
      %2441 = vmatprep.subr.mxu0 0.0
      %2442 = vmatpush1.msra.mxu0 0.0
      %2443 = vmatprep.subr.mxu0 0.0
      %2444 = vmatpush1.msra.mxu0 0.0
      %2445 = vmatprep.subr.mxu0 0.0
      %2446 = vmatpush1.msra.mxu0 0.0
      %2447 = vmatprep.subr.mxu0 0.0
      %2448 = vmatpush1.msra.mxu0 0.0
      %2449 = vmatprep.subr.mxu0 0.0
      %2450 = vmatpush1.msra.mxu0 0.0
      %2451 = vmatprep.subr.mxu0 0.0
      %2452 = vmatpush1.msra.mxu0 0.0
      %2453 = vmatprep.subr.mxu0 0.0
      %2454 = vmatpush1.msra.mxu0 0.0
      %2455 = vmatprep.subr.mxu0 0.0
      %2456 = vmatpush1.msra.mxu0 0.0
      %2457 = vmatprep.subr.mxu0 0.0
      %2458 = vmatpush1.msra.mxu0 0.0
      %2459 = vmatprep.subr.mxu0 0.0
      %2460 = vmatpush1.msra.mxu0 0.0
      %2461 = vmatprep.subr.mxu0 0.0
      %2462 = vmatpush1.msra.mxu0 0.0
      %2463 = vmatprep.subr.mxu0 0.0
      %2464 = vmatpush1.msra.mxu0 0.0
      %2465 = vmatprep.subr.mxu0 0.0
      %2466 = vmatpush1.msra.mxu0 0.0
      %2467 = vmatprep.subr.mxu0 0.0
      %2468 = vmatpush1.msra.mxu0 0.0
      %2469 = vmatprep.subr.mxu0 0.0
      %2470 = vmatpush1.msra.mxu0 0.0
      %2471 = vmatprep.subr.mxu0 0.0
      %2472 = vmatpush1.msra.mxu0 0.0
      %2473 = vmatprep.subr.mxu0 0.0
      %2474 = vmatpush1.msra.mxu0 0.0
      %2475 = vmatprep.mubr.f32.mxu0 0.0
      %2476 = vmatmul.mubr.f32.gmra.mrb[0].mxu0 %v2336
      %v2477 = vpop.f32.mrb[0].mxu0
      %v2478 = vadd.f32 0.0, %v2477
      %v2479 = vpop.f32.mrb[0].mxu0
      %2480 = vmatprep.mubr.f32.mxu0 0.0
      %2481 = vmatmul.mubr.f32.gmra.mrb[0].mxu0 %v2338
      %v2482 = vpop.f32.mrb[0].mxu0
      %v2483 = vadd.f32 0.0, %v2482
      %v2484 = vpop.f32.mrb[0].mxu0
      %2485 = vmatprep.mubr.f32.mxu0 0.0
      %2486 = vmatmul.mubr.f32.gmra.mrb[0].mxu0 %v2340
      %v2487 = vpop.f32.mrb[0].mxu0
      %v2488 = vadd.f32 0.0, %v2487
      %v2489 = vpop.f32.mrb[0].mxu0
      %2490 = vmatprep.mubr.f32.mxu0 0.0
      %2491 = vmatmul.mubr.f32.gmra.mrb[0].mxu0 %v2342
      %v2492 = vpop.f32.mrb[0].mxu0
      %v2493 = vadd.f32 0.0, %v2492
      %v2494 = vpop.f32.mrb[0].mxu0
      %2495 = vmatprep.mubr.f32.mxu0 0.0
      %2496 = vmatmul.mubr.f32.gmra.mrb[0].mxu0 %v2344
      %v2497 = vpop.f32.mrb[0].mxu0
      %v2498 = vadd.f32 0.0, %v2497
      %v2499 = vpop.f32.mrb[0].mxu0
      %2500 = vmatprep.mubr.f32.mxu0 0.0
      %2501 = vmatmul.mubr.f32.gmra.mrb[0].mxu0 %v2346
      %v2502 = vpop.f32.mrb[0].mxu0
      %v2503 = vadd.f32 0.0, %v2502
      %v2504 = vpop.f32.mrb[0].mxu0
      %2505 = vmatprep.mubr.f32.mxu0 0.0
      %2506 = vmatmul.mubr.f32.gmra.mrb[0].mxu0 %v2348
      %v2507 = vpop.f32.mrb[0].mxu0
      %v2508 = vadd.f32 0.0, %v2507
      %v2509 = vpop.f32.mrb[0].mxu0
      %2510 = vmatprep.mubr.f32.mxu0 0.0
      %2511 = vmatmul.mubr.f32.gmra.mrb[0].mxu0 %v2350
      %v2512 = vpop.f32.mrb[0].mxu0
      %v2513 = vadd.f32 0.0, %v2512
      %v2514 = vpop.f32.mrb[0].mxu0
      %2515 = vmatprep.mubr.f32.mxu0 0.0
      %2516 = vmatmul.mubr.f32.gmra.mrb[0].mxu0 %v2352
      %v2517 = vpop.f32.mrb[0].mxu0
      %v2518 = vadd.f32 0.0, %v2517
      %v2519 = vpop.f32.mrb[0].mxu0
      %2520 = vmatprep.mubr.f32.mxu0 0.0
      %2521 = vmatmul.mubr.f32.gmra.mrb[0].mxu0 %v2354
      %v2522 = vpop.f32.mrb[0].mxu0
      %v2523 = vadd.f32 0.0, %v2522
      %v2524 = vpop.f32.mrb[0].mxu0
      %2525 = vmatprep.mubr.f32.mxu0 0.0
      %2526 = vmatmul.mubr.f32.gmra.mrb[0].mxu0 %v2356
      %v2527 = vpop.f32.mrb[0].mxu0
      %v2528 = vadd.f32 0.0, %v2527
      %v2529 = vpop.f32.mrb[0].mxu0
      %2530 = vmatprep.mubr.f32.mxu0 0.0
      %2531 = vmatmul.mubr.f32.gmra.mrb[0].mxu0 %v2358
      %v2532 = vpop.f32.mrb[0].mxu0
      %v2533 = vadd.f32 0.0, %v2532
      %v2534 = vpop.f32.mrb[0].mxu0
      %2535 = vmatprep.mubr.f32.mxu0 0.0
      %2536 = vmatmul.mubr.f32.gmra.mrb[0].mxu0 %v2360
      %v2537 = vpop.f32.mrb[0].mxu0
      %v2538 = vadd.f32 0.0, %v2537
      %v2539 = vpop.f32.mrb[0].mxu0
      %2540 = vmatprep.mubr.f32.mxu0 0.0
      %2541 = vmatmul.mubr.f32.gmra.mrb[0].mxu0 %v2362
      %v2542 = vpop.f32.mrb[0].mxu0
      %v2543 = vadd.f32 0.0, %v2542
      %v2544 = vpop.f32.mrb[0].mxu0
      %2545 = vmatprep.mubr.f32.mxu0 0.0
      %2546 = vmatmul.mubr.f32.gmra.mrb[0].mxu0 %v2364
      %v2547 = vpop.f32.mrb[0].mxu0
      %v2548 = vadd.f32 0.0, %v2547
      %v2549 = vpop.f32.mrb[0].mxu0
      %2550 = vmatprep.mubr.f32.mxu0 0.0
      %2551 = vmatmul.mubr.f32.gmra.mrb[0].mxu0 %v2366
      %v2552 = vpop.f32.mrb[0].mxu0
      %v2553 = vadd.f32 0.0, %v2552
      %v2554 = vpop.f32.mrb[0].mxu0
      %2555 = vmatprep.mubr.f32.mxu0 0.0
      %2556 = vmatmul.mubr.f32.gmra.mrb[0].mxu0 %v2368
      %v2557 = vpop.f32.mrb[0].mxu0
      %v2558 = vadd.f32 0.0, %v2557
      %v2559 = vpop.f32.mrb[0].mxu0
      %2560 = vmatprep.mubr.f32.mxu0 0.0
      %2561 = vmatmul.mubr.f32.gmra.mrb[0].mxu0 %v2370
      %v2562 = vpop.f32.mrb[0].mxu0
      %v2563 = vadd.f32 0.0, %v2562
      %v2564 = vpop.f32.mrb[0].mxu0
      %2565 = vmatprep.mubr.f32.mxu0 0.0
      %2566 = vmatmul.mubr.f32.gmra.mrb[0].mxu0 %v2372
      %v2567 = vpop.f32.mrb[0].mxu0
      %v2568 = vadd.f32 0.0, %v2567
      %v2569 = vpop.f32.mrb[0].mxu0
      %2570 = vmatprep.mubr.f32.mxu0 0.0
      %2571 = vmatmul.mubr.f32.gmra.mrb[0].mxu0 %v2374
      %v2572 = vpop.f32.mrb[0].mxu0
      %v2573 = vadd.f32 0.0, %v2572
      %v2574 = vpop.f32.mrb[0].mxu0
      %2575 = vmatprep.mubr.f32.mxu0 0.0
      %2576 = vmatmul.mubr.f32.gmra.mrb[0].mxu0 %v2376
      %v2577 = vpop.f32.mrb[0].mxu0
      %v2578 = vadd.f32 0.0, %v2577
      %v2579 = vpop.f32.mrb[0].mxu0
      %2580 = vmatprep.mubr.f32.mxu0 0.0
      %2581 = vmatmul.mubr.f32.gmra.mrb[0].mxu0 %v2378
      %v2582 = vpop.f32.mrb[0].mxu0
      %v2583 = vadd.f32 0.0, %v2582
      %v2584 = vpop.f32.mrb[0].mxu0
      %2585 = vmatprep.mubr.f32.mxu0 0.0
      %2586 = vmatmul.mubr.f32.gmra.mrb[0].mxu0 %v2380
      %v2587 = vpop.f32.mrb[0].mxu0
      %v2588 = vadd.f32 0.0, %v2587
      %v2589 = vpop.f32.mrb[0].mxu0
      %2590 = vmatprep.mubr.f32.mxu0 0.0
      %2591 = vmatmul.mubr.f32.gmra.mrb[0].mxu0 %v2382
      %v2592 = vpop.f32.mrb[0].mxu0
      %v2593 = vadd.f32 0.0, %v2592
      %v2594 = vpop.f32.mrb[0].mxu0
      %2595 = vmatprep.mubr.f32.mxu0 0.0
      %2596 = vmatmul.mubr.f32.gmra.mrb[0].mxu0 %v2384
      %v2597 = vpop.f32.mrb[0].mxu0
      %v2598 = vadd.f32 0.0, %v2597
      %v2599 = vpop.f32.mrb[0].mxu0
      %2600 = vmatprep.mubr.f32.mxu0 0.0
      %2601 = vmatmul.mubr.f32.gmra.mrb[0].mxu0 %v2386
      %v2602 = vpop.f32.mrb[0].mxu0
      %v2603 = vadd.f32 0.0, %v2602
      %v2604 = vpop.f32.mrb[0].mxu0
      %2605 = vmatprep.mubr.f32.mxu0 0.0
      %2606 = vmatmul.mubr.f32.gmra.mrb[0].mxu0 %v2388
      %v2607 = vpop.f32.mrb[0].mxu0
      %v2608 = vadd.f32 0.0, %v2607
      %v2609 = vpop.f32.mrb[0].mxu0
      %2610 = vmatprep.mubr.f32.mxu0 0.0
      %2611 = vmatmul.mubr.f32.gmra.mrb[0].mxu0 %v2390
      %v2612 = vpop.f32.mrb[0].mxu0
      %v2613 = vadd.f32 0.0, %v2612
      %v2614 = vpop.f32.mrb[0].mxu0
      %2615 = vmatprep.mubr.f32.mxu0 0.0
      %2616 = vmatmul.mubr.f32.gmra.mrb[0].mxu0 %v2392
      %v2617 = vpop.f32.mrb[0].mxu0
      %v2618 = vadd.f32 0.0, %v2617
      %v2619 = vpop.f32.mrb[0].mxu0
      %2620 = vmatprep.mubr.f32.mxu0 0.0
      %2621 = vmatmul.mubr.f32.gmra.mrb[0].mxu0 %v2394
      %v2622 = vpop.f32.mrb[0].mxu0
      %v2623 = vadd.f32 0.0, %v2622
      %v2624 = vpop.f32.mrb[0].mxu0
      %2625 = vmatprep.mubr.f32.mxu0 0.0
      %2626 = vmatmul.mubr.f32.gmra.mrb[0].mxu0 %v2396
      %v2627 = vpop.f32.mrb[0].mxu0
      %v2628 = vadd.f32 0.0, %v2627
      %v2629 = vpop.f32.mrb[0].mxu0
      %2630 = vmatprep.mubr.f32.mxu0 0.0
      %2631 = vmatmul.mubr.f32.gmra.mrb[0].mxu0 %v2398
      %v2632 = vpop.f32.mrb[0].mxu0
      %v2633 = vadd.f32 0.0, %v2632
      %v2634 = vpop.f32.mrb[0].mxu0
      %2635 = vmatprep.mubr.f32.mxu0 0.0
      %2636 = vmatmul.mubr.f32.gmra.mrb[0].mxu0 %v2400
      %v2637 = vpop.f32.mrb[0].mxu0
      %v2638 = vadd.f32 0.0, %v2637
      %v2639 = vpop.f32.mrb[0].mxu0
      %2640 = vmatprep.mubr.f32.mxu0 0.0
      %2641 = vmatmul.mubr.f32.gmra.mrb[0].mxu0 %v2402
      %v2642 = vpop.f32.mrb[0].mxu0
      %v2643 = vadd.f32 0.0, %v2642
      %v2644 = vpop.f32.mrb[0].mxu0
      %2645 = vmatprep.mubr.f32.mxu0 0.0
      %2646 = vmatmul.mubr.f32.gmra.mrb[0].mxu0 %v2404
      %v2647 = vpop.f32.mrb[0].mxu0
      %v2648 = vadd.f32 0.0, %v2647
      %v2649 = vpop.f32.mrb[0].mxu0
      %2650 = vmatprep.mubr.f32.mxu0 0.0
      %2651 = vmatmul.mubr.f32.gmra.mrb[0].mxu0 %v2406
      %v2652 = vpop.f32.mrb[0].mxu0
      %v2653 = vadd.f32 0.0, %v2652
      %v2654 = vpop.f32.mrb[0].mxu0
      %2655 = vdwg.mxu0
      %v2656 = vadd.f32 %v2225, %v2478
      %v2657 = vadd.f32 %v2226, %v2483
      %v2658 = vadd.f32 %v2227, %v2488
      %v2659 = vadd.f32 %v2228, %v2493
      %v2660 = vadd.f32 %v2229, %v2498
      %v2661 = vadd.f32 %v2230, %v2503
      %v2662 = vadd.f32 %v2231, %v2508
      %v2663 = vadd.f32 %v2232, %v2513
      %v2664 = vadd.f32 %v2233, %v2518
      %v2665 = vadd.f32 %v2234, %v2523
      %v2666 = vadd.f32 %v2235, %v2528
      %v2667 = vadd.f32 %v2236, %v2533
      %v2668 = vadd.f32 %v2237, %v2538
      %v2669 = vadd.f32 %v2238, %v2543
      %v2670 = vadd.f32 %v2239, %v2548
      %v2671 = vadd.f32 %v2240, %v2553
      %v2672 = vadd.f32 %v2241, %v2558
      %v2673 = vadd.f32 %v2242, %v2563
      %v2674 = vadd.f32 %v2243, %v2568
      %v2675 = vadd.f32 %v2244, %v2573
      %v2676 = vadd.f32 %v2245, %v2578
      %v2677 = vadd.f32 %v2246, %v2583
      %v2678 = vadd.f32 %v2247, %v2588
      %v2679 = vadd.f32 %v2248, %v2593
      %v2680 = vadd.f32 %v2249, %v2598
      %v2681 = vadd.f32 %v2250, %v2603
      %v2682 = vadd.f32 %v2251, %v2608
      %v2683 = vadd.f32 %v2252, %v2613
      %v2684 = vadd.f32 %v2253, %v2618
      %v2685 = vadd.f32 %v2254, %v2623
      %v2686 = vadd.f32 %v2255, %v2628
      %v2687 = vadd.f32 %v2256, %v2633
      %v2688 = vadd.f32 %v2257, %v2638
      %v2689 = vadd.f32 %v2258, %v2643
      %v2690 = vadd.f32 %v2259, %v2648
      %v2691 = vadd.f32 %v2260, %v2653
      %s2692 = scalar_lea.vmem %s1, 24
      %v2693 = vld [vmem:[%s2692] sm:$0xf]
      %v2696 = vrot.slane %v264, 4
      %v2697 = vsel %vm532, %v2334, %v2696
      %v2698 = vrot.slane %v265, 4
      %v2699 = vsel %vm532, %v2696, %v2698
      %v2700 = vsel %vm459, %v2697, 0
      %v2702 = vsel %vm459, %v2699, 0
      %v2705 = vsel %vm532, %v2693, 0
      %2707 = vmatprep.subr.mxu0 0.0
      %2708 = vmatpush1.msra.mxu0 %v2705
      %2709 = vmatprep.subr.mxu0 0.0
      %2710 = vmatpush1.msra.mxu0 0.0
      %2711 = vmatprep.subr.mxu0 0.0
      %2712 = vmatpush1.msra.mxu0 0.0
      %2713 = vmatprep.subr.mxu0 0.0
      %2714 = vmatpush1.msra.mxu0 0.0
      %2715 = vmatprep.subr.mxu0 0.0
      %2716 = vmatpush1.msra.mxu0 0.0
      %2717 = vmatprep.subr.mxu0 0.0
      %2718 = vmatpush1.msra.mxu0 0.0
      %2719 = vmatprep.subr.mxu0 0.0
      %2720 = vmatpush1.msra.mxu0 0.0
      %2721 = vmatprep.subr.mxu0 0.0
      %2722 = vmatpush1.msra.mxu0 0.0
      %2723 = vmatprep.subr.mxu0 0.0
      %2724 = vmatpush1.msra.mxu0 0.0
      %2725 = vmatprep.subr.mxu0 0.0
      %2726 = vmatpush1.msra.mxu0 0.0
      %2727 = vmatprep.subr.mxu0 0.0
      %2728 = vmatpush1.msra.mxu0 0.0
      %2729 = vmatprep.subr.mxu0 0.0
      %2730 = vmatpush1.msra.mxu0 0.0
      %2731 = vmatprep.subr.mxu0 0.0
      %2732 = vmatpush1.msra.mxu0 0.0
      %2733 = vmatprep.subr.mxu0 0.0
      %2734 = vmatpush1.msra.mxu0 0.0
      %2735 = vmatprep.subr.mxu0 0.0
      %2736 = vmatpush1.msra.mxu0 0.0
      %2737 = vmatprep.subr.mxu0 0.0
      %2738 = vmatpush1.msra.mxu0 0.0
      %2739 = vmatprep.subr.mxu0 0.0
      %2740 = vmatpush1.msra.mxu0 0.0
      %2741 = vmatprep.subr.mxu0 0.0
      %2742 = vmatpush1.msra.mxu0 0.0
      %2743 = vmatprep.subr.mxu0 0.0
      %2744 = vmatpush1.msra.mxu0 0.0
      %2745 = vmatprep.subr.mxu0 0.0
      %2746 = vmatpush1.msra.mxu0 0.0
      %2747 = vmatprep.subr.mxu0 0.0
      %2748 = vmatpush1.msra.mxu0 0.0
      %2749 = vmatprep.subr.mxu0 0.0
      %2750 = vmatpush1.msra.mxu0 0.0
      %2751 = vmatprep.subr.mxu0 0.0
      %2752 = vmatpush1.msra.mxu0 0.0
      %2753 = vmatprep.subr.mxu0 0.0
      %2754 = vmatpush1.msra.mxu0 0.0
      %2755 = vmatprep.subr.mxu0 0.0
      %2756 = vmatpush1.msra.mxu0 0.0
      %2757 = vmatprep.subr.mxu0 0.0
      %2758 = vmatpush1.msra.mxu0 0.0
      %2759 = vmatprep.subr.mxu0 0.0
      %2760 = vmatpush1.msra.mxu0 0.0
      %2761 = vmatprep.subr.mxu0 0.0
      %2762 = vmatpush1.msra.mxu0 0.0
      %2763 = vmatprep.subr.mxu0 0.0
      %2764 = vmatpush1.msra.mxu0 0.0
      %2765 = vmatprep.subr.mxu0 0.0
      %2766 = vmatpush1.msra.mxu0 0.0
      %2767 = vmatprep.subr.mxu0 0.0
      %2768 = vmatpush1.msra.mxu0 0.0
      %2769 = vmatprep.subr.mxu0 0.0
      %2770 = vmatpush1.msra.mxu0 0.0
      %2771 = vmatprep.mubr.f32.mxu0 0.0
      %2772 = vmatmul.mubr.f32.gmra.mrb[0].mxu0 %v2340
      %v2773 = vpop.f32.mrb[0].mxu0
      %v2774 = vadd.f32 0.0, %v2773
      %v2775 = vpop.f32.mrb[0].mxu0
      %2776 = vmatprep.mubr.f32.mxu0 0.0
      %2777 = vmatmul.mubr.f32.gmra.mrb[0].mxu0 %v2342
      %v2778 = vpop.f32.mrb[0].mxu0
      %v2779 = vadd.f32 0.0, %v2778
      %v2780 = vpop.f32.mrb[0].mxu0
      %2781 = vmatprep.mubr.f32.mxu0 0.0
      %2782 = vmatmul.mubr.f32.gmra.mrb[0].mxu0 %v2344
      %v2783 = vpop.f32.mrb[0].mxu0
      %v2784 = vadd.f32 0.0, %v2783
      %v2785 = vpop.f32.mrb[0].mxu0
      %2786 = vmatprep.mubr.f32.mxu0 0.0
      %2787 = vmatmul.mubr.f32.gmra.mrb[0].mxu0 %v2346
      %v2788 = vpop.f32.mrb[0].mxu0
      %v2789 = vadd.f32 0.0, %v2788
      %v2790 = vpop.f32.mrb[0].mxu0
      %2791 = vmatprep.mubr.f32.mxu0 0.0
      %2792 = vmatmul.mubr.f32.gmra.mrb[0].mxu0 %v2348
      %v2793 = vpop.f32.mrb[0].mxu0
      %v2794 = vadd.f32 0.0, %v2793
      %v2795 = vpop.f32.mrb[0].mxu0
      %2796 = vmatprep.mubr.f32.mxu0 0.0
      %2797 = vmatmul.mubr.f32.gmra.mrb[0].mxu0 %v2350
      %v2798 = vpop.f32.mrb[0].mxu0
      %v2799 = vadd.f32 0.0, %v2798
      %v2800 = vpop.f32.mrb[0].mxu0
      %2801 = vmatprep.mubr.f32.mxu0 0.0
      %2802 = vmatmul.mubr.f32.gmra.mrb[0].mxu0 %v2352
      %v2803 = vpop.f32.mrb[0].mxu0
      %v2804 = vadd.f32 0.0, %v2803
      %v2805 = vpop.f32.mrb[0].mxu0
      %2806 = vmatprep.mubr.f32.mxu0 0.0
      %2807 = vmatmul.mubr.f32.gmra.mrb[0].mxu0 %v2354
      %v2808 = vpop.f32.mrb[0].mxu0
      %v2809 = vadd.f32 0.0, %v2808
      %v2810 = vpop.f32.mrb[0].mxu0
      %2811 = vmatprep.mubr.f32.mxu0 0.0
      %2812 = vmatmul.mubr.f32.gmra.mrb[0].mxu0 %v2356
      %v2813 = vpop.f32.mrb[0].mxu0
      %v2814 = vadd.f32 0.0, %v2813
      %v2815 = vpop.f32.mrb[0].mxu0
      %2816 = vmatprep.mubr.f32.mxu0 0.0
      %2817 = vmatmul.mubr.f32.gmra.mrb[0].mxu0 %v2358
      %v2818 = vpop.f32.mrb[0].mxu0
      %v2819 = vadd.f32 0.0, %v2818
      %v2820 = vpop.f32.mrb[0].mxu0
      %2821 = vmatprep.mubr.f32.mxu0 0.0
      %2822 = vmatmul.mubr.f32.gmra.mrb[0].mxu0 %v2360
      %v2823 = vpop.f32.mrb[0].mxu0
      %v2824 = vadd.f32 0.0, %v2823
      %v2825 = vpop.f32.mrb[0].mxu0
      %2826 = vmatprep.mubr.f32.mxu0 0.0
      %2827 = vmatmul.mubr.f32.gmra.mrb[0].mxu0 %v2362
      %v2828 = vpop.f32.mrb[0].mxu0
      %v2829 = vadd.f32 0.0, %v2828
      %v2830 = vpop.f32.mrb[0].mxu0
      %2831 = vmatprep.mubr.f32.mxu0 0.0
      %2832 = vmatmul.mubr.f32.gmra.mrb[0].mxu0 %v2364
      %v2833 = vpop.f32.mrb[0].mxu0
      %v2834 = vadd.f32 0.0, %v2833
      %v2835 = vpop.f32.mrb[0].mxu0
      %2836 = vmatprep.mubr.f32.mxu0 0.0
      %2837 = vmatmul.mubr.f32.gmra.mrb[0].mxu0 %v2366
      %v2838 = vpop.f32.mrb[0].mxu0
      %v2839 = vadd.f32 0.0, %v2838
      %v2840 = vpop.f32.mrb[0].mxu0
      %2841 = vmatprep.mubr.f32.mxu0 0.0
      %2842 = vmatmul.mubr.f32.gmra.mrb[0].mxu0 %v2368
      %v2843 = vpop.f32.mrb[0].mxu0
      %v2844 = vadd.f32 0.0, %v2843
      %v2845 = vpop.f32.mrb[0].mxu0
      %2846 = vmatprep.mubr.f32.mxu0 0.0
      %2847 = vmatmul.mubr.f32.gmra.mrb[0].mxu0 %v2370
      %v2848 = vpop.f32.mrb[0].mxu0
      %v2849 = vadd.f32 0.0, %v2848
      %v2850 = vpop.f32.mrb[0].mxu0
      %2851 = vmatprep.mubr.f32.mxu0 0.0
      %2852 = vmatmul.mubr.f32.gmra.mrb[0].mxu0 %v2372
      %v2853 = vpop.f32.mrb[0].mxu0
      %v2854 = vadd.f32 0.0, %v2853
      %v2855 = vpop.f32.mrb[0].mxu0
      %2856 = vmatprep.mubr.f32.mxu0 0.0
      %2857 = vmatmul.mubr.f32.gmra.mrb[0].mxu0 %v2374
      %v2858 = vpop.f32.mrb[0].mxu0
      %v2859 = vadd.f32 0.0, %v2858
      %v2860 = vpop.f32.mrb[0].mxu0
      %2861 = vmatprep.mubr.f32.mxu0 0.0
      %2862 = vmatmul.mubr.f32.gmra.mrb[0].mxu0 %v2376
      %v2863 = vpop.f32.mrb[0].mxu0
      %v2864 = vadd.f32 0.0, %v2863
      %v2865 = vpop.f32.mrb[0].mxu0
      %2866 = vmatprep.mubr.f32.mxu0 0.0
      %2867 = vmatmul.mubr.f32.gmra.mrb[0].mxu0 %v2378
      %v2868 = vpop.f32.mrb[0].mxu0
      %v2869 = vadd.f32 0.0, %v2868
      %v2870 = vpop.f32.mrb[0].mxu0
      %2871 = vmatprep.mubr.f32.mxu0 0.0
      %2872 = vmatmul.mubr.f32.gmra.mrb[0].mxu0 %v2380
      %v2873 = vpop.f32.mrb[0].mxu0
      %v2874 = vadd.f32 0.0, %v2873
      %v2875 = vpop.f32.mrb[0].mxu0
      %2876 = vmatprep.mubr.f32.mxu0 0.0
      %2877 = vmatmul.mubr.f32.gmra.mrb[0].mxu0 %v2382
      %v2878 = vpop.f32.mrb[0].mxu0
      %v2879 = vadd.f32 0.0, %v2878
      %v2880 = vpop.f32.mrb[0].mxu0
      %2881 = vmatprep.mubr.f32.mxu0 0.0
      %2882 = vmatmul.mubr.f32.gmra.mrb[0].mxu0 %v2384
      %v2883 = vpop.f32.mrb[0].mxu0
      %v2884 = vadd.f32 0.0, %v2883
      %v2885 = vpop.f32.mrb[0].mxu0
      %2886 = vmatprep.mubr.f32.mxu0 0.0
      %2887 = vmatmul.mubr.f32.gmra.mrb[0].mxu0 %v2386
      %v2888 = vpop.f32.mrb[0].mxu0
      %v2889 = vadd.f32 0.0, %v2888
      %v2890 = vpop.f32.mrb[0].mxu0
      %2891 = vmatprep.mubr.f32.mxu0 0.0
      %2892 = vmatmul.mubr.f32.gmra.mrb[0].mxu0 %v2388
      %v2893 = vpop.f32.mrb[0].mxu0
      %v2894 = vadd.f32 0.0, %v2893
      %v2895 = vpop.f32.mrb[0].mxu0
      %2896 = vmatprep.mubr.f32.mxu0 0.0
      %2897 = vmatmul.mubr.f32.gmra.mrb[0].mxu0 %v2390
      %v2898 = vpop.f32.mrb[0].mxu0
      %v2899 = vadd.f32 0.0, %v2898
      %v2900 = vpop.f32.mrb[0].mxu0
      %2901 = vmatprep.mubr.f32.mxu0 0.0
      %2902 = vmatmul.mubr.f32.gmra.mrb[0].mxu0 %v2392
      %v2903 = vpop.f32.mrb[0].mxu0
      %v2904 = vadd.f32 0.0, %v2903
      %v2905 = vpop.f32.mrb[0].mxu0
      %2906 = vmatprep.mubr.f32.mxu0 0.0
      %2907 = vmatmul.mubr.f32.gmra.mrb[0].mxu0 %v2394
      %v2908 = vpop.f32.mrb[0].mxu0
      %v2909 = vadd.f32 0.0, %v2908
      %v2910 = vpop.f32.mrb[0].mxu0
      %2911 = vmatprep.mubr.f32.mxu0 0.0
      %2912 = vmatmul.mubr.f32.gmra.mrb[0].mxu0 %v2396
      %v2913 = vpop.f32.mrb[0].mxu0
      %v2914 = vadd.f32 0.0, %v2913
      %v2915 = vpop.f32.mrb[0].mxu0
      %2916 = vmatprep.mubr.f32.mxu0 0.0
      %2917 = vmatmul.mubr.f32.gmra.mrb[0].mxu0 %v2398
      %v2918 = vpop.f32.mrb[0].mxu0
      %v2919 = vadd.f32 0.0, %v2918
      %v2920 = vpop.f32.mrb[0].mxu0
      %2921 = vmatprep.mubr.f32.mxu0 0.0
      %2922 = vmatmul.mubr.f32.gmra.mrb[0].mxu0 %v2400
      %v2923 = vpop.f32.mrb[0].mxu0
      %v2924 = vadd.f32 0.0, %v2923
      %v2925 = vpop.f32.mrb[0].mxu0
      %2926 = vmatprep.mubr.f32.mxu0 0.0
      %2927 = vmatmul.mubr.f32.gmra.mrb[0].mxu0 %v2402
      %v2928 = vpop.f32.mrb[0].mxu0
      %v2929 = vadd.f32 0.0, %v2928
      %v2930 = vpop.f32.mrb[0].mxu0
      %2931 = vmatprep.mubr.f32.mxu0 0.0
      %2932 = vmatmul.mubr.f32.gmra.mrb[0].mxu0 %v2404
      %v2933 = vpop.f32.mrb[0].mxu0
      %v2934 = vadd.f32 0.0, %v2933
      %v2935 = vpop.f32.mrb[0].mxu0
      %2936 = vmatprep.mubr.f32.mxu0 0.0
      %2937 = vmatmul.mubr.f32.gmra.mrb[0].mxu0 %v2406
      %v2938 = vpop.f32.mrb[0].mxu0
      %v2939 = vadd.f32 0.0, %v2938
      %v2940 = vpop.f32.mrb[0].mxu0
      %2941 = vmatprep.mubr.f32.mxu0 0.0
      %2942 = vmatmul.mubr.f32.gmra.mrb[0].mxu0 %v2700
      %v2943 = vpop.f32.mrb[0].mxu0
      %v2944 = vadd.f32 0.0, %v2943
      %v2945 = vpop.f32.mrb[0].mxu0
      %2946 = vmatprep.mubr.f32.mxu0 0.0
      %2947 = vmatmul.mubr.f32.gmra.mrb[0].mxu0 %v2702
      %v2948 = vpop.f32.mrb[0].mxu0
      %v2949 = vadd.f32 0.0, %v2948
      %v2950 = vpop.f32.mrb[0].mxu0
      %2951 = vdwg.mxu0
      %v2952 = vadd.f32 %v2656, %v2774
      %v2953 = vadd.f32 %v2657, %v2779
      %v2954 = vadd.f32 %v2658, %v2784
      %v2955 = vadd.f32 %v2659, %v2789
      %v2956 = vadd.f32 %v2660, %v2794
      %v2957 = vadd.f32 %v2661, %v2799
      %v2958 = vadd.f32 %v2662, %v2804
      %v2959 = vadd.f32 %v2663, %v2809
      %v2960 = vadd.f32 %v2664, %v2814
      %v2961 = vadd.f32 %v2665, %v2819
      %v2962 = vadd.f32 %v2666, %v2824
      %v2963 = vadd.f32 %v2667, %v2829
      %v2964 = vadd.f32 %v2668, %v2834
      %v2965 = vadd.f32 %v2669, %v2839
      %v2966 = vadd.f32 %v2670, %v2844
      %v2967 = vadd.f32 %v2671, %v2849
      %v2968 = vadd.f32 %v2672, %v2854
      %v2969 = vadd.f32 %v2673, %v2859
      %v2970 = vadd.f32 %v2674, %v2864
      %v2971 = vadd.f32 %v2675, %v2869
      %v2972 = vadd.f32 %v2676, %v2874
      %v2973 = vadd.f32 %v2677, %v2879
      %v2974 = vadd.f32 %v2678, %v2884
      %v2975 = vadd.f32 %v2679, %v2889
      %v2976 = vadd.f32 %v2680, %v2894
      %v2977 = vadd.f32 %v2681, %v2899
      %v2978 = vadd.f32 %v2682, %v2904
      %v2979 = vadd.f32 %v2683, %v2909
      %v2980 = vadd.f32 %v2684, %v2914
      %v2981 = vadd.f32 %v2685, %v2919
      %v2982 = vadd.f32 %v2686, %v2924
      %v2983 = vadd.f32 %v2687, %v2929
      %v2984 = vadd.f32 %v2688, %v2934
      %v2985 = vadd.f32 %v2689, %v2939
      %v2986 = vadd.f32 %v2690, %v2944
      %v2987 = vadd.f32 %v2691, %v2949
      %s2988 = scalar_lea.vmem %s1, 28
      %v2989 = vld [vmem:[%s2988] sm:$0xf]
      %vm2990 = vcmask 1042432
      %v2991 = vrot.slane %v229, 5
      %v2992 = vrot.slane %v230, 5
      %v2993 = vsel %vm2990, %v2991, %v2992
      %v2994 = vrot.slane %v231, 5
      %v2995 = vsel %vm2990, %v2992, %v2994
      %v2996 = vrot.slane %v232, 5
      %v2997 = vsel %vm2990, %v2994, %v2996
      %v2998 = vrot.slane %v233, 5
      %v2999 = vsel %vm2990, %v2996, %v2998
      %v3000 = vrot.slane %v234, 5
      %v3001 = vsel %vm2990, %v2998, %v3000
      %v3002 = vrot.slane %v235, 5
      %v3003 = vsel %vm2990, %v3000, %v3002
      %v3004 = vrot.slane %v236, 5
      %v3005 = vsel %vm2990, %v3002, %v3004
      %v3006 = vrot.slane %v237, 5
      %v3007 = vsel %vm2990, %v3004, %v3006
      %v3008 = vrot.slane %v238, 5
      %v3009 = vsel %vm2990, %v3006, %v3008
      %v3010 = vrot.slane %v239, 5
      %v3011 = vsel %vm2990, %v3008, %v3010
      %v3012 = vrot.slane %v240, 5
      %v3013 = vsel %vm2990, %v3010, %v3012
      %v3014 = vrot.slane %v241, 5
      %v3015 = vsel %vm2990, %v3012, %v3014
      %v3016 = vrot.slane %v242, 5
      %v3017 = vsel %vm2990, %v3014, %v3016
      %v3018 = vrot.slane %v243, 5
      %v3019 = vsel %vm2990, %v3016, %v3018
      %v3020 = vrot.slane %v244, 5
      %v3021 = vsel %vm2990, %v3018, %v3020
      %v3022 = vrot.slane %v245, 5
      %v3023 = vsel %vm2990, %v3020, %v3022
      %v3024 = vrot.slane %v246, 5
      %v3025 = vsel %vm2990, %v3022, %v3024
      %v3026 = vrot.slane %v247, 5
      %v3027 = vsel %vm2990, %v3024, %v3026
      %v3028 = vrot.slane %v248, 5
      %v3029 = vsel %vm2990, %v3026, %v3028
      %v3030 = vrot.slane %v249, 5
      %v3031 = vsel %vm2990, %v3028, %v3030
      %v3032 = vrot.slane %v250, 5
      %v3033 = vsel %vm2990, %v3030, %v3032
      %v3034 = vrot.slane %v251, 5
      %v3035 = vsel %vm2990, %v3032, %v3034
      %v3036 = vrot.slane %v252, 5
      %v3037 = vsel %vm2990, %v3034, %v3036
      %v3038 = vrot.slane %v253, 5
      %v3039 = vsel %vm2990, %v3036, %v3038
      %v3040 = vrot.slane %v254, 5
      %v3041 = vsel %vm2990, %v3038, %v3040
      %v3042 = vrot.slane %v255, 5
      %v3043 = vsel %vm2990, %v3040, %v3042
      %v3044 = vrot.slane %v256, 5
      %v3045 = vsel %vm2990, %v3042, %v3044
      %v3046 = vrot.slane %v257, 5
      %v3047 = vsel %vm2990, %v3044, %v3046
      %v3048 = vrot.slane %v258, 5
      %v3049 = vsel %vm2990, %v3046, %v3048
      %v3050 = vrot.slane %v259, 5
      %v3051 = vsel %vm2990, %v3048, %v3050
      %v3052 = vrot.slane %v260, 5
      %v3053 = vsel %vm2990, %v3050, %v3052
      %v3054 = vrot.slane %v261, 5
      %v3055 = vsel %vm2990, %v3052, %v3054
      %v3056 = vrot.slane %v262, 5
      %v3057 = vsel %vm2990, %v3054, %v3056
      %v3058 = vrot.slane %v263, 5
      %v3059 = vsel %vm2990, %v3056, %v3058
      %v3060 = vrot.slane %v264, 5
      %v3061 = vsel %vm2990, %v3058, %v3060
      %v3062 = vrot.slane %v265, 5
      %v3063 = vsel %vm2990, %v3060, %v3062
      %v3064 = vsel %vm459, %v2993, 0
      %v3066 = vsel %vm459, %v2995, 0
      %v3068 = vsel %vm459, %v2997, 0
      %v3070 = vsel %vm459, %v2999, 0
      %v3072 = vsel %vm459, %v3001, 0
      %v3074 = vsel %vm459, %v3003, 0
      %v3076 = vsel %vm459, %v3005, 0
      %v3078 = vsel %vm459, %v3007, 0
      %v3080 = vsel %vm459, %v3009, 0
      %v3082 = vsel %vm459, %v3011, 0
      %v3084 = vsel %vm459, %v3013, 0
      %v3086 = vsel %vm459, %v3015, 0
      %v3088 = vsel %vm459, %v3017, 0
      %v3090 = vsel %vm459, %v3019, 0
      %v3092 = vsel %vm459, %v3021, 0
      %v3094 = vsel %vm459, %v3023, 0
      %v3096 = vsel %vm459, %v3025, 0
      %v3098 = vsel %vm459, %v3027, 0
      %v3100 = vsel %vm459, %v3029, 0
      %v3102 = vsel %vm459, %v3031, 0
      %v3104 = vsel %vm459, %v3033, 0
      %v3106 = vsel %vm459, %v3035, 0
      %v3108 = vsel %vm459, %v3037, 0
      %v3110 = vsel %vm459, %v3039, 0
      %v3112 = vsel %vm459, %v3041, 0
      %v3114 = vsel %vm459, %v3043, 0
      %v3116 = vsel %vm459, %v3045, 0
      %v3118 = vsel %vm459, %v3047, 0
      %v3120 = vsel %vm459, %v3049, 0
      %v3122 = vsel %vm459, %v3051, 0
      %v3124 = vsel %vm459, %v3053, 0
      %v3126 = vsel %vm459, %v3055, 0
      %v3128 = vsel %vm459, %v3057, 0
      %v3130 = vsel %vm459, %v3059, 0
      %v3132 = vsel %vm459, %v3061, 0
      %v3134 = vsel %vm459, %v3063, 0
      %v3137 = vsel %vm532, %v2989, 0
      %3139 = vmatprep.subr.mxu0 0.0
      %3140 = vmatpush1.msra.mxu0 %v3137
      %3141 = vmatprep.subr.mxu0 0.0
      %3142 = vmatpush1.msra.mxu0 0.0
      %3143 = vmatprep.subr.mxu0 0.0
      %3144 = vmatpush1.msra.mxu0 0.0
      %3145 = vmatprep.subr.mxu0 0.0
      %3146 = vmatpush1.msra.mxu0 0.0
      %3147 = vmatprep.subr.mxu0 0.0
      %3148 = vmatpush1.msra.mxu0 0.0
      %3149 = vmatprep.subr.mxu0 0.0
      %3150 = vmatpush1.msra.mxu0 0.0
      %3151 = vmatprep.subr.mxu0 0.0
      %3152 = vmatpush1.msra.mxu0 0.0
      %3153 = vmatprep.subr.mxu0 0.0
      %3154 = vmatpush1.msra.mxu0 0.0
      %3155 = vmatprep.subr.mxu0 0.0
      %3156 = vmatpush1.msra.mxu0 0.0
      %3157 = vmatprep.subr.mxu0 0.0
      %3158 = vmatpush1.msra.mxu0 0.0
      %3159 = vmatprep.subr.mxu0 0.0
      %3160 = vmatpush1.msra.mxu0 0.0
      %3161 = vmatprep.subr.mxu0 0.0
      %3162 = vmatpush1.msra.mxu0 0.0
      %3163 = vmatprep.subr.mxu0 0.0
      %3164 = vmatpush1.msra.mxu0 0.0
      %3165 = vmatprep.subr.mxu0 0.0
      %3166 = vmatpush1.msra.mxu0 0.0
      %3167 = vmatprep.subr.mxu0 0.0
      %3168 = vmatpush1.msra.mxu0 0.0
      %3169 = vmatprep.subr.mxu0 0.0
      %3170 = vmatpush1.msra.mxu0 0.0
      %3171 = vmatprep.subr.mxu0 0.0
      %3172 = vmatpush1.msra.mxu0 0.0
      %3173 = vmatprep.subr.mxu0 0.0
      %3174 = vmatpush1.msra.mxu0 0.0
      %3175 = vmatprep.subr.mxu0 0.0
      %3176 = vmatpush1.msra.mxu0 0.0
      %3177 = vmatprep.subr.mxu0 0.0
      %3178 = vmatpush1.msra.mxu0 0.0
      %3179 = vmatprep.subr.mxu0 0.0
      %3180 = vmatpush1.msra.mxu0 0.0
      %3181 = vmatprep.subr.mxu0 0.0
      %3182 = vmatpush1.msra.mxu0 0.0
      %3183 = vmatprep.subr.mxu0 0.0
      %3184 = vmatpush1.msra.mxu0 0.0
      %3185 = vmatprep.subr.mxu0 0.0
      %3186 = vmatpush1.msra.mxu0 0.0
      %3187 = vmatprep.subr.mxu0 0.0
      %3188 = vmatpush1.msra.mxu0 0.0
      %3189 = vmatprep.subr.mxu0 0.0
      %3190 = vmatpush1.msra.mxu0 0.0
      %3191 = vmatprep.subr.mxu0 0.0
      %3192 = vmatpush1.msra.mxu0 0.0
      %3193 = vmatprep.subr.mxu0 0.0
      %3194 = vmatpush1.msra.mxu0 0.0
      %3195 = vmatprep.subr.mxu0 0.0
      %3196 = vmatpush1.msra.mxu0 0.0
      %3197 = vmatprep.subr.mxu0 0.0
      %3198 = vmatpush1.msra.mxu0 0.0
      %3199 = vmatprep.subr.mxu0 0.0
      %3200 = vmatpush1.msra.mxu0 0.0
      %3201 = vmatprep.subr.mxu0 0.0
      %3202 = vmatpush1.msra.mxu0 0.0
      %3203 = vmatprep.mubr.f32.mxu0 0.0
      %3204 = vmatmul.mubr.f32.gmra.mrb[0].mxu0 %v3064
      %v3205 = vpop.f32.mrb[0].mxu0
      %v3206 = vadd.f32 0.0, %v3205
      %v3207 = vpop.f32.mrb[0].mxu0
      %3208 = vmatprep.mubr.f32.mxu0 0.0
      %3209 = vmatmul.mubr.f32.gmra.mrb[0].mxu0 %v3066
      %v3210 = vpop.f32.mrb[0].mxu0
      %v3211 = vadd.f32 0.0, %v3210
      %v3212 = vpop.f32.mrb[0].mxu0
      %3213 = vmatprep.mubr.f32.mxu0 0.0
      %3214 = vmatmul.mubr.f32.gmra.mrb[0].mxu0 %v3068
      %v3215 = vpop.f32.mrb[0].mxu0
      %v3216 = vadd.f32 0.0, %v3215
      %v3217 = vpop.f32.mrb[0].mxu0
      %3218 = vmatprep.mubr.f32.mxu0 0.0
      %3219 = vmatmul.mubr.f32.gmra.mrb[0].mxu0 %v3070
      %v3220 = vpop.f32.mrb[0].mxu0
      %v3221 = vadd.f32 0.0, %v3220
      %v3222 = vpop.f32.mrb[0].mxu0
      %3223 = vmatprep.mubr.f32.mxu0 0.0
      %3224 = vmatmul.mubr.f32.gmra.mrb[0].mxu0 %v3072
      %v3225 = vpop.f32.mrb[0].mxu0
      %v3226 = vadd.f32 0.0, %v3225
      %v3227 = vpop.f32.mrb[0].mxu0
      %3228 = vmatprep.mubr.f32.mxu0 0.0
      %3229 = vmatmul.mubr.f32.gmra.mrb[0].mxu0 %v3074
      %v3230 = vpop.f32.mrb[0].mxu0
      %v3231 = vadd.f32 0.0, %v3230
      %v3232 = vpop.f32.mrb[0].mxu0
      %3233 = vmatprep.mubr.f32.mxu0 0.0
      %3234 = vmatmul.mubr.f32.gmra.mrb[0].mxu0 %v3076
      %v3235 = vpop.f32.mrb[0].mxu0
      %v3236 = vadd.f32 0.0, %v3235
      %v3237 = vpop.f32.mrb[0].mxu0
      %3238 = vmatprep.mubr.f32.mxu0 0.0
      %3239 = vmatmul.mubr.f32.gmra.mrb[0].mxu0 %v3078
      %v3240 = vpop.f32.mrb[0].mxu0
      %v3241 = vadd.f32 0.0, %v3240
      %v3242 = vpop.f32.mrb[0].mxu0
      %3243 = vmatprep.mubr.f32.mxu0 0.0
      %3244 = vmatmul.mubr.f32.gmra.mrb[0].mxu0 %v3080
      %v3245 = vpop.f32.mrb[0].mxu0
      %v3246 = vadd.f32 0.0, %v3245
      %v3247 = vpop.f32.mrb[0].mxu0
      %3248 = vmatprep.mubr.f32.mxu0 0.0
      %3249 = vmatmul.mubr.f32.gmra.mrb[0].mxu0 %v3082
      %v3250 = vpop.f32.mrb[0].mxu0
      %v3251 = vadd.f32 0.0, %v3250
      %v3252 = vpop.f32.mrb[0].mxu0
      %3253 = vmatprep.mubr.f32.mxu0 0.0
      %3254 = vmatmul.mubr.f32.gmra.mrb[0].mxu0 %v3084
      %v3255 = vpop.f32.mrb[0].mxu0
      %v3256 = vadd.f32 0.0, %v3255
      %v3257 = vpop.f32.mrb[0].mxu0
      %3258 = vmatprep.mubr.f32.mxu0 0.0
      %3259 = vmatmul.mubr.f32.gmra.mrb[0].mxu0 %v3086
      %v3260 = vpop.f32.mrb[0].mxu0
      %v3261 = vadd.f32 0.0, %v3260
      %v3262 = vpop.f32.mrb[0].mxu0
      %3263 = vmatprep.mubr.f32.mxu0 0.0
      %3264 = vmatmul.mubr.f32.gmra.mrb[0].mxu0 %v3088
      %v3265 = vpop.f32.mrb[0].mxu0
      %v3266 = vadd.f32 0.0, %v3265
      %v3267 = vpop.f32.mrb[0].mxu0
      %3268 = vmatprep.mubr.f32.mxu0 0.0
      %3269 = vmatmul.mubr.f32.gmra.mrb[0].mxu0 %v3090
      %v3270 = vpop.f32.mrb[0].mxu0
      %v3271 = vadd.f32 0.0, %v3270
      %v3272 = vpop.f32.mrb[0].mxu0
      %3273 = vmatprep.mubr.f32.mxu0 0.0
      %3274 = vmatmul.mubr.f32.gmra.mrb[0].mxu0 %v3092
      %v3275 = vpop.f32.mrb[0].mxu0
      %v3276 = vadd.f32 0.0, %v3275
      %v3277 = vpop.f32.mrb[0].mxu0
      %3278 = vmatprep.mubr.f32.mxu0 0.0
      %3279 = vmatmul.mubr.f32.gmra.mrb[0].mxu0 %v3094
      %v3280 = vpop.f32.mrb[0].mxu0
      %v3281 = vadd.f32 0.0, %v3280
      %v3282 = vpop.f32.mrb[0].mxu0
      %3283 = vmatprep.mubr.f32.mxu0 0.0
      %3284 = vmatmul.mubr.f32.gmra.mrb[0].mxu0 %v3096
      %v3285 = vpop.f32.mrb[0].mxu0
      %v3286 = vadd.f32 0.0, %v3285
      %v3287 = vpop.f32.mrb[0].mxu0
      %3288 = vmatprep.mubr.f32.mxu0 0.0
      %3289 = vmatmul.mubr.f32.gmra.mrb[0].mxu0 %v3098
      %v3290 = vpop.f32.mrb[0].mxu0
      %v3291 = vadd.f32 0.0, %v3290
      %v3292 = vpop.f32.mrb[0].mxu0
      %3293 = vmatprep.mubr.f32.mxu0 0.0
      %3294 = vmatmul.mubr.f32.gmra.mrb[0].mxu0 %v3100
      %v3295 = vpop.f32.mrb[0].mxu0
      %v3296 = vadd.f32 0.0, %v3295
      %v3297 = vpop.f32.mrb[0].mxu0
      %3298 = vmatprep.mubr.f32.mxu0 0.0
      %3299 = vmatmul.mubr.f32.gmra.mrb[0].mxu0 %v3102
      %v3300 = vpop.f32.mrb[0].mxu0
      %v3301 = vadd.f32 0.0, %v3300
      %v3302 = vpop.f32.mrb[0].mxu0
      %3303 = vmatprep.mubr.f32.mxu0 0.0
      %3304 = vmatmul.mubr.f32.gmra.mrb[0].mxu0 %v3104
      %v3305 = vpop.f32.mrb[0].mxu0
      %v3306 = vadd.f32 0.0, %v3305
      %v3307 = vpop.f32.mrb[0].mxu0
      %3308 = vmatprep.mubr.f32.mxu0 0.0
      %3309 = vmatmul.mubr.f32.gmra.mrb[0].mxu0 %v3106
      %v3310 = vpop.f32.mrb[0].mxu0
      %v3311 = vadd.f32 0.0, %v3310
      %v3312 = vpop.f32.mrb[0].mxu0
      %3313 = vmatprep.mubr.f32.mxu0 0.0
      %3314 = vmatmul.mubr.f32.gmra.mrb[0].mxu0 %v3108
      %v3315 = vpop.f32.mrb[0].mxu0
      %v3316 = vadd.f32 0.0, %v3315
      %v3317 = vpop.f32.mrb[0].mxu0
      %3318 = vmatprep.mubr.f32.mxu0 0.0
      %3319 = vmatmul.mubr.f32.gmra.mrb[0].mxu0 %v3110
      %v3320 = vpop.f32.mrb[0].mxu0
      %v3321 = vadd.f32 0.0, %v3320
      %v3322 = vpop.f32.mrb[0].mxu0
      %3323 = vmatprep.mubr.f32.mxu0 0.0
      %3324 = vmatmul.mubr.f32.gmra.mrb[0].mxu0 %v3112
      %v3325 = vpop.f32.mrb[0].mxu0
      %v3326 = vadd.f32 0.0, %v3325
      %v3327 = vpop.f32.mrb[0].mxu0
      %3328 = vmatprep.mubr.f32.mxu0 0.0
      %3329 = vmatmul.mubr.f32.gmra.mrb[0].mxu0 %v3114
      %v3330 = vpop.f32.mrb[0].mxu0
      %v3331 = vadd.f32 0.0, %v3330
      %v3332 = vpop.f32.mrb[0].mxu0
      %3333 = vmatprep.mubr.f32.mxu0 0.0
      %3334 = vmatmul.mubr.f32.gmra.mrb[0].mxu0 %v3116
      %v3335 = vpop.f32.mrb[0].mxu0
      %v3336 = vadd.f32 0.0, %v3335
      %v3337 = vpop.f32.mrb[0].mxu0
      %3338 = vmatprep.mubr.f32.mxu0 0.0
      %3339 = vmatmul.mubr.f32.gmra.mrb[0].mxu0 %v3118
      %v3340 = vpop.f32.mrb[0].mxu0
      %v3341 = vadd.f32 0.0, %v3340
      %v3342 = vpop.f32.mrb[0].mxu0
      %3343 = vmatprep.mubr.f32.mxu0 0.0
      %3344 = vmatmul.mubr.f32.gmra.mrb[0].mxu0 %v3120
      %v3345 = vpop.f32.mrb[0].mxu0
      %v3346 = vadd.f32 0.0, %v3345
      %v3347 = vpop.f32.mrb[0].mxu0
      %3348 = vmatprep.mubr.f32.mxu0 0.0
      %3349 = vmatmul.mubr.f32.gmra.mrb[0].mxu0 %v3122
      %v3350 = vpop.f32.mrb[0].mxu0
      %v3351 = vadd.f32 0.0, %v3350
      %v3352 = vpop.f32.mrb[0].mxu0
      %3353 = vmatprep.mubr.f32.mxu0 0.0
      %3354 = vmatmul.mubr.f32.gmra.mrb[0].mxu0 %v3124
      %v3355 = vpop.f32.mrb[0].mxu0
      %v3356 = vadd.f32 0.0, %v3355
      %v3357 = vpop.f32.mrb[0].mxu0
      %3358 = vmatprep.mubr.f32.mxu0 0.0
      %3359 = vmatmul.mubr.f32.gmra.mrb[0].mxu0 %v3126
      %v3360 = vpop.f32.mrb[0].mxu0
      %v3361 = vadd.f32 0.0, %v3360
      %v3362 = vpop.f32.mrb[0].mxu0
      %3363 = vmatprep.mubr.f32.mxu0 0.0
      %3364 = vmatmul.mubr.f32.gmra.mrb[0].mxu0 %v3128
      %v3365 = vpop.f32.mrb[0].mxu0
      %v3366 = vadd.f32 0.0, %v3365
      %v3367 = vpop.f32.mrb[0].mxu0
      %3368 = vmatprep.mubr.f32.mxu0 0.0
      %3369 = vmatmul.mubr.f32.gmra.mrb[0].mxu0 %v3130
      %v3370 = vpop.f32.mrb[0].mxu0
      %v3371 = vadd.f32 0.0, %v3370
      %v3372 = vpop.f32.mrb[0].mxu0
      %3373 = vmatprep.mubr.f32.mxu0 0.0
      %3374 = vmatmul.mubr.f32.gmra.mrb[0].mxu0 %v3132
      %v3375 = vpop.f32.mrb[0].mxu0
      %v3376 = vadd.f32 0.0, %v3375
      %v3377 = vpop.f32.mrb[0].mxu0
      %3378 = vmatprep.mubr.f32.mxu0 0.0
      %3379 = vmatmul.mubr.f32.gmra.mrb[0].mxu0 %v3134
      %v3380 = vpop.f32.mrb[0].mxu0
      %v3381 = vadd.f32 0.0, %v3380
      %v3382 = vpop.f32.mrb[0].mxu0
      %3383 = vdwg.mxu0
      %v3384 = vadd.f32 %v2952, %v3206
      %v3385 = vadd.f32 %v2953, %v3211
      %v3386 = vadd.f32 %v2954, %v3216
      %v3387 = vadd.f32 %v2955, %v3221
      %v3388 = vadd.f32 %v2956, %v3226
      %v3389 = vadd.f32 %v2957, %v3231
      %v3390 = vadd.f32 %v2958, %v3236
      %v3391 = vadd.f32 %v2959, %v3241
      %v3392 = vadd.f32 %v2960, %v3246
      %v3393 = vadd.f32 %v2961, %v3251
      %v3394 = vadd.f32 %v2962, %v3256
      %v3395 = vadd.f32 %v2963, %v3261
      %v3396 = vadd.f32 %v2964, %v3266
      %v3397 = vadd.f32 %v2965, %v3271
      %v3398 = vadd.f32 %v2966, %v3276
      %v3399 = vadd.f32 %v2967, %v3281
      %v3400 = vadd.f32 %v2968, %v3286
      %v3401 = vadd.f32 %v2969, %v3291
      %v3402 = vadd.f32 %v2970, %v3296
      %v3403 = vadd.f32 %v2971, %v3301
      %v3404 = vadd.f32 %v2972, %v3306
      %v3405 = vadd.f32 %v2973, %v3311
      %v3406 = vadd.f32 %v2974, %v3316
      %v3407 = vadd.f32 %v2975, %v3321
      %v3408 = vadd.f32 %v2976, %v3326
      %v3409 = vadd.f32 %v2977, %v3331
      %v3410 = vadd.f32 %v2978, %v3336
      %v3411 = vadd.f32 %v2979, %v3341
      %v3412 = vadd.f32 %v2980, %v3346
      %v3413 = vadd.f32 %v2981, %v3351
      %v3414 = vadd.f32 %v2982, %v3356
      %v3415 = vadd.f32 %v2983, %v3361
      %v3416 = vadd.f32 %v2984, %v3366
      %v3417 = vadd.f32 %v2985, %v3371
      %v3418 = vadd.f32 %v2986, %v3376
      %v3419 = vadd.f32 %v2987, %v3381
      %s3420 = scalar_lea.vmem %s1, 32
      %v3421 = vld [vmem:[%s3420] sm:$0xf]
      %vm3422 = vcmask 1041408
      %v3423 = vrot.slane %v229, 6
      %v3424 = vrot.slane %v230, 6
      %v3425 = vsel %vm3422, %v3423, %v3424
      %v3426 = vrot.slane %v231, 6
      %v3427 = vsel %vm3422, %v3424, %v3426
      %v3428 = vrot.slane %v232, 6
      %v3429 = vsel %vm3422, %v3426, %v3428
      %v3430 = vrot.slane %v233, 6
      %v3431 = vsel %vm3422, %v3428, %v3430
      %v3432 = vrot.slane %v234, 6
      %v3433 = vsel %vm3422, %v3430, %v3432
      %v3434 = vrot.slane %v235, 6
      %v3435 = vsel %vm3422, %v3432, %v3434
      %v3436 = vrot.slane %v236, 6
      %v3437 = vsel %vm3422, %v3434, %v3436
      %v3438 = vrot.slane %v237, 6
      %v3439 = vsel %vm3422, %v3436, %v3438
      %v3440 = vrot.slane %v238, 6
      %v3441 = vsel %vm3422, %v3438, %v3440
      %v3442 = vrot.slane %v239, 6
      %v3443 = vsel %vm3422, %v3440, %v3442
      %v3444 = vrot.slane %v240, 6
      %v3445 = vsel %vm3422, %v3442, %v3444
      %v3446 = vrot.slane %v241, 6
      %v3447 = vsel %vm3422, %v3444, %v3446
      %v3448 = vrot.slane %v242, 6
      %v3449 = vsel %vm3422, %v3446, %v3448
      %v3450 = vrot.slane %v243, 6
      %v3451 = vsel %vm3422, %v3448, %v3450
      %v3452 = vrot.slane %v244, 6
      %v3453 = vsel %vm3422, %v3450, %v3452
      %v3454 = vrot.slane %v245, 6
      %v3455 = vsel %vm3422, %v3452, %v3454
      %v3456 = vrot.slane %v246, 6
      %v3457 = vsel %vm3422, %v3454, %v3456
      %v3458 = vrot.slane %v247, 6
      %v3459 = vsel %vm3422, %v3456, %v3458
      %v3460 = vrot.slane %v248, 6
      %v3461 = vsel %vm3422, %v3458, %v3460
      %v3462 = vrot.slane %v249, 6
      %v3463 = vsel %vm3422, %v3460, %v3462
      %v3464 = vrot.slane %v250, 6
      %v3465 = vsel %vm3422, %v3462, %v3464
      %v3466 = vrot.slane %v251, 6
      %v3467 = vsel %vm3422, %v3464, %v3466
      %v3468 = vrot.slane %v252, 6
      %v3469 = vsel %vm3422, %v3466, %v3468
      %v3470 = vrot.slane %v253, 6
      %v3471 = vsel %vm3422, %v3468, %v3470
      %v3472 = vrot.slane %v254, 6
      %v3473 = vsel %vm3422, %v3470, %v3472
      %v3474 = vrot.slane %v255, 6
      %v3475 = vsel %vm3422, %v3472, %v3474
      %v3476 = vrot.slane %v256, 6
      %v3477 = vsel %vm3422, %v3474, %v3476
      %v3478 = vrot.slane %v257, 6
      %v3479 = vsel %vm3422, %v3476, %v3478
      %v3480 = vrot.slane %v258, 6
      %v3481 = vsel %vm3422, %v3478, %v3480
      %v3482 = vrot.slane %v259, 6
      %v3483 = vsel %vm3422, %v3480, %v3482
      %v3484 = vrot.slane %v260, 6
      %v3485 = vsel %vm3422, %v3482, %v3484
      %v3486 = vrot.slane %v261, 6
      %v3487 = vsel %vm3422, %v3484, %v3486
      %v3488 = vrot.slane %v262, 6
      %v3489 = vsel %vm3422, %v3486, %v3488
      %v3490 = vrot.slane %v263, 6
      %v3491 = vsel %vm3422, %v3488, %v3490
      %v3492 = vrot.slane %v264, 6
      %v3493 = vsel %vm3422, %v3490, %v3492
      %v3494 = vrot.slane %v265, 6
      %v3495 = vsel %vm3422, %v3492, %v3494
      %v3496 = vsel %vm459, %v3425, 0
      %v3498 = vsel %vm459, %v3427, 0
      %v3500 = vsel %vm459, %v3429, 0
      %v3502 = vsel %vm459, %v3431, 0
      %v3504 = vsel %vm459, %v3433, 0
      %v3506 = vsel %vm459, %v3435, 0
      %v3508 = vsel %vm459, %v3437, 0
      %v3510 = vsel %vm459, %v3439, 0
      %v3512 = vsel %vm459, %v3441, 0
      %v3514 = vsel %vm459, %v3443, 0
      %v3516 = vsel %vm459, %v3445, 0
      %v3518 = vsel %vm459, %v3447, 0
      %v3520 = vsel %vm459, %v3449, 0
      %v3522 = vsel %vm459, %v3451, 0
      %v3524 = vsel %vm459, %v3453, 0
      %v3526 = vsel %vm459, %v3455, 0
      %v3528 = vsel %vm459, %v3457, 0
      %v3530 = vsel %vm459, %v3459, 0
      %v3532 = vsel %vm459, %v3461, 0
      %v3534 = vsel %vm459, %v3463, 0
      %v3536 = vsel %vm459, %v3465, 0
      %v3538 = vsel %vm459, %v3467, 0
      %v3540 = vsel %vm459, %v3469, 0
      %v3542 = vsel %vm459, %v3471, 0
      %v3544 = vsel %vm459, %v3473, 0
      %v3546 = vsel %vm459, %v3475, 0
      %v3548 = vsel %vm459, %v3477, 0
      %v3550 = vsel %vm459, %v3479, 0
      %v3552 = vsel %vm459, %v3481, 0
      %v3554 = vsel %vm459, %v3483, 0
      %v3556 = vsel %vm459, %v3485, 0
      %v3558 = vsel %vm459, %v3487, 0
      %v3560 = vsel %vm459, %v3489, 0
      %v3562 = vsel %vm459, %v3491, 0
      %v3564 = vsel %vm459, %v3493, 0
      %v3566 = vsel %vm459, %v3495, 0
      %v3569 = vsel %vm532, %v3421, 0
      %3571 = vmatprep.subr.mxu0 0.0
      %3572 = vmatpush1.msra.mxu0 %v3569
      %3573 = vmatprep.subr.mxu0 0.0
      %3574 = vmatpush1.msra.mxu0 0.0
      %3575 = vmatprep.subr.mxu0 0.0
      %3576 = vmatpush1.msra.mxu0 0.0
      %3577 = vmatprep.subr.mxu0 0.0
      %3578 = vmatpush1.msra.mxu0 0.0
      %3579 = vmatprep.subr.mxu0 0.0
      %3580 = vmatpush1.msra.mxu0 0.0
      %3581 = vmatprep.subr.mxu0 0.0
      %3582 = vmatpush1.msra.mxu0 0.0
      %3583 = vmatprep.subr.mxu0 0.0
      %3584 = vmatpush1.msra.mxu0 0.0
      %3585 = vmatprep.subr.mxu0 0.0
      %3586 = vmatpush1.msra.mxu0 0.0
      %3587 = vmatprep.subr.mxu0 0.0
      %3588 = vmatpush1.msra.mxu0 0.0
      %3589 = vmatprep.subr.mxu0 0.0
      %3590 = vmatpush1.msra.mxu0 0.0
      %3591 = vmatprep.subr.mxu0 0.0
      %3592 = vmatpush1.msra.mxu0 0.0
      %3593 = vmatprep.subr.mxu0 0.0
      %3594 = vmatpush1.msra.mxu0 0.0
      %3595 = vmatprep.subr.mxu0 0.0
      %3596 = vmatpush1.msra.mxu0 0.0
      %3597 = vmatprep.subr.mxu0 0.0
      %3598 = vmatpush1.msra.mxu0 0.0
      %3599 = vmatprep.subr.mxu0 0.0
      %3600 = vmatpush1.msra.mxu0 0.0
      %3601 = vmatprep.subr.mxu0 0.0
      %3602 = vmatpush1.msra.mxu0 0.0
      %3603 = vmatprep.subr.mxu0 0.0
      %3604 = vmatpush1.msra.mxu0 0.0
      %3605 = vmatprep.subr.mxu0 0.0
      %3606 = vmatpush1.msra.mxu0 0.0
      %3607 = vmatprep.subr.mxu0 0.0
      %3608 = vmatpush1.msra.mxu0 0.0
      %3609 = vmatprep.subr.mxu0 0.0
      %3610 = vmatpush1.msra.mxu0 0.0
      %3611 = vmatprep.subr.mxu0 0.0
      %3612 = vmatpush1.msra.mxu0 0.0
      %3613 = vmatprep.subr.mxu0 0.0
      %3614 = vmatpush1.msra.mxu0 0.0
      %3615 = vmatprep.subr.mxu0 0.0
      %3616 = vmatpush1.msra.mxu0 0.0
      %3617 = vmatprep.subr.mxu0 0.0
      %3618 = vmatpush1.msra.mxu0 0.0
      %3619 = vmatprep.subr.mxu0 0.0
      %3620 = vmatpush1.msra.mxu0 0.0
      %3621 = vmatprep.subr.mxu0 0.0
      %3622 = vmatpush1.msra.mxu0 0.0
      %3623 = vmatprep.subr.mxu0 0.0
      %3624 = vmatpush1.msra.mxu0 0.0
      %3625 = vmatprep.subr.mxu0 0.0
      %3626 = vmatpush1.msra.mxu0 0.0
      %3627 = vmatprep.subr.mxu0 0.0
      %3628 = vmatpush1.msra.mxu0 0.0
      %3629 = vmatprep.subr.mxu0 0.0
      %3630 = vmatpush1.msra.mxu0 0.0
      %3631 = vmatprep.subr.mxu0 0.0
      %3632 = vmatpush1.msra.mxu0 0.0
      %3633 = vmatprep.subr.mxu0 0.0
      %3634 = vmatpush1.msra.mxu0 0.0
      %3635 = vmatprep.mubr.f32.mxu0 0.0
      %3636 = vmatmul.mubr.f32.gmra.mrb[0].mxu0 %v3496
      %v3637 = vpop.f32.mrb[0].mxu0
      %v3638 = vadd.f32 0.0, %v3637
      %v3639 = vpop.f32.mrb[0].mxu0
      %3640 = vmatprep.mubr.f32.mxu0 0.0
      %3641 = vmatmul.mubr.f32.gmra.mrb[0].mxu0 %v3498
      %v3642 = vpop.f32.mrb[0].mxu0
      %v3643 = vadd.f32 0.0, %v3642
      %v3644 = vpop.f32.mrb[0].mxu0
      %3645 = vmatprep.mubr.f32.mxu0 0.0
      %3646 = vmatmul.mubr.f32.gmra.mrb[0].mxu0 %v3500
      %v3647 = vpop.f32.mrb[0].mxu0
      %v3648 = vadd.f32 0.0, %v3647
      %v3649 = vpop.f32.mrb[0].mxu0
      %3650 = vmatprep.mubr.f32.mxu0 0.0
      %3651 = vmatmul.mubr.f32.gmra.mrb[0].mxu0 %v3502
      %v3652 = vpop.f32.mrb[0].mxu0
      %v3653 = vadd.f32 0.0, %v3652
      %v3654 = vpop.f32.mrb[0].mxu0
      %3655 = vmatprep.mubr.f32.mxu0 0.0
      %3656 = vmatmul.mubr.f32.gmra.mrb[0].mxu0 %v3504
      %v3657 = vpop.f32.mrb[0].mxu0
      %v3658 = vadd.f32 0.0, %v3657
      %v3659 = vpop.f32.mrb[0].mxu0
      %3660 = vmatprep.mubr.f32.mxu0 0.0
      %3661 = vmatmul.mubr.f32.gmra.mrb[0].mxu0 %v3506
      %v3662 = vpop.f32.mrb[0].mxu0
      %v3663 = vadd.f32 0.0, %v3662
      %v3664 = vpop.f32.mrb[0].mxu0
      %3665 = vmatprep.mubr.f32.mxu0 0.0
      %3666 = vmatmul.mubr.f32.gmra.mrb[0].mxu0 %v3508
      %v3667 = vpop.f32.mrb[0].mxu0
      %v3668 = vadd.f32 0.0, %v3667
      %v3669 = vpop.f32.mrb[0].mxu0
      %3670 = vmatprep.mubr.f32.mxu0 0.0
      %3671 = vmatmul.mubr.f32.gmra.mrb[0].mxu0 %v3510
      %v3672 = vpop.f32.mrb[0].mxu0
      %v3673 = vadd.f32 0.0, %v3672
      %v3674 = vpop.f32.mrb[0].mxu0
      %3675 = vmatprep.mubr.f32.mxu0 0.0
      %3676 = vmatmul.mubr.f32.gmra.mrb[0].mxu0 %v3512
      %v3677 = vpop.f32.mrb[0].mxu0
      %v3678 = vadd.f32 0.0, %v3677
      %v3679 = vpop.f32.mrb[0].mxu0
      %3680 = vmatprep.mubr.f32.mxu0 0.0
      %3681 = vmatmul.mubr.f32.gmra.mrb[0].mxu0 %v3514
      %v3682 = vpop.f32.mrb[0].mxu0
      %v3683 = vadd.f32 0.0, %v3682
      %v3684 = vpop.f32.mrb[0].mxu0
      %3685 = vmatprep.mubr.f32.mxu0 0.0
      %3686 = vmatmul.mubr.f32.gmra.mrb[0].mxu0 %v3516
      %v3687 = vpop.f32.mrb[0].mxu0
      %v3688 = vadd.f32 0.0, %v3687
      %v3689 = vpop.f32.mrb[0].mxu0
      %3690 = vmatprep.mubr.f32.mxu0 0.0
      %3691 = vmatmul.mubr.f32.gmra.mrb[0].mxu0 %v3518
      %v3692 = vpop.f32.mrb[0].mxu0
      %v3693 = vadd.f32 0.0, %v3692
      %v3694 = vpop.f32.mrb[0].mxu0
      %3695 = vmatprep.mubr.f32.mxu0 0.0
      %3696 = vmatmul.mubr.f32.gmra.mrb[0].mxu0 %v3520
      %v3697 = vpop.f32.mrb[0].mxu0
      %v3698 = vadd.f32 0.0, %v3697
      %v3699 = vpop.f32.mrb[0].mxu0
      %3700 = vmatprep.mubr.f32.mxu0 0.0
      %3701 = vmatmul.mubr.f32.gmra.mrb[0].mxu0 %v3522
      %v3702 = vpop.f32.mrb[0].mxu0
      %v3703 = vadd.f32 0.0, %v3702
      %v3704 = vpop.f32.mrb[0].mxu0
      %3705 = vmatprep.mubr.f32.mxu0 0.0
      %3706 = vmatmul.mubr.f32.gmra.mrb[0].mxu0 %v3524
      %v3707 = vpop.f32.mrb[0].mxu0
      %v3708 = vadd.f32 0.0, %v3707
      %v3709 = vpop.f32.mrb[0].mxu0
      %3710 = vmatprep.mubr.f32.mxu0 0.0
      %3711 = vmatmul.mubr.f32.gmra.mrb[0].mxu0 %v3526
      %v3712 = vpop.f32.mrb[0].mxu0
      %v3713 = vadd.f32 0.0, %v3712
      %v3714 = vpop.f32.mrb[0].mxu0
      %3715 = vmatprep.mubr.f32.mxu0 0.0
      %3716 = vmatmul.mubr.f32.gmra.mrb[0].mxu0 %v3528
      %v3717 = vpop.f32.mrb[0].mxu0
      %v3718 = vadd.f32 0.0, %v3717
      %v3719 = vpop.f32.mrb[0].mxu0
      %3720 = vmatprep.mubr.f32.mxu0 0.0
      %3721 = vmatmul.mubr.f32.gmra.mrb[0].mxu0 %v3530
      %v3722 = vpop.f32.mrb[0].mxu0
      %v3723 = vadd.f32 0.0, %v3722
      %v3724 = vpop.f32.mrb[0].mxu0
      %3725 = vmatprep.mubr.f32.mxu0 0.0
      %3726 = vmatmul.mubr.f32.gmra.mrb[0].mxu0 %v3532
      %v3727 = vpop.f32.mrb[0].mxu0
      %v3728 = vadd.f32 0.0, %v3727
      %v3729 = vpop.f32.mrb[0].mxu0
      %3730 = vmatprep.mubr.f32.mxu0 0.0
      %3731 = vmatmul.mubr.f32.gmra.mrb[0].mxu0 %v3534
      %v3732 = vpop.f32.mrb[0].mxu0
      %v3733 = vadd.f32 0.0, %v3732
      %v3734 = vpop.f32.mrb[0].mxu0
      %3735 = vmatprep.mubr.f32.mxu0 0.0
      %3736 = vmatmul.mubr.f32.gmra.mrb[0].mxu0 %v3536
      %v3737 = vpop.f32.mrb[0].mxu0
      %v3738 = vadd.f32 0.0, %v3737
      %v3739 = vpop.f32.mrb[0].mxu0
      %3740 = vmatprep.mubr.f32.mxu0 0.0
      %3741 = vmatmul.mubr.f32.gmra.mrb[0].mxu0 %v3538
      %v3742 = vpop.f32.mrb[0].mxu0
      %v3743 = vadd.f32 0.0, %v3742
      %v3744 = vpop.f32.mrb[0].mxu0
      %3745 = vmatprep.mubr.f32.mxu0 0.0
      %3746 = vmatmul.mubr.f32.gmra.mrb[0].mxu0 %v3540
      %v3747 = vpop.f32.mrb[0].mxu0
      %v3748 = vadd.f32 0.0, %v3747
      %v3749 = vpop.f32.mrb[0].mxu0
      %3750 = vmatprep.mubr.f32.mxu0 0.0
      %3751 = vmatmul.mubr.f32.gmra.mrb[0].mxu0 %v3542
      %v3752 = vpop.f32.mrb[0].mxu0
      %v3753 = vadd.f32 0.0, %v3752
      %v3754 = vpop.f32.mrb[0].mxu0
      %3755 = vmatprep.mubr.f32.mxu0 0.0
      %3756 = vmatmul.mubr.f32.gmra.mrb[0].mxu0 %v3544
      %v3757 = vpop.f32.mrb[0].mxu0
      %v3758 = vadd.f32 0.0, %v3757
      %v3759 = vpop.f32.mrb[0].mxu0
      %3760 = vmatprep.mubr.f32.mxu0 0.0
      %3761 = vmatmul.mubr.f32.gmra.mrb[0].mxu0 %v3546
      %v3762 = vpop.f32.mrb[0].mxu0
      %v3763 = vadd.f32 0.0, %v3762
      %v3764 = vpop.f32.mrb[0].mxu0
      %3765 = vmatprep.mubr.f32.mxu0 0.0
      %3766 = vmatmul.mubr.f32.gmra.mrb[0].mxu0 %v3548
      %v3767 = vpop.f32.mrb[0].mxu0
      %v3768 = vadd.f32 0.0, %v3767
      %v3769 = vpop.f32.mrb[0].mxu0
      %3770 = vmatprep.mubr.f32.mxu0 0.0
      %3771 = vmatmul.mubr.f32.gmra.mrb[0].mxu0 %v3550
      %v3772 = vpop.f32.mrb[0].mxu0
      %v3773 = vadd.f32 0.0, %v3772
      %v3774 = vpop.f32.mrb[0].mxu0
      %3775 = vmatprep.mubr.f32.mxu0 0.0
      %3776 = vmatmul.mubr.f32.gmra.mrb[0].mxu0 %v3552
      %v3777 = vpop.f32.mrb[0].mxu0
      %v3778 = vadd.f32 0.0, %v3777
      %v3779 = vpop.f32.mrb[0].mxu0
      %3780 = vmatprep.mubr.f32.mxu0 0.0
      %3781 = vmatmul.mubr.f32.gmra.mrb[0].mxu0 %v3554
      %v3782 = vpop.f32.mrb[0].mxu0
      %v3783 = vadd.f32 0.0, %v3782
      %v3784 = vpop.f32.mrb[0].mxu0
      %3785 = vmatprep.mubr.f32.mxu0 0.0
      %3786 = vmatmul.mubr.f32.gmra.mrb[0].mxu0 %v3556
      %v3787 = vpop.f32.mrb[0].mxu0
      %v3788 = vadd.f32 0.0, %v3787
      %v3789 = vpop.f32.mrb[0].mxu0
      %3790 = vmatprep.mubr.f32.mxu0 0.0
      %3791 = vmatmul.mubr.f32.gmra.mrb[0].mxu0 %v3558
      %v3792 = vpop.f32.mrb[0].mxu0
      %v3793 = vadd.f32 0.0, %v3792
      %v3794 = vpop.f32.mrb[0].mxu0
      %3795 = vmatprep.mubr.f32.mxu0 0.0
      %3796 = vmatmul.mubr.f32.gmra.mrb[0].mxu0 %v3560
      %v3797 = vpop.f32.mrb[0].mxu0
      %v3798 = vadd.f32 0.0, %v3797
      %v3799 = vpop.f32.mrb[0].mxu0
      %3800 = vmatprep.mubr.f32.mxu0 0.0
      %3801 = vmatmul.mubr.f32.gmra.mrb[0].mxu0 %v3562
      %v3802 = vpop.f32.mrb[0].mxu0
      %v3803 = vadd.f32 0.0, %v3802
      %v3804 = vpop.f32.mrb[0].mxu0
      %3805 = vmatprep.mubr.f32.mxu0 0.0
      %3806 = vmatmul.mubr.f32.gmra.mrb[0].mxu0 %v3564
      %v3807 = vpop.f32.mrb[0].mxu0
      %v3808 = vadd.f32 0.0, %v3807
      %v3809 = vpop.f32.mrb[0].mxu0
      %3810 = vmatprep.mubr.f32.mxu0 0.0
      %3811 = vmatmul.mubr.f32.gmra.mrb[0].mxu0 %v3566
      %v3812 = vpop.f32.mrb[0].mxu0
      %v3813 = vadd.f32 0.0, %v3812
      %v3814 = vpop.f32.mrb[0].mxu0
      %3815 = vdwg.mxu0
      %v3816 = vadd.f32 %v3384, %v3638
      %v3817 = vadd.f32 %v3385, %v3643
      %v3818 = vadd.f32 %v3386, %v3648
      %v3819 = vadd.f32 %v3387, %v3653
      %v3820 = vadd.f32 %v3388, %v3658
      %v3821 = vadd.f32 %v3389, %v3663
      %v3822 = vadd.f32 %v3390, %v3668
      %v3823 = vadd.f32 %v3391, %v3673
      %v3824 = vadd.f32 %v3392, %v3678
      %v3825 = vadd.f32 %v3393, %v3683
      %v3826 = vadd.f32 %v3394, %v3688
      %v3827 = vadd.f32 %v3395, %v3693
      %v3828 = vadd.f32 %v3396, %v3698
      %v3829 = vadd.f32 %v3397, %v3703
      %v3830 = vadd.f32 %v3398, %v3708
      %v3831 = vadd.f32 %v3399, %v3713
      %v3832 = vadd.f32 %v3400, %v3718
      %v3833 = vadd.f32 %v3401, %v3723
      %v3834 = vadd.f32 %v3402, %v3728
      %v3835 = vadd.f32 %v3403, %v3733
      %v3836 = vadd.f32 %v3404, %v3738
      %v3837 = vadd.f32 %v3405, %v3743
      %v3838 = vadd.f32 %v3406, %v3748
      %v3839 = vadd.f32 %v3407, %v3753
      %v3840 = vadd.f32 %v3408, %v3758
      %v3841 = vadd.f32 %v3409, %v3763
      %v3842 = vadd.f32 %v3410, %v3768
      %v3843 = vadd.f32 %v3411, %v3773
      %v3844 = vadd.f32 %v3412, %v3778
      %v3845 = vadd.f32 %v3413, %v3783
      %v3846 = vadd.f32 %v3414, %v3788
      %v3847 = vadd.f32 %v3415, %v3793
      %v3848 = vadd.f32 %v3416, %v3798
      %v3849 = vadd.f32 %v3417, %v3803
      %v3850 = vadd.f32 %v3418, %v3808
      %v3851 = vadd.f32 %v3419, %v3813
      %v3852 = vld [vmem:[%s2] sm:$0x1]
      %v3854 = vlaneseq
      %v3855 = vshrl.u32 %v3854, 7
      %v3856 = vsub.s32 0, %v3855
      %v3857 = vrot.slane %v3852, %v3856
      %v3859 = vadd.f32 %v3816, %v3857
      %v3860 = vadd.f32 %v3817, %v3857
      %v3861 = vadd.f32 %v3818, %v3857
      %v3862 = vadd.f32 %v3819, %v3857
      %v3863 = vadd.f32 %v3820, %v3857
      %v3864 = vadd.f32 %v3821, %v3857
      %v3865 = vadd.f32 %v3822, %v3857
      %v3866 = vadd.f32 %v3823, %v3857
      %v3867 = vadd.f32 %v3824, %v3857
      %v3868 = vadd.f32 %v3825, %v3857
      %v3869 = vadd.f32 %v3826, %v3857
      %v3870 = vadd.f32 %v3827, %v3857
      %v3871 = vadd.f32 %v3828, %v3857
      %v3872 = vadd.f32 %v3829, %v3857
      %v3873 = vadd.f32 %v3830, %v3857
      %v3874 = vadd.f32 %v3831, %v3857
      %v3875 = vadd.f32 %v3832, %v3857
      %v3876 = vadd.f32 %v3833, %v3857
      %v3877 = vadd.f32 %v3834, %v3857
      %v3878 = vadd.f32 %v3835, %v3857
      %v3879 = vadd.f32 %v3836, %v3857
      %v3880 = vadd.f32 %v3837, %v3857
      %v3881 = vadd.f32 %v3838, %v3857
      %v3882 = vadd.f32 %v3839, %v3857
      %v3883 = vadd.f32 %v3840, %v3857
      %v3884 = vadd.f32 %v3841, %v3857
      %v3885 = vadd.f32 %v3842, %v3857
      %v3886 = vadd.f32 %v3843, %v3857
      %v3887 = vadd.f32 %v3844, %v3857
      %v3888 = vadd.f32 %v3845, %v3857
      %v3889 = vadd.f32 %v3846, %v3857
      %v3890 = vadd.f32 %v3847, %v3857
      %v3891 = vadd.f32 %v3848, %v3857
      %v3892 = vadd.f32 %v3849, %v3857
      %v3893 = vadd.f32 %v3850, %v3857
      %v3894 = vadd.f32 %v3851, %v3857
      %v3895 = vcombine.low %v288, %v295
      %v3896 = vcombine.low %v302, %v309
      %v3898 = vunpack.c.l.s4 1983009808
      %v3899 = vunpack.c.0.s8 %v3898
      %v3900 = vlaneseq
      %v3901 = vshrl.u32 %v3900, 7
      %v3902 = vsub.s32 %v3899, %v3901
      %v3903 = vrot.slane %v3895, %v3902
      %v3905 = vunpack.c.l.s4 1983009808
      %v3906 = vunpack.c.0.s8 %v3905
      %v3907 = vlaneseq
      %v3908 = vshrl.u32 %v3907, 7
      %v3909 = vsub.s32 %v3906, %v3908
      %v3910 = vrot.slane %v3896, %v3909
      %v3911 = vcombine.low %v3903, %v3910
      %v3912 = vcombine.low %v316, %v323
      %v3913 = vcombine.low %v330, %v337
      %v3915 = vunpack.c.l.s4 1983009808
      %v3916 = vunpack.c.0.s8 %v3915
      %v3917 = vlaneseq
      %v3918 = vshrl.u32 %v3917, 7
      %v3919 = vsub.s32 %v3916, %v3918
      %v3920 = vrot.slane %v3912, %v3919
      %v3922 = vunpack.c.l.s4 1983009808
      %v3923 = vunpack.c.0.s8 %v3922
      %v3924 = vlaneseq
      %v3925 = vshrl.u32 %v3924, 7
      %v3926 = vsub.s32 %v3923, %v3925
      %v3927 = vrot.slane %v3913, %v3926
      %v3928 = vcombine.low %v3920, %v3927
      %v3929 = vcombine.low %v344, %v288
      %v3930 = vcombine.low %v295, %v302
      %v3932 = vunpack.c.l.s4 1983009808
      %v3933 = vunpack.c.0.s8 %v3932
      %v3934 = vlaneseq
      %v3935 = vshrl.u32 %v3934, 7
      %v3936 = vsub.s32 %v3933, %v3935
      %v3937 = vrot.slane %v3929, %v3936
      %v3939 = vunpack.c.l.s4 1983009808
      %v3940 = vunpack.c.0.s8 %v3939
      %v3941 = vlaneseq
      %v3942 = vshrl.u32 %v3941, 7
      %v3943 = vsub.s32 %v3940, %v3942
      %v3944 = vrot.slane %v3930, %v3943
      %v3945 = vcombine.low %v3937, %v3944
      %v3946 = vcombine.low %v309, %v316
      %v3947 = vcombine.low %v323, %v330
      %v3949 = vunpack.c.l.s4 1983009808
      %v3950 = vunpack.c.0.s8 %v3949
      %v3951 = vlaneseq
      %v3952 = vshrl.u32 %v3951, 7
      %v3953 = vsub.s32 %v3950, %v3952
      %v3954 = vrot.slane %v3946, %v3953
      %v3956 = vunpack.c.l.s4 1983009808
      %v3957 = vunpack.c.0.s8 %v3956
      %v3958 = vlaneseq
      %v3959 = vshrl.u32 %v3958, 7
      %v3960 = vsub.s32 %v3957, %v3959
      %v3961 = vrot.slane %v3947, %v3960
      %v3962 = vcombine.low %v3954, %v3961
      %v3963 = vcombine.low %v337, %v344
      %v3965 = vunpack.c.l.s4 1983009808
      %v3966 = vunpack.c.0.s8 %v3965
      %v3967 = vlaneseq
      %v3968 = vshrl.u32 %v3967, 7
      %v3969 = vsub.s32 %v3966, %v3968
      %v3970 = vrot.slane %v3963, %v3969
      %v3971 = vcombine.low %v3970, %v3903
      %v3972 = vcombine.low %v3910, %v3920
      %v3973 = vcombine.low %v3927, %v3937
      %v3974 = vcombine.low %v3944, %v3954
      %v3975 = vcombine.low %v3961, %v3970
      %v3985 = vmul.f32 %v3859, %v3911
      %v3986 = vmul.f32 %v3860, %v3928
      %v3987 = vmul.f32 %v3861, %v3945
      %v3988 = vmul.f32 %v3862, %v3962
      %v3989 = vmul.f32 %v3863, %v3971
      %v3990 = vmul.f32 %v3864, %v3972
      %v3991 = vmul.f32 %v3865, %v3973
      %v3992 = vmul.f32 %v3866, %v3974
      %v3993 = vmul.f32 %v3867, %v3975
      %v3994 = vmul.f32 %v3868, %v3911
      %v3995 = vmul.f32 %v3869, %v3928
      %v3996 = vmul.f32 %v3870, %v3945
      %v3997 = vmul.f32 %v3871, %v3962
      %v3998 = vmul.f32 %v3872, %v3971
      %v3999 = vmul.f32 %v3873, %v3972
      %v4000 = vmul.f32 %v3874, %v3973
      %v4001 = vmul.f32 %v3875, %v3974
      %v4002 = vmul.f32 %v3876, %v3975
      %v4003 = vmul.f32 %v3877, %v3911
      %v4004 = vmul.f32 %v3878, %v3928
      %v4005 = vmul.f32 %v3879, %v3945
      %v4006 = vmul.f32 %v3880, %v3962
      %v4007 = vmul.f32 %v3881, %v3971
      %v4008 = vmul.f32 %v3882, %v3972
      %v4009 = vmul.f32 %v3883, %v3973
      %v4010 = vmul.f32 %v3884, %v3974
      %v4011 = vmul.f32 %v3885, %v3975
      %v4012 = vmul.f32 %v3886, %v3911
      %v4013 = vmul.f32 %v3887, %v3928
      %v4014 = vmul.f32 %v3888, %v3945
      %v4015 = vmul.f32 %v3889, %v3962
      %v4016 = vmul.f32 %v3890, %v3971
      %v4017 = vmul.f32 %v3891, %v3972
      %v4018 = vmul.f32 %v3892, %v3973
      %v4019 = vmul.f32 %v3893, %v3974
      %v4020 = vmul.f32 %v3894, %v3975
      %v4021 = vsel %vm459, %v3985, 0.0
      %v4022 = vsel %vm459, %v3986, 0.0
      %v4023 = vadd.f32 %v4021, %v4022
      %v4024 = vsel %vm459, %v3987, 0.0
      %v4025 = vadd.f32 %v4023, %v4024
      %v4026 = vsel %vm459, %v3988, 0.0
      %v4027 = vadd.f32 %v4025, %v4026
      %v4028 = vsel %vm459, %v3989, 0.0
      %v4029 = vadd.f32 %v4027, %v4028
      %v4030 = vsel %vm459, %v3990, 0.0
      %v4031 = vadd.f32 %v4029, %v4030
      %v4032 = vsel %vm459, %v3991, 0.0
      %v4033 = vadd.f32 %v4031, %v4032
      %v4034 = vsel %vm459, %v3992, 0.0
      %v4035 = vadd.f32 %v4033, %v4034
      %v4036 = vsel %vm459, %v3993, 0.0
      %v4037 = vadd.f32 %v4035, %v4036
      %v4038 = vsel %vm459, %v3994, 0.0
      %v4039 = vadd.f32 %v4037, %v4038
      %v4040 = vsel %vm459, %v3995, 0.0
      %v4041 = vadd.f32 %v4039, %v4040
      %v4042 = vsel %vm459, %v3996, 0.0
      %v4043 = vadd.f32 %v4041, %v4042
      %v4044 = vsel %vm459, %v3997, 0.0
      %v4045 = vadd.f32 %v4043, %v4044
      %v4046 = vsel %vm459, %v3998, 0.0
      %v4047 = vadd.f32 %v4045, %v4046
      %v4048 = vsel %vm459, %v3999, 0.0
      %v4049 = vadd.f32 %v4047, %v4048
      %v4050 = vsel %vm459, %v4000, 0.0
      %v4051 = vadd.f32 %v4049, %v4050
      %v4052 = vsel %vm459, %v4001, 0.0
      %v4053 = vadd.f32 %v4051, %v4052
      %v4054 = vsel %vm459, %v4002, 0.0
      %v4055 = vadd.f32 %v4053, %v4054
      %v4056 = vsel %vm459, %v4003, 0.0
      %v4057 = vadd.f32 %v4055, %v4056
      %v4058 = vsel %vm459, %v4004, 0.0
      %v4059 = vadd.f32 %v4057, %v4058
      %v4060 = vsel %vm459, %v4005, 0.0
      %v4061 = vadd.f32 %v4059, %v4060
      %v4062 = vsel %vm459, %v4006, 0.0
      %v4063 = vadd.f32 %v4061, %v4062
      %v4064 = vsel %vm459, %v4007, 0.0
      %v4065 = vadd.f32 %v4063, %v4064
      %v4066 = vsel %vm459, %v4008, 0.0
      %v4067 = vadd.f32 %v4065, %v4066
      %v4068 = vsel %vm459, %v4009, 0.0
      %v4069 = vadd.f32 %v4067, %v4068
      %v4070 = vsel %vm459, %v4010, 0.0
      %v4071 = vadd.f32 %v4069, %v4070
      %v4072 = vsel %vm459, %v4011, 0.0
      %v4073 = vadd.f32 %v4071, %v4072
      %v4074 = vsel %vm459, %v4012, 0.0
      %v4075 = vadd.f32 %v4073, %v4074
      %v4076 = vsel %vm459, %v4013, 0.0
      %v4077 = vadd.f32 %v4075, %v4076
      %v4078 = vsel %vm459, %v4014, 0.0
      %v4079 = vadd.f32 %v4077, %v4078
      %v4080 = vsel %vm459, %v4015, 0.0
      %v4081 = vadd.f32 %v4079, %v4080
      %v4082 = vsel %vm459, %v4016, 0.0
      %v4083 = vadd.f32 %v4081, %v4082
      %v4084 = vsel %vm459, %v4017, 0.0
      %v4085 = vadd.f32 %v4083, %v4084
      %v4086 = vsel %vm459, %v4018, 0.0
      %v4087 = vadd.f32 %v4085, %v4086
      %v4088 = vsel %vm459, %v4019, 0.0
      %v4089 = vadd.f32 %v4087, %v4088
      %v4090 = vsel %vm459, %v4020, 0.0
      %v4091 = vadd.f32 %v4089, %v4090
      %v4092 = vrot.slane %v4091, 4
      %v4093 = vadd.f32 %v4091, %v4092
      %v4094 = vrot.slane %v4093, 2
      %v4095 = vadd.f32 %v4093, %v4094
      %v4096 = vrot.slane %v4095, 1
      %v4097 = vadd.f32 %v4095, %v4096
      %v4098 = vmul.f32 %v4097, 0.00390625
      %v4099 = vsub.f32 %v3859, %v4098
      %v4100 = vsub.f32 %v3860, %v4098
      %v4101 = vsub.f32 %v3861, %v4098
      %v4102 = vsub.f32 %v3862, %v4098
      %v4103 = vsub.f32 %v3863, %v4098
      %v4104 = vsub.f32 %v3864, %v4098
      %v4105 = vsub.f32 %v3865, %v4098
      %v4106 = vsub.f32 %v3866, %v4098
      %v4107 = vsub.f32 %v3867, %v4098
      %v4108 = vsub.f32 %v3868, %v4098
      %v4109 = vsub.f32 %v3869, %v4098
      %v4110 = vsub.f32 %v3870, %v4098
      %v4111 = vsub.f32 %v3871, %v4098
      %v4112 = vsub.f32 %v3872, %v4098
      %v4113 = vsub.f32 %v3873, %v4098
      %v4114 = vsub.f32 %v3874, %v4098
      %v4115 = vsub.f32 %v3875, %v4098
      %v4116 = vsub.f32 %v3876, %v4098
      %v4117 = vsub.f32 %v3877, %v4098
      %v4118 = vsub.f32 %v3878, %v4098
      %v4119 = vsub.f32 %v3879, %v4098
      %v4120 = vsub.f32 %v3880, %v4098
      %v4121 = vsub.f32 %v3881, %v4098
      %v4122 = vsub.f32 %v3882, %v4098
      %v4123 = vsub.f32 %v3883, %v4098
      %v4124 = vsub.f32 %v3884, %v4098
      %v4125 = vsub.f32 %v3885, %v4098
      %v4126 = vsub.f32 %v3886, %v4098
      %v4127 = vsub.f32 %v3887, %v4098
      %v4128 = vsub.f32 %v3888, %v4098
      %v4129 = vsub.f32 %v3889, %v4098
      %v4130 = vsub.f32 %v3890, %v4098
      %v4131 = vsub.f32 %v3891, %v4098
      %v4132 = vsub.f32 %v3892, %v4098
      %v4133 = vsub.f32 %v3893, %v4098
      %v4134 = vsub.f32 %v3894, %v4098
      %v4135 = vmul.f32 %v4099, %v4099
      %v4136 = vmul.f32 %v4100, %v4100
      %v4137 = vmul.f32 %v4101, %v4101
      %v4138 = vmul.f32 %v4102, %v4102
      %v4139 = vmul.f32 %v4103, %v4103
      %v4140 = vmul.f32 %v4104, %v4104
      %v4141 = vmul.f32 %v4105, %v4105
      %v4142 = vmul.f32 %v4106, %v4106
      %v4143 = vmul.f32 %v4107, %v4107
      %v4144 = vmul.f32 %v4108, %v4108
      %v4145 = vmul.f32 %v4109, %v4109
      %v4146 = vmul.f32 %v4110, %v4110
      %v4147 = vmul.f32 %v4111, %v4111
      %v4148 = vmul.f32 %v4112, %v4112
      %v4149 = vmul.f32 %v4113, %v4113
      %v4150 = vmul.f32 %v4114, %v4114
      %v4151 = vmul.f32 %v4115, %v4115
      %v4152 = vmul.f32 %v4116, %v4116
      %v4153 = vmul.f32 %v4117, %v4117
      %v4154 = vmul.f32 %v4118, %v4118
      %v4155 = vmul.f32 %v4119, %v4119
      %v4156 = vmul.f32 %v4120, %v4120
      %v4157 = vmul.f32 %v4121, %v4121
      %v4158 = vmul.f32 %v4122, %v4122
      %v4159 = vmul.f32 %v4123, %v4123
      %v4160 = vmul.f32 %v4124, %v4124
      %v4161 = vmul.f32 %v4125, %v4125
      %v4162 = vmul.f32 %v4126, %v4126
      %v4163 = vmul.f32 %v4127, %v4127
      %v4164 = vmul.f32 %v4128, %v4128
      %v4165 = vmul.f32 %v4129, %v4129
      %v4166 = vmul.f32 %v4130, %v4130
      %v4167 = vmul.f32 %v4131, %v4131
      %v4168 = vmul.f32 %v4132, %v4132
      %v4169 = vmul.f32 %v4133, %v4133
      %v4170 = vmul.f32 %v4134, %v4134
      %v4171 = vmul.f32 %v4135, %v3911
      %v4172 = vmul.f32 %v4136, %v3928
      %v4173 = vmul.f32 %v4137, %v3945
      %v4174 = vmul.f32 %v4138, %v3962
      %v4175 = vmul.f32 %v4139, %v3971
      %v4176 = vmul.f32 %v4140, %v3972
      %v4177 = vmul.f32 %v4141, %v3973
      %v4178 = vmul.f32 %v4142, %v3974
      %v4179 = vmul.f32 %v4143, %v3975
      %v4180 = vmul.f32 %v4144, %v3911
      %v4181 = vmul.f32 %v4145, %v3928
      %v4182 = vmul.f32 %v4146, %v3945
      %v4183 = vmul.f32 %v4147, %v3962
      %v4184 = vmul.f32 %v4148, %v3971
      %v4185 = vmul.f32 %v4149, %v3972
      %v4186 = vmul.f32 %v4150, %v3973
      %v4187 = vmul.f32 %v4151, %v3974
      %v4188 = vmul.f32 %v4152, %v3975
      %v4189 = vmul.f32 %v4153, %v3911
      %v4190 = vmul.f32 %v4154, %v3928
      %v4191 = vmul.f32 %v4155, %v3945
      %v4192 = vmul.f32 %v4156, %v3962
      %v4193 = vmul.f32 %v4157, %v3971
      %v4194 = vmul.f32 %v4158, %v3972
      %v4195 = vmul.f32 %v4159, %v3973
      %v4196 = vmul.f32 %v4160, %v3974
      %v4197 = vmul.f32 %v4161, %v3975
      %v4198 = vmul.f32 %v4162, %v3911
      %v4199 = vmul.f32 %v4163, %v3928
      %v4200 = vmul.f32 %v4164, %v3945
      %v4201 = vmul.f32 %v4165, %v3962
      %v4202 = vmul.f32 %v4166, %v3971
      %v4203 = vmul.f32 %v4167, %v3972
      %v4204 = vmul.f32 %v4168, %v3973
      %v4205 = vmul.f32 %v4169, %v3974
      %v4206 = vmul.f32 %v4170, %v3975
      %v4207 = vsel %vm459, %v4171, 0.0
      %v4208 = vsel %vm459, %v4172, 0.0
      %v4209 = vadd.f32 %v4207, %v4208
      %v4210 = vsel %vm459, %v4173, 0.0
      %v4211 = vadd.f32 %v4209, %v4210
      %v4212 = vsel %vm459, %v4174, 0.0
      %v4213 = vadd.f32 %v4211, %v4212
      %v4214 = vsel %vm459, %v4175, 0.0
      %v4215 = vadd.f32 %v4213, %v4214
      %v4216 = vsel %vm459, %v4176, 0.0
      %v4217 = vadd.f32 %v4215, %v4216
      %v4218 = vsel %vm459, %v4177, 0.0
      %v4219 = vadd.f32 %v4217, %v4218
      %v4220 = vsel %vm459, %v4178, 0.0
      %v4221 = vadd.f32 %v4219, %v4220
      %v4222 = vsel %vm459, %v4179, 0.0
      %v4223 = vadd.f32 %v4221, %v4222
      %v4224 = vsel %vm459, %v4180, 0.0
      %v4225 = vadd.f32 %v4223, %v4224
      %v4226 = vsel %vm459, %v4181, 0.0
      %v4227 = vadd.f32 %v4225, %v4226
      %v4228 = vsel %vm459, %v4182, 0.0
      %v4229 = vadd.f32 %v4227, %v4228
      %v4230 = vsel %vm459, %v4183, 0.0
      %v4231 = vadd.f32 %v4229, %v4230
      %v4232 = vsel %vm459, %v4184, 0.0
      %v4233 = vadd.f32 %v4231, %v4232
      %v4234 = vsel %vm459, %v4185, 0.0
      %v4235 = vadd.f32 %v4233, %v4234
      %v4236 = vsel %vm459, %v4186, 0.0
      %v4237 = vadd.f32 %v4235, %v4236
      %v4238 = vsel %vm459, %v4187, 0.0
      %v4239 = vadd.f32 %v4237, %v4238
      %v4240 = vsel %vm459, %v4188, 0.0
      %v4241 = vadd.f32 %v4239, %v4240
      %v4242 = vsel %vm459, %v4189, 0.0
      %v4243 = vadd.f32 %v4241, %v4242
      %v4244 = vsel %vm459, %v4190, 0.0
      %v4245 = vadd.f32 %v4243, %v4244
      %v4246 = vsel %vm459, %v4191, 0.0
      %v4247 = vadd.f32 %v4245, %v4246
      %v4248 = vsel %vm459, %v4192, 0.0
      %v4249 = vadd.f32 %v4247, %v4248
      %v4250 = vsel %vm459, %v4193, 0.0
      %v4251 = vadd.f32 %v4249, %v4250
      %v4252 = vsel %vm459, %v4194, 0.0
      %v4253 = vadd.f32 %v4251, %v4252
      %v4254 = vsel %vm459, %v4195, 0.0
      %v4255 = vadd.f32 %v4253, %v4254
      %v4256 = vsel %vm459, %v4196, 0.0
      %v4257 = vadd.f32 %v4255, %v4256
      %v4258 = vsel %vm459, %v4197, 0.0
      %v4259 = vadd.f32 %v4257, %v4258
      %v4260 = vsel %vm459, %v4198, 0.0
      %v4261 = vadd.f32 %v4259, %v4260
      %v4262 = vsel %vm459, %v4199, 0.0
      %v4263 = vadd.f32 %v4261, %v4262
      %v4264 = vsel %vm459, %v4200, 0.0
      %v4265 = vadd.f32 %v4263, %v4264
      %v4266 = vsel %vm459, %v4201, 0.0
      %v4267 = vadd.f32 %v4265, %v4266
      %v4268 = vsel %vm459, %v4202, 0.0
      %v4269 = vadd.f32 %v4267, %v4268
      %v4270 = vsel %vm459, %v4203, 0.0
      %v4271 = vadd.f32 %v4269, %v4270
      %v4272 = vsel %vm459, %v4204, 0.0
      %v4273 = vadd.f32 %v4271, %v4272
      %v4274 = vsel %vm459, %v4205, 0.0
      %v4275 = vadd.f32 %v4273, %v4274
      %v4276 = vsel %vm459, %v4206, 0.0
      %v4277 = vadd.f32 %v4275, %v4276
      %v4278 = vrot.slane %v4277, 4
      %v4279 = vadd.f32 %v4277, %v4278
      %v4280 = vrot.slane %v4279, 2
      %v4281 = vadd.f32 %v4279, %v4280
      %v4282 = vrot.slane %v4281, 1
      %v4283 = vadd.f32 %v4281, %v4282
      %v4284 = vmul.f32 %v4283, 0.00390625
      %v4285 = vadd.f32 %v4284, 1e-05
      %v4286 = vrsqrt.pop %v4285
      %v4287 = vmul.f32 %v4099, %v4286
      %v4288 = vmul.f32 %v4100, %v4286
      %v4289 = vmul.f32 %v4101, %v4286
      %v4290 = vmul.f32 %v4102, %v4286
      %v4291 = vmul.f32 %v4103, %v4286
      %v4292 = vmul.f32 %v4104, %v4286
      %v4293 = vmul.f32 %v4105, %v4286
      %v4294 = vmul.f32 %v4106, %v4286
      %v4295 = vmul.f32 %v4107, %v4286
      %v4296 = vmul.f32 %v4108, %v4286
      %v4297 = vmul.f32 %v4109, %v4286
      %v4298 = vmul.f32 %v4110, %v4286
      %v4299 = vmul.f32 %v4111, %v4286
      %v4300 = vmul.f32 %v4112, %v4286
      %v4301 = vmul.f32 %v4113, %v4286
      %v4302 = vmul.f32 %v4114, %v4286
      %v4303 = vmul.f32 %v4115, %v4286
      %v4304 = vmul.f32 %v4116, %v4286
      %v4305 = vmul.f32 %v4117, %v4286
      %v4306 = vmul.f32 %v4118, %v4286
      %v4307 = vmul.f32 %v4119, %v4286
      %v4308 = vmul.f32 %v4120, %v4286
      %v4309 = vmul.f32 %v4121, %v4286
      %v4310 = vmul.f32 %v4122, %v4286
      %v4311 = vmul.f32 %v4123, %v4286
      %v4312 = vmul.f32 %v4124, %v4286
      %v4313 = vmul.f32 %v4125, %v4286
      %v4314 = vmul.f32 %v4126, %v4286
      %v4315 = vmul.f32 %v4127, %v4286
      %v4316 = vmul.f32 %v4128, %v4286
      %v4317 = vmul.f32 %v4129, %v4286
      %v4318 = vmul.f32 %v4130, %v4286
      %v4319 = vmul.f32 %v4131, %v4286
      %v4320 = vmul.f32 %v4132, %v4286
      %v4321 = vmul.f32 %v4133, %v4286
      %v4322 = vmul.f32 %v4134, %v4286
      %v4323 = vmax.f32 %v4287, 0.0
      %v4324 = vmax.f32 %v4288, 0.0
      %v4325 = vmax.f32 %v4289, 0.0
      %v4326 = vmax.f32 %v4290, 0.0
      %v4327 = vmax.f32 %v4291, 0.0
      %v4328 = vmax.f32 %v4292, 0.0
      %v4329 = vmax.f32 %v4293, 0.0
      %v4330 = vmax.f32 %v4294, 0.0
      %v4331 = vmax.f32 %v4295, 0.0
      %v4332 = vmax.f32 %v4296, 0.0
      %v4333 = vmax.f32 %v4297, 0.0
      %v4334 = vmax.f32 %v4298, 0.0
      %v4335 = vmax.f32 %v4299, 0.0
      %v4336 = vmax.f32 %v4300, 0.0
      %v4337 = vmax.f32 %v4301, 0.0
      %v4338 = vmax.f32 %v4302, 0.0
      %v4339 = vmax.f32 %v4303, 0.0
      %v4340 = vmax.f32 %v4304, 0.0
      %v4341 = vmax.f32 %v4305, 0.0
      %v4342 = vmax.f32 %v4306, 0.0
      %v4343 = vmax.f32 %v4307, 0.0
      %v4344 = vmax.f32 %v4308, 0.0
      %v4345 = vmax.f32 %v4309, 0.0
      %v4346 = vmax.f32 %v4310, 0.0
      %v4347 = vmax.f32 %v4311, 0.0
      %v4348 = vmax.f32 %v4312, 0.0
      %v4349 = vmax.f32 %v4313, 0.0
      %v4350 = vmax.f32 %v4314, 0.0
      %v4351 = vmax.f32 %v4315, 0.0
      %v4352 = vmax.f32 %v4316, 0.0
      %v4353 = vmax.f32 %v4317, 0.0
      %v4354 = vmax.f32 %v4318, 0.0
      %v4355 = vmax.f32 %v4319, 0.0
      %v4356 = vmax.f32 %v4320, 0.0
      %v4357 = vmax.f32 %v4321, 0.0
      %v4358 = vmax.f32 %v4322, 0.0
      %v4395 = vcombine.high %v4323, %v4323
      %v4397 = vunpack.c.l.s4 1983009808
      %v4398 = vunpack.c.0.s8 %v4397
      %v4399 = vlaneseq
      %v4400 = vshrl.u32 %v4399, 7
      %v4401 = vsub.s32 %v4398, %v4400
      %v4402 = vrot.slane %v4323, %v4401
      %v4404 = vunpack.c.l.s4 1983009808
      %v4405 = vunpack.c.0.s8 %v4404
      %v4406 = vlaneseq
      %v4407 = vshrl.u32 %v4406, 7
      %v4408 = vsub.s32 %v4405, %v4407
      %v4409 = vrot.slane %v4395, %v4408
      %v4410 = vcombine.high %v4402, %v4402
      %v4411 = vcombine.high %v4409, %v4409
      %v4412 = vcombine.high %v4324, %v4324
      %v4414 = vunpack.c.l.s4 1983009808
      %v4415 = vunpack.c.0.s8 %v4414
      %v4416 = vlaneseq
      %v4417 = vshrl.u32 %v4416, 7
      %v4418 = vsub.s32 %v4415, %v4417
      %v4419 = vrot.slane %v4324, %v4418
      %v4421 = vunpack.c.l.s4 1983009808
      %v4422 = vunpack.c.0.s8 %v4421
      %v4423 = vlaneseq
      %v4424 = vshrl.u32 %v4423, 7
      %v4425 = vsub.s32 %v4422, %v4424
      %v4426 = vrot.slane %v4412, %v4425
      %v4427 = vcombine.high %v4419, %v4419
      %v4428 = vcombine.high %v4426, %v4426
      %v4429 = vcombine.high %v4325, %v4325
      %v4431 = vunpack.c.l.s4 1983009808
      %v4432 = vunpack.c.0.s8 %v4431
      %v4433 = vlaneseq
      %v4434 = vshrl.u32 %v4433, 7
      %v4435 = vsub.s32 %v4432, %v4434
      %v4436 = vrot.slane %v4325, %v4435
      %v4438 = vunpack.c.l.s4 1983009808
      %v4439 = vunpack.c.0.s8 %v4438
      %v4440 = vlaneseq
      %v4441 = vshrl.u32 %v4440, 7
      %v4442 = vsub.s32 %v4439, %v4441
      %v4443 = vrot.slane %v4429, %v4442
      %v4444 = vcombine.high %v4436, %v4436
      %v4445 = vcombine.high %v4443, %v4443
      %v4446 = vcombine.high %v4326, %v4326
      %v4448 = vunpack.c.l.s4 1983009808
      %v4449 = vunpack.c.0.s8 %v4448
      %v4450 = vlaneseq
      %v4451 = vshrl.u32 %v4450, 7
      %v4452 = vsub.s32 %v4449, %v4451
      %v4453 = vrot.slane %v4326, %v4452
      %v4455 = vunpack.c.l.s4 1983009808
      %v4456 = vunpack.c.0.s8 %v4455
      %v4457 = vlaneseq
      %v4458 = vshrl.u32 %v4457, 7
      %v4459 = vsub.s32 %v4456, %v4458
      %v4460 = vrot.slane %v4446, %v4459
      %v4461 = vcombine.high %v4453, %v4453
      %v4462 = vcombine.high %v4460, %v4460
      %v4463 = vcombine.high %v4327, %v4327
      %v4465 = vunpack.c.l.s4 1983009808
      %v4466 = vunpack.c.0.s8 %v4465
      %v4467 = vlaneseq
      %v4468 = vshrl.u32 %v4467, 7
      %v4469 = vsub.s32 %v4466, %v4468
      %v4470 = vrot.slane %v4327, %v4469
      %v4472 = vunpack.c.l.s4 1983009808
      %v4473 = vunpack.c.0.s8 %v4472
      %v4474 = vlaneseq
      %v4475 = vshrl.u32 %v4474, 7
      %v4476 = vsub.s32 %v4473, %v4475
      %v4477 = vrot.slane %v4463, %v4476
      %v4478 = vcombine.high %v4477, %v4477
      %v4479 = vcombine.high %v4328, %v4328
      %v4481 = vunpack.c.l.s4 1983009808
      %v4482 = vunpack.c.0.s8 %v4481
      %v4483 = vlaneseq
      %v4484 = vshrl.u32 %v4483, 7
      %v4485 = vsub.s32 %v4482, %v4484
      %v4486 = vrot.slane %v4328, %v4485
      %v4488 = vunpack.c.l.s4 1983009808
      %v4489 = vunpack.c.0.s8 %v4488
      %v4490 = vlaneseq
      %v4491 = vshrl.u32 %v4490, 7
      %v4492 = vsub.s32 %v4489, %v4491
      %v4493 = vrot.slane %v4479, %v4492
      %v4494 = vcombine.high %v4486, %v4486
      %v4495 = vcombine.high %v4493, %v4493
      %v4496 = vcombine.high %v4329, %v4329
      %v4498 = vunpack.c.l.s4 1983009808
      %v4499 = vunpack.c.0.s8 %v4498
      %v4500 = vlaneseq
      %v4501 = vshrl.u32 %v4500, 7
      %v4502 = vsub.s32 %v4499, %v4501
      %v4503 = vrot.slane %v4329, %v4502
      %v4505 = vunpack.c.l.s4 1983009808
      %v4506 = vunpack.c.0.s8 %v4505
      %v4507 = vlaneseq
      %v4508 = vshrl.u32 %v4507, 7
      %v4509 = vsub.s32 %v4506, %v4508
      %v4510 = vrot.slane %v4496, %v4509
      %v4511 = vcombine.high %v4503, %v4503
      %v4512 = vcombine.high %v4510, %v4510
      %v4513 = vcombine.high %v4330, %v4330
      %v4515 = vunpack.c.l.s4 1983009808
      %v4516 = vunpack.c.0.s8 %v4515
      %v4517 = vlaneseq
      %v4518 = vshrl.u32 %v4517, 7
      %v4519 = vsub.s32 %v4516, %v4518
      %v4520 = vrot.slane %v4330, %v4519
      %v4522 = vunpack.c.l.s4 1983009808
      %v4523 = vunpack.c.0.s8 %v4522
      %v4524 = vlaneseq
      %v4525 = vshrl.u32 %v4524, 7
      %v4526 = vsub.s32 %v4523, %v4525
      %v4527 = vrot.slane %v4513, %v4526
      %v4528 = vcombine.high %v4520, %v4520
      %v4529 = vcombine.high %v4527, %v4527
      %v4530 = vcombine.high %v4331, %v4331
      %v4532 = vunpack.c.l.s4 1983009808
      %v4533 = vunpack.c.0.s8 %v4532
      %v4534 = vlaneseq
      %v4535 = vshrl.u32 %v4534, 7
      %v4536 = vsub.s32 %v4533, %v4535
      %v4537 = vrot.slane %v4331, %v4536
      %v4539 = vunpack.c.l.s4 1983009808
      %v4540 = vunpack.c.0.s8 %v4539
      %v4541 = vlaneseq
      %v4542 = vshrl.u32 %v4541, 7
      %v4543 = vsub.s32 %v4540, %v4542
      %v4544 = vrot.slane %v4530, %v4543
      %v4545 = vcombine.high %v4537, %v4537
      %v4546 = vcombine.high %v4332, %v4332
      %v4548 = vunpack.c.l.s4 1983009808
      %v4549 = vunpack.c.0.s8 %v4548
      %v4550 = vlaneseq
      %v4551 = vshrl.u32 %v4550, 7
      %v4552 = vsub.s32 %v4549, %v4551
      %v4553 = vrot.slane %v4332, %v4552
      %v4555 = vunpack.c.l.s4 1983009808
      %v4556 = vunpack.c.0.s8 %v4555
      %v4557 = vlaneseq
      %v4558 = vshrl.u32 %v4557, 7
      %v4559 = vsub.s32 %v4556, %v4558
      %v4560 = vrot.slane %v4546, %v4559
      %v4561 = vcombine.high %v4553, %v4553
      %v4562 = vcombine.high %v4560, %v4560
      %v4563 = vcombine.high %v4333, %v4333
      %v4565 = vunpack.c.l.s4 1983009808
      %v4566 = vunpack.c.0.s8 %v4565
      %v4567 = vlaneseq
      %v4568 = vshrl.u32 %v4567, 7
      %v4569 = vsub.s32 %v4566, %v4568
      %v4570 = vrot.slane %v4333, %v4569
      %v4572 = vunpack.c.l.s4 1983009808
      %v4573 = vunpack.c.0.s8 %v4572
      %v4574 = vlaneseq
      %v4575 = vshrl.u32 %v4574, 7
      %v4576 = vsub.s32 %v4573, %v4575
      %v4577 = vrot.slane %v4563, %v4576
      %v4578 = vcombine.high %v4570, %v4570
      %v4579 = vcombine.high %v4577, %v4577
      %v4580 = vcombine.high %v4334, %v4334
      %v4582 = vunpack.c.l.s4 1983009808
      %v4583 = vunpack.c.0.s8 %v4582
      %v4584 = vlaneseq
      %v4585 = vshrl.u32 %v4584, 7
      %v4586 = vsub.s32 %v4583, %v4585
      %v4587 = vrot.slane %v4334, %v4586
      %v4589 = vunpack.c.l.s4 1983009808
      %v4590 = vunpack.c.0.s8 %v4589
      %v4591 = vlaneseq
      %v4592 = vshrl.u32 %v4591, 7
      %v4593 = vsub.s32 %v4590, %v4592
      %v4594 = vrot.slane %v4580, %v4593
      %v4595 = vcombine.high %v4587, %v4587
      %v4596 = vcombine.high %v4594, %v4594
      %v4597 = vcombine.high %v4335, %v4335
      %v4599 = vunpack.c.l.s4 1983009808
      %v4600 = vunpack.c.0.s8 %v4599
      %v4601 = vlaneseq
      %v4602 = vshrl.u32 %v4601, 7
      %v4603 = vsub.s32 %v4600, %v4602
      %v4604 = vrot.slane %v4335, %v4603
      %v4606 = vunpack.c.l.s4 1983009808
      %v4607 = vunpack.c.0.s8 %v4606
      %v4608 = vlaneseq
      %v4609 = vshrl.u32 %v4608, 7
      %v4610 = vsub.s32 %v4607, %v4609
      %v4611 = vrot.slane %v4597, %v4610
      %v4612 = vcombine.high %v4604, %v4604
      %v4613 = vcombine.high %v4611, %v4611
      %v4614 = vcombine.high %v4336, %v4336
      %v4616 = vunpack.c.l.s4 1983009808
      %v4617 = vunpack.c.0.s8 %v4616
      %v4618 = vlaneseq
      %v4619 = vshrl.u32 %v4618, 7
      %v4620 = vsub.s32 %v4617, %v4619
      %v4621 = vrot.slane %v4336, %v4620
      %v4623 = vunpack.c.l.s4 1983009808
      %v4624 = vunpack.c.0.s8 %v4623
      %v4625 = vlaneseq
      %v4626 = vshrl.u32 %v4625, 7
      %v4627 = vsub.s32 %v4624, %v4626
      %v4628 = vrot.slane %v4614, %v4627
      %v4629 = vcombine.high %v4628, %v4628
      %v4630 = vcombine.high %v4337, %v4337
      %v4632 = vunpack.c.l.s4 1983009808
      %v4633 = vunpack.c.0.s8 %v4632
      %v4634 = vlaneseq
      %v4635 = vshrl.u32 %v4634, 7
      %v4636 = vsub.s32 %v4633, %v4635
      %v4637 = vrot.slane %v4337, %v4636
      %v4639 = vunpack.c.l.s4 1983009808
      %v4640 = vunpack.c.0.s8 %v4639
      %v4641 = vlaneseq
      %v4642 = vshrl.u32 %v4641, 7
      %v4643 = vsub.s32 %v4640, %v4642
      %v4644 = vrot.slane %v4630, %v4643
      %v4645 = vcombine.high %v4637, %v4637
      %v4646 = vcombine.high %v4644, %v4644
      %v4647 = vcombine.high %v4338, %v4338
      %v4649 = vunpack.c.l.s4 1983009808
      %v4650 = vunpack.c.0.s8 %v4649
      %v4651 = vlaneseq
      %v4652 = vshrl.u32 %v4651, 7
      %v4653 = vsub.s32 %v4650, %v4652
      %v4654 = vrot.slane %v4338, %v4653
      %v4656 = vunpack.c.l.s4 1983009808
      %v4657 = vunpack.c.0.s8 %v4656
      %v4658 = vlaneseq
      %v4659 = vshrl.u32 %v4658, 7
      %v4660 = vsub.s32 %v4657, %v4659
      %v4661 = vrot.slane %v4647, %v4660
      %v4662 = vcombine.high %v4654, %v4654
      %v4663 = vcombine.high %v4661, %v4661
      %v4664 = vcombine.high %v4339, %v4339
      %v4666 = vunpack.c.l.s4 1983009808
      %v4667 = vunpack.c.0.s8 %v4666
      %v4668 = vlaneseq
      %v4669 = vshrl.u32 %v4668, 7
      %v4670 = vsub.s32 %v4667, %v4669
      %v4671 = vrot.slane %v4339, %v4670
      %v4673 = vunpack.c.l.s4 1983009808
      %v4674 = vunpack.c.0.s8 %v4673
      %v4675 = vlaneseq
      %v4676 = vshrl.u32 %v4675, 7
      %v4677 = vsub.s32 %v4674, %v4676
      %v4678 = vrot.slane %v4664, %v4677
      %v4679 = vcombine.high %v4671, %v4671
      %v4680 = vcombine.high %v4678, %v4678
      %v4681 = vcombine.high %v4340, %v4340
      %v4683 = vunpack.c.l.s4 1983009808
      %v4684 = vunpack.c.0.s8 %v4683
      %v4685 = vlaneseq
      %v4686 = vshrl.u32 %v4685, 7
      %v4687 = vsub.s32 %v4684, %v4686
      %v4688 = vrot.slane %v4340, %v4687
      %v4690 = vunpack.c.l.s4 1983009808
      %v4691 = vunpack.c.0.s8 %v4690
      %v4692 = vlaneseq
      %v4693 = vshrl.u32 %v4692, 7
      %v4694 = vsub.s32 %v4691, %v4693
      %v4695 = vrot.slane %v4681, %v4694
      %v4696 = vcombine.high %v4688, %v4688
      %v4697 = vcombine.high %v4341, %v4341
      %v4699 = vunpack.c.l.s4 1983009808
      %v4700 = vunpack.c.0.s8 %v4699
      %v4701 = vlaneseq
      %v4702 = vshrl.u32 %v4701, 7
      %v4703 = vsub.s32 %v4700, %v4702
      %v4704 = vrot.slane %v4341, %v4703
      %v4706 = vunpack.c.l.s4 1983009808
      %v4707 = vunpack.c.0.s8 %v4706
      %v4708 = vlaneseq
      %v4709 = vshrl.u32 %v4708, 7
      %v4710 = vsub.s32 %v4707, %v4709
      %v4711 = vrot.slane %v4697, %v4710
      %v4712 = vcombine.high %v4704, %v4704
      %v4713 = vcombine.high %v4711, %v4711
      %v4714 = vcombine.high %v4342, %v4342
      %v4716 = vunpack.c.l.s4 1983009808
      %v4717 = vunpack.c.0.s8 %v4716
      %v4718 = vlaneseq
      %v4719 = vshrl.u32 %v4718, 7
      %v4720 = vsub.s32 %v4717, %v4719
      %v4721 = vrot.slane %v4342, %v4720
      %v4723 = vunpack.c.l.s4 1983009808
      %v4724 = vunpack.c.0.s8 %v4723
      %v4725 = vlaneseq
      %v4726 = vshrl.u32 %v4725, 7
      %v4727 = vsub.s32 %v4724, %v4726
      %v4728 = vrot.slane %v4714, %v4727
      %v4729 = vcombine.high %v4721, %v4721
      %v4730 = vcombine.high %v4728, %v4728
      %v4731 = vcombine.high %v4343, %v4343
      %v4733 = vunpack.c.l.s4 1983009808
      %v4734 = vunpack.c.0.s8 %v4733
      %v4735 = vlaneseq
      %v4736 = vshrl.u32 %v4735, 7
      %v4737 = vsub.s32 %v4734, %v4736
      %v4738 = vrot.slane %v4343, %v4737
      %v4740 = vunpack.c.l.s4 1983009808
      %v4741 = vunpack.c.0.s8 %v4740
      %v4742 = vlaneseq
      %v4743 = vshrl.u32 %v4742, 7
      %v4744 = vsub.s32 %v4741, %v4743
      %v4745 = vrot.slane %v4731, %v4744
      %v4746 = vcombine.high %v4738, %v4738
      %v4747 = vcombine.high %v4745, %v4745
      %v4748 = vcombine.high %v4344, %v4344
      %v4750 = vunpack.c.l.s4 1983009808
      %v4751 = vunpack.c.0.s8 %v4750
      %v4752 = vlaneseq
      %v4753 = vshrl.u32 %v4752, 7
      %v4754 = vsub.s32 %v4751, %v4753
      %v4755 = vrot.slane %v4344, %v4754
      %v4757 = vunpack.c.l.s4 1983009808
      %v4758 = vunpack.c.0.s8 %v4757
      %v4759 = vlaneseq
      %v4760 = vshrl.u32 %v4759, 7
      %v4761 = vsub.s32 %v4758, %v4760
      %v4762 = vrot.slane %v4748, %v4761
      %v4763 = vcombine.high %v4755, %v4755
      %v4764 = vcombine.high %v4762, %v4762
      %v4765 = vcombine.high %v4345, %v4345
      %v4767 = vunpack.c.l.s4 1983009808
      %v4768 = vunpack.c.0.s8 %v4767
      %v4769 = vlaneseq
      %v4770 = vshrl.u32 %v4769, 7
      %v4771 = vsub.s32 %v4768, %v4770
      %v4772 = vrot.slane %v4345, %v4771
      %v4774 = vunpack.c.l.s4 1983009808
      %v4775 = vunpack.c.0.s8 %v4774
      %v4776 = vlaneseq
      %v4777 = vshrl.u32 %v4776, 7
      %v4778 = vsub.s32 %v4775, %v4777
      %v4779 = vrot.slane %v4765, %v4778
      %v4780 = vcombine.high %v4779, %v4779
      %v4781 = vcombine.high %v4346, %v4346
      %v4783 = vunpack.c.l.s4 1983009808
      %v4784 = vunpack.c.0.s8 %v4783
      %v4785 = vlaneseq
      %v4786 = vshrl.u32 %v4785, 7
      %v4787 = vsub.s32 %v4784, %v4786
      %v4788 = vrot.slane %v4346, %v4787
      %v4790 = vunpack.c.l.s4 1983009808
      %v4791 = vunpack.c.0.s8 %v4790
      %v4792 = vlaneseq
      %v4793 = vshrl.u32 %v4792, 7
      %v4794 = vsub.s32 %v4791, %v4793
      %v4795 = vrot.slane %v4781, %v4794
      %v4796 = vcombine.high %v4788, %v4788
      %v4797 = vcombine.high %v4795, %v4795
      %v4798 = vcombine.high %v4347, %v4347
      %v4800 = vunpack.c.l.s4 1983009808
      %v4801 = vunpack.c.0.s8 %v4800
      %v4802 = vlaneseq
      %v4803 = vshrl.u32 %v4802, 7
      %v4804 = vsub.s32 %v4801, %v4803
      %v4805 = vrot.slane %v4347, %v4804
      %v4807 = vunpack.c.l.s4 1983009808
      %v4808 = vunpack.c.0.s8 %v4807
      %v4809 = vlaneseq
      %v4810 = vshrl.u32 %v4809, 7
      %v4811 = vsub.s32 %v4808, %v4810
      %v4812 = vrot.slane %v4798, %v4811
      %v4813 = vcombine.high %v4805, %v4805
      %v4814 = vcombine.high %v4812, %v4812
      %v4815 = vcombine.high %v4348, %v4348
      %v4817 = vunpack.c.l.s4 1983009808
      %v4818 = vunpack.c.0.s8 %v4817
      %v4819 = vlaneseq
      %v4820 = vshrl.u32 %v4819, 7
      %v4821 = vsub.s32 %v4818, %v4820
      %v4822 = vrot.slane %v4348, %v4821
      %v4824 = vunpack.c.l.s4 1983009808
      %v4825 = vunpack.c.0.s8 %v4824
      %v4826 = vlaneseq
      %v4827 = vshrl.u32 %v4826, 7
      %v4828 = vsub.s32 %v4825, %v4827
      %v4829 = vrot.slane %v4815, %v4828
      %v4830 = vcombine.high %v4822, %v4822
      %v4831 = vcombine.high %v4829, %v4829
      %v4832 = vcombine.high %v4349, %v4349
      %v4834 = vunpack.c.l.s4 1983009808
      %v4835 = vunpack.c.0.s8 %v4834
      %v4836 = vlaneseq
      %v4837 = vshrl.u32 %v4836, 7
      %v4838 = vsub.s32 %v4835, %v4837
      %v4839 = vrot.slane %v4349, %v4838
      %v4841 = vunpack.c.l.s4 1983009808
      %v4842 = vunpack.c.0.s8 %v4841
      %v4843 = vlaneseq
      %v4844 = vshrl.u32 %v4843, 7
      %v4845 = vsub.s32 %v4842, %v4844
      %v4846 = vrot.slane %v4832, %v4845
      %v4847 = vcombine.high %v4839, %v4839
      %v4848 = vcombine.high %v4350, %v4350
      %v4850 = vunpack.c.l.s4 1983009808
      %v4851 = vunpack.c.0.s8 %v4850
      %v4852 = vlaneseq
      %v4853 = vshrl.u32 %v4852, 7
      %v4854 = vsub.s32 %v4851, %v4853
      %v4855 = vrot.slane %v4350, %v4854
      %v4857 = vunpack.c.l.s4 1983009808
      %v4858 = vunpack.c.0.s8 %v4857
      %v4859 = vlaneseq
      %v4860 = vshrl.u32 %v4859, 7
      %v4861 = vsub.s32 %v4858, %v4860
      %v4862 = vrot.slane %v4848, %v4861
      %v4863 = vcombine.high %v4855, %v4855
      %v4864 = vcombine.high %v4862, %v4862
      %v4865 = vcombine.high %v4351, %v4351
      %v4867 = vunpack.c.l.s4 1983009808
      %v4868 = vunpack.c.0.s8 %v4867
      %v4869 = vlaneseq
      %v4870 = vshrl.u32 %v4869, 7
      %v4871 = vsub.s32 %v4868, %v4870
      %v4872 = vrot.slane %v4351, %v4871
      %v4874 = vunpack.c.l.s4 1983009808
      %v4875 = vunpack.c.0.s8 %v4874
      %v4876 = vlaneseq
      %v4877 = vshrl.u32 %v4876, 7
      %v4878 = vsub.s32 %v4875, %v4877
      %v4879 = vrot.slane %v4865, %v4878
      %v4880 = vcombine.high %v4872, %v4872
      %v4881 = vcombine.high %v4879, %v4879
      %v4882 = vcombine.high %v4352, %v4352
      %v4884 = vunpack.c.l.s4 1983009808
      %v4885 = vunpack.c.0.s8 %v4884
      %v4886 = vlaneseq
      %v4887 = vshrl.u32 %v4886, 7
      %v4888 = vsub.s32 %v4885, %v4887
      %v4889 = vrot.slane %v4352, %v4888
      %v4891 = vunpack.c.l.s4 1983009808
      %v4892 = vunpack.c.0.s8 %v4891
      %v4893 = vlaneseq
      %v4894 = vshrl.u32 %v4893, 7
      %v4895 = vsub.s32 %v4892, %v4894
      %v4896 = vrot.slane %v4882, %v4895
      %v4897 = vcombine.high %v4889, %v4889
      %v4898 = vcombine.high %v4896, %v4896
      %v4899 = vcombine.high %v4353, %v4353
      %v4901 = vunpack.c.l.s4 1983009808
      %v4902 = vunpack.c.0.s8 %v4901
      %v4903 = vlaneseq
      %v4904 = vshrl.u32 %v4903, 7
      %v4905 = vsub.s32 %v4902, %v4904
      %v4906 = vrot.slane %v4353, %v4905
      %v4908 = vunpack.c.l.s4 1983009808
      %v4909 = vunpack.c.0.s8 %v4908
      %v4910 = vlaneseq
      %v4911 = vshrl.u32 %v4910, 7
      %v4912 = vsub.s32 %v4909, %v4911
      %v4913 = vrot.slane %v4899, %v4912
      %v4914 = vcombine.high %v4906, %v4906
      %v4915 = vcombine.high %v4913, %v4913
      %v4916 = vcombine.high %v4354, %v4354
      %v4918 = vunpack.c.l.s4 1983009808
      %v4919 = vunpack.c.0.s8 %v4918
      %v4920 = vlaneseq
      %v4921 = vshrl.u32 %v4920, 7
      %v4922 = vsub.s32 %v4919, %v4921
      %v4923 = vrot.slane %v4354, %v4922
      %v4925 = vunpack.c.l.s4 1983009808
      %v4926 = vunpack.c.0.s8 %v4925
      %v4927 = vlaneseq
      %v4928 = vshrl.u32 %v4927, 7
      %v4929 = vsub.s32 %v4926, %v4928
      %v4930 = vrot.slane %v4916, %v4929
      %v4931 = vcombine.high %v4930, %v4930
      %v4932 = vcombine.high %v4355, %v4355
      %v4934 = vunpack.c.l.s4 1983009808
      %v4935 = vunpack.c.0.s8 %v4934
      %v4936 = vlaneseq
      %v4937 = vshrl.u32 %v4936, 7
      %v4938 = vsub.s32 %v4935, %v4937
      %v4939 = vrot.slane %v4355, %v4938
      %v4941 = vunpack.c.l.s4 1983009808
      %v4942 = vunpack.c.0.s8 %v4941
      %v4943 = vlaneseq
      %v4944 = vshrl.u32 %v4943, 7
      %v4945 = vsub.s32 %v4942, %v4944
      %v4946 = vrot.slane %v4932, %v4945
      %v4947 = vcombine.high %v4939, %v4939
      %v4948 = vcombine.high %v4946, %v4946
      %v4949 = vcombine.high %v4356, %v4356
      %v4951 = vunpack.c.l.s4 1983009808
      %v4952 = vunpack.c.0.s8 %v4951
      %v4953 = vlaneseq
      %v4954 = vshrl.u32 %v4953, 7
      %v4955 = vsub.s32 %v4952, %v4954
      %v4956 = vrot.slane %v4356, %v4955
      %v4958 = vunpack.c.l.s4 1983009808
      %v4959 = vunpack.c.0.s8 %v4958
      %v4960 = vlaneseq
      %v4961 = vshrl.u32 %v4960, 7
      %v4962 = vsub.s32 %v4959, %v4961
      %v4963 = vrot.slane %v4949, %v4962
      %v4964 = vcombine.high %v4956, %v4956
      %v4965 = vcombine.high %v4963, %v4963
      %v4966 = vcombine.high %v4357, %v4357
      %v4968 = vunpack.c.l.s4 1983009808
      %v4969 = vunpack.c.0.s8 %v4968
      %v4970 = vlaneseq
      %v4971 = vshrl.u32 %v4970, 7
      %v4972 = vsub.s32 %v4969, %v4971
      %v4973 = vrot.slane %v4357, %v4972
      %v4975 = vunpack.c.l.s4 1983009808
      %v4976 = vunpack.c.0.s8 %v4975
      %v4977 = vlaneseq
      %v4978 = vshrl.u32 %v4977, 7
      %v4979 = vsub.s32 %v4976, %v4978
      %v4980 = vrot.slane %v4966, %v4979
      %v4981 = vcombine.high %v4973, %v4973
      %v4982 = vcombine.high %v4980, %v4980
      %v4983 = vcombine.high %v4358, %v4358
      %v4985 = vunpack.c.l.s4 1983009808
      %v4986 = vunpack.c.0.s8 %v4985
      %v4987 = vlaneseq
      %v4988 = vshrl.u32 %v4987, 7
      %v4989 = vsub.s32 %v4986, %v4988
      %v4990 = vrot.slane %v4358, %v4989
      %v4992 = vunpack.c.l.s4 1983009808
      %v4993 = vunpack.c.0.s8 %v4992
      %v4994 = vlaneseq
      %v4995 = vshrl.u32 %v4994, 7
      %v4996 = vsub.s32 %v4993, %v4995
      %v4997 = vrot.slane %v4983, %v4996
      %v4998 = vcombine.high %v4990, %v4990
      %v4999 = vlaneseq
      %v5000 = vshrl.u32 %v4999, 7
      %v5001 = vsub.s32 1, %v5000
      %v5002 = vrot.slane %v4402, %v5001
      %v5003 = vlaneseq
      %v5004 = vshrl.u32 %v5003, 7
      %v5005 = vsub.s32 1, %v5004
      %v5006 = vrot.slane %v4444, %v5005
      %v5007 = vlaneseq
      %v5008 = vshrl.u32 %v5007, 7
      %v5009 = vsub.s32 1, %v5008
      %v5010 = vrot.slane %v4477, %v5009
      %v5011 = vlaneseq
      %v5012 = vshrl.u32 %v5011, 7
      %v5013 = vsub.s32 1, %v5012
      %v5014 = vrot.slane %v4512, %v5013
      %v5015 = vlaneseq
      %v5016 = vshrl.u32 %v5015, 7
      %v5017 = vsub.s32 1, %v5016
      %v5018 = vrot.slane %v4553, %v5017
      %v5019 = vlaneseq
      %v5020 = vshrl.u32 %v5019, 7
      %v5021 = vsub.s32 1, %v5020
      %v5022 = vrot.slane %v4595, %v5021
      %v5023 = vlaneseq
      %v5024 = vshrl.u32 %v5023, 7
      %v5025 = vsub.s32 1, %v5024
      %v5026 = vrot.slane %v4628, %v5025
      %v5027 = vlaneseq
      %v5028 = vshrl.u32 %v5027, 7
      %v5029 = vsub.s32 1, %v5028
      %v5030 = vrot.slane %v4663, %v5029
      %v5031 = vlaneseq
      %v5032 = vshrl.u32 %v5031, 7
      %v5033 = vsub.s32 1, %v5032
      %v5034 = vrot.slane %v4704, %v5033
      %v5035 = vlaneseq
      %v5036 = vshrl.u32 %v5035, 7
      %v5037 = vsub.s32 1, %v5036
      %v5038 = vrot.slane %v4746, %v5037
      %v5039 = vlaneseq
      %v5040 = vshrl.u32 %v5039, 7
      %v5041 = vsub.s32 1, %v5040
      %v5042 = vrot.slane %v4779, %v5041
      %v5043 = vlaneseq
      %v5044 = vshrl.u32 %v5043, 7
      %v5045 = vsub.s32 1, %v5044
      %v5046 = vrot.slane %v4814, %v5045
      %v5047 = vlaneseq
      %v5048 = vshrl.u32 %v5047, 7
      %v5049 = vsub.s32 1, %v5048
      %v5050 = vrot.slane %v4855, %v5049
      %v5051 = vlaneseq
      %v5052 = vshrl.u32 %v5051, 7
      %v5053 = vsub.s32 1, %v5052
      %v5054 = vrot.slane %v4897, %v5053
      %v5055 = vlaneseq
      %v5056 = vshrl.u32 %v5055, 7
      %v5057 = vsub.s32 1, %v5056
      %v5058 = vrot.slane %v4930, %v5057
      %v5059 = vlaneseq
      %v5060 = vshrl.u32 %v5059, 7
      %v5061 = vsub.s32 1, %v5060
      %v5062 = vrot.slane %v4965, %v5061
      %v5079 = vcombine.low %v4402, %v4410
      %v5080 = vcombine.low %v4409, %v4411
      %v5082 = vunpack.c.l.s4 1983009808
      %v5083 = vunpack.c.0.s8 %v5082
      %v5084 = vlaneseq
      %v5085 = vshrl.u32 %v5084, 7
      %v5086 = vsub.s32 %v5083, %v5085
      %v5087 = vrot.slane %v5079, %v5086
      %v5089 = vunpack.c.l.s4 1983009808
      %v5090 = vunpack.c.0.s8 %v5089
      %v5091 = vlaneseq
      %v5092 = vshrl.u32 %v5091, 7
      %v5093 = vsub.s32 %v5090, %v5092
      %v5094 = vrot.slane %v5080, %v5093
      %v5095 = vcombine.low %v5087, %v5094
      %v5096 = vcombine.low %v4419, %v4427
      %v5097 = vcombine.low %v4426, %v4428
      %v5099 = vunpack.c.l.s4 1983009808
      %v5100 = vunpack.c.0.s8 %v5099
      %v5101 = vlaneseq
      %v5102 = vshrl.u32 %v5101, 7
      %v5103 = vsub.s32 %v5100, %v5102
      %v5104 = vrot.slane %v5096, %v5103
      %v5106 = vunpack.c.l.s4 1983009808
      %v5107 = vunpack.c.0.s8 %v5106
      %v5108 = vlaneseq
      %v5109 = vshrl.u32 %v5108, 7
      %v5110 = vsub.s32 %v5107, %v5109
      %v5111 = vrot.slane %v5097, %v5110
      %v5112 = vcombine.low %v5104, %v5111
      %v5113 = vcombine.low %v4444, %v4443
      %v5114 = vcombine.low %v4445, %v4453
      %v5116 = vunpack.c.l.s4 1983009808
      %v5117 = vunpack.c.0.s8 %v5116
      %v5118 = vlaneseq
      %v5119 = vshrl.u32 %v5118, 7
      %v5120 = vsub.s32 %v5117, %v5119
      %v5121 = vrot.slane %v5113, %v5120
      %v5123 = vunpack.c.l.s4 1983009808
      %v5124 = vunpack.c.0.s8 %v5123
      %v5125 = vlaneseq
      %v5126 = vshrl.u32 %v5125, 7
      %v5127 = vsub.s32 %v5124, %v5126
      %v5128 = vrot.slane %v5114, %v5127
      %v5129 = vcombine.low %v5121, %v5128
      %v5130 = vcombine.low %v4461, %v4460
      %v5131 = vcombine.low %v4462, %v4470
      %v5133 = vunpack.c.l.s4 1983009808
      %v5134 = vunpack.c.0.s8 %v5133
      %v5135 = vlaneseq
      %v5136 = vshrl.u32 %v5135, 7
      %v5137 = vsub.s32 %v5134, %v5136
      %v5138 = vrot.slane %v5130, %v5137
      %v5140 = vunpack.c.l.s4 1983009808
      %v5141 = vunpack.c.0.s8 %v5140
      %v5142 = vlaneseq
      %v5143 = vshrl.u32 %v5142, 7
      %v5144 = vsub.s32 %v5141, %v5143
      %v5145 = vrot.slane %v5131, %v5144
      %v5146 = vcombine.low %v5138, %v5145
      %v5147 = vcombine.low %v4477, %v4478
      %v5148 = vcombine.low %v4486, %v4494
      %v5150 = vunpack.c.l.s4 1983009808
      %v5151 = vunpack.c.0.s8 %v5150
      %v5152 = vlaneseq
      %v5153 = vshrl.u32 %v5152, 7
      %v5154 = vsub.s32 %v5151, %v5153
      %v5155 = vrot.slane %v5147, %v5154
      %v5157 = vunpack.c.l.s4 1983009808
      %v5158 = vunpack.c.0.s8 %v5157
      %v5159 = vlaneseq
      %v5160 = vshrl.u32 %v5159, 7
      %v5161 = vsub.s32 %v5158, %v5160
      %v5162 = vrot.slane %v5148, %v5161
      %v5163 = vcombine.low %v5155, %v5162
      %v5164 = vcombine.low %v4493, %v4495
      %v5165 = vcombine.low %v4503, %v4511
      %v5167 = vunpack.c.l.s4 1983009808
      %v5168 = vunpack.c.0.s8 %v5167
      %v5169 = vlaneseq
      %v5170 = vshrl.u32 %v5169, 7
      %v5171 = vsub.s32 %v5168, %v5170
      %v5172 = vrot.slane %v5164, %v5171
      %v5174 = vunpack.c.l.s4 1983009808
      %v5175 = vunpack.c.0.s8 %v5174
      %v5176 = vlaneseq
      %v5177 = vshrl.u32 %v5176, 7
      %v5178 = vsub.s32 %v5175, %v5177
      %v5179 = vrot.slane %v5165, %v5178
      %v5180 = vcombine.low %v5172, %v5179
      %v5181 = vcombine.low %v4512, %v4520
      %v5182 = vcombine.low %v4528, %v4527
      %v5184 = vunpack.c.l.s4 1983009808
      %v5185 = vunpack.c.0.s8 %v5184
      %v5186 = vlaneseq
      %v5187 = vshrl.u32 %v5186, 7
      %v5188 = vsub.s32 %v5185, %v5187
      %v5189 = vrot.slane %v5181, %v5188
      %v5191 = vunpack.c.l.s4 1983009808
      %v5192 = vunpack.c.0.s8 %v5191
      %v5193 = vlaneseq
      %v5194 = vshrl.u32 %v5193, 7
      %v5195 = vsub.s32 %v5192, %v5194
      %v5196 = vrot.slane %v5182, %v5195
      %v5197 = vcombine.low %v5189, %v5196
      %v5198 = vcombine.low %v4529, %v4537
      %v5199 = vcombine.low %v4545, %v4544
      %v5201 = vunpack.c.l.s4 1983009808
      %v5202 = vunpack.c.0.s8 %v5201
      %v5203 = vlaneseq
      %v5204 = vshrl.u32 %v5203, 7
      %v5205 = vsub.s32 %v5202, %v5204
      %v5206 = vrot.slane %v5198, %v5205
      %v5208 = vunpack.c.l.s4 1983009808
      %v5209 = vunpack.c.0.s8 %v5208
      %v5210 = vlaneseq
      %v5211 = vshrl.u32 %v5210, 7
      %v5212 = vsub.s32 %v5209, %v5211
      %v5213 = vrot.slane %v5199, %v5212
      %v5214 = vcombine.low %v5206, %v5213
      %v5215 = vcombine.low %v4553, %v4561
      %v5216 = vcombine.low %v4560, %v4562
      %v5218 = vunpack.c.l.s4 1983009808
      %v5219 = vunpack.c.0.s8 %v5218
      %v5220 = vlaneseq
      %v5221 = vshrl.u32 %v5220, 7
      %v5222 = vsub.s32 %v5219, %v5221
      %v5223 = vrot.slane %v5215, %v5222
      %v5225 = vunpack.c.l.s4 1983009808
      %v5226 = vunpack.c.0.s8 %v5225
      %v5227 = vlaneseq
      %v5228 = vshrl.u32 %v5227, 7
      %v5229 = vsub.s32 %v5226, %v5228
      %v5230 = vrot.slane %v5216, %v5229
      %v5231 = vcombine.low %v5223, %v5230
      %v5232 = vcombine.low %v4570, %v4578
      %v5233 = vcombine.low %v4577, %v4579
      %v5235 = vunpack.c.l.s4 1983009808
      %v5236 = vunpack.c.0.s8 %v5235
      %v5237 = vlaneseq
      %v5238 = vshrl.u32 %v5237, 7
      %v5239 = vsub.s32 %v5236, %v5238
      %v5240 = vrot.slane %v5232, %v5239
      %v5242 = vunpack.c.l.s4 1983009808
      %v5243 = vunpack.c.0.s8 %v5242
      %v5244 = vlaneseq
      %v5245 = vshrl.u32 %v5244, 7
      %v5246 = vsub.s32 %v5243, %v5245
      %v5247 = vrot.slane %v5233, %v5246
      %v5248 = vcombine.low %v5240, %v5247
      %v5249 = vcombine.low %v4595, %v4594
      %v5250 = vcombine.low %v4596, %v4604
      %v5252 = vunpack.c.l.s4 1983009808
      %v5253 = vunpack.c.0.s8 %v5252
      %v5254 = vlaneseq
      %v5255 = vshrl.u32 %v5254, 7
      %v5256 = vsub.s32 %v5253, %v5255
      %v5257 = vrot.slane %v5249, %v5256
      %v5259 = vunpack.c.l.s4 1983009808
      %v5260 = vunpack.c.0.s8 %v5259
      %v5261 = vlaneseq
      %v5262 = vshrl.u32 %v5261, 7
      %v5263 = vsub.s32 %v5260, %v5262
      %v5264 = vrot.slane %v5250, %v5263
      %v5265 = vcombine.low %v5257, %v5264
      %v5266 = vcombine.low %v4612, %v4611
      %v5267 = vcombine.low %v4613, %v4621
      %v5269 = vunpack.c.l.s4 1983009808
      %v5270 = vunpack.c.0.s8 %v5269
      %v5271 = vlaneseq
      %v5272 = vshrl.u32 %v5271, 7
      %v5273 = vsub.s32 %v5270, %v5272
      %v5274 = vrot.slane %v5266, %v5273
      %v5276 = vunpack.c.l.s4 1983009808
      %v5277 = vunpack.c.0.s8 %v5276
      %v5278 = vlaneseq
      %v5279 = vshrl.u32 %v5278, 7
      %v5280 = vsub.s32 %v5277, %v5279
      %v5281 = vrot.slane %v5267, %v5280
      %v5282 = vcombine.low %v5274, %v5281
      %v5283 = vcombine.low %v4628, %v4629
      %v5284 = vcombine.low %v4637, %v4645
      %v5286 = vunpack.c.l.s4 1983009808
      %v5287 = vunpack.c.0.s8 %v5286
      %v5288 = vlaneseq
      %v5289 = vshrl.u32 %v5288, 7
      %v5290 = vsub.s32 %v5287, %v5289
      %v5291 = vrot.slane %v5283, %v5290
      %v5293 = vunpack.c.l.s4 1983009808
      %v5294 = vunpack.c.0.s8 %v5293
      %v5295 = vlaneseq
      %v5296 = vshrl.u32 %v5295, 7
      %v5297 = vsub.s32 %v5294, %v5296
      %v5298 = vrot.slane %v5284, %v5297
      %v5299 = vcombine.low %v5291, %v5298
      %v5300 = vcombine.low %v4644, %v4646
      %v5301 = vcombine.low %v4654, %v4662
      %v5303 = vunpack.c.l.s4 1983009808
      %v5304 = vunpack.c.0.s8 %v5303
      %v5305 = vlaneseq
      %v5306 = vshrl.u32 %v5305, 7
      %v5307 = vsub.s32 %v5304, %v5306
      %v5308 = vrot.slane %v5300, %v5307
      %v5310 = vunpack.c.l.s4 1983009808
      %v5311 = vunpack.c.0.s8 %v5310
      %v5312 = vlaneseq
      %v5313 = vshrl.u32 %v5312, 7
      %v5314 = vsub.s32 %v5311, %v5313
      %v5315 = vrot.slane %v5301, %v5314
      %v5316 = vcombine.low %v5308, %v5315
      %v5317 = vcombine.low %v4663, %v4671
      %v5318 = vcombine.low %v4679, %v4678
      %v5320 = vunpack.c.l.s4 1983009808
      %v5321 = vunpack.c.0.s8 %v5320
      %v5322 = vlaneseq
      %v5323 = vshrl.u32 %v5322, 7
      %v5324 = vsub.s32 %v5321, %v5323
      %v5325 = vrot.slane %v5317, %v5324
      %v5327 = vunpack.c.l.s4 1983009808
      %v5328 = vunpack.c.0.s8 %v5327
      %v5329 = vlaneseq
      %v5330 = vshrl.u32 %v5329, 7
      %v5331 = vsub.s32 %v5328, %v5330
      %v5332 = vrot.slane %v5318, %v5331
      %v5333 = vcombine.low %v5325, %v5332
      %v5334 = vcombine.low %v4680, %v4688
      %v5335 = vcombine.low %v4696, %v4695
      %v5337 = vunpack.c.l.s4 1983009808
      %v5338 = vunpack.c.0.s8 %v5337
      %v5339 = vlaneseq
      %v5340 = vshrl.u32 %v5339, 7
      %v5341 = vsub.s32 %v5338, %v5340
      %v5342 = vrot.slane %v5334, %v5341
      %v5344 = vunpack.c.l.s4 1983009808
      %v5345 = vunpack.c.0.s8 %v5344
      %v5346 = vlaneseq
      %v5347 = vshrl.u32 %v5346, 7
      %v5348 = vsub.s32 %v5345, %v5347
      %v5349 = vrot.slane %v5335, %v5348
      %v5350 = vcombine.low %v5342, %v5349
      %v5351 = vcombine.low %v4704, %v4712
      %v5352 = vcombine.low %v4711, %v4713
      %v5354 = vunpack.c.l.s4 1983009808
      %v5355 = vunpack.c.0.s8 %v5354
      %v5356 = vlaneseq
      %v5357 = vshrl.u32 %v5356, 7
      %v5358 = vsub.s32 %v5355, %v5357
      %v5359 = vrot.slane %v5351, %v5358
      %v5361 = vunpack.c.l.s4 1983009808
      %v5362 = vunpack.c.0.s8 %v5361
      %v5363 = vlaneseq
      %v5364 = vshrl.u32 %v5363, 7
      %v5365 = vsub.s32 %v5362, %v5364
      %v5366 = vrot.slane %v5352, %v5365
      %v5367 = vcombine.low %v5359, %v5366
      %v5368 = vcombine.low %v4721, %v4729
      %v5369 = vcombine.low %v4728, %v4730
      %v5371 = vunpack.c.l.s4 1983009808
      %v5372 = vunpack.c.0.s8 %v5371
      %v5373 = vlaneseq
      %v5374 = vshrl.u32 %v5373, 7
      %v5375 = vsub.s32 %v5372, %v5374
      %v5376 = vrot.slane %v5368, %v5375
      %v5378 = vunpack.c.l.s4 1983009808
      %v5379 = vunpack.c.0.s8 %v5378
      %v5380 = vlaneseq
      %v5381 = vshrl.u32 %v5380, 7
      %v5382 = vsub.s32 %v5379, %v5381
      %v5383 = vrot.slane %v5369, %v5382
      %v5384 = vcombine.low %v5376, %v5383
      %v5385 = vcombine.low %v4746, %v4745
      %v5386 = vcombine.low %v4747, %v4755
      %v5388 = vunpack.c.l.s4 1983009808
      %v5389 = vunpack.c.0.s8 %v5388
      %v5390 = vlaneseq
      %v5391 = vshrl.u32 %v5390, 7
      %v5392 = vsub.s32 %v5389, %v5391
      %v5393 = vrot.slane %v5385, %v5392
      %v5395 = vunpack.c.l.s4 1983009808
      %v5396 = vunpack.c.0.s8 %v5395
      %v5397 = vlaneseq
      %v5398 = vshrl.u32 %v5397, 7
      %v5399 = vsub.s32 %v5396, %v5398
      %v5400 = vrot.slane %v5386, %v5399
      %v5401 = vcombine.low %v5393, %v5400
      %v5402 = vcombine.low %v4763, %v4762
      %v5403 = vcombine.low %v4764, %v4772
      %v5405 = vunpack.c.l.s4 1983009808
      %v5406 = vunpack.c.0.s8 %v5405
      %v5407 = vlaneseq
      %v5408 = vshrl.u32 %v5407, 7
      %v5409 = vsub.s32 %v5406, %v5408
      %v5410 = vrot.slane %v5402, %v5409
      %v5412 = vunpack.c.l.s4 1983009808
      %v5413 = vunpack.c.0.s8 %v5412
      %v5414 = vlaneseq
      %v5415 = vshrl.u32 %v5414, 7
      %v5416 = vsub.s32 %v5413, %v5415
      %v5417 = vrot.slane %v5403, %v5416
      %v5418 = vcombine.low %v5410, %v5417
      %v5419 = vcombine.low %v4779, %v4780
      %v5420 = vcombine.low %v4788, %v4796
      %v5422 = vunpack.c.l.s4 1983009808
      %v5423 = vunpack.c.0.s8 %v5422
      %v5424 = vlaneseq
      %v5425 = vshrl.u32 %v5424, 7
      %v5426 = vsub.s32 %v5423, %v5425
      %v5427 = vrot.slane %v5419, %v5426
      %v5429 = vunpack.c.l.s4 1983009808
      %v5430 = vunpack.c.0.s8 %v5429
      %v5431 = vlaneseq
      %v5432 = vshrl.u32 %v5431, 7
      %v5433 = vsub.s32 %v5430, %v5432
      %v5434 = vrot.slane %v5420, %v5433
      %v5435 = vcombine.low %v5427, %v5434
      %v5436 = vcombine.low %v4795, %v4797
      %v5437 = vcombine.low %v4805, %v4813
      %v5439 = vunpack.c.l.s4 1983009808
      %v5440 = vunpack.c.0.s8 %v5439
      %v5441 = vlaneseq
      %v5442 = vshrl.u32 %v5441, 7
      %v5443 = vsub.s32 %v5440, %v5442
      %v5444 = vrot.slane %v5436, %v5443
      %v5446 = vunpack.c.l.s4 1983009808
      %v5447 = vunpack.c.0.s8 %v5446
      %v5448 = vlaneseq
      %v5449 = vshrl.u32 %v5448, 7
      %v5450 = vsub.s32 %v5447, %v5449
      %v5451 = vrot.slane %v5437, %v5450
      %v5452 = vcombine.low %v5444, %v5451
      %v5453 = vcombine.low %v4814, %v4822
      %v5454 = vcombine.low %v4830, %v4829
      %v5456 = vunpack.c.l.s4 1983009808
      %v5457 = vunpack.c.0.s8 %v5456
      %v5458 = vlaneseq
      %v5459 = vshrl.u32 %v5458, 7
      %v5460 = vsub.s32 %v5457, %v5459
      %v5461 = vrot.slane %v5453, %v5460
      %v5463 = vunpack.c.l.s4 1983009808
      %v5464 = vunpack.c.0.s8 %v5463
      %v5465 = vlaneseq
      %v5466 = vshrl.u32 %v5465, 7
      %v5467 = vsub.s32 %v5464, %v5466
      %v5468 = vrot.slane %v5454, %v5467
      %v5469 = vcombine.low %v5461, %v5468
      %v5470 = vcombine.low %v4831, %v4839
      %v5471 = vcombine.low %v4847, %v4846
      %v5473 = vunpack.c.l.s4 1983009808
      %v5474 = vunpack.c.0.s8 %v5473
      %v5475 = vlaneseq
      %v5476 = vshrl.u32 %v5475, 7
      %v5477 = vsub.s32 %v5474, %v5476
      %v5478 = vrot.slane %v5470, %v5477
      %v5480 = vunpack.c.l.s4 1983009808
      %v5481 = vunpack.c.0.s8 %v5480
      %v5482 = vlaneseq
      %v5483 = vshrl.u32 %v5482, 7
      %v5484 = vsub.s32 %v5481, %v5483
      %v5485 = vrot.slane %v5471, %v5484
      %v5486 = vcombine.low %v5478, %v5485
      %v5487 = vcombine.low %v4855, %v4863
      %v5488 = vcombine.low %v4862, %v4864
      %v5490 = vunpack.c.l.s4 1983009808
      %v5491 = vunpack.c.0.s8 %v5490
      %v5492 = vlaneseq
      %v5493 = vshrl.u32 %v5492, 7
      %v5494 = vsub.s32 %v5491, %v5493
      %v5495 = vrot.slane %v5487, %v5494
      %v5497 = vunpack.c.l.s4 1983009808
      %v5498 = vunpack.c.0.s8 %v5497
      %v5499 = vlaneseq
      %v5500 = vshrl.u32 %v5499, 7
      %v5501 = vsub.s32 %v5498, %v5500
      %v5502 = vrot.slane %v5488, %v5501
      %v5503 = vcombine.low %v5495, %v5502
      %v5504 = vcombine.low %v4872, %v4880
      %v5505 = vcombine.low %v4879, %v4881
      %v5507 = vunpack.c.l.s4 1983009808
      %v5508 = vunpack.c.0.s8 %v5507
      %v5509 = vlaneseq
      %v5510 = vshrl.u32 %v5509, 7
      %v5511 = vsub.s32 %v5508, %v5510
      %v5512 = vrot.slane %v5504, %v5511
      %v5514 = vunpack.c.l.s4 1983009808
      %v5515 = vunpack.c.0.s8 %v5514
      %v5516 = vlaneseq
      %v5517 = vshrl.u32 %v5516, 7
      %v5518 = vsub.s32 %v5515, %v5517
      %v5519 = vrot.slane %v5505, %v5518
      %v5520 = vcombine.low %v5512, %v5519
      %v5521 = vcombine.low %v4897, %v4896
      %v5522 = vcombine.low %v4898, %v4906
      %v5524 = vunpack.c.l.s4 1983009808
      %v5525 = vunpack.c.0.s8 %v5524
      %v5526 = vlaneseq
      %v5527 = vshrl.u32 %v5526, 7
      %v5528 = vsub.s32 %v5525, %v5527
      %v5529 = vrot.slane %v5521, %v5528
      %v5531 = vunpack.c.l.s4 1983009808
      %v5532 = vunpack.c.0.s8 %v5531
      %v5533 = vlaneseq
      %v5534 = vshrl.u32 %v5533, 7
      %v5535 = vsub.s32 %v5532, %v5534
      %v5536 = vrot.slane %v5522, %v5535
      %v5537 = vcombine.low %v5529, %v5536
      %v5538 = vcombine.low %v4914, %v4913
      %v5539 = vcombine.low %v4915, %v4923
      %v5541 = vunpack.c.l.s4 1983009808
      %v5542 = vunpack.c.0.s8 %v5541
      %v5543 = vlaneseq
      %v5544 = vshrl.u32 %v5543, 7
      %v5545 = vsub.s32 %v5542, %v5544
      %v5546 = vrot.slane %v5538, %v5545
      %v5548 = vunpack.c.l.s4 1983009808
      %v5549 = vunpack.c.0.s8 %v5548
      %v5550 = vlaneseq
      %v5551 = vshrl.u32 %v5550, 7
      %v5552 = vsub.s32 %v5549, %v5551
      %v5553 = vrot.slane %v5539, %v5552
      %v5554 = vcombine.low %v5546, %v5553
      %v5555 = vcombine.low %v4930, %v4931
      %v5556 = vcombine.low %v4939, %v4947
      %v5558 = vunpack.c.l.s4 1983009808
      %v5559 = vunpack.c.0.s8 %v5558
      %v5560 = vlaneseq
      %v5561 = vshrl.u32 %v5560, 7
      %v5562 = vsub.s32 %v5559, %v5561
      %v5563 = vrot.slane %v5555, %v5562
      %v5565 = vunpack.c.l.s4 1983009808
      %v5566 = vunpack.c.0.s8 %v5565
      %v5567 = vlaneseq
      %v5568 = vshrl.u32 %v5567, 7
      %v5569 = vsub.s32 %v5566, %v5568
      %v5570 = vrot.slane %v5556, %v5569
      %v5571 = vcombine.low %v5563, %v5570
      %v5572 = vcombine.low %v4946, %v4948
      %v5573 = vcombine.low %v4956, %v4964
      %v5575 = vunpack.c.l.s4 1983009808
      %v5576 = vunpack.c.0.s8 %v5575
      %v5577 = vlaneseq
      %v5578 = vshrl.u32 %v5577, 7
      %v5579 = vsub.s32 %v5576, %v5578
      %v5580 = vrot.slane %v5572, %v5579
      %v5582 = vunpack.c.l.s4 1983009808
      %v5583 = vunpack.c.0.s8 %v5582
      %v5584 = vlaneseq
      %v5585 = vshrl.u32 %v5584, 7
      %v5586 = vsub.s32 %v5583, %v5585
      %v5587 = vrot.slane %v5573, %v5586
      %v5588 = vcombine.low %v5580, %v5587
      %v5589 = vcombine.low %v4965, %v4973
      %v5590 = vcombine.low %v4981, %v4980
      %v5592 = vunpack.c.l.s4 1983009808
      %v5593 = vunpack.c.0.s8 %v5592
      %v5594 = vlaneseq
      %v5595 = vshrl.u32 %v5594, 7
      %v5596 = vsub.s32 %v5593, %v5595
      %v5597 = vrot.slane %v5589, %v5596
      %v5599 = vunpack.c.l.s4 1983009808
      %v5600 = vunpack.c.0.s8 %v5599
      %v5601 = vlaneseq
      %v5602 = vshrl.u32 %v5601, 7
      %v5603 = vsub.s32 %v5600, %v5602
      %v5604 = vrot.slane %v5590, %v5603
      %v5605 = vcombine.low %v5597, %v5604
      %v5606 = vcombine.low %v4982, %v4990
      %v5607 = vcombine.low %v4998, %v4997
      %v5609 = vunpack.c.l.s4 1983009808
      %v5610 = vunpack.c.0.s8 %v5609
      %v5611 = vlaneseq
      %v5612 = vshrl.u32 %v5611, 7
      %v5613 = vsub.s32 %v5610, %v5612
      %v5614 = vrot.slane %v5606, %v5613
      %v5616 = vunpack.c.l.s4 1983009808
      %v5617 = vunpack.c.0.s8 %v5616
      %v5618 = vlaneseq
      %v5619 = vshrl.u32 %v5618, 7
      %v5620 = vsub.s32 %v5617, %v5619
      %v5621 = vrot.slane %v5607, %v5620
      %v5622 = vcombine.low %v5614, %v5621
      %vm5623 = vcmask 1040384
      %v5624 = vrot.slane %v5095, 7
      %v5625 = vrot.slane %v5112, 7
      %v5626 = vsel %vm5623, %v5624, %v5625
      %v5627 = vrot.slane %v5129, 7
      %v5628 = vrot.slane %v5146, 7
      %v5629 = vsel %vm5623, %v5627, %v5628
      %v5630 = vrot.slane %v5163, 7
      %v5631 = vrot.slane %v5180, 7
      %v5632 = vsel %vm5623, %v5630, %v5631
      %v5633 = vrot.slane %v5197, 7
      %v5634 = vrot.slane %v5214, 7
      %v5635 = vsel %vm5623, %v5633, %v5634
      %v5636 = vrot.slane %v5231, 7
      %v5637 = vrot.slane %v5248, 7
      %v5638 = vsel %vm5623, %v5636, %v5637
      %v5639 = vrot.slane %v5265, 7
      %v5640 = vrot.slane %v5282, 7
      %v5641 = vsel %vm5623, %v5639, %v5640
      %v5642 = vrot.slane %v5299, 7
      %v5643 = vrot.slane %v5316, 7
      %v5644 = vsel %vm5623, %v5642, %v5643
      %v5645 = vrot.slane %v5333, 7
      %v5646 = vrot.slane %v5350, 7
      %v5647 = vsel %vm5623, %v5645, %v5646
      %v5648 = vrot.slane %v5367, 7
      %v5649 = vrot.slane %v5384, 7
      %v5650 = vsel %vm5623, %v5648, %v5649
      %v5651 = vrot.slane %v5401, 7
      %v5652 = vrot.slane %v5418, 7
      %v5653 = vsel %vm5623, %v5651, %v5652
      %v5654 = vrot.slane %v5435, 7
      %v5655 = vrot.slane %v5452, 7
      %v5656 = vsel %vm5623, %v5654, %v5655
      %v5657 = vrot.slane %v5469, 7
      %v5658 = vrot.slane %v5486, 7
      %v5659 = vsel %vm5623, %v5657, %v5658
      %v5660 = vrot.slane %v5503, 7
      %v5661 = vrot.slane %v5520, 7
      %v5662 = vsel %vm5623, %v5660, %v5661
      %v5663 = vrot.slane %v5537, 7
      %v5664 = vrot.slane %v5554, 7
      %v5665 = vsel %vm5623, %v5663, %v5664
      %v5666 = vrot.slane %v5571, 7
      %v5667 = vrot.slane %v5588, 7
      %v5668 = vsel %vm5623, %v5666, %v5667
      %v5669 = vrot.slane %v5605, 7
      %v5670 = vrot.slane %v5622, 7
      %v5671 = vsel %vm5623, %v5669, %v5670
      %v5704 = vlaneseq
      %v5705 = vshrl.u32 %v5704, 7
      %v5706 = vsub.s32 0, %v5705
      %v5707 = vrot.slane %v4428, %v5706
      %v5708 = vlaneseq
      %v5709 = vshrl.u32 %v5708, 7
      %v5710 = vsub.s32 0, %v5709
      %v5711 = vrot.slane %v4470, %v5710
      %v5712 = vlaneseq
      %v5713 = vshrl.u32 %v5712, 7
      %v5714 = vsub.s32 0, %v5713
      %v5715 = vrot.slane %v4511, %v5714
      %v5716 = vlaneseq
      %v5717 = vshrl.u32 %v5716, 7
      %v5718 = vsub.s32 0, %v5717
      %v5719 = vrot.slane %v4544, %v5718
      %v5720 = vlaneseq
      %v5721 = vshrl.u32 %v5720, 7
      %v5722 = vsub.s32 0, %v5721
      %v5723 = vrot.slane %v4579, %v5722
      %v5724 = vlaneseq
      %v5725 = vshrl.u32 %v5724, 7
      %v5726 = vsub.s32 0, %v5725
      %v5727 = vrot.slane %v4621, %v5726
      %v5728 = vlaneseq
      %v5729 = vshrl.u32 %v5728, 7
      %v5730 = vsub.s32 0, %v5729
      %v5731 = vrot.slane %v4662, %v5730
      %v5732 = vlaneseq
      %v5733 = vshrl.u32 %v5732, 7
      %v5734 = vsub.s32 0, %v5733
      %v5735 = vrot.slane %v4695, %v5734
      %v5736 = vlaneseq
      %v5737 = vshrl.u32 %v5736, 7
      %v5738 = vsub.s32 0, %v5737
      %v5739 = vrot.slane %v4730, %v5738
      %v5740 = vlaneseq
      %v5741 = vshrl.u32 %v5740, 7
      %v5742 = vsub.s32 0, %v5741
      %v5743 = vrot.slane %v4772, %v5742
      %v5744 = vlaneseq
      %v5745 = vshrl.u32 %v5744, 7
      %v5746 = vsub.s32 0, %v5745
      %v5747 = vrot.slane %v4813, %v5746
      %v5748 = vlaneseq
      %v5749 = vshrl.u32 %v5748, 7
      %v5750 = vsub.s32 0, %v5749
      %v5751 = vrot.slane %v4846, %v5750
      %v5752 = vlaneseq
      %v5753 = vshrl.u32 %v5752, 7
      %v5754 = vsub.s32 0, %v5753
      %v5755 = vrot.slane %v4881, %v5754
      %v5756 = vlaneseq
      %v5757 = vshrl.u32 %v5756, 7
      %v5758 = vsub.s32 0, %v5757
      %v5759 = vrot.slane %v4923, %v5758
      %v5760 = vlaneseq
      %v5761 = vshrl.u32 %v5760, 7
      %v5762 = vsub.s32 0, %v5761
      %v5763 = vrot.slane %v4964, %v5762
      %v5764 = vlaneseq
      %v5765 = vshrl.u32 %v5764, 7
      %v5766 = vsub.s32 0, %v5765
      %v5767 = vrot.slane %v4997, %v5766
      %v5784 = vsel %vm5623, %v5002, %v5624
      %v5785 = vsel %vm5623, %v5006, %v5627
      %v5786 = vsel %vm5623, %v5010, %v5630
      %v5787 = vsel %vm5623, %v5014, %v5633
      %v5788 = vsel %vm5623, %v5018, %v5636
      %v5789 = vsel %vm5623, %v5022, %v5639
      %v5790 = vsel %vm5623, %v5026, %v5642
      %v5791 = vsel %vm5623, %v5030, %v5645
      %v5792 = vsel %vm5623, %v5034, %v5648
      %v5793 = vsel %vm5623, %v5038, %v5651
      %v5794 = vsel %vm5623, %v5042, %v5654
      %v5795 = vsel %vm5623, %v5046, %v5657
      %v5796 = vsel %vm5623, %v5050, %v5660
      %v5797 = vsel %vm5623, %v5054, %v5663
      %v5798 = vsel %vm5623, %v5058, %v5666
      %v5799 = vsel %vm5623, %v5062, %v5669
      %v5800 = vsel %vm5623, %v5625, %v5707
      %v5801 = vsel %vm5623, %v5628, %v5711
      %v5802 = vsel %vm5623, %v5631, %v5715
      %v5803 = vsel %vm5623, %v5634, %v5719
      %v5804 = vsel %vm5623, %v5637, %v5723
      %v5805 = vsel %vm5623, %v5640, %v5727
      %v5806 = vsel %vm5623, %v5643, %v5731
      %v5807 = vsel %vm5623, %v5646, %v5735
      %v5808 = vsel %vm5623, %v5649, %v5739
      %v5809 = vsel %vm5623, %v5652, %v5743
      %v5810 = vsel %vm5623, %v5655, %v5747
      %v5811 = vsel %vm5623, %v5658, %v5751
      %v5812 = vsel %vm5623, %v5661, %v5755
      %v5813 = vsel %vm5623, %v5664, %v5759
      %v5814 = vsel %vm5623, %v5667, %v5763
      %v5815 = vsel %vm5623, %v5670, %v5767
      %v5848 = vcombine.high %v5785, %v5785
      %v5850 = vunpack.c.l.s4 1983009808
      %v5851 = vunpack.c.0.s8 %v5850
      %v5852 = vlaneseq
      %v5853 = vshrl.u32 %v5852, 7
      %v5854 = vsub.s32 %v5851, %v5853
      %v5855 = vrot.slane %v5785, %v5854
      %v5857 = vunpack.c.l.s4 1983009808
      %v5858 = vunpack.c.0.s8 %v5857
      %v5859 = vlaneseq
      %v5860 = vshrl.u32 %v5859, 7
      %v5861 = vsub.s32 %v5858, %v5860
      %v5862 = vrot.slane %v5848, %v5861
      %v5863 = vcombine.high %v5855, %v5855
      %v5864 = vcombine.high %v5862, %v5862
      %v5865 = vcombine.high %v5629, %v5629
      %v5867 = vunpack.c.l.s4 1983009808
      %v5868 = vunpack.c.0.s8 %v5867
      %v5869 = vlaneseq
      %v5870 = vshrl.u32 %v5869, 7
      %v5871 = vsub.s32 %v5868, %v5870
      %v5872 = vrot.slane %v5629, %v5871
      %v5874 = vunpack.c.l.s4 1983009808
      %v5875 = vunpack.c.0.s8 %v5874
      %v5876 = vlaneseq
      %v5877 = vshrl.u32 %v5876, 7
      %v5878 = vsub.s32 %v5875, %v5877
      %v5879 = vrot.slane %v5865, %v5878
      %v5880 = vcombine.high %v5872, %v5872
      %v5881 = vcombine.high %v5879, %v5879
      %v5883 = vunpack.c.l.s4 1983009808
      %v5884 = vunpack.c.0.s8 %v5883
      %v5885 = vlaneseq
      %v5886 = vshrl.u32 %v5885, 7
      %v5887 = vsub.s32 %v5884, %v5886
      %v5888 = vrot.slane %v5801, %v5887
      %v5889 = vcombine.high %v5784, %v5784
      %v5891 = vunpack.c.l.s4 1983009808
      %v5892 = vunpack.c.0.s8 %v5891
      %v5893 = vlaneseq
      %v5894 = vshrl.u32 %v5893, 7
      %v5895 = vsub.s32 %v5892, %v5894
      %v5896 = vrot.slane %v5784, %v5895
      %v5898 = vunpack.c.l.s4 1983009808
      %v5899 = vunpack.c.0.s8 %v5898
      %v5900 = vlaneseq
      %v5901 = vshrl.u32 %v5900, 7
      %v5902 = vsub.s32 %v5899, %v5901
      %v5903 = vrot.slane %v5889, %v5902
      %v5904 = vcombine.high %v5896, %v5896
      %v5905 = vcombine.high %v5903, %v5903
      %v5906 = vcombine.high %v5626, %v5626
      %v5908 = vunpack.c.l.s4 1983009808
      %v5909 = vunpack.c.0.s8 %v5908
      %v5910 = vlaneseq
      %v5911 = vshrl.u32 %v5910, 7
      %v5912 = vsub.s32 %v5909, %v5911
      %v5913 = vrot.slane %v5626, %v5912
      %v5915 = vunpack.c.l.s4 1983009808
      %v5916 = vunpack.c.0.s8 %v5915
      %v5917 = vlaneseq
      %v5918 = vshrl.u32 %v5917, 7
      %v5919 = vsub.s32 %v5916, %v5918
      %v5920 = vrot.slane %v5906, %v5919
      %v5921 = vcombine.high %v5913, %v5913
      %v5922 = vcombine.high %v5920, %v5920
      %v5924 = vunpack.c.l.s4 1983009808
      %v5925 = vunpack.c.0.s8 %v5924
      %v5926 = vlaneseq
      %v5927 = vshrl.u32 %v5926, 7
      %v5928 = vsub.s32 %v5925, %v5927
      %v5929 = vrot.slane %v5800, %v5928
      %v5930 = vcombine.high %v5786, %v5786
      %v5932 = vunpack.c.l.s4 1983009808
      %v5933 = vunpack.c.0.s8 %v5932
      %v5934 = vlaneseq
      %v5935 = vshrl.u32 %v5934, 7
      %v5936 = vsub.s32 %v5933, %v5935
      %v5937 = vrot.slane %v5786, %v5936
      %v5939 = vunpack.c.l.s4 1983009808
      %v5940 = vunpack.c.0.s8 %v5939
      %v5941 = vlaneseq
      %v5942 = vshrl.u32 %v5941, 7
      %v5943 = vsub.s32 %v5940, %v5942
      %v5944 = vrot.slane %v5930, %v5943
      %v5945 = vcombine.high %v5937, %v5937
      %v5946 = vcombine.high %v5944, %v5944
      %v5947 = vcombine.high %v5632, %v5632
      %v5949 = vunpack.c.l.s4 1983009808
      %v5950 = vunpack.c.0.s8 %v5949
      %v5951 = vlaneseq
      %v5952 = vshrl.u32 %v5951, 7
      %v5953 = vsub.s32 %v5950, %v5952
      %v5954 = vrot.slane %v5632, %v5953
      %v5956 = vunpack.c.l.s4 1983009808
      %v5957 = vunpack.c.0.s8 %v5956
      %v5958 = vlaneseq
      %v5959 = vshrl.u32 %v5958, 7
      %v5960 = vsub.s32 %v5957, %v5959
      %v5961 = vrot.slane %v5947, %v5960
      %v5962 = vcombine.high %v5954, %v5954
      %v5963 = vcombine.high %v5961, %v5961
      %v5965 = vunpack.c.l.s4 1983009808
      %v5966 = vunpack.c.0.s8 %v5965
      %v5967 = vlaneseq
      %v5968 = vshrl.u32 %v5967, 7
      %v5969 = vsub.s32 %v5966, %v5968
      %v5970 = vrot.slane %v5802, %v5969
      %v5971 = vcombine.high %v5787, %v5787
      %v5973 = vunpack.c.l.s4 1983009808
      %v5974 = vunpack.c.0.s8 %v5973
      %v5975 = vlaneseq
      %v5976 = vshrl.u32 %v5975, 7
      %v5977 = vsub.s32 %v5974, %v5976
      %v5978 = vrot.slane %v5787, %v5977
      %v5980 = vunpack.c.l.s4 1983009808
      %v5981 = vunpack.c.0.s8 %v5980
      %v5982 = vlaneseq
      %v5983 = vshrl.u32 %v5982, 7
      %v5984 = vsub.s32 %v5981, %v5983
      %v5985 = vrot.slane %v5971, %v5984
      %v5986 = vcombine.high %v5978, %v5978
      %v5987 = vcombine.high %v5985, %v5985
      %v5988 = vcombine.high %v5635, %v5635
      %v5990 = vunpack.c.l.s4 1983009808
      %v5991 = vunpack.c.0.s8 %v5990
      %v5992 = vlaneseq
      %v5993 = vshrl.u32 %v5992, 7
      %v5994 = vsub.s32 %v5991, %v5993
      %v5995 = vrot.slane %v5635, %v5994
      %v5997 = vunpack.c.l.s4 1983009808
      %v5998 = vunpack.c.0.s8 %v5997
      %v5999 = vlaneseq
      %v6000 = vshrl.u32 %v5999, 7
      %v6001 = vsub.s32 %v5998, %v6000
      %v6002 = vrot.slane %v5988, %v6001
      %v6003 = vcombine.high %v5995, %v5995
      %v6004 = vcombine.high %v6002, %v6002
      %v6006 = vunpack.c.l.s4 1983009808
      %v6007 = vunpack.c.0.s8 %v6006
      %v6008 = vlaneseq
      %v6009 = vshrl.u32 %v6008, 7
      %v6010 = vsub.s32 %v6007, %v6009
      %v6011 = vrot.slane %v5803, %v6010
      %v6012 = vcombine.high %v5788, %v5788
      %v6014 = vunpack.c.l.s4 1983009808
      %v6015 = vunpack.c.0.s8 %v6014
      %v6016 = vlaneseq
      %v6017 = vshrl.u32 %v6016, 7
      %v6018 = vsub.s32 %v6015, %v6017
      %v6019 = vrot.slane %v5788, %v6018
      %v6021 = vunpack.c.l.s4 1983009808
      %v6022 = vunpack.c.0.s8 %v6021
      %v6023 = vlaneseq
      %v6024 = vshrl.u32 %v6023, 7
      %v6025 = vsub.s32 %v6022, %v6024
      %v6026 = vrot.slane %v6012, %v6025
      %v6027 = vcombine.high %v6019, %v6019
      %v6028 = vcombine.high %v6026, %v6026
      %v6029 = vcombine.high %v5638, %v5638
      %v6031 = vunpack.c.l.s4 1983009808
      %v6032 = vunpack.c.0.s8 %v6031
      %v6033 = vlaneseq
      %v6034 = vshrl.u32 %v6033, 7
      %v6035 = vsub.s32 %v6032, %v6034
      %v6036 = vrot.slane %v5638, %v6035
      %v6038 = vunpack.c.l.s4 1983009808
      %v6039 = vunpack.c.0.s8 %v6038
      %v6040 = vlaneseq
      %v6041 = vshrl.u32 %v6040, 7
      %v6042 = vsub.s32 %v6039, %v6041
      %v6043 = vrot.slane %v6029, %v6042
      %v6044 = vcombine.high %v6036, %v6036
      %v6045 = vcombine.high %v6043, %v6043
      %v6047 = vunpack.c.l.s4 1983009808
      %v6048 = vunpack.c.0.s8 %v6047
      %v6049 = vlaneseq
      %v6050 = vshrl.u32 %v6049, 7
      %v6051 = vsub.s32 %v6048, %v6050
      %v6052 = vrot.slane %v5804, %v6051
      %v6053 = vcombine.high %v5789, %v5789
      %v6055 = vunpack.c.l.s4 1983009808
      %v6056 = vunpack.c.0.s8 %v6055
      %v6057 = vlaneseq
      %v6058 = vshrl.u32 %v6057, 7
      %v6059 = vsub.s32 %v6056, %v6058
      %v6060 = vrot.slane %v5789, %v6059
      %v6062 = vunpack.c.l.s4 1983009808
      %v6063 = vunpack.c.0.s8 %v6062
      %v6064 = vlaneseq
      %v6065 = vshrl.u32 %v6064, 7
      %v6066 = vsub.s32 %v6063, %v6065
      %v6067 = vrot.slane %v6053, %v6066
      %v6068 = vcombine.high %v6060, %v6060
      %v6069 = vcombine.high %v6067, %v6067
      %v6070 = vcombine.high %v5641, %v5641
      %v6072 = vunpack.c.l.s4 1983009808
      %v6073 = vunpack.c.0.s8 %v6072
      %v6074 = vlaneseq
      %v6075 = vshrl.u32 %v6074, 7
      %v6076 = vsub.s32 %v6073, %v6075
      %v6077 = vrot.slane %v5641, %v6076
      %v6079 = vunpack.c.l.s4 1983009808
      %v6080 = vunpack.c.0.s8 %v6079
      %v6081 = vlaneseq
      %v6082 = vshrl.u32 %v6081, 7
      %v6083 = vsub.s32 %v6080, %v6082
      %v6084 = vrot.slane %v6070, %v6083
      %v6085 = vcombine.high %v6077, %v6077
      %v6086 = vcombine.high %v6084, %v6084
      %v6088 = vunpack.c.l.s4 1983009808
      %v6089 = vunpack.c.0.s8 %v6088
      %v6090 = vlaneseq
      %v6091 = vshrl.u32 %v6090, 7
      %v6092 = vsub.s32 %v6089, %v6091
      %v6093 = vrot.slane %v5805, %v6092
      %v6094 = vcombine.high %v5790, %v5790
      %v6096 = vunpack.c.l.s4 1983009808
      %v6097 = vunpack.c.0.s8 %v6096
      %v6098 = vlaneseq
      %v6099 = vshrl.u32 %v6098, 7
      %v6100 = vsub.s32 %v6097, %v6099
      %v6101 = vrot.slane %v5790, %v6100
      %v6103 = vunpack.c.l.s4 1983009808
      %v6104 = vunpack.c.0.s8 %v6103
      %v6105 = vlaneseq
      %v6106 = vshrl.u32 %v6105, 7
      %v6107 = vsub.s32 %v6104, %v6106
      %v6108 = vrot.slane %v6094, %v6107
      %v6109 = vcombine.high %v6101, %v6101
      %v6110 = vcombine.high %v6108, %v6108
      %v6111 = vcombine.high %v5644, %v5644
      %v6113 = vunpack.c.l.s4 1983009808
      %v6114 = vunpack.c.0.s8 %v6113
      %v6115 = vlaneseq
      %v6116 = vshrl.u32 %v6115, 7
      %v6117 = vsub.s32 %v6114, %v6116
      %v6118 = vrot.slane %v5644, %v6117
      %v6120 = vunpack.c.l.s4 1983009808
      %v6121 = vunpack.c.0.s8 %v6120
      %v6122 = vlaneseq
      %v6123 = vshrl.u32 %v6122, 7
      %v6124 = vsub.s32 %v6121, %v6123
      %v6125 = vrot.slane %v6111, %v6124
      %v6126 = vcombine.high %v6118, %v6118
      %v6127 = vcombine.high %v6125, %v6125
      %v6129 = vunpack.c.l.s4 1983009808
      %v6130 = vunpack.c.0.s8 %v6129
      %v6131 = vlaneseq
      %v6132 = vshrl.u32 %v6131, 7
      %v6133 = vsub.s32 %v6130, %v6132
      %v6134 = vrot.slane %v5806, %v6133
      %v6135 = vcombine.high %v5791, %v5791
      %v6137 = vunpack.c.l.s4 1983009808
      %v6138 = vunpack.c.0.s8 %v6137
      %v6139 = vlaneseq
      %v6140 = vshrl.u32 %v6139, 7
      %v6141 = vsub.s32 %v6138, %v6140
      %v6142 = vrot.slane %v5791, %v6141
      %v6144 = vunpack.c.l.s4 1983009808
      %v6145 = vunpack.c.0.s8 %v6144
      %v6146 = vlaneseq
      %v6147 = vshrl.u32 %v6146, 7
      %v6148 = vsub.s32 %v6145, %v6147
      %v6149 = vrot.slane %v6135, %v6148
      %v6150 = vcombine.high %v6142, %v6142
      %v6151 = vcombine.high %v6149, %v6149
      %v6152 = vcombine.high %v5647, %v5647
      %v6154 = vunpack.c.l.s4 1983009808
      %v6155 = vunpack.c.0.s8 %v6154
      %v6156 = vlaneseq
      %v6157 = vshrl.u32 %v6156, 7
      %v6158 = vsub.s32 %v6155, %v6157
      %v6159 = vrot.slane %v5647, %v6158
      %v6161 = vunpack.c.l.s4 1983009808
      %v6162 = vunpack.c.0.s8 %v6161
      %v6163 = vlaneseq
      %v6164 = vshrl.u32 %v6163, 7
      %v6165 = vsub.s32 %v6162, %v6164
      %v6166 = vrot.slane %v6152, %v6165
      %v6167 = vcombine.high %v6159, %v6159
      %v6168 = vcombine.high %v6166, %v6166
      %v6170 = vunpack.c.l.s4 1983009808
      %v6171 = vunpack.c.0.s8 %v6170
      %v6172 = vlaneseq
      %v6173 = vshrl.u32 %v6172, 7
      %v6174 = vsub.s32 %v6171, %v6173
      %v6175 = vrot.slane %v5807, %v6174
      %v6176 = vcombine.high %v5792, %v5792
      %v6178 = vunpack.c.l.s4 1983009808
      %v6179 = vunpack.c.0.s8 %v6178
      %v6180 = vlaneseq
      %v6181 = vshrl.u32 %v6180, 7
      %v6182 = vsub.s32 %v6179, %v6181
      %v6183 = vrot.slane %v5792, %v6182
      %v6185 = vunpack.c.l.s4 1983009808
      %v6186 = vunpack.c.0.s8 %v6185
      %v6187 = vlaneseq
      %v6188 = vshrl.u32 %v6187, 7
      %v6189 = vsub.s32 %v6186, %v6188
      %v6190 = vrot.slane %v6176, %v6189
      %v6191 = vcombine.high %v6183, %v6183
      %v6192 = vcombine.high %v6190, %v6190
      %v6193 = vcombine.high %v5650, %v5650
      %v6195 = vunpack.c.l.s4 1983009808
      %v6196 = vunpack.c.0.s8 %v6195
      %v6197 = vlaneseq
      %v6198 = vshrl.u32 %v6197, 7
      %v6199 = vsub.s32 %v6196, %v6198
      %v6200 = vrot.slane %v5650, %v6199
      %v6202 = vunpack.c.l.s4 1983009808
      %v6203 = vunpack.c.0.s8 %v6202
      %v6204 = vlaneseq
      %v6205 = vshrl.u32 %v6204, 7
      %v6206 = vsub.s32 %v6203, %v6205
      %v6207 = vrot.slane %v6193, %v6206
      %v6208 = vcombine.high %v6200, %v6200
      %v6209 = vcombine.high %v6207, %v6207
      %v6211 = vunpack.c.l.s4 1983009808
      %v6212 = vunpack.c.0.s8 %v6211
      %v6213 = vlaneseq
      %v6214 = vshrl.u32 %v6213, 7
      %v6215 = vsub.s32 %v6212, %v6214
      %v6216 = vrot.slane %v5808, %v6215
      %v6217 = vcombine.high %v5793, %v5793
      %v6219 = vunpack.c.l.s4 1983009808
      %v6220 = vunpack.c.0.s8 %v6219
      %v6221 = vlaneseq
      %v6222 = vshrl.u32 %v6221, 7
      %v6223 = vsub.s32 %v6220, %v6222
      %v6224 = vrot.slane %v5793, %v6223
      %v6226 = vunpack.c.l.s4 1983009808
      %v6227 = vunpack.c.0.s8 %v6226
      %v6228 = vlaneseq
      %v6229 = vshrl.u32 %v6228, 7
      %v6230 = vsub.s32 %v6227, %v6229
      %v6231 = vrot.slane %v6217, %v6230
      %v6232 = vcombine.high %v6224, %v6224
      %v6233 = vcombine.high %v6231, %v6231
      %v6234 = vcombine.high %v5653, %v5653
      %v6236 = vunpack.c.l.s4 1983009808
      %v6237 = vunpack.c.0.s8 %v6236
      %v6238 = vlaneseq
      %v6239 = vshrl.u32 %v6238, 7
      %v6240 = vsub.s32 %v6237, %v6239
      %v6241 = vrot.slane %v5653, %v6240
      %v6243 = vunpack.c.l.s4 1983009808
      %v6244 = vunpack.c.0.s8 %v6243
      %v6245 = vlaneseq
      %v6246 = vshrl.u32 %v6245, 7
      %v6247 = vsub.s32 %v6244, %v6246
      %v6248 = vrot.slane %v6234, %v6247
      %v6249 = vcombine.high %v6241, %v6241
      %v6250 = vcombine.high %v6248, %v6248
      %v6252 = vunpack.c.l.s4 1983009808
      %v6253 = vunpack.c.0.s8 %v6252
      %v6254 = vlaneseq
      %v6255 = vshrl.u32 %v6254, 7
      %v6256 = vsub.s32 %v6253, %v6255
      %v6257 = vrot.slane %v5809, %v6256
      %v6258 = vcombine.high %v5794, %v5794
      %v6260 = vunpack.c.l.s4 1983009808
      %v6261 = vunpack.c.0.s8 %v6260
      %v6262 = vlaneseq
      %v6263 = vshrl.u32 %v6262, 7
      %v6264 = vsub.s32 %v6261, %v6263
      %v6265 = vrot.slane %v5794, %v6264
      %v6267 = vunpack.c.l.s4 1983009808
      %v6268 = vunpack.c.0.s8 %v6267
      %v6269 = vlaneseq
      %v6270 = vshrl.u32 %v6269, 7
      %v6271 = vsub.s32 %v6268, %v6270
      %v6272 = vrot.slane %v6258, %v6271
      %v6273 = vcombine.high %v6265, %v6265
      %v6274 = vcombine.high %v6272, %v6272
      %v6275 = vcombine.high %v5656, %v5656
      %v6277 = vunpack.c.l.s4 1983009808
      %v6278 = vunpack.c.0.s8 %v6277
      %v6279 = vlaneseq
      %v6280 = vshrl.u32 %v6279, 7
      %v6281 = vsub.s32 %v6278, %v6280
      %v6282 = vrot.slane %v5656, %v6281
      %v6284 = vunpack.c.l.s4 1983009808
      %v6285 = vunpack.c.0.s8 %v6284
      %v6286 = vlaneseq
      %v6287 = vshrl.u32 %v6286, 7
      %v6288 = vsub.s32 %v6285, %v6287
      %v6289 = vrot.slane %v6275, %v6288
      %v6290 = vcombine.high %v6282, %v6282
      %v6291 = vcombine.high %v6289, %v6289
      %v6293 = vunpack.c.l.s4 1983009808
      %v6294 = vunpack.c.0.s8 %v6293
      %v6295 = vlaneseq
      %v6296 = vshrl.u32 %v6295, 7
      %v6297 = vsub.s32 %v6294, %v6296
      %v6298 = vrot.slane %v5810, %v6297
      %v6299 = vcombine.high %v5795, %v5795
      %v6301 = vunpack.c.l.s4 1983009808
      %v6302 = vunpack.c.0.s8 %v6301
      %v6303 = vlaneseq
      %v6304 = vshrl.u32 %v6303, 7
      %v6305 = vsub.s32 %v6302, %v6304
      %v6306 = vrot.slane %v5795, %v6305
      %v6308 = vunpack.c.l.s4 1983009808
      %v6309 = vunpack.c.0.s8 %v6308
      %v6310 = vlaneseq
      %v6311 = vshrl.u32 %v6310, 7
      %v6312 = vsub.s32 %v6309, %v6311
      %v6313 = vrot.slane %v6299, %v6312
      %v6314 = vcombine.high %v6306, %v6306
      %v6315 = vcombine.high %v6313, %v6313
      %v6316 = vcombine.high %v5659, %v5659
      %v6318 = vunpack.c.l.s4 1983009808
      %v6319 = vunpack.c.0.s8 %v6318
      %v6320 = vlaneseq
      %v6321 = vshrl.u32 %v6320, 7
      %v6322 = vsub.s32 %v6319, %v6321
      %v6323 = vrot.slane %v5659, %v6322
      %v6325 = vunpack.c.l.s4 1983009808
      %v6326 = vunpack.c.0.s8 %v6325
      %v6327 = vlaneseq
      %v6328 = vshrl.u32 %v6327, 7
      %v6329 = vsub.s32 %v6326, %v6328
      %v6330 = vrot.slane %v6316, %v6329
      %v6331 = vcombine.high %v6323, %v6323
      %v6332 = vcombine.high %v6330, %v6330
      %v6334 = vunpack.c.l.s4 1983009808
      %v6335 = vunpack.c.0.s8 %v6334
      %v6336 = vlaneseq
      %v6337 = vshrl.u32 %v6336, 7
      %v6338 = vsub.s32 %v6335, %v6337
      %v6339 = vrot.slane %v5811, %v6338
      %v6340 = vcombine.high %v5796, %v5796
      %v6342 = vunpack.c.l.s4 1983009808
      %v6343 = vunpack.c.0.s8 %v6342
      %v6344 = vlaneseq
      %v6345 = vshrl.u32 %v6344, 7
      %v6346 = vsub.s32 %v6343, %v6345
      %v6347 = vrot.slane %v5796, %v6346
      %v6349 = vunpack.c.l.s4 1983009808
      %v6350 = vunpack.c.0.s8 %v6349
      %v6351 = vlaneseq
      %v6352 = vshrl.u32 %v6351, 7
      %v6353 = vsub.s32 %v6350, %v6352
      %v6354 = vrot.slane %v6340, %v6353
      %v6355 = vcombine.high %v6347, %v6347
      %v6356 = vcombine.high %v6354, %v6354
      %v6357 = vcombine.high %v5662, %v5662
      %v6359 = vunpack.c.l.s4 1983009808
      %v6360 = vunpack.c.0.s8 %v6359
      %v6361 = vlaneseq
      %v6362 = vshrl.u32 %v6361, 7
      %v6363 = vsub.s32 %v6360, %v6362
      %v6364 = vrot.slane %v5662, %v6363
      %v6366 = vunpack.c.l.s4 1983009808
      %v6367 = vunpack.c.0.s8 %v6366
      %v6368 = vlaneseq
      %v6369 = vshrl.u32 %v6368, 7
      %v6370 = vsub.s32 %v6367, %v6369
      %v6371 = vrot.slane %v6357, %v6370
      %v6372 = vcombine.high %v6364, %v6364
      %v6373 = vcombine.high %v6371, %v6371
      %v6375 = vunpack.c.l.s4 1983009808
      %v6376 = vunpack.c.0.s8 %v6375
      %v6377 = vlaneseq
      %v6378 = vshrl.u32 %v6377, 7
      %v6379 = vsub.s32 %v6376, %v6378
      %v6380 = vrot.slane %v5812, %v6379
      %v6381 = vcombine.high %v5797, %v5797
      %v6383 = vunpack.c.l.s4 1983009808
      %v6384 = vunpack.c.0.s8 %v6383
      %v6385 = vlaneseq
      %v6386 = vshrl.u32 %v6385, 7
      %v6387 = vsub.s32 %v6384, %v6386
      %v6388 = vrot.slane %v5797, %v6387
      %v6390 = vunpack.c.l.s4 1983009808
      %v6391 = vunpack.c.0.s8 %v6390
      %v6392 = vlaneseq
      %v6393 = vshrl.u32 %v6392, 7
      %v6394 = vsub.s32 %v6391, %v6393
      %v6395 = vrot.slane %v6381, %v6394
      %v6396 = vcombine.high %v6388, %v6388
      %v6397 = vcombine.high %v6395, %v6395
      %v6398 = vcombine.high %v5665, %v5665
      %v6400 = vunpack.c.l.s4 1983009808
      %v6401 = vunpack.c.0.s8 %v6400
      %v6402 = vlaneseq
      %v6403 = vshrl.u32 %v6402, 7
      %v6404 = vsub.s32 %v6401, %v6403
      %v6405 = vrot.slane %v5665, %v6404
      %v6407 = vunpack.c.l.s4 1983009808
      %v6408 = vunpack.c.0.s8 %v6407
      %v6409 = vlaneseq
      %v6410 = vshrl.u32 %v6409, 7
      %v6411 = vsub.s32 %v6408, %v6410
      %v6412 = vrot.slane %v6398, %v6411
      %v6413 = vcombine.high %v6405, %v6405
      %v6414 = vcombine.high %v6412, %v6412
      %v6416 = vunpack.c.l.s4 1983009808
      %v6417 = vunpack.c.0.s8 %v6416
      %v6418 = vlaneseq
      %v6419 = vshrl.u32 %v6418, 7
      %v6420 = vsub.s32 %v6417, %v6419
      %v6421 = vrot.slane %v5813, %v6420
      %v6422 = vcombine.high %v5798, %v5798
      %v6424 = vunpack.c.l.s4 1983009808
      %v6425 = vunpack.c.0.s8 %v6424
      %v6426 = vlaneseq
      %v6427 = vshrl.u32 %v6426, 7
      %v6428 = vsub.s32 %v6425, %v6427
      %v6429 = vrot.slane %v5798, %v6428
      %v6431 = vunpack.c.l.s4 1983009808
      %v6432 = vunpack.c.0.s8 %v6431
      %v6433 = vlaneseq
      %v6434 = vshrl.u32 %v6433, 7
      %v6435 = vsub.s32 %v6432, %v6434
      %v6436 = vrot.slane %v6422, %v6435
      %v6437 = vcombine.high %v6429, %v6429
      %v6438 = vcombine.high %v6436, %v6436
      %v6439 = vcombine.high %v5668, %v5668
      %v6441 = vunpack.c.l.s4 1983009808
      %v6442 = vunpack.c.0.s8 %v6441
      %v6443 = vlaneseq
      %v6444 = vshrl.u32 %v6443, 7
      %v6445 = vsub.s32 %v6442, %v6444
      %v6446 = vrot.slane %v5668, %v6445
      %v6448 = vunpack.c.l.s4 1983009808
      %v6449 = vunpack.c.0.s8 %v6448
      %v6450 = vlaneseq
      %v6451 = vshrl.u32 %v6450, 7
      %v6452 = vsub.s32 %v6449, %v6451
      %v6453 = vrot.slane %v6439, %v6452
      %v6454 = vcombine.high %v6446, %v6446
      %v6455 = vcombine.high %v6453, %v6453
      %v6457 = vunpack.c.l.s4 1983009808
      %v6458 = vunpack.c.0.s8 %v6457
      %v6459 = vlaneseq
      %v6460 = vshrl.u32 %v6459, 7
      %v6461 = vsub.s32 %v6458, %v6460
      %v6462 = vrot.slane %v5814, %v6461
      %v6463 = vcombine.high %v5799, %v5799
      %v6465 = vunpack.c.l.s4 1983009808
      %v6466 = vunpack.c.0.s8 %v6465
      %v6467 = vlaneseq
      %v6468 = vshrl.u32 %v6467, 7
      %v6469 = vsub.s32 %v6466, %v6468
      %v6470 = vrot.slane %v5799, %v6469
      %v6472 = vunpack.c.l.s4 1983009808
      %v6473 = vunpack.c.0.s8 %v6472
      %v6474 = vlaneseq
      %v6475 = vshrl.u32 %v6474, 7
      %v6476 = vsub.s32 %v6473, %v6475
      %v6477 = vrot.slane %v6463, %v6476
      %v6478 = vcombine.high %v6470, %v6470
      %v6479 = vcombine.high %v6477, %v6477
      %v6480 = vcombine.high %v5671, %v5671
      %v6482 = vunpack.c.l.s4 1983009808
      %v6483 = vunpack.c.0.s8 %v6482
      %v6484 = vlaneseq
      %v6485 = vshrl.u32 %v6484, 7
      %v6486 = vsub.s32 %v6483, %v6485
      %v6487 = vrot.slane %v5671, %v6486
      %v6489 = vunpack.c.l.s4 1983009808
      %v6490 = vunpack.c.0.s8 %v6489
      %v6491 = vlaneseq
      %v6492 = vshrl.u32 %v6491, 7
      %v6493 = vsub.s32 %v6490, %v6492
      %v6494 = vrot.slane %v6480, %v6493
      %v6495 = vcombine.high %v6487, %v6487
      %v6496 = vcombine.high %v6494, %v6494
      %v6498 = vunpack.c.l.s4 1983009808
      %v6499 = vunpack.c.0.s8 %v6498
      %v6500 = vlaneseq
      %v6501 = vshrl.u32 %v6500, 7
      %v6502 = vsub.s32 %v6499, %v6501
      %v6503 = vrot.slane %v5815, %v6502
      %v6504 = vld [vmem:[%s3] sm:$0xf]
      %s6505 = scalar_lea.vmem %s3, 4
      %v6506 = vld [vmem:[%s6505] sm:$0xf]
      %v6507 = vcombine.low %v5855, %v5863
      %v6508 = vcombine.low %v5862, %v5864
      %v6510 = vunpack.c.l.s4 1983009808
      %v6511 = vunpack.c.0.s8 %v6510
      %v6512 = vlaneseq
      %v6513 = vshrl.u32 %v6512, 7
      %v6514 = vsub.s32 %v6511, %v6513
      %v6515 = vrot.slane %v6507, %v6514
      %v6517 = vunpack.c.l.s4 1983009808
      %v6518 = vunpack.c.0.s8 %v6517
      %v6519 = vlaneseq
      %v6520 = vshrl.u32 %v6519, 7
      %v6521 = vsub.s32 %v6518, %v6520
      %v6522 = vrot.slane %v6508, %v6521
      %v6523 = vcombine.low %v6515, %v6522
      %v6524 = vcombine.low %v5872, %v5880
      %v6525 = vcombine.low %v5879, %v5881
      %v6527 = vunpack.c.l.s4 1983009808
      %v6528 = vunpack.c.0.s8 %v6527
      %v6529 = vlaneseq
      %v6530 = vshrl.u32 %v6529, 7
      %v6531 = vsub.s32 %v6528, %v6530
      %v6532 = vrot.slane %v6524, %v6531
      %v6534 = vunpack.c.l.s4 1983009808
      %v6535 = vunpack.c.0.s8 %v6534
      %v6536 = vlaneseq
      %v6537 = vshrl.u32 %v6536, 7
      %v6538 = vsub.s32 %v6535, %v6537
      %v6539 = vrot.slane %v6525, %v6538
      %v6540 = vcombine.low %v6532, %v6539
      %v6541 = vcombine.low %v5888, %v5896
      %v6542 = vcombine.low %v5904, %v5903
      %v6544 = vunpack.c.l.s4 1983009808
      %v6545 = vunpack.c.0.s8 %v6544
      %v6546 = vlaneseq
      %v6547 = vshrl.u32 %v6546, 7
      %v6548 = vsub.s32 %v6545, %v6547
      %v6549 = vrot.slane %v6541, %v6548
      %v6551 = vunpack.c.l.s4 1983009808
      %v6552 = vunpack.c.0.s8 %v6551
      %v6553 = vlaneseq
      %v6554 = vshrl.u32 %v6553, 7
      %v6555 = vsub.s32 %v6552, %v6554
      %v6556 = vrot.slane %v6542, %v6555
      %v6557 = vcombine.low %v6549, %v6556
      %v6558 = vcombine.low %v5905, %v5913
      %v6559 = vcombine.low %v5921, %v5920
      %v6561 = vunpack.c.l.s4 1983009808
      %v6562 = vunpack.c.0.s8 %v6561
      %v6563 = vlaneseq
      %v6564 = vshrl.u32 %v6563, 7
      %v6565 = vsub.s32 %v6562, %v6564
      %v6566 = vrot.slane %v6558, %v6565
      %v6568 = vunpack.c.l.s4 1983009808
      %v6569 = vunpack.c.0.s8 %v6568
      %v6570 = vlaneseq
      %v6571 = vshrl.u32 %v6570, 7
      %v6572 = vsub.s32 %v6569, %v6571
      %v6573 = vrot.slane %v6559, %v6572
      %v6574 = vcombine.low %v6566, %v6573
      %v6575 = vcombine.low %v5922, %v5929
      %v6577 = vunpack.c.l.s4 1983009808
      %v6578 = vunpack.c.0.s8 %v6577
      %v6579 = vlaneseq
      %v6580 = vshrl.u32 %v6579, 7
      %v6581 = vsub.s32 %v6578, %v6580
      %v6582 = vrot.slane %v6575, %v6581
      %v6583 = vcombine.low %v6582, %v6515
      %v6584 = vcombine.low %v6522, %v6532
      %v6585 = vcombine.low %v5888, %v5937
      %v6587 = vunpack.c.l.s4 1983009808
      %v6588 = vunpack.c.0.s8 %v6587
      %v6589 = vlaneseq
      %v6590 = vshrl.u32 %v6589, 7
      %v6591 = vsub.s32 %v6588, %v6590
      %v6592 = vrot.slane %v6585, %v6591
      %v6593 = vcombine.low %v6539, %v6592
      %v6594 = vcombine.low %v5945, %v5944
      %v6595 = vcombine.low %v5946, %v5954
      %v6597 = vunpack.c.l.s4 1983009808
      %v6598 = vunpack.c.0.s8 %v6597
      %v6599 = vlaneseq
      %v6600 = vshrl.u32 %v6599, 7
      %v6601 = vsub.s32 %v6598, %v6600
      %v6602 = vrot.slane %v6594, %v6601
      %v6604 = vunpack.c.l.s4 1983009808
      %v6605 = vunpack.c.0.s8 %v6604
      %v6606 = vlaneseq
      %v6607 = vshrl.u32 %v6606, 7
      %v6608 = vsub.s32 %v6605, %v6607
      %v6609 = vrot.slane %v6595, %v6608
      %v6610 = vcombine.low %v6602, %v6609
      %v6611 = vcombine.low %v5962, %v5961
      %v6612 = vcombine.low %v5963, %v5970
      %v6614 = vunpack.c.l.s4 1983009808
      %v6615 = vunpack.c.0.s8 %v6614
      %v6616 = vlaneseq
      %v6617 = vshrl.u32 %v6616, 7
      %v6618 = vsub.s32 %v6615, %v6617
      %v6619 = vrot.slane %v6611, %v6618
      %v6621 = vunpack.c.l.s4 1983009808
      %v6622 = vunpack.c.0.s8 %v6621
      %v6623 = vlaneseq
      %v6624 = vshrl.u32 %v6623, 7
      %v6625 = vsub.s32 %v6622, %v6624
      %v6626 = vrot.slane %v6612, %v6625
      %v6627 = vcombine.low %v6619, %v6626
      %v6628 = vcombine.low %v5978, %v5986
      %v6629 = vcombine.low %v5985, %v5987
      %v6631 = vunpack.c.l.s4 1983009808
      %v6632 = vunpack.c.0.s8 %v6631
      %v6633 = vlaneseq
      %v6634 = vshrl.u32 %v6633, 7
      %v6635 = vsub.s32 %v6632, %v6634
      %v6636 = vrot.slane %v6628, %v6635
      %v6638 = vunpack.c.l.s4 1983009808
      %v6639 = vunpack.c.0.s8 %v6638
      %v6640 = vlaneseq
      %v6641 = vshrl.u32 %v6640, 7
      %v6642 = vsub.s32 %v6639, %v6641
      %v6643 = vrot.slane %v6629, %v6642
      %v6644 = vcombine.low %v6636, %v6643
      %v6645 = vcombine.low %v5995, %v6003
      %v6646 = vcombine.low %v6002, %v6004
      %v6648 = vunpack.c.l.s4 1983009808
      %v6649 = vunpack.c.0.s8 %v6648
      %v6650 = vlaneseq
      %v6651 = vshrl.u32 %v6650, 7
      %v6652 = vsub.s32 %v6649, %v6651
      %v6653 = vrot.slane %v6645, %v6652
      %v6655 = vunpack.c.l.s4 1983009808
      %v6656 = vunpack.c.0.s8 %v6655
      %v6657 = vlaneseq
      %v6658 = vshrl.u32 %v6657, 7
      %v6659 = vsub.s32 %v6656, %v6658
      %v6660 = vrot.slane %v6646, %v6659
      %v6661 = vcombine.low %v6653, %v6660
      %v6662 = vcombine.low %v6011, %v6019
      %v6663 = vcombine.low %v6027, %v6026
      %v6665 = vunpack.c.l.s4 1983009808
      %v6666 = vunpack.c.0.s8 %v6665
      %v6667 = vlaneseq
      %v6668 = vshrl.u32 %v6667, 7
      %v6669 = vsub.s32 %v6666, %v6668
      %v6670 = vrot.slane %v6662, %v6669
      %v6672 = vunpack.c.l.s4 1983009808
      %v6673 = vunpack.c.0.s8 %v6672
      %v6674 = vlaneseq
      %v6675 = vshrl.u32 %v6674, 7
      %v6676 = vsub.s32 %v6673, %v6675
      %v6677 = vrot.slane %v6663, %v6676
      %v6678 = vcombine.low %v6670, %v6677
      %v6679 = vcombine.low %v6028, %v6036
      %v6680 = vcombine.low %v6044, %v6043
      %v6682 = vunpack.c.l.s4 1983009808
      %v6683 = vunpack.c.0.s8 %v6682
      %v6684 = vlaneseq
      %v6685 = vshrl.u32 %v6684, 7
      %v6686 = vsub.s32 %v6683, %v6685
      %v6687 = vrot.slane %v6679, %v6686
      %v6689 = vunpack.c.l.s4 1983009808
      %v6690 = vunpack.c.0.s8 %v6689
      %v6691 = vlaneseq
      %v6692 = vshrl.u32 %v6691, 7
      %v6693 = vsub.s32 %v6690, %v6692
      %v6694 = vrot.slane %v6680, %v6693
      %v6695 = vcombine.low %v6687, %v6694
      %v6696 = vcombine.low %v6045, %v6052
      %v6697 = vcombine.low %v6060, %v6068
      %v6699 = vunpack.c.l.s4 1983009808
      %v6700 = vunpack.c.0.s8 %v6699
      %v6701 = vlaneseq
      %v6702 = vshrl.u32 %v6701, 7
      %v6703 = vsub.s32 %v6700, %v6702
      %v6704 = vrot.slane %v6696, %v6703
      %v6706 = vunpack.c.l.s4 1983009808
      %v6707 = vunpack.c.0.s8 %v6706
      %v6708 = vlaneseq
      %v6709 = vshrl.u32 %v6708, 7
      %v6710 = vsub.s32 %v6707, %v6709
      %v6711 = vrot.slane %v6697, %v6710
      %v6712 = vcombine.low %v6704, %v6711
      %v6713 = vcombine.low %v6067, %v6069
      %v6714 = vcombine.low %v6077, %v6085
      %v6716 = vunpack.c.l.s4 1983009808
      %v6717 = vunpack.c.0.s8 %v6716
      %v6718 = vlaneseq
      %v6719 = vshrl.u32 %v6718, 7
      %v6720 = vsub.s32 %v6717, %v6719
      %v6721 = vrot.slane %v6713, %v6720
      %v6723 = vunpack.c.l.s4 1983009808
      %v6724 = vunpack.c.0.s8 %v6723
      %v6725 = vlaneseq
      %v6726 = vshrl.u32 %v6725, 7
      %v6727 = vsub.s32 %v6724, %v6726
      %v6728 = vrot.slane %v6714, %v6727
      %v6729 = vcombine.low %v6721, %v6728
      %v6730 = vcombine.low %v6084, %v6086
      %v6731 = vcombine.low %v6093, %v6101
      %v6733 = vunpack.c.l.s4 1983009808
      %v6734 = vunpack.c.0.s8 %v6733
      %v6735 = vlaneseq
      %v6736 = vshrl.u32 %v6735, 7
      %v6737 = vsub.s32 %v6734, %v6736
      %v6738 = vrot.slane %v6730, %v6737
      %v6740 = vunpack.c.l.s4 1983009808
      %v6741 = vunpack.c.0.s8 %v6740
      %v6742 = vlaneseq
      %v6743 = vshrl.u32 %v6742, 7
      %v6744 = vsub.s32 %v6741, %v6743
      %v6745 = vrot.slane %v6731, %v6744
      %v6746 = vcombine.low %v6738, %v6745
      %v6747 = vcombine.low %v6109, %v6108
      %v6748 = vcombine.low %v6110, %v6118
      %v6750 = vunpack.c.l.s4 1983009808
      %v6751 = vunpack.c.0.s8 %v6750
      %v6752 = vlaneseq
      %v6753 = vshrl.u32 %v6752, 7
      %v6754 = vsub.s32 %v6751, %v6753
      %v6755 = vrot.slane %v6747, %v6754
      %v6757 = vunpack.c.l.s4 1983009808
      %v6758 = vunpack.c.0.s8 %v6757
      %v6759 = vlaneseq
      %v6760 = vshrl.u32 %v6759, 7
      %v6761 = vsub.s32 %v6758, %v6760
      %v6762 = vrot.slane %v6748, %v6761
      %v6763 = vcombine.low %v6755, %v6762
      %v6764 = vcombine.low %v6126, %v6125
      %v6765 = vcombine.low %v6127, %v6134
      %v6767 = vunpack.c.l.s4 1983009808
      %v6768 = vunpack.c.0.s8 %v6767
      %v6769 = vlaneseq
      %v6770 = vshrl.u32 %v6769, 7
      %v6771 = vsub.s32 %v6768, %v6770
      %v6772 = vrot.slane %v6764, %v6771
      %v6774 = vunpack.c.l.s4 1983009808
      %v6775 = vunpack.c.0.s8 %v6774
      %v6776 = vlaneseq
      %v6777 = vshrl.u32 %v6776, 7
      %v6778 = vsub.s32 %v6775, %v6777
      %v6779 = vrot.slane %v6765, %v6778
      %v6780 = vcombine.low %v6772, %v6779
      %v6781 = vcombine.low %v6142, %v6150
      %v6782 = vcombine.low %v6149, %v6151
      %v6784 = vunpack.c.l.s4 1983009808
      %v6785 = vunpack.c.0.s8 %v6784
      %v6786 = vlaneseq
      %v6787 = vshrl.u32 %v6786, 7
      %v6788 = vsub.s32 %v6785, %v6787
      %v6789 = vrot.slane %v6781, %v6788
      %v6791 = vunpack.c.l.s4 1983009808
      %v6792 = vunpack.c.0.s8 %v6791
      %v6793 = vlaneseq
      %v6794 = vshrl.u32 %v6793, 7
      %v6795 = vsub.s32 %v6792, %v6794
      %v6796 = vrot.slane %v6782, %v6795
      %v6797 = vcombine.low %v6789, %v6796
      %v6798 = vcombine.low %v6159, %v6167
      %v6799 = vcombine.low %v6166, %v6168
      %v6801 = vunpack.c.l.s4 1983009808
      %v6802 = vunpack.c.0.s8 %v6801
      %v6803 = vlaneseq
      %v6804 = vshrl.u32 %v6803, 7
      %v6805 = vsub.s32 %v6802, %v6804
      %v6806 = vrot.slane %v6798, %v6805
      %v6808 = vunpack.c.l.s4 1983009808
      %v6809 = vunpack.c.0.s8 %v6808
      %v6810 = vlaneseq
      %v6811 = vshrl.u32 %v6810, 7
      %v6812 = vsub.s32 %v6809, %v6811
      %v6813 = vrot.slane %v6799, %v6812
      %v6814 = vcombine.low %v6806, %v6813
      %v6815 = vcombine.low %v6175, %v6183
      %v6816 = vcombine.low %v6191, %v6190
      %v6818 = vunpack.c.l.s4 1983009808
      %v6819 = vunpack.c.0.s8 %v6818
      %v6820 = vlaneseq
      %v6821 = vshrl.u32 %v6820, 7
      %v6822 = vsub.s32 %v6819, %v6821
      %v6823 = vrot.slane %v6815, %v6822
      %v6825 = vunpack.c.l.s4 1983009808
      %v6826 = vunpack.c.0.s8 %v6825
      %v6827 = vlaneseq
      %v6828 = vshrl.u32 %v6827, 7
      %v6829 = vsub.s32 %v6826, %v6828
      %v6830 = vrot.slane %v6816, %v6829
      %v6831 = vcombine.low %v6823, %v6830
      %v6832 = vcombine.low %v6192, %v6200
      %v6833 = vcombine.low %v6208, %v6207
      %v6835 = vunpack.c.l.s4 1983009808
      %v6836 = vunpack.c.0.s8 %v6835
      %v6837 = vlaneseq
      %v6838 = vshrl.u32 %v6837, 7
      %v6839 = vsub.s32 %v6836, %v6838
      %v6840 = vrot.slane %v6832, %v6839
      %v6842 = vunpack.c.l.s4 1983009808
      %v6843 = vunpack.c.0.s8 %v6842
      %v6844 = vlaneseq
      %v6845 = vshrl.u32 %v6844, 7
      %v6846 = vsub.s32 %v6843, %v6845
      %v6847 = vrot.slane %v6833, %v6846
      %v6848 = vcombine.low %v6840, %v6847
      %v6849 = vcombine.low %v6209, %v6216
      %v6850 = vcombine.low %v6224, %v6232
      %v6852 = vunpack.c.l.s4 1983009808
      %v6853 = vunpack.c.0.s8 %v6852
      %v6854 = vlaneseq
      %v6855 = vshrl.u32 %v6854, 7
      %v6856 = vsub.s32 %v6853, %v6855
      %v6857 = vrot.slane %v6849, %v6856
      %v6859 = vunpack.c.l.s4 1983009808
      %v6860 = vunpack.c.0.s8 %v6859
      %v6861 = vlaneseq
      %v6862 = vshrl.u32 %v6861, 7
      %v6863 = vsub.s32 %v6860, %v6862
      %v6864 = vrot.slane %v6850, %v6863
      %v6865 = vcombine.low %v6857, %v6864
      %v6866 = vcombine.low %v6231, %v6233
      %v6867 = vcombine.low %v6241, %v6249
      %v6869 = vunpack.c.l.s4 1983009808
      %v6870 = vunpack.c.0.s8 %v6869
      %v6871 = vlaneseq
      %v6872 = vshrl.u32 %v6871, 7
      %v6873 = vsub.s32 %v6870, %v6872
      %v6874 = vrot.slane %v6866, %v6873
      %v6876 = vunpack.c.l.s4 1983009808
      %v6877 = vunpack.c.0.s8 %v6876
      %v6878 = vlaneseq
      %v6879 = vshrl.u32 %v6878, 7
      %v6880 = vsub.s32 %v6877, %v6879
      %v6881 = vrot.slane %v6867, %v6880
      %v6882 = vcombine.low %v6874, %v6881
      %v6883 = vcombine.low %v6248, %v6250
      %v6884 = vcombine.low %v6257, %v6265
      %v6886 = vunpack.c.l.s4 1983009808
      %v6887 = vunpack.c.0.s8 %v6886
      %v6888 = vlaneseq
      %v6889 = vshrl.u32 %v6888, 7
      %v6890 = vsub.s32 %v6887, %v6889
      %v6891 = vrot.slane %v6883, %v6890
      %v6893 = vunpack.c.l.s4 1983009808
      %v6894 = vunpack.c.0.s8 %v6893
      %v6895 = vlaneseq
      %v6896 = vshrl.u32 %v6895, 7
      %v6897 = vsub.s32 %v6894, %v6896
      %v6898 = vrot.slane %v6884, %v6897
      %v6899 = vcombine.low %v6891, %v6898
      %v6900 = vcombine.low %v6273, %v6272
      %v6901 = vcombine.low %v6274, %v6282
      %v6903 = vunpack.c.l.s4 1983009808
      %v6904 = vunpack.c.0.s8 %v6903
      %v6905 = vlaneseq
      %v6906 = vshrl.u32 %v6905, 7
      %v6907 = vsub.s32 %v6904, %v6906
      %v6908 = vrot.slane %v6900, %v6907
      %v6910 = vunpack.c.l.s4 1983009808
      %v6911 = vunpack.c.0.s8 %v6910
      %v6912 = vlaneseq
      %v6913 = vshrl.u32 %v6912, 7
      %v6914 = vsub.s32 %v6911, %v6913
      %v6915 = vrot.slane %v6901, %v6914
      %v6916 = vcombine.low %v6908, %v6915
      %v6917 = vcombine.low %v6290, %v6289
      %v6918 = vcombine.low %v6291, %v6298
      %v6920 = vunpack.c.l.s4 1983009808
      %v6921 = vunpack.c.0.s8 %v6920
      %v6922 = vlaneseq
      %v6923 = vshrl.u32 %v6922, 7
      %v6924 = vsub.s32 %v6921, %v6923
      %v6925 = vrot.slane %v6917, %v6924
      %v6927 = vunpack.c.l.s4 1983009808
      %v6928 = vunpack.c.0.s8 %v6927
      %v6929 = vlaneseq
      %v6930 = vshrl.u32 %v6929, 7
      %v6931 = vsub.s32 %v6928, %v6930
      %v6932 = vrot.slane %v6918, %v6931
      %v6933 = vcombine.low %v6925, %v6932
      %v6934 = vcombine.low %v6306, %v6314
      %v6935 = vcombine.low %v6313, %v6315
      %v6937 = vunpack.c.l.s4 1983009808
      %v6938 = vunpack.c.0.s8 %v6937
      %v6939 = vlaneseq
      %v6940 = vshrl.u32 %v6939, 7
      %v6941 = vsub.s32 %v6938, %v6940
      %v6942 = vrot.slane %v6934, %v6941
      %v6944 = vunpack.c.l.s4 1983009808
      %v6945 = vunpack.c.0.s8 %v6944
      %v6946 = vlaneseq
      %v6947 = vshrl.u32 %v6946, 7
      %v6948 = vsub.s32 %v6945, %v6947
      %v6949 = vrot.slane %v6935, %v6948
      %v6950 = vcombine.low %v6942, %v6949
      %v6951 = vcombine.low %v6323, %v6331
      %v6952 = vcombine.low %v6330, %v6332
      %v6954 = vunpack.c.l.s4 1983009808
      %v6955 = vunpack.c.0.s8 %v6954
      %v6956 = vlaneseq
      %v6957 = vshrl.u32 %v6956, 7
      %v6958 = vsub.s32 %v6955, %v6957
      %v6959 = vrot.slane %v6951, %v6958
      %v6961 = vunpack.c.l.s4 1983009808
      %v6962 = vunpack.c.0.s8 %v6961
      %v6963 = vlaneseq
      %v6964 = vshrl.u32 %v6963, 7
      %v6965 = vsub.s32 %v6962, %v6964
      %v6966 = vrot.slane %v6952, %v6965
      %v6967 = vcombine.low %v6959, %v6966
      %v6968 = vcombine.low %v6339, %v6347
      %v6969 = vcombine.low %v6355, %v6354
      %v6971 = vunpack.c.l.s4 1983009808
      %v6972 = vunpack.c.0.s8 %v6971
      %v6973 = vlaneseq
      %v6974 = vshrl.u32 %v6973, 7
      %v6975 = vsub.s32 %v6972, %v6974
      %v6976 = vrot.slane %v6968, %v6975
      %v6978 = vunpack.c.l.s4 1983009808
      %v6979 = vunpack.c.0.s8 %v6978
      %v6980 = vlaneseq
      %v6981 = vshrl.u32 %v6980, 7
      %v6982 = vsub.s32 %v6979, %v6981
      %v6983 = vrot.slane %v6969, %v6982
      %v6984 = vcombine.low %v6976, %v6983
      %v6985 = vcombine.low %v6356, %v6364
      %v6986 = vcombine.low %v6372, %v6371
      %v6988 = vunpack.c.l.s4 1983009808
      %v6989 = vunpack.c.0.s8 %v6988
      %v6990 = vlaneseq
      %v6991 = vshrl.u32 %v6990, 7
      %v6992 = vsub.s32 %v6989, %v6991
      %v6993 = vrot.slane %v6985, %v6992
      %v6995 = vunpack.c.l.s4 1983009808
      %v6996 = vunpack.c.0.s8 %v6995
      %v6997 = vlaneseq
      %v6998 = vshrl.u32 %v6997, 7
      %v6999 = vsub.s32 %v6996, %v6998
      %v7000 = vrot.slane %v6986, %v6999
      %v7001 = vcombine.low %v6993, %v7000
      %v7002 = vcombine.low %v6373, %v6380
      %v7003 = vcombine.low %v6388, %v6396
      %v7005 = vunpack.c.l.s4 1983009808
      %v7006 = vunpack.c.0.s8 %v7005
      %v7007 = vlaneseq
      %v7008 = vshrl.u32 %v7007, 7
      %v7009 = vsub.s32 %v7006, %v7008
      %v7010 = vrot.slane %v7002, %v7009
      %v7012 = vunpack.c.l.s4 1983009808
      %v7013 = vunpack.c.0.s8 %v7012
      %v7014 = vlaneseq
      %v7015 = vshrl.u32 %v7014, 7
      %v7016 = vsub.s32 %v7013, %v7015
      %v7017 = vrot.slane %v7003, %v7016
      %v7018 = vcombine.low %v7010, %v7017
      %v7019 = vcombine.low %v6395, %v6397
      %v7020 = vcombine.low %v6405, %v6413
      %v7022 = vunpack.c.l.s4 1983009808
      %v7023 = vunpack.c.0.s8 %v7022
      %v7024 = vlaneseq
      %v7025 = vshrl.u32 %v7024, 7
      %v7026 = vsub.s32 %v7023, %v7025
      %v7027 = vrot.slane %v7019, %v7026
      %v7029 = vunpack.c.l.s4 1983009808
      %v7030 = vunpack.c.0.s8 %v7029
      %v7031 = vlaneseq
      %v7032 = vshrl.u32 %v7031, 7
      %v7033 = vsub.s32 %v7030, %v7032
      %v7034 = vrot.slane %v7020, %v7033
      %v7035 = vcombine.low %v7027, %v7034
      %v7036 = vcombine.low %v6412, %v6414
      %v7037 = vcombine.low %v6421, %v6429
      %v7039 = vunpack.c.l.s4 1983009808
      %v7040 = vunpack.c.0.s8 %v7039
      %v7041 = vlaneseq
      %v7042 = vshrl.u32 %v7041, 7
      %v7043 = vsub.s32 %v7040, %v7042
      %v7044 = vrot.slane %v7036, %v7043
      %v7046 = vunpack.c.l.s4 1983009808
      %v7047 = vunpack.c.0.s8 %v7046
      %v7048 = vlaneseq
      %v7049 = vshrl.u32 %v7048, 7
      %v7050 = vsub.s32 %v7047, %v7049
      %v7051 = vrot.slane %v7037, %v7050
      %v7052 = vcombine.low %v7044, %v7051
      %v7053 = vcombine.low %v6437, %v6436
      %v7054 = vcombine.low %v6438, %v6446
      %v7056 = vunpack.c.l.s4 1983009808
      %v7057 = vunpack.c.0.s8 %v7056
      %v7058 = vlaneseq
      %v7059 = vshrl.u32 %v7058, 7
      %v7060 = vsub.s32 %v7057, %v7059
      %v7061 = vrot.slane %v7053, %v7060
      %v7063 = vunpack.c.l.s4 1983009808
      %v7064 = vunpack.c.0.s8 %v7063
      %v7065 = vlaneseq
      %v7066 = vshrl.u32 %v7065, 7
      %v7067 = vsub.s32 %v7064, %v7066
      %v7068 = vrot.slane %v7054, %v7067
      %v7069 = vcombine.low %v7061, %v7068
      %v7070 = vcombine.low %v6454, %v6453
      %v7071 = vcombine.low %v6455, %v6462
      %v7073 = vunpack.c.l.s4 1983009808
      %v7074 = vunpack.c.0.s8 %v7073
      %v7075 = vlaneseq
      %v7076 = vshrl.u32 %v7075, 7
      %v7077 = vsub.s32 %v7074, %v7076
      %v7078 = vrot.slane %v7070, %v7077
      %v7080 = vunpack.c.l.s4 1983009808
      %v7081 = vunpack.c.0.s8 %v7080
      %v7082 = vlaneseq
      %v7083 = vshrl.u32 %v7082, 7
      %v7084 = vsub.s32 %v7081, %v7083
      %v7085 = vrot.slane %v7071, %v7084
      %v7086 = vcombine.low %v7078, %v7085
      %v7088 = vunpack.c.l.s4 1983009808
      %v7089 = vunpack.c.0.s8 %v7088
      %v7090 = vlaneseq
      %v7091 = vshrl.u32 %v7090, 7
      %v7092 = vsub.s32 %v7089, %v7091
      %v7093 = vrot.slane %v6470, %v7092
      %v7094 = vrot.slane %v6523, 1
      %v7095 = vrot.slane %v6540, 1
      %v7096 = vsel %vm385, %v7094, %v7095
      %v7097 = vrot.slane %v6557, 1
      %v7098 = vsel %vm385, %v7095, %v7097
      %v7099 = vrot.slane %v6574, 1
      %v7100 = vsel %vm385, %v7097, %v7099
      %v7101 = vrot.slane %v6583, 1
      %v7102 = vsel %vm385, %v7099, %v7101
      %v7103 = vrot.slane %v6584, 1
      %v7104 = vsel %vm385, %v7101, %v7103
      %v7105 = vrot.slane %v6593, 1
      %v7106 = vsel %vm385, %v7103, %v7105
      %v7107 = vrot.slane %v6610, 1
      %v7108 = vsel %vm385, %v7105, %v7107
      %v7109 = vrot.slane %v6627, 1
      %v7110 = vsel %vm385, %v7107, %v7109
      %v7111 = vrot.slane %v6644, 1
      %v7112 = vsel %vm385, %v7109, %v7111
      %v7113 = vrot.slane %v6661, 1
      %v7114 = vsel %vm385, %v7111, %v7113
      %v7115 = vrot.slane %v6678, 1
      %v7116 = vsel %vm385, %v7113, %v7115
      %v7117 = vrot.slane %v6695, 1
      %v7118 = vsel %vm385, %v7115, %v7117
      %v7119 = vrot.slane %v6712, 1
      %v7120 = vsel %vm385, %v7117, %v7119
      %v7121 = vrot.slane %v6729, 1
      %v7122 = vsel %vm385, %v7119, %v7121
      %v7123 = vrot.slane %v6746, 1
      %v7124 = vsel %vm385, %v7121, %v7123
      %v7125 = vrot.slane %v6763, 1
      %v7126 = vsel %vm385, %v7123, %v7125
      %v7127 = vrot.slane %v6780, 1
      %v7128 = vsel %vm385, %v7125, %v7127
      %v7129 = vrot.slane %v6797, 1
      %v7130 = vsel %vm385, %v7127, %v7129
      %v7131 = vrot.slane %v6814, 1
      %v7132 = vsel %vm385, %v7129, %v7131
      %v7133 = vrot.slane %v6831, 1
      %v7134 = vsel %vm385, %v7131, %v7133
      %v7135 = vrot.slane %v6848, 1
      %v7136 = vsel %vm385, %v7133, %v7135
      %v7137 = vrot.slane %v6865, 1
      %v7138 = vsel %vm385, %v7135, %v7137
      %v7139 = vrot.slane %v6882, 1
      %v7140 = vsel %vm385, %v7137, %v7139
      %v7141 = vrot.slane %v6899, 1
      %v7142 = vsel %vm385, %v7139, %v7141
      %v7143 = vrot.slane %v6916, 1
      %v7144 = vsel %vm385, %v7141, %v7143
      %v7145 = vrot.slane %v6933, 1
      %v7146 = vsel %vm385, %v7143, %v7145
      %v7147 = vrot.slane %v6950, 1
      %v7148 = vsel %vm385, %v7145, %v7147
      %v7149 = vrot.slane %v6967, 1
      %v7150 = vsel %vm385, %v7147, %v7149
      %v7151 = vrot.slane %v6984, 1
      %v7152 = vsel %vm385, %v7149, %v7151
      %v7153 = vrot.slane %v7001, 1
      %v7154 = vsel %vm385, %v7151, %v7153
      %v7155 = vrot.slane %v7018, 1
      %v7156 = vsel %vm385, %v7153, %v7155
      %v7157 = vrot.slane %v7035, 1
      %v7158 = vsel %vm385, %v7155, %v7157
      %v7159 = vrot.slane %v7052, 1
      %v7160 = vsel %vm385, %v7157, %v7159
      %v7161 = vrot.slane %v7069, 1
      %v7162 = vsel %vm385, %v7159, %v7161
      %v7163 = vrot.slane %v7086, 1
      %v7164 = vsel %vm385, %v7161, %v7163
      %v7165 = vrot.slane %v7093, 1
      %v7166 = vsel %vm385, %v7163, %v7165
      %v7167 = vsel %vm459, %v7096, 0
      %v7169 = vsel %vm459, %v7098, 0
      %v7171 = vsel %vm459, %v7100, 0
      %v7173 = vsel %vm459, %v7102, 0
      %v7175 = vsel %vm459, %v7104, 0
      %v7177 = vsel %vm459, %v7106, 0
      %v7179 = vsel %vm459, %v7108, 0
      %v7181 = vsel %vm459, %v7110, 0
      %v7183 = vsel %vm459, %v7112, 0
      %v7185 = vsel %vm459, %v7114, 0
      %v7187 = vsel %vm459, %v7116, 0
      %v7189 = vsel %vm459, %v7118, 0
      %v7191 = vsel %vm459, %v7120, 0
      %v7193 = vsel %vm459, %v7122, 0
      %v7195 = vsel %vm459, %v7124, 0
      %v7197 = vsel %vm459, %v7126, 0
      %v7199 = vsel %vm459, %v7128, 0
      %v7201 = vsel %vm459, %v7130, 0
      %v7203 = vsel %vm459, %v7132, 0
      %v7205 = vsel %vm459, %v7134, 0
      %v7207 = vsel %vm459, %v7136, 0
      %v7209 = vsel %vm459, %v7138, 0
      %v7211 = vsel %vm459, %v7140, 0
      %v7213 = vsel %vm459, %v7142, 0
      %v7215 = vsel %vm459, %v7144, 0
      %v7217 = vsel %vm459, %v7146, 0
      %v7219 = vsel %vm459, %v7148, 0
      %v7221 = vsel %vm459, %v7150, 0
      %v7223 = vsel %vm459, %v7152, 0
      %v7225 = vsel %vm459, %v7154, 0
      %v7227 = vsel %vm459, %v7156, 0
      %v7229 = vsel %vm459, %v7158, 0
      %v7231 = vsel %vm459, %v7160, 0
      %v7233 = vsel %vm459, %v7162, 0
      %v7235 = vsel %vm459, %v7164, 0
      %v7237 = vsel %vm459, %v7166, 0
      %v7240 = vsel %vm532, %v6506, 0
      %7242 = vmatprep.subr.mxu0 0.0
      %7243 = vmatpush1.msra.mxu0 %v7240
      %7244 = vmatprep.subr.mxu0 0.0
      %7245 = vmatpush1.msra.mxu0 0.0
      %7246 = vmatprep.subr.mxu0 0.0
      %7247 = vmatpush1.msra.mxu0 0.0
      %7248 = vmatprep.subr.mxu0 0.0
      %7249 = vmatpush1.msra.mxu0 0.0
      %7250 = vmatprep.subr.mxu0 0.0
      %7251 = vmatpush1.msra.mxu0 0.0
      %7252 = vmatprep.subr.mxu0 0.0
      %7253 = vmatpush1.msra.mxu0 0.0
      %7254 = vmatprep.subr.mxu0 0.0
      %7255 = vmatpush1.msra.mxu0 0.0
      %7256 = vmatprep.subr.mxu0 0.0
      %7257 = vmatpush1.msra.mxu0 0.0
      %7258 = vmatprep.subr.mxu0 0.0
      %7259 = vmatpush1.msra.mxu0 0.0
      %7260 = vmatprep.subr.mxu0 0.0
      %7261 = vmatpush1.msra.mxu0 0.0
      %7262 = vmatprep.subr.mxu0 0.0
      %7263 = vmatpush1.msra.mxu0 0.0
      %7264 = vmatprep.subr.mxu0 0.0
      %7265 = vmatpush1.msra.mxu0 0.0
      %7266 = vmatprep.subr.mxu0 0.0
      %7267 = vmatpush1.msra.mxu0 0.0
      %7268 = vmatprep.subr.mxu0 0.0
      %7269 = vmatpush1.msra.mxu0 0.0
      %7270 = vmatprep.subr.mxu0 0.0
      %7271 = vmatpush1.msra.mxu0 0.0
      %7272 = vmatprep.subr.mxu0 0.0
      %7273 = vmatpush1.msra.mxu0 0.0
      %7274 = vmatprep.subr.mxu0 0.0
      %7275 = vmatpush1.msra.mxu0 0.0
      %7276 = vmatprep.subr.mxu0 0.0
      %7277 = vmatpush1.msra.mxu0 0.0
      %7278 = vmatprep.subr.mxu0 0.0
      %7279 = vmatpush1.msra.mxu0 0.0
      %7280 = vmatprep.subr.mxu0 0.0
      %7281 = vmatpush1.msra.mxu0 0.0
      %7282 = vmatprep.subr.mxu0 0.0
      %7283 = vmatpush1.msra.mxu0 0.0
      %7284 = vmatprep.subr.mxu0 0.0
      %7285 = vmatpush1.msra.mxu0 0.0
      %7286 = vmatprep.subr.mxu0 0.0
      %7287 = vmatpush1.msra.mxu0 0.0
      %7288 = vmatprep.subr.mxu0 0.0
      %7289 = vmatpush1.msra.mxu0 0.0
      %7290 = vmatprep.subr.mxu0 0.0
      %7291 = vmatpush1.msra.mxu0 0.0
      %7292 = vmatprep.subr.mxu0 0.0
      %7293 = vmatpush1.msra.mxu0 0.0
      %7294 = vmatprep.subr.mxu0 0.0
      %7295 = vmatpush1.msra.mxu0 0.0
      %7296 = vmatprep.subr.mxu0 0.0
      %7297 = vmatpush1.msra.mxu0 0.0
      %7298 = vmatprep.subr.mxu0 0.0
      %7299 = vmatpush1.msra.mxu0 0.0
      %7300 = vmatprep.subr.mxu0 0.0
      %7301 = vmatpush1.msra.mxu0 0.0
      %7302 = vmatprep.subr.mxu0 0.0
      %7303 = vmatpush1.msra.mxu0 0.0
      %7304 = vmatprep.subr.mxu0 0.0
      %7305 = vmatpush1.msra.mxu0 0.0
      %7306 = vmatprep.mubr.f32.mxu0 0.0
      %7307 = vmatmul.mubr.f32.gmra.mrb[0].mxu0 %v7167
      %v7308 = vpop.f32.mrb[0].mxu0
      %v7309 = vadd.f32 0.0, %v7308
      %v7310 = vpop.f32.mrb[0].mxu0
      %7311 = vmatprep.mubr.f32.mxu0 0.0
      %7312 = vmatmul.mubr.f32.gmra.mrb[0].mxu0 %v7169
      %v7313 = vpop.f32.mrb[0].mxu0
      %v7314 = vadd.f32 0.0, %v7313
      %v7315 = vpop.f32.mrb[0].mxu0
      %7316 = vmatprep.mubr.f32.mxu0 0.0
      %7317 = vmatmul.mubr.f32.gmra.mrb[0].mxu0 %v7171
      %v7318 = vpop.f32.mrb[0].mxu0
      %v7319 = vadd.f32 0.0, %v7318
      %v7320 = vpop.f32.mrb[0].mxu0
      %7321 = vmatprep.mubr.f32.mxu0 0.0
      %7322 = vmatmul.mubr.f32.gmra.mrb[0].mxu0 %v7173
      %v7323 = vpop.f32.mrb[0].mxu0
      %v7324 = vadd.f32 0.0, %v7323
      %v7325 = vpop.f32.mrb[0].mxu0
      %7326 = vmatprep.mubr.f32.mxu0 0.0
      %7327 = vmatmul.mubr.f32.gmra.mrb[0].mxu0 %v7175
      %v7328 = vpop.f32.mrb[0].mxu0
      %v7329 = vadd.f32 0.0, %v7328
      %v7330 = vpop.f32.mrb[0].mxu0
      %7331 = vmatprep.mubr.f32.mxu0 0.0
      %7332 = vmatmul.mubr.f32.gmra.mrb[0].mxu0 %v7177
      %v7333 = vpop.f32.mrb[0].mxu0
      %v7334 = vadd.f32 0.0, %v7333
      %v7335 = vpop.f32.mrb[0].mxu0
      %7336 = vmatprep.mubr.f32.mxu0 0.0
      %7337 = vmatmul.mubr.f32.gmra.mrb[0].mxu0 %v7179
      %v7338 = vpop.f32.mrb[0].mxu0
      %v7339 = vadd.f32 0.0, %v7338
      %v7340 = vpop.f32.mrb[0].mxu0
      %7341 = vmatprep.mubr.f32.mxu0 0.0
      %7342 = vmatmul.mubr.f32.gmra.mrb[0].mxu0 %v7181
      %v7343 = vpop.f32.mrb[0].mxu0
      %v7344 = vadd.f32 0.0, %v7343
      %v7345 = vpop.f32.mrb[0].mxu0
      %7346 = vmatprep.mubr.f32.mxu0 0.0
      %7347 = vmatmul.mubr.f32.gmra.mrb[0].mxu0 %v7183
      %v7348 = vpop.f32.mrb[0].mxu0
      %v7349 = vadd.f32 0.0, %v7348
      %v7350 = vpop.f32.mrb[0].mxu0
      %7351 = vmatprep.mubr.f32.mxu0 0.0
      %7352 = vmatmul.mubr.f32.gmra.mrb[0].mxu0 %v7185
      %v7353 = vpop.f32.mrb[0].mxu0
      %v7354 = vadd.f32 0.0, %v7353
      %v7355 = vpop.f32.mrb[0].mxu0
      %7356 = vmatprep.mubr.f32.mxu0 0.0
      %7357 = vmatmul.mubr.f32.gmra.mrb[0].mxu0 %v7187
      %v7358 = vpop.f32.mrb[0].mxu0
      %v7359 = vadd.f32 0.0, %v7358
      %v7360 = vpop.f32.mrb[0].mxu0
      %7361 = vmatprep.mubr.f32.mxu0 0.0
      %7362 = vmatmul.mubr.f32.gmra.mrb[0].mxu0 %v7189
      %v7363 = vpop.f32.mrb[0].mxu0
      %v7364 = vadd.f32 0.0, %v7363
      %v7365 = vpop.f32.mrb[0].mxu0
      %7366 = vmatprep.mubr.f32.mxu0 0.0
      %7367 = vmatmul.mubr.f32.gmra.mrb[0].mxu0 %v7191
      %v7368 = vpop.f32.mrb[0].mxu0
      %v7369 = vadd.f32 0.0, %v7368
      %v7370 = vpop.f32.mrb[0].mxu0
      %7371 = vmatprep.mubr.f32.mxu0 0.0
      %7372 = vmatmul.mubr.f32.gmra.mrb[0].mxu0 %v7193
      %v7373 = vpop.f32.mrb[0].mxu0
      %v7374 = vadd.f32 0.0, %v7373
      %v7375 = vpop.f32.mrb[0].mxu0
      %7376 = vmatprep.mubr.f32.mxu0 0.0
      %7377 = vmatmul.mubr.f32.gmra.mrb[0].mxu0 %v7195
      %v7378 = vpop.f32.mrb[0].mxu0
      %v7379 = vadd.f32 0.0, %v7378
      %v7380 = vpop.f32.mrb[0].mxu0
      %7381 = vmatprep.mubr.f32.mxu0 0.0
      %7382 = vmatmul.mubr.f32.gmra.mrb[0].mxu0 %v7197
      %v7383 = vpop.f32.mrb[0].mxu0
      %v7384 = vadd.f32 0.0, %v7383
      %v7385 = vpop.f32.mrb[0].mxu0
      %7386 = vmatprep.mubr.f32.mxu0 0.0
      %7387 = vmatmul.mubr.f32.gmra.mrb[0].mxu0 %v7199
      %v7388 = vpop.f32.mrb[0].mxu0
      %v7389 = vadd.f32 0.0, %v7388
      %v7390 = vpop.f32.mrb[0].mxu0
      %7391 = vmatprep.mubr.f32.mxu0 0.0
      %7392 = vmatmul.mubr.f32.gmra.mrb[0].mxu0 %v7201
      %v7393 = vpop.f32.mrb[0].mxu0
      %v7394 = vadd.f32 0.0, %v7393
      %v7395 = vpop.f32.mrb[0].mxu0
      %7396 = vmatprep.mubr.f32.mxu0 0.0
      %7397 = vmatmul.mubr.f32.gmra.mrb[0].mxu0 %v7203
      %v7398 = vpop.f32.mrb[0].mxu0
      %v7399 = vadd.f32 0.0, %v7398
      %v7400 = vpop.f32.mrb[0].mxu0
      %7401 = vmatprep.mubr.f32.mxu0 0.0
      %7402 = vmatmul.mubr.f32.gmra.mrb[0].mxu0 %v7205
      %v7403 = vpop.f32.mrb[0].mxu0
      %v7404 = vadd.f32 0.0, %v7403
      %v7405 = vpop.f32.mrb[0].mxu0
      %7406 = vmatprep.mubr.f32.mxu0 0.0
      %7407 = vmatmul.mubr.f32.gmra.mrb[0].mxu0 %v7207
      %v7408 = vpop.f32.mrb[0].mxu0
      %v7409 = vadd.f32 0.0, %v7408
      %v7410 = vpop.f32.mrb[0].mxu0
      %7411 = vmatprep.mubr.f32.mxu0 0.0
      %7412 = vmatmul.mubr.f32.gmra.mrb[0].mxu0 %v7209
      %v7413 = vpop.f32.mrb[0].mxu0
      %v7414 = vadd.f32 0.0, %v7413
      %v7415 = vpop.f32.mrb[0].mxu0
      %7416 = vmatprep.mubr.f32.mxu0 0.0
      %7417 = vmatmul.mubr.f32.gmra.mrb[0].mxu0 %v7211
      %v7418 = vpop.f32.mrb[0].mxu0
      %v7419 = vadd.f32 0.0, %v7418
      %v7420 = vpop.f32.mrb[0].mxu0
      %7421 = vmatprep.mubr.f32.mxu0 0.0
      %7422 = vmatmul.mubr.f32.gmra.mrb[0].mxu0 %v7213
      %v7423 = vpop.f32.mrb[0].mxu0
      %v7424 = vadd.f32 0.0, %v7423
      %v7425 = vpop.f32.mrb[0].mxu0
      %7426 = vmatprep.mubr.f32.mxu0 0.0
      %7427 = vmatmul.mubr.f32.gmra.mrb[0].mxu0 %v7215
      %v7428 = vpop.f32.mrb[0].mxu0
      %v7429 = vadd.f32 0.0, %v7428
      %v7430 = vpop.f32.mrb[0].mxu0
      %7431 = vmatprep.mubr.f32.mxu0 0.0
      %7432 = vmatmul.mubr.f32.gmra.mrb[0].mxu0 %v7217
      %v7433 = vpop.f32.mrb[0].mxu0
      %v7434 = vadd.f32 0.0, %v7433
      %v7435 = vpop.f32.mrb[0].mxu0
      %7436 = vmatprep.mubr.f32.mxu0 0.0
      %7437 = vmatmul.mubr.f32.gmra.mrb[0].mxu0 %v7219
      %v7438 = vpop.f32.mrb[0].mxu0
      %v7439 = vadd.f32 0.0, %v7438
      %v7440 = vpop.f32.mrb[0].mxu0
      %7441 = vmatprep.mubr.f32.mxu0 0.0
      %7442 = vmatmul.mubr.f32.gmra.mrb[0].mxu0 %v7221
      %v7443 = vpop.f32.mrb[0].mxu0
      %v7444 = vadd.f32 0.0, %v7443
      %v7445 = vpop.f32.mrb[0].mxu0
      %7446 = vmatprep.mubr.f32.mxu0 0.0
      %7447 = vmatmul.mubr.f32.gmra.mrb[0].mxu0 %v7223
      %v7448 = vpop.f32.mrb[0].mxu0
      %v7449 = vadd.f32 0.0, %v7448
      %v7450 = vpop.f32.mrb[0].mxu0
      %7451 = vmatprep.mubr.f32.mxu0 0.0
      %7452 = vmatmul.mubr.f32.gmra.mrb[0].mxu0 %v7225
      %v7453 = vpop.f32.mrb[0].mxu0
      %v7454 = vadd.f32 0.0, %v7453
      %v7455 = vpop.f32.mrb[0].mxu0
      %7456 = vmatprep.mubr.f32.mxu0 0.0
      %7457 = vmatmul.mubr.f32.gmra.mrb[0].mxu0 %v7227
      %v7458 = vpop.f32.mrb[0].mxu0
      %v7459 = vadd.f32 0.0, %v7458
      %v7460 = vpop.f32.mrb[0].mxu0
      %7461 = vmatprep.mubr.f32.mxu0 0.0
      %7462 = vmatmul.mubr.f32.gmra.mrb[0].mxu0 %v7229
      %v7463 = vpop.f32.mrb[0].mxu0
      %v7464 = vadd.f32 0.0, %v7463
      %v7465 = vpop.f32.mrb[0].mxu0
      %7466 = vmatprep.mubr.f32.mxu0 0.0
      %7467 = vmatmul.mubr.f32.gmra.mrb[0].mxu0 %v7231
      %v7468 = vpop.f32.mrb[0].mxu0
      %v7469 = vadd.f32 0.0, %v7468
      %v7470 = vpop.f32.mrb[0].mxu0
      %7471 = vmatprep.mubr.f32.mxu0 0.0
      %7472 = vmatmul.mubr.f32.gmra.mrb[0].mxu0 %v7233
      %v7473 = vpop.f32.mrb[0].mxu0
      %v7474 = vadd.f32 0.0, %v7473
      %v7475 = vpop.f32.mrb[0].mxu0
      %7476 = vmatprep.mubr.f32.mxu0 0.0
      %7477 = vmatmul.mubr.f32.gmra.mrb[0].mxu0 %v7235
      %v7478 = vpop.f32.mrb[0].mxu0
      %v7479 = vadd.f32 0.0, %v7478
      %v7480 = vpop.f32.mrb[0].mxu0
      %7481 = vmatprep.mubr.f32.mxu0 0.0
      %7482 = vmatmul.mubr.f32.gmra.mrb[0].mxu0 %v7237
      %v7483 = vpop.f32.mrb[0].mxu0
      %v7484 = vadd.f32 0.0, %v7483
      %v7485 = vpop.f32.mrb[0].mxu0
      %7486 = vdwg.mxu0
      %v7487 = vsel %vm459, %v6523, 0
      %v7489 = vsel %vm459, %v6540, 0
      %v7491 = vsel %vm459, %v6557, 0
      %v7493 = vsel %vm459, %v6574, 0
      %v7495 = vsel %vm459, %v6583, 0
      %v7497 = vsel %vm459, %v6584, 0
      %v7499 = vsel %vm459, %v6593, 0
      %v7501 = vsel %vm459, %v6610, 0
      %v7503 = vsel %vm459, %v6627, 0
      %v7505 = vsel %vm459, %v6644, 0
      %v7507 = vsel %vm459, %v6661, 0
      %v7509 = vsel %vm459, %v6678, 0
      %v7511 = vsel %vm459, %v6695, 0
      %v7513 = vsel %vm459, %v6712, 0
      %v7515 = vsel %vm459, %v6729, 0
      %v7517 = vsel %vm459, %v6746, 0
      %v7519 = vsel %vm459, %v6763, 0
      %v7521 = vsel %vm459, %v6780, 0
      %v7523 = vsel %vm459, %v6797, 0
      %v7525 = vsel %vm459, %v6814, 0
      %v7527 = vsel %vm459, %v6831, 0
      %v7529 = vsel %vm459, %v6848, 0
      %v7531 = vsel %vm459, %v6865, 0
      %v7533 = vsel %vm459, %v6882, 0
      %v7535 = vsel %vm459, %v6899, 0
      %v7537 = vsel %vm459, %v6916, 0
      %v7539 = vsel %vm459, %v6933, 0
      %v7541 = vsel %vm459, %v6950, 0
      %v7543 = vsel %vm459, %v6967, 0
      %v7545 = vsel %vm459, %v6984, 0
      %v7547 = vsel %vm459, %v7001, 0
      %v7549 = vsel %vm459, %v7018, 0
      %v7551 = vsel %vm459, %v7035, 0
      %v7553 = vsel %vm459, %v7052, 0
      %v7555 = vsel %vm459, %v7069, 0
      %v7557 = vsel %vm459, %v7086, 0
      %v7560 = vsel %vm532, %v6504, 0
      %7562 = vmatprep.subr.mxu0 0.0
      %7563 = vmatpush1.msra.mxu0 %v7560
      %7564 = vmatprep.subr.mxu0 0.0
      %7565 = vmatpush1.msra.mxu0 0.0
      %7566 = vmatprep.subr.mxu0 0.0
      %7567 = vmatpush1.msra.mxu0 0.0
      %7568 = vmatprep.subr.mxu0 0.0
      %7569 = vmatpush1.msra.mxu0 0.0
      %7570 = vmatprep.subr.mxu0 0.0
      %7571 = vmatpush1.msra.mxu0 0.0
      %7572 = vmatprep.subr.mxu0 0.0
      %7573 = vmatpush1.msra.mxu0 0.0
      %7574 = vmatprep.subr.mxu0 0.0
      %7575 = vmatpush1.msra.mxu0 0.0
      %7576 = vmatprep.subr.mxu0 0.0
      %7577 = vmatpush1.msra.mxu0 0.0
      %7578 = vmatprep.subr.mxu0 0.0
      %7579 = vmatpush1.msra.mxu0 0.0
      %7580 = vmatprep.subr.mxu0 0.0
      %7581 = vmatpush1.msra.mxu0 0.0
      %7582 = vmatprep.subr.mxu0 0.0
      %7583 = vmatpush1.msra.mxu0 0.0
      %7584 = vmatprep.subr.mxu0 0.0
      %7585 = vmatpush1.msra.mxu0 0.0
      %7586 = vmatprep.subr.mxu0 0.0
      %7587 = vmatpush1.msra.mxu0 0.0
      %7588 = vmatprep.subr.mxu0 0.0
      %7589 = vmatpush1.msra.mxu0 0.0
      %7590 = vmatprep.subr.mxu0 0.0
      %7591 = vmatpush1.msra.mxu0 0.0
      %7592 = vmatprep.subr.mxu0 0.0
      %7593 = vmatpush1.msra.mxu0 0.0
      %7594 = vmatprep.subr.mxu0 0.0
      %7595 = vmatpush1.msra.mxu0 0.0
      %7596 = vmatprep.subr.mxu0 0.0
      %7597 = vmatpush1.msra.mxu0 0.0
      %7598 = vmatprep.subr.mxu0 0.0
      %7599 = vmatpush1.msra.mxu0 0.0
      %7600 = vmatprep.subr.mxu0 0.0
      %7601 = vmatpush1.msra.mxu0 0.0
      %7602 = vmatprep.subr.mxu0 0.0
      %7603 = vmatpush1.msra.mxu0 0.0
      %7604 = vmatprep.subr.mxu0 0.0
      %7605 = vmatpush1.msra.mxu0 0.0
      %7606 = vmatprep.subr.mxu0 0.0
      %7607 = vmatpush1.msra.mxu0 0.0
      %7608 = vmatprep.subr.mxu0 0.0
      %7609 = vmatpush1.msra.mxu0 0.0
      %7610 = vmatprep.subr.mxu0 0.0
      %7611 = vmatpush1.msra.mxu0 0.0
      %7612 = vmatprep.subr.mxu0 0.0
      %7613 = vmatpush1.msra.mxu0 0.0
      %7614 = vmatprep.subr.mxu0 0.0
      %7615 = vmatpush1.msra.mxu0 0.0
      %7616 = vmatprep.subr.mxu0 0.0
      %7617 = vmatpush1.msra.mxu0 0.0
      %7618 = vmatprep.subr.mxu0 0.0
      %7619 = vmatpush1.msra.mxu0 0.0
      %7620 = vmatprep.subr.mxu0 0.0
      %7621 = vmatpush1.msra.mxu0 0.0
      %7622 = vmatprep.subr.mxu0 0.0
      %7623 = vmatpush1.msra.mxu0 0.0
      %7624 = vmatprep.subr.mxu0 0.0
      %7625 = vmatpush1.msra.mxu0 0.0
      %7626 = vmatprep.mubr.f32.mxu0 0.0
      %7627 = vmatmul.mubr.f32.gmra.mrb[0].mxu0 %v7487
      %v7628 = vpop.f32.mrb[0].mxu0
      %v7629 = vadd.f32 %v7309, %v7628
      %v7630 = vpop.f32.mrb[0].mxu0
      %7631 = vmatprep.mubr.f32.mxu0 0.0
      %7632 = vmatmul.mubr.f32.gmra.mrb[0].mxu0 %v7489
      %v7633 = vpop.f32.mrb[0].mxu0
      %v7634 = vadd.f32 %v7314, %v7633
      %v7635 = vpop.f32.mrb[0].mxu0
      %7636 = vmatprep.mubr.f32.mxu0 0.0
      %7637 = vmatmul.mubr.f32.gmra.mrb[0].mxu0 %v7491
      %v7638 = vpop.f32.mrb[0].mxu0
      %v7639 = vadd.f32 %v7319, %v7638
      %v7640 = vpop.f32.mrb[0].mxu0
      %7641 = vmatprep.mubr.f32.mxu0 0.0
      %7642 = vmatmul.mubr.f32.gmra.mrb[0].mxu0 %v7493
      %v7643 = vpop.f32.mrb[0].mxu0
      %v7644 = vadd.f32 %v7324, %v7643
      %v7645 = vpop.f32.mrb[0].mxu0
      %7646 = vmatprep.mubr.f32.mxu0 0.0
      %7647 = vmatmul.mubr.f32.gmra.mrb[0].mxu0 %v7495
      %v7648 = vpop.f32.mrb[0].mxu0
      %v7649 = vadd.f32 %v7329, %v7648
      %v7650 = vpop.f32.mrb[0].mxu0
      %7651 = vmatprep.mubr.f32.mxu0 0.0
      %7652 = vmatmul.mubr.f32.gmra.mrb[0].mxu0 %v7497
      %v7653 = vpop.f32.mrb[0].mxu0
      %v7654 = vadd.f32 %v7334, %v7653
      %v7655 = vpop.f32.mrb[0].mxu0
      %7656 = vmatprep.mubr.f32.mxu0 0.0
      %7657 = vmatmul.mubr.f32.gmra.mrb[0].mxu0 %v7499
      %v7658 = vpop.f32.mrb[0].mxu0
      %v7659 = vadd.f32 %v7339, %v7658
      %v7660 = vpop.f32.mrb[0].mxu0
      %7661 = vmatprep.mubr.f32.mxu0 0.0
      %7662 = vmatmul.mubr.f32.gmra.mrb[0].mxu0 %v7501
      %v7663 = vpop.f32.mrb[0].mxu0
      %v7664 = vadd.f32 %v7344, %v7663
      %v7665 = vpop.f32.mrb[0].mxu0
      %7666 = vmatprep.mubr.f32.mxu0 0.0
      %7667 = vmatmul.mubr.f32.gmra.mrb[0].mxu0 %v7503
      %v7668 = vpop.f32.mrb[0].mxu0
      %v7669 = vadd.f32 %v7349, %v7668
      %v7670 = vpop.f32.mrb[0].mxu0
      %7671 = vmatprep.mubr.f32.mxu0 0.0
      %7672 = vmatmul.mubr.f32.gmra.mrb[0].mxu0 %v7505
      %v7673 = vpop.f32.mrb[0].mxu0
      %v7674 = vadd.f32 %v7354, %v7673
      %v7675 = vpop.f32.mrb[0].mxu0
      %7676 = vmatprep.mubr.f32.mxu0 0.0
      %7677 = vmatmul.mubr.f32.gmra.mrb[0].mxu0 %v7507
      %v7678 = vpop.f32.mrb[0].mxu0
      %v7679 = vadd.f32 %v7359, %v7678
      %v7680 = vpop.f32.mrb[0].mxu0
      %7681 = vmatprep.mubr.f32.mxu0 0.0
      %7682 = vmatmul.mubr.f32.gmra.mrb[0].mxu0 %v7509
      %v7683 = vpop.f32.mrb[0].mxu0
      %v7684 = vadd.f32 %v7364, %v7683
      %v7685 = vpop.f32.mrb[0].mxu0
      %7686 = vmatprep.mubr.f32.mxu0 0.0
      %7687 = vmatmul.mubr.f32.gmra.mrb[0].mxu0 %v7511
      %v7688 = vpop.f32.mrb[0].mxu0
      %v7689 = vadd.f32 %v7369, %v7688
      %v7690 = vpop.f32.mrb[0].mxu0
      %7691 = vmatprep.mubr.f32.mxu0 0.0
      %7692 = vmatmul.mubr.f32.gmra.mrb[0].mxu0 %v7513
      %v7693 = vpop.f32.mrb[0].mxu0
      %v7694 = vadd.f32 %v7374, %v7693
      %v7695 = vpop.f32.mrb[0].mxu0
      %7696 = vmatprep.mubr.f32.mxu0 0.0
      %7697 = vmatmul.mubr.f32.gmra.mrb[0].mxu0 %v7515
      %v7698 = vpop.f32.mrb[0].mxu0
      %v7699 = vadd.f32 %v7379, %v7698
      %v7700 = vpop.f32.mrb[0].mxu0
      %7701 = vmatprep.mubr.f32.mxu0 0.0
      %7702 = vmatmul.mubr.f32.gmra.mrb[0].mxu0 %v7517
      %v7703 = vpop.f32.mrb[0].mxu0
      %v7704 = vadd.f32 %v7384, %v7703
      %v7705 = vpop.f32.mrb[0].mxu0
      %7706 = vmatprep.mubr.f32.mxu0 0.0
      %7707 = vmatmul.mubr.f32.gmra.mrb[0].mxu0 %v7519
      %v7708 = vpop.f32.mrb[0].mxu0
      %v7709 = vadd.f32 %v7389, %v7708
      %v7710 = vpop.f32.mrb[0].mxu0
      %7711 = vmatprep.mubr.f32.mxu0 0.0
      %7712 = vmatmul.mubr.f32.gmra.mrb[0].mxu0 %v7521
      %v7713 = vpop.f32.mrb[0].mxu0
      %v7714 = vadd.f32 %v7394, %v7713
      %v7715 = vpop.f32.mrb[0].mxu0
      %7716 = vmatprep.mubr.f32.mxu0 0.0
      %7717 = vmatmul.mubr.f32.gmra.mrb[0].mxu0 %v7523
      %v7718 = vpop.f32.mrb[0].mxu0
      %v7719 = vadd.f32 %v7399, %v7718
      %v7720 = vpop.f32.mrb[0].mxu0
      %7721 = vmatprep.mubr.f32.mxu0 0.0
      %7722 = vmatmul.mubr.f32.gmra.mrb[0].mxu0 %v7525
      %v7723 = vpop.f32.mrb[0].mxu0
      %v7724 = vadd.f32 %v7404, %v7723
      %v7725 = vpop.f32.mrb[0].mxu0
      %7726 = vmatprep.mubr.f32.mxu0 0.0
      %7727 = vmatmul.mubr.f32.gmra.mrb[0].mxu0 %v7527
      %v7728 = vpop.f32.mrb[0].mxu0
      %v7729 = vadd.f32 %v7409, %v7728
      %v7730 = vpop.f32.mrb[0].mxu0
      %7731 = vmatprep.mubr.f32.mxu0 0.0
      %7732 = vmatmul.mubr.f32.gmra.mrb[0].mxu0 %v7529
      %v7733 = vpop.f32.mrb[0].mxu0
      %v7734 = vadd.f32 %v7414, %v7733
      %v7735 = vpop.f32.mrb[0].mxu0
      %7736 = vmatprep.mubr.f32.mxu0 0.0
      %7737 = vmatmul.mubr.f32.gmra.mrb[0].mxu0 %v7531
      %v7738 = vpop.f32.mrb[0].mxu0
      %v7739 = vadd.f32 %v7419, %v7738
      %v7740 = vpop.f32.mrb[0].mxu0
      %7741 = vmatprep.mubr.f32.mxu0 0.0
      %7742 = vmatmul.mubr.f32.gmra.mrb[0].mxu0 %v7533
      %v7743 = vpop.f32.mrb[0].mxu0
      %v7744 = vadd.f32 %v7424, %v7743
      %v7745 = vpop.f32.mrb[0].mxu0
      %7746 = vmatprep.mubr.f32.mxu0 0.0
      %7747 = vmatmul.mubr.f32.gmra.mrb[0].mxu0 %v7535
      %v7748 = vpop.f32.mrb[0].mxu0
      %v7749 = vadd.f32 %v7429, %v7748
      %v7750 = vpop.f32.mrb[0].mxu0
      %7751 = vmatprep.mubr.f32.mxu0 0.0
      %7752 = vmatmul.mubr.f32.gmra.mrb[0].mxu0 %v7537
      %v7753 = vpop.f32.mrb[0].mxu0
      %v7754 = vadd.f32 %v7434, %v7753
      %v7755 = vpop.f32.mrb[0].mxu0
      %7756 = vmatprep.mubr.f32.mxu0 0.0
      %7757 = vmatmul.mubr.f32.gmra.mrb[0].mxu0 %v7539
      %v7758 = vpop.f32.mrb[0].mxu0
      %v7759 = vadd.f32 %v7439, %v7758
      %v7760 = vpop.f32.mrb[0].mxu0
      %7761 = vmatprep.mubr.f32.mxu0 0.0
      %7762 = vmatmul.mubr.f32.gmra.mrb[0].mxu0 %v7541
      %v7763 = vpop.f32.mrb[0].mxu0
      %v7764 = vadd.f32 %v7444, %v7763
      %v7765 = vpop.f32.mrb[0].mxu0
      %7766 = vmatprep.mubr.f32.mxu0 0.0
      %7767 = vmatmul.mubr.f32.gmra.mrb[0].mxu0 %v7543
      %v7768 = vpop.f32.mrb[0].mxu0
      %v7769 = vadd.f32 %v7449, %v7768
      %v7770 = vpop.f32.mrb[0].mxu0
      %7771 = vmatprep.mubr.f32.mxu0 0.0
      %7772 = vmatmul.mubr.f32.gmra.mrb[0].mxu0 %v7545
      %v7773 = vpop.f32.mrb[0].mxu0
      %v7774 = vadd.f32 %v7454, %v7773
      %v7775 = vpop.f32.mrb[0].mxu0
      %7776 = vmatprep.mubr.f32.mxu0 0.0
      %7777 = vmatmul.mubr.f32.gmra.mrb[0].mxu0 %v7547
      %v7778 = vpop.f32.mrb[0].mxu0
      %v7779 = vadd.f32 %v7459, %v7778
      %v7780 = vpop.f32.mrb[0].mxu0
      %7781 = vmatprep.mubr.f32.mxu0 0.0
      %7782 = vmatmul.mubr.f32.gmra.mrb[0].mxu0 %v7549
      %v7783 = vpop.f32.mrb[0].mxu0
      %v7784 = vadd.f32 %v7464, %v7783
      %v7785 = vpop.f32.mrb[0].mxu0
      %7786 = vmatprep.mubr.f32.mxu0 0.0
      %7787 = vmatmul.mubr.f32.gmra.mrb[0].mxu0 %v7551
      %v7788 = vpop.f32.mrb[0].mxu0
      %v7789 = vadd.f32 %v7469, %v7788
      %v7790 = vpop.f32.mrb[0].mxu0
      %7791 = vmatprep.mubr.f32.mxu0 0.0
      %7792 = vmatmul.mubr.f32.gmra.mrb[0].mxu0 %v7553
      %v7793 = vpop.f32.mrb[0].mxu0
      %v7794 = vadd.f32 %v7474, %v7793
      %v7795 = vpop.f32.mrb[0].mxu0
      %7796 = vmatprep.mubr.f32.mxu0 0.0
      %7797 = vmatmul.mubr.f32.gmra.mrb[0].mxu0 %v7555
      %v7798 = vpop.f32.mrb[0].mxu0
      %v7799 = vadd.f32 %v7479, %v7798
      %v7800 = vpop.f32.mrb[0].mxu0
      %7801 = vmatprep.mubr.f32.mxu0 0.0
      %7802 = vmatmul.mubr.f32.gmra.mrb[0].mxu0 %v7557
      %v7803 = vpop.f32.mrb[0].mxu0
      %v7804 = vadd.f32 %v7484, %v7803
      %v7805 = vpop.f32.mrb[0].mxu0
      %7806 = vdwg.mxu0
      %s7807 = scalar_lea.vmem %s3, 8
      %v7808 = vld [vmem:[%s7807] sm:$0xf]
      %v7809 = vcombine.low %v5863, %v5862
      %v7810 = vcombine.low %v5864, %v5872
      %v7812 = vunpack.c.l.s4 1983009808
      %v7813 = vunpack.c.0.s8 %v7812
      %v7814 = vlaneseq
      %v7815 = vshrl.u32 %v7814, 7
      %v7816 = vsub.s32 %v7813, %v7815
      %v7817 = vrot.slane %v7809, %v7816
      %v7819 = vunpack.c.l.s4 1983009808
      %v7820 = vunpack.c.0.s8 %v7819
      %v7821 = vlaneseq
      %v7822 = vshrl.u32 %v7821, 7
      %v7823 = vsub.s32 %v7820, %v7822
      %v7824 = vrot.slane %v7810, %v7823
      %v7825 = vcombine.low %v7817, %v7824
      %v7826 = vcombine.low %v5880, %v5879
      %v7827 = vcombine.low %v5881, %v5888
      %v7829 = vunpack.c.l.s4 1983009808
      %v7830 = vunpack.c.0.s8 %v7829
      %v7831 = vlaneseq
      %v7832 = vshrl.u32 %v7831, 7
      %v7833 = vsub.s32 %v7830, %v7832
      %v7834 = vrot.slane %v7826, %v7833
      %v7836 = vunpack.c.l.s4 1983009808
      %v7837 = vunpack.c.0.s8 %v7836
      %v7838 = vlaneseq
      %v7839 = vshrl.u32 %v7838, 7
      %v7840 = vsub.s32 %v7837, %v7839
      %v7841 = vrot.slane %v7827, %v7840
      %v7842 = vcombine.low %v7834, %v7841
      %v7843 = vcombine.low %v5896, %v5904
      %v7844 = vcombine.low %v5903, %v5905
      %v7846 = vunpack.c.l.s4 1983009808
      %v7847 = vunpack.c.0.s8 %v7846
      %v7848 = vlaneseq
      %v7849 = vshrl.u32 %v7848, 7
      %v7850 = vsub.s32 %v7847, %v7849
      %v7851 = vrot.slane %v7843, %v7850
      %v7853 = vunpack.c.l.s4 1983009808
      %v7854 = vunpack.c.0.s8 %v7853
      %v7855 = vlaneseq
      %v7856 = vshrl.u32 %v7855, 7
      %v7857 = vsub.s32 %v7854, %v7856
      %v7858 = vrot.slane %v7844, %v7857
      %v7859 = vcombine.low %v7851, %v7858
      %v7860 = vcombine.low %v5913, %v5921
      %v7861 = vcombine.low %v5920, %v5922
      %v7863 = vunpack.c.l.s4 1983009808
      %v7864 = vunpack.c.0.s8 %v7863
      %v7865 = vlaneseq
      %v7866 = vshrl.u32 %v7865, 7
      %v7867 = vsub.s32 %v7864, %v7866
      %v7868 = vrot.slane %v7860, %v7867
      %v7870 = vunpack.c.l.s4 1983009808
      %v7871 = vunpack.c.0.s8 %v7870
      %v7872 = vlaneseq
      %v7873 = vshrl.u32 %v7872, 7
      %v7874 = vsub.s32 %v7871, %v7873
      %v7875 = vrot.slane %v7861, %v7874
      %v7876 = vcombine.low %v7868, %v7875
      %v7877 = vcombine.low %v5929, %v5855
      %v7879 = vunpack.c.l.s4 1983009808
      %v7880 = vunpack.c.0.s8 %v7879
      %v7881 = vlaneseq
      %v7882 = vshrl.u32 %v7881, 7
      %v7883 = vsub.s32 %v7880, %v7882
      %v7884 = vrot.slane %v7877, %v7883
      %v7885 = vcombine.low %v7884, %v7817
      %v7886 = vcombine.low %v7824, %v7834
      %v7887 = vcombine.low %v5937, %v5945
      %v7889 = vunpack.c.l.s4 1983009808
      %v7890 = vunpack.c.0.s8 %v7889
      %v7891 = vlaneseq
      %v7892 = vshrl.u32 %v7891, 7
      %v7893 = vsub.s32 %v7890, %v7892
      %v7894 = vrot.slane %v7887, %v7893
      %v7895 = vcombine.low %v7841, %v7894
      %v7896 = vcombine.low %v5944, %v5946
      %v7897 = vcombine.low %v5954, %v5962
      %v7899 = vunpack.c.l.s4 1983009808
      %v7900 = vunpack.c.0.s8 %v7899
      %v7901 = vlaneseq
      %v7902 = vshrl.u32 %v7901, 7
      %v7903 = vsub.s32 %v7900, %v7902
      %v7904 = vrot.slane %v7896, %v7903
      %v7906 = vunpack.c.l.s4 1983009808
      %v7907 = vunpack.c.0.s8 %v7906
      %v7908 = vlaneseq
      %v7909 = vshrl.u32 %v7908, 7
      %v7910 = vsub.s32 %v7907, %v7909
      %v7911 = vrot.slane %v7897, %v7910
      %v7912 = vcombine.low %v7904, %v7911
      %v7913 = vcombine.low %v5961, %v5963
      %v7914 = vcombine.low %v5970, %v5978
      %v7916 = vunpack.c.l.s4 1983009808
      %v7917 = vunpack.c.0.s8 %v7916
      %v7918 = vlaneseq
      %v7919 = vshrl.u32 %v7918, 7
      %v7920 = vsub.s32 %v7917, %v7919
      %v7921 = vrot.slane %v7913, %v7920
      %v7923 = vunpack.c.l.s4 1983009808
      %v7924 = vunpack.c.0.s8 %v7923
      %v7925 = vlaneseq
      %v7926 = vshrl.u32 %v7925, 7
      %v7927 = vsub.s32 %v7924, %v7926
      %v7928 = vrot.slane %v7914, %v7927
      %v7929 = vcombine.low %v7921, %v7928
      %v7930 = vcombine.low %v5986, %v5985
      %v7931 = vcombine.low %v5987, %v5995
      %v7933 = vunpack.c.l.s4 1983009808
      %v7934 = vunpack.c.0.s8 %v7933
      %v7935 = vlaneseq
      %v7936 = vshrl.u32 %v7935, 7
      %v7937 = vsub.s32 %v7934, %v7936
      %v7938 = vrot.slane %v7930, %v7937
      %v7940 = vunpack.c.l.s4 1983009808
      %v7941 = vunpack.c.0.s8 %v7940
      %v7942 = vlaneseq
      %v7943 = vshrl.u32 %v7942, 7
      %v7944 = vsub.s32 %v7941, %v7943
      %v7945 = vrot.slane %v7931, %v7944
      %v7946 = vcombine.low %v7938, %v7945
      %v7947 = vcombine.low %v6003, %v6002
      %v7948 = vcombine.low %v6004, %v6011
      %v7950 = vunpack.c.l.s4 1983009808
      %v7951 = vunpack.c.0.s8 %v7950
      %v7952 = vlaneseq
      %v7953 = vshrl.u32 %v7952, 7
      %v7954 = vsub.s32 %v7951, %v7953
      %v7955 = vrot.slane %v7947, %v7954
      %v7957 = vunpack.c.l.s4 1983009808
      %v7958 = vunpack.c.0.s8 %v7957
      %v7959 = vlaneseq
      %v7960 = vshrl.u32 %v7959, 7
      %v7961 = vsub.s32 %v7958, %v7960
      %v7962 = vrot.slane %v7948, %v7961
      %v7963 = vcombine.low %v7955, %v7962
      %v7964 = vcombine.low %v6019, %v6027
      %v7965 = vcombine.low %v6026, %v6028
      %v7967 = vunpack.c.l.s4 1983009808
      %v7968 = vunpack.c.0.s8 %v7967
      %v7969 = vlaneseq
      %v7970 = vshrl.u32 %v7969, 7
      %v7971 = vsub.s32 %v7968, %v7970
      %v7972 = vrot.slane %v7964, %v7971
      %v7974 = vunpack.c.l.s4 1983009808
      %v7975 = vunpack.c.0.s8 %v7974
      %v7976 = vlaneseq
      %v7977 = vshrl.u32 %v7976, 7
      %v7978 = vsub.s32 %v7975, %v7977
      %v7979 = vrot.slane %v7965, %v7978
      %v7980 = vcombine.low %v7972, %v7979
      %v7981 = vcombine.low %v6036, %v6044
      %v7982 = vcombine.low %v6043, %v6045
      %v7984 = vunpack.c.l.s4 1983009808
      %v7985 = vunpack.c.0.s8 %v7984
      %v7986 = vlaneseq
      %v7987 = vshrl.u32 %v7986, 7
      %v7988 = vsub.s32 %v7985, %v7987
      %v7989 = vrot.slane %v7981, %v7988
      %v7991 = vunpack.c.l.s4 1983009808
      %v7992 = vunpack.c.0.s8 %v7991
      %v7993 = vlaneseq
      %v7994 = vshrl.u32 %v7993, 7
      %v7995 = vsub.s32 %v7992, %v7994
      %v7996 = vrot.slane %v7982, %v7995
      %v7997 = vcombine.low %v7989, %v7996
      %v7998 = vcombine.low %v6052, %v6060
      %v7999 = vcombine.low %v6068, %v6067
      %v8001 = vunpack.c.l.s4 1983009808
      %v8002 = vunpack.c.0.s8 %v8001
      %v8003 = vlaneseq
      %v8004 = vshrl.u32 %v8003, 7
      %v8005 = vsub.s32 %v8002, %v8004
      %v8006 = vrot.slane %v7998, %v8005
      %v8008 = vunpack.c.l.s4 1983009808
      %v8009 = vunpack.c.0.s8 %v8008
      %v8010 = vlaneseq
      %v8011 = vshrl.u32 %v8010, 7
      %v8012 = vsub.s32 %v8009, %v8011
      %v8013 = vrot.slane %v7999, %v8012
      %v8014 = vcombine.low %v8006, %v8013
      %v8015 = vcombine.low %v6069, %v6077
      %v8016 = vcombine.low %v6085, %v6084
      %v8018 = vunpack.c.l.s4 1983009808
      %v8019 = vunpack.c.0.s8 %v8018
      %v8020 = vlaneseq
      %v8021 = vshrl.u32 %v8020, 7
      %v8022 = vsub.s32 %v8019, %v8021
      %v8023 = vrot.slane %v8015, %v8022
      %v8025 = vunpack.c.l.s4 1983009808
      %v8026 = vunpack.c.0.s8 %v8025
      %v8027 = vlaneseq
      %v8028 = vshrl.u32 %v8027, 7
      %v8029 = vsub.s32 %v8026, %v8028
      %v8030 = vrot.slane %v8016, %v8029
      %v8031 = vcombine.low %v8023, %v8030
      %v8032 = vcombine.low %v6086, %v6093
      %v8033 = vcombine.low %v6101, %v6109
      %v8035 = vunpack.c.l.s4 1983009808
      %v8036 = vunpack.c.0.s8 %v8035
      %v8037 = vlaneseq
      %v8038 = vshrl.u32 %v8037, 7
      %v8039 = vsub.s32 %v8036, %v8038
      %v8040 = vrot.slane %v8032, %v8039
      %v8042 = vunpack.c.l.s4 1983009808
      %v8043 = vunpack.c.0.s8 %v8042
      %v8044 = vlaneseq
      %v8045 = vshrl.u32 %v8044, 7
      %v8046 = vsub.s32 %v8043, %v8045
      %v8047 = vrot.slane %v8033, %v8046
      %v8048 = vcombine.low %v8040, %v8047
      %v8049 = vcombine.low %v6108, %v6110
      %v8050 = vcombine.low %v6118, %v6126
      %v8052 = vunpack.c.l.s4 1983009808
      %v8053 = vunpack.c.0.s8 %v8052
      %v8054 = vlaneseq
      %v8055 = vshrl.u32 %v8054, 7
      %v8056 = vsub.s32 %v8053, %v8055
      %v8057 = vrot.slane %v8049, %v8056
      %v8059 = vunpack.c.l.s4 1983009808
      %v8060 = vunpack.c.0.s8 %v8059
      %v8061 = vlaneseq
      %v8062 = vshrl.u32 %v8061, 7
      %v8063 = vsub.s32 %v8060, %v8062
      %v8064 = vrot.slane %v8050, %v8063
      %v8065 = vcombine.low %v8057, %v8064
      %v8066 = vcombine.low %v6125, %v6127
      %v8067 = vcombine.low %v6134, %v6142
      %v8069 = vunpack.c.l.s4 1983009808
      %v8070 = vunpack.c.0.s8 %v8069
      %v8071 = vlaneseq
      %v8072 = vshrl.u32 %v8071, 7
      %v8073 = vsub.s32 %v8070, %v8072
      %v8074 = vrot.slane %v8066, %v8073
      %v8076 = vunpack.c.l.s4 1983009808
      %v8077 = vunpack.c.0.s8 %v8076
      %v8078 = vlaneseq
      %v8079 = vshrl.u32 %v8078, 7
      %v8080 = vsub.s32 %v8077, %v8079
      %v8081 = vrot.slane %v8067, %v8080
      %v8082 = vcombine.low %v8074, %v8081
      %v8083 = vcombine.low %v6150, %v6149
      %v8084 = vcombine.low %v6151, %v6159
      %v8086 = vunpack.c.l.s4 1983009808
      %v8087 = vunpack.c.0.s8 %v8086
      %v8088 = vlaneseq
      %v8089 = vshrl.u32 %v8088, 7
      %v8090 = vsub.s32 %v8087, %v8089
      %v8091 = vrot.slane %v8083, %v8090
      %v8093 = vunpack.c.l.s4 1983009808
      %v8094 = vunpack.c.0.s8 %v8093
      %v8095 = vlaneseq
      %v8096 = vshrl.u32 %v8095, 7
      %v8097 = vsub.s32 %v8094, %v8096
      %v8098 = vrot.slane %v8084, %v8097
      %v8099 = vcombine.low %v8091, %v8098
      %v8100 = vcombine.low %v6167, %v6166
      %v8101 = vcombine.low %v6168, %v6175
      %v8103 = vunpack.c.l.s4 1983009808
      %v8104 = vunpack.c.0.s8 %v8103
      %v8105 = vlaneseq
      %v8106 = vshrl.u32 %v8105, 7
      %v8107 = vsub.s32 %v8104, %v8106
      %v8108 = vrot.slane %v8100, %v8107
      %v8110 = vunpack.c.l.s4 1983009808
      %v8111 = vunpack.c.0.s8 %v8110
      %v8112 = vlaneseq
      %v8113 = vshrl.u32 %v8112, 7
      %v8114 = vsub.s32 %v8111, %v8113
      %v8115 = vrot.slane %v8101, %v8114
      %v8116 = vcombine.low %v8108, %v8115
      %v8117 = vcombine.low %v6183, %v6191
      %v8118 = vcombine.low %v6190, %v6192
      %v8120 = vunpack.c.l.s4 1983009808
      %v8121 = vunpack.c.0.s8 %v8120
      %v8122 = vlaneseq
      %v8123 = vshrl.u32 %v8122, 7
      %v8124 = vsub.s32 %v8121, %v8123
      %v8125 = vrot.slane %v8117, %v8124
      %v8127 = vunpack.c.l.s4 1983009808
      %v8128 = vunpack.c.0.s8 %v8127
      %v8129 = vlaneseq
      %v8130 = vshrl.u32 %v8129, 7
      %v8131 = vsub.s32 %v8128, %v8130
      %v8132 = vrot.slane %v8118, %v8131
      %v8133 = vcombine.low %v8125, %v8132
      %v8134 = vcombine.low %v6200, %v6208
      %v8135 = vcombine.low %v6207, %v6209
      %v8137 = vunpack.c.l.s4 1983009808
      %v8138 = vunpack.c.0.s8 %v8137
      %v8139 = vlaneseq
      %v8140 = vshrl.u32 %v8139, 7
      %v8141 = vsub.s32 %v8138, %v8140
      %v8142 = vrot.slane %v8134, %v8141
      %v8144 = vunpack.c.l.s4 1983009808
      %v8145 = vunpack.c.0.s8 %v8144
      %v8146 = vlaneseq
      %v8147 = vshrl.u32 %v8146, 7
      %v8148 = vsub.s32 %v8145, %v8147
      %v8149 = vrot.slane %v8135, %v8148
      %v8150 = vcombine.low %v8142, %v8149
      %v8151 = vcombine.low %v6216, %v6224
      %v8152 = vcombine.low %v6232, %v6231
      %v8154 = vunpack.c.l.s4 1983009808
      %v8155 = vunpack.c.0.s8 %v8154
      %v8156 = vlaneseq
      %v8157 = vshrl.u32 %v8156, 7
      %v8158 = vsub.s32 %v8155, %v8157
      %v8159 = vrot.slane %v8151, %v8158
      %v8161 = vunpack.c.l.s4 1983009808
      %v8162 = vunpack.c.0.s8 %v8161
      %v8163 = vlaneseq
      %v8164 = vshrl.u32 %v8163, 7
      %v8165 = vsub.s32 %v8162, %v8164
      %v8166 = vrot.slane %v8152, %v8165
      %v8167 = vcombine.low %v8159, %v8166
      %v8168 = vcombine.low %v6233, %v6241
      %v8169 = vcombine.low %v6249, %v6248
      %v8171 = vunpack.c.l.s4 1983009808
      %v8172 = vunpack.c.0.s8 %v8171
      %v8173 = vlaneseq
      %v8174 = vshrl.u32 %v8173, 7
      %v8175 = vsub.s32 %v8172, %v8174
      %v8176 = vrot.slane %v8168, %v8175
      %v8178 = vunpack.c.l.s4 1983009808
      %v8179 = vunpack.c.0.s8 %v8178
      %v8180 = vlaneseq
      %v8181 = vshrl.u32 %v8180, 7
      %v8182 = vsub.s32 %v8179, %v8181
      %v8183 = vrot.slane %v8169, %v8182
      %v8184 = vcombine.low %v8176, %v8183
      %v8185 = vcombine.low %v6250, %v6257
      %v8186 = vcombine.low %v6265, %v6273
      %v8188 = vunpack.c.l.s4 1983009808
      %v8189 = vunpack.c.0.s8 %v8188
      %v8190 = vlaneseq
      %v8191 = vshrl.u32 %v8190, 7
      %v8192 = vsub.s32 %v8189, %v8191
      %v8193 = vrot.slane %v8185, %v8192
      %v8195 = vunpack.c.l.s4 1983009808
      %v8196 = vunpack.c.0.s8 %v8195
      %v8197 = vlaneseq
      %v8198 = vshrl.u32 %v8197, 7
      %v8199 = vsub.s32 %v8196, %v8198
      %v8200 = vrot.slane %v8186, %v8199
      %v8201 = vcombine.low %v8193, %v8200
      %v8202 = vcombine.low %v6272, %v6274
      %v8203 = vcombine.low %v6282, %v6290
      %v8205 = vunpack.c.l.s4 1983009808
      %v8206 = vunpack.c.0.s8 %v8205
      %v8207 = vlaneseq
      %v8208 = vshrl.u32 %v8207, 7
      %v8209 = vsub.s32 %v8206, %v8208
      %v8210 = vrot.slane %v8202, %v8209
      %v8212 = vunpack.c.l.s4 1983009808
      %v8213 = vunpack.c.0.s8 %v8212
      %v8214 = vlaneseq
      %v8215 = vshrl.u32 %v8214, 7
      %v8216 = vsub.s32 %v8213, %v8215
      %v8217 = vrot.slane %v8203, %v8216
      %v8218 = vcombine.low %v8210, %v8217
      %v8219 = vcombine.low %v6289, %v6291
      %v8220 = vcombine.low %v6298, %v6306
      %v8222 = vunpack.c.l.s4 1983009808
      %v8223 = vunpack.c.0.s8 %v8222
      %v8224 = vlaneseq
      %v8225 = vshrl.u32 %v8224, 7
      %v8226 = vsub.s32 %v8223, %v8225
      %v8227 = vrot.slane %v8219, %v8226
      %v8229 = vunpack.c.l.s4 1983009808
      %v8230 = vunpack.c.0.s8 %v8229
      %v8231 = vlaneseq
      %v8232 = vshrl.u32 %v8231, 7
      %v8233 = vsub.s32 %v8230, %v8232
      %v8234 = vrot.slane %v8220, %v8233
      %v8235 = vcombine.low %v8227, %v8234
      %v8236 = vcombine.low %v6314, %v6313
      %v8237 = vcombine.low %v6315, %v6323
      %v8239 = vunpack.c.l.s4 1983009808
      %v8240 = vunpack.c.0.s8 %v8239
      %v8241 = vlaneseq
      %v8242 = vshrl.u32 %v8241, 7
      %v8243 = vsub.s32 %v8240, %v8242
      %v8244 = vrot.slane %v8236, %v8243
      %v8246 = vunpack.c.l.s4 1983009808
      %v8247 = vunpack.c.0.s8 %v8246
      %v8248 = vlaneseq
      %v8249 = vshrl.u32 %v8248, 7
      %v8250 = vsub.s32 %v8247, %v8249
      %v8251 = vrot.slane %v8237, %v8250
      %v8252 = vcombine.low %v8244, %v8251
      %v8253 = vcombine.low %v6331, %v6330
      %v8254 = vcombine.low %v6332, %v6339
      %v8256 = vunpack.c.l.s4 1983009808
      %v8257 = vunpack.c.0.s8 %v8256
      %v8258 = vlaneseq
      %v8259 = vshrl.u32 %v8258, 7
      %v8260 = vsub.s32 %v8257, %v8259
      %v8261 = vrot.slane %v8253, %v8260
      %v8263 = vunpack.c.l.s4 1983009808
      %v8264 = vunpack.c.0.s8 %v8263
      %v8265 = vlaneseq
      %v8266 = vshrl.u32 %v8265, 7
      %v8267 = vsub.s32 %v8264, %v8266
      %v8268 = vrot.slane %v8254, %v8267
      %v8269 = vcombine.low %v8261, %v8268
      %v8270 = vcombine.low %v6347, %v6355
      %v8271 = vcombine.low %v6354, %v6356
      %v8273 = vunpack.c.l.s4 1983009808
      %v8274 = vunpack.c.0.s8 %v8273
      %v8275 = vlaneseq
      %v8276 = vshrl.u32 %v8275, 7
      %v8277 = vsub.s32 %v8274, %v8276
      %v8278 = vrot.slane %v8270, %v8277
      %v8280 = vunpack.c.l.s4 1983009808
      %v8281 = vunpack.c.0.s8 %v8280
      %v8282 = vlaneseq
      %v8283 = vshrl.u32 %v8282, 7
      %v8284 = vsub.s32 %v8281, %v8283
      %v8285 = vrot.slane %v8271, %v8284
      %v8286 = vcombine.low %v8278, %v8285
      %v8287 = vcombine.low %v6364, %v6372
      %v8288 = vcombine.low %v6371, %v6373
      %v8290 = vunpack.c.l.s4 1983009808
      %v8291 = vunpack.c.0.s8 %v8290
      %v8292 = vlaneseq
      %v8293 = vshrl.u32 %v8292, 7
      %v8294 = vsub.s32 %v8291, %v8293
      %v8295 = vrot.slane %v8287, %v8294
      %v8297 = vunpack.c.l.s4 1983009808
      %v8298 = vunpack.c.0.s8 %v8297
      %v8299 = vlaneseq
      %v8300 = vshrl.u32 %v8299, 7
      %v8301 = vsub.s32 %v8298, %v8300
      %v8302 = vrot.slane %v8288, %v8301
      %v8303 = vcombine.low %v8295, %v8302
      %v8304 = vcombine.low %v6380, %v6388
      %v8305 = vcombine.low %v6396, %v6395
      %v8307 = vunpack.c.l.s4 1983009808
      %v8308 = vunpack.c.0.s8 %v8307
      %v8309 = vlaneseq
      %v8310 = vshrl.u32 %v8309, 7
      %v8311 = vsub.s32 %v8308, %v8310
      %v8312 = vrot.slane %v8304, %v8311
      %v8314 = vunpack.c.l.s4 1983009808
      %v8315 = vunpack.c.0.s8 %v8314
      %v8316 = vlaneseq
      %v8317 = vshrl.u32 %v8316, 7
      %v8318 = vsub.s32 %v8315, %v8317
      %v8319 = vrot.slane %v8305, %v8318
      %v8320 = vcombine.low %v8312, %v8319
      %v8321 = vcombine.low %v6397, %v6405
      %v8322 = vcombine.low %v6413, %v6412
      %v8324 = vunpack.c.l.s4 1983009808
      %v8325 = vunpack.c.0.s8 %v8324
      %v8326 = vlaneseq
      %v8327 = vshrl.u32 %v8326, 7
      %v8328 = vsub.s32 %v8325, %v8327
      %v8329 = vrot.slane %v8321, %v8328
      %v8331 = vunpack.c.l.s4 1983009808
      %v8332 = vunpack.c.0.s8 %v8331
      %v8333 = vlaneseq
      %v8334 = vshrl.u32 %v8333, 7
      %v8335 = vsub.s32 %v8332, %v8334
      %v8336 = vrot.slane %v8322, %v8335
      %v8337 = vcombine.low %v8329, %v8336
      %v8338 = vcombine.low %v6414, %v6421
      %v8339 = vcombine.low %v6429, %v6437
      %v8341 = vunpack.c.l.s4 1983009808
      %v8342 = vunpack.c.0.s8 %v8341
      %v8343 = vlaneseq
      %v8344 = vshrl.u32 %v8343, 7
      %v8345 = vsub.s32 %v8342, %v8344
      %v8346 = vrot.slane %v8338, %v8345
      %v8348 = vunpack.c.l.s4 1983009808
      %v8349 = vunpack.c.0.s8 %v8348
      %v8350 = vlaneseq
      %v8351 = vshrl.u32 %v8350, 7
      %v8352 = vsub.s32 %v8349, %v8351
      %v8353 = vrot.slane %v8339, %v8352
      %v8354 = vcombine.low %v8346, %v8353
      %v8355 = vcombine.low %v6436, %v6438
      %v8356 = vcombine.low %v6446, %v6454
      %v8358 = vunpack.c.l.s4 1983009808
      %v8359 = vunpack.c.0.s8 %v8358
      %v8360 = vlaneseq
      %v8361 = vshrl.u32 %v8360, 7
      %v8362 = vsub.s32 %v8359, %v8361
      %v8363 = vrot.slane %v8355, %v8362
      %v8365 = vunpack.c.l.s4 1983009808
      %v8366 = vunpack.c.0.s8 %v8365
      %v8367 = vlaneseq
      %v8368 = vshrl.u32 %v8367, 7
      %v8369 = vsub.s32 %v8366, %v8368
      %v8370 = vrot.slane %v8356, %v8369
      %v8371 = vcombine.low %v8363, %v8370
      %v8372 = vcombine.low %v6453, %v6455
      %v8373 = vcombine.low %v6462, %v6470
      %v8375 = vunpack.c.l.s4 1983009808
      %v8376 = vunpack.c.0.s8 %v8375
      %v8377 = vlaneseq
      %v8378 = vshrl.u32 %v8377, 7
      %v8379 = vsub.s32 %v8376, %v8378
      %v8380 = vrot.slane %v8372, %v8379
      %v8382 = vunpack.c.l.s4 1983009808
      %v8383 = vunpack.c.0.s8 %v8382
      %v8384 = vlaneseq
      %v8385 = vshrl.u32 %v8384, 7
      %v8386 = vsub.s32 %v8383, %v8385
      %v8387 = vrot.slane %v8373, %v8386
      %v8388 = vcombine.low %v8380, %v8387
      %v8389 = vsel %vm459, %v7825, 0
      %v8391 = vsel %vm459, %v7842, 0
      %v8393 = vsel %vm459, %v7859, 0
      %v8395 = vsel %vm459, %v7876, 0
      %v8397 = vsel %vm459, %v7885, 0
      %v8399 = vsel %vm459, %v7886, 0
      %v8401 = vsel %vm459, %v7895, 0
      %v8403 = vsel %vm459, %v7912, 0
      %v8405 = vsel %vm459, %v7929, 0
      %v8407 = vsel %vm459, %v7946, 0
      %v8409 = vsel %vm459, %v7963, 0
      %v8411 = vsel %vm459, %v7980, 0
      %v8413 = vsel %vm459, %v7997, 0
      %v8415 = vsel %vm459, %v8014, 0
      %v8417 = vsel %vm459, %v8031, 0
      %v8419 = vsel %vm459, %v8048, 0
      %v8421 = vsel %vm459, %v8065, 0
      %v8423 = vsel %vm459, %v8082, 0
      %v8425 = vsel %vm459, %v8099, 0
      %v8427 = vsel %vm459, %v8116, 0
      %v8429 = vsel %vm459, %v8133, 0
      %v8431 = vsel %vm459, %v8150, 0
      %v8433 = vsel %vm459, %v8167, 0
      %v8435 = vsel %vm459, %v8184, 0
      %v8437 = vsel %vm459, %v8201, 0
      %v8439 = vsel %vm459, %v8218, 0
      %v8441 = vsel %vm459, %v8235, 0
      %v8443 = vsel %vm459, %v8252, 0
      %v8445 = vsel %vm459, %v8269, 0
      %v8447 = vsel %vm459, %v8286, 0
      %v8449 = vsel %vm459, %v8303, 0
      %v8451 = vsel %vm459, %v8320, 0
      %v8453 = vsel %vm459, %v8337, 0
      %v8455 = vsel %vm459, %v8354, 0
      %v8457 = vsel %vm459, %v8371, 0
      %v8459 = vsel %vm459, %v8388, 0
      %v8462 = vsel %vm532, %v7808, 0
      %8464 = vmatprep.subr.mxu0 0.0
      %8465 = vmatpush1.msra.mxu0 %v8462
      %8466 = vmatprep.subr.mxu0 0.0
      %8467 = vmatpush1.msra.mxu0 0.0
      %8468 = vmatprep.subr.mxu0 0.0
      %8469 = vmatpush1.msra.mxu0 0.0
      %8470 = vmatprep.subr.mxu0 0.0
      %8471 = vmatpush1.msra.mxu0 0.0
      %8472 = vmatprep.subr.mxu0 0.0
      %8473 = vmatpush1.msra.mxu0 0.0
      %8474 = vmatprep.subr.mxu0 0.0
      %8475 = vmatpush1.msra.mxu0 0.0
      %8476 = vmatprep.subr.mxu0 0.0
      %8477 = vmatpush1.msra.mxu0 0.0
      %8478 = vmatprep.subr.mxu0 0.0
      %8479 = vmatpush1.msra.mxu0 0.0
      %8480 = vmatprep.subr.mxu0 0.0
      %8481 = vmatpush1.msra.mxu0 0.0
      %8482 = vmatprep.subr.mxu0 0.0
      %8483 = vmatpush1.msra.mxu0 0.0
      %8484 = vmatprep.subr.mxu0 0.0
      %8485 = vmatpush1.msra.mxu0 0.0
      %8486 = vmatprep.subr.mxu0 0.0
      %8487 = vmatpush1.msra.mxu0 0.0
      %8488 = vmatprep.subr.mxu0 0.0
      %8489 = vmatpush1.msra.mxu0 0.0
      %8490 = vmatprep.subr.mxu0 0.0
      %8491 = vmatpush1.msra.mxu0 0.0
      %8492 = vmatprep.subr.mxu0 0.0
      %8493 = vmatpush1.msra.mxu0 0.0
      %8494 = vmatprep.subr.mxu0 0.0
      %8495 = vmatpush1.msra.mxu0 0.0
      %8496 = vmatprep.subr.mxu0 0.0
      %8497 = vmatpush1.msra.mxu0 0.0
      %8498 = vmatprep.subr.mxu0 0.0
      %8499 = vmatpush1.msra.mxu0 0.0
      %8500 = vmatprep.subr.mxu0 0.0
      %8501 = vmatpush1.msra.mxu0 0.0
      %8502 = vmatprep.subr.mxu0 0.0
      %8503 = vmatpush1.msra.mxu0 0.0
      %8504 = vmatprep.subr.mxu0 0.0
      %8505 = vmatpush1.msra.mxu0 0.0
      %8506 = vmatprep.subr.mxu0 0.0
      %8507 = vmatpush1.msra.mxu0 0.0
      %8508 = vmatprep.subr.mxu0 0.0
      %8509 = vmatpush1.msra.mxu0 0.0
      %8510 = vmatprep.subr.mxu0 0.0
      %8511 = vmatpush1.msra.mxu0 0.0
      %8512 = vmatprep.subr.mxu0 0.0
      %8513 = vmatpush1.msra.mxu0 0.0
      %8514 = vmatprep.subr.mxu0 0.0
      %8515 = vmatpush1.msra.mxu0 0.0
      %8516 = vmatprep.subr.mxu0 0.0
      %8517 = vmatpush1.msra.mxu0 0.0
      %8518 = vmatprep.subr.mxu0 0.0
      %8519 = vmatpush1.msra.mxu0 0.0
      %8520 = vmatprep.subr.mxu0 0.0
      %8521 = vmatpush1.msra.mxu0 0.0
      %8522 = vmatprep.subr.mxu0 0.0
      %8523 = vmatpush1.msra.mxu0 0.0
      %8524 = vmatprep.subr.mxu0 0.0
      %8525 = vmatpush1.msra.mxu0 0.0
      %8526 = vmatprep.subr.mxu0 0.0
      %8527 = vmatpush1.msra.mxu0 0.0
      %8528 = vmatprep.mubr.f32.mxu0 0.0
      %8529 = vmatmul.mubr.f32.gmra.mrb[0].mxu0 %v8389
      %v8530 = vpop.f32.mrb[0].mxu0
      %v8531 = vadd.f32 0.0, %v8530
      %v8532 = vpop.f32.mrb[0].mxu0
      %8533 = vmatprep.mubr.f32.mxu0 0.0
      %8534 = vmatmul.mubr.f32.gmra.mrb[0].mxu0 %v8391
      %v8535 = vpop.f32.mrb[0].mxu0
      %v8536 = vadd.f32 0.0, %v8535
      %v8537 = vpop.f32.mrb[0].mxu0
      %8538 = vmatprep.mubr.f32.mxu0 0.0
      %8539 = vmatmul.mubr.f32.gmra.mrb[0].mxu0 %v8393
      %v8540 = vpop.f32.mrb[0].mxu0
      %v8541 = vadd.f32 0.0, %v8540
      %v8542 = vpop.f32.mrb[0].mxu0
      %8543 = vmatprep.mubr.f32.mxu0 0.0
      %8544 = vmatmul.mubr.f32.gmra.mrb[0].mxu0 %v8395
      %v8545 = vpop.f32.mrb[0].mxu0
      %v8546 = vadd.f32 0.0, %v8545
      %v8547 = vpop.f32.mrb[0].mxu0
      %8548 = vmatprep.mubr.f32.mxu0 0.0
      %8549 = vmatmul.mubr.f32.gmra.mrb[0].mxu0 %v8397
      %v8550 = vpop.f32.mrb[0].mxu0
      %v8551 = vadd.f32 0.0, %v8550
      %v8552 = vpop.f32.mrb[0].mxu0
      %8553 = vmatprep.mubr.f32.mxu0 0.0
      %8554 = vmatmul.mubr.f32.gmra.mrb[0].mxu0 %v8399
      %v8555 = vpop.f32.mrb[0].mxu0
      %v8556 = vadd.f32 0.0, %v8555
      %v8557 = vpop.f32.mrb[0].mxu0
      %8558 = vmatprep.mubr.f32.mxu0 0.0
      %8559 = vmatmul.mubr.f32.gmra.mrb[0].mxu0 %v8401
      %v8560 = vpop.f32.mrb[0].mxu0
      %v8561 = vadd.f32 0.0, %v8560
      %v8562 = vpop.f32.mrb[0].mxu0
      %8563 = vmatprep.mubr.f32.mxu0 0.0
      %8564 = vmatmul.mubr.f32.gmra.mrb[0].mxu0 %v8403
      %v8565 = vpop.f32.mrb[0].mxu0
      %v8566 = vadd.f32 0.0, %v8565
      %v8567 = vpop.f32.mrb[0].mxu0
      %8568 = vmatprep.mubr.f32.mxu0 0.0
      %8569 = vmatmul.mubr.f32.gmra.mrb[0].mxu0 %v8405
      %v8570 = vpop.f32.mrb[0].mxu0
      %v8571 = vadd.f32 0.0, %v8570
      %v8572 = vpop.f32.mrb[0].mxu0
      %8573 = vmatprep.mubr.f32.mxu0 0.0
      %8574 = vmatmul.mubr.f32.gmra.mrb[0].mxu0 %v8407
      %v8575 = vpop.f32.mrb[0].mxu0
      %v8576 = vadd.f32 0.0, %v8575
      %v8577 = vpop.f32.mrb[0].mxu0
      %8578 = vmatprep.mubr.f32.mxu0 0.0
      %8579 = vmatmul.mubr.f32.gmra.mrb[0].mxu0 %v8409
      %v8580 = vpop.f32.mrb[0].mxu0
      %v8581 = vadd.f32 0.0, %v8580
      %v8582 = vpop.f32.mrb[0].mxu0
      %8583 = vmatprep.mubr.f32.mxu0 0.0
      %8584 = vmatmul.mubr.f32.gmra.mrb[0].mxu0 %v8411
      %v8585 = vpop.f32.mrb[0].mxu0
      %v8586 = vadd.f32 0.0, %v8585
      %v8587 = vpop.f32.mrb[0].mxu0
      %8588 = vmatprep.mubr.f32.mxu0 0.0
      %8589 = vmatmul.mubr.f32.gmra.mrb[0].mxu0 %v8413
      %v8590 = vpop.f32.mrb[0].mxu0
      %v8591 = vadd.f32 0.0, %v8590
      %v8592 = vpop.f32.mrb[0].mxu0
      %8593 = vmatprep.mubr.f32.mxu0 0.0
      %8594 = vmatmul.mubr.f32.gmra.mrb[0].mxu0 %v8415
      %v8595 = vpop.f32.mrb[0].mxu0
      %v8596 = vadd.f32 0.0, %v8595
      %v8597 = vpop.f32.mrb[0].mxu0
      %8598 = vmatprep.mubr.f32.mxu0 0.0
      %8599 = vmatmul.mubr.f32.gmra.mrb[0].mxu0 %v8417
      %v8600 = vpop.f32.mrb[0].mxu0
      %v8601 = vadd.f32 0.0, %v8600
      %v8602 = vpop.f32.mrb[0].mxu0
      %8603 = vmatprep.mubr.f32.mxu0 0.0
      %8604 = vmatmul.mubr.f32.gmra.mrb[0].mxu0 %v8419
      %v8605 = vpop.f32.mrb[0].mxu0
      %v8606 = vadd.f32 0.0, %v8605
      %v8607 = vpop.f32.mrb[0].mxu0
      %8608 = vmatprep.mubr.f32.mxu0 0.0
      %8609 = vmatmul.mubr.f32.gmra.mrb[0].mxu0 %v8421
      %v8610 = vpop.f32.mrb[0].mxu0
      %v8611 = vadd.f32 0.0, %v8610
      %v8612 = vpop.f32.mrb[0].mxu0
      %8613 = vmatprep.mubr.f32.mxu0 0.0
      %8614 = vmatmul.mubr.f32.gmra.mrb[0].mxu0 %v8423
      %v8615 = vpop.f32.mrb[0].mxu0
      %v8616 = vadd.f32 0.0, %v8615
      %v8617 = vpop.f32.mrb[0].mxu0
      %8618 = vmatprep.mubr.f32.mxu0 0.0
      %8619 = vmatmul.mubr.f32.gmra.mrb[0].mxu0 %v8425
      %v8620 = vpop.f32.mrb[0].mxu0
      %v8621 = vadd.f32 0.0, %v8620
      %v8622 = vpop.f32.mrb[0].mxu0
      %8623 = vmatprep.mubr.f32.mxu0 0.0
      %8624 = vmatmul.mubr.f32.gmra.mrb[0].mxu0 %v8427
      %v8625 = vpop.f32.mrb[0].mxu0
      %v8626 = vadd.f32 0.0, %v8625
      %v8627 = vpop.f32.mrb[0].mxu0
      %8628 = vmatprep.mubr.f32.mxu0 0.0
      %8629 = vmatmul.mubr.f32.gmra.mrb[0].mxu0 %v8429
      %v8630 = vpop.f32.mrb[0].mxu0
      %v8631 = vadd.f32 0.0, %v8630
      %v8632 = vpop.f32.mrb[0].mxu0
      %8633 = vmatprep.mubr.f32.mxu0 0.0
      %8634 = vmatmul.mubr.f32.gmra.mrb[0].mxu0 %v8431
      %v8635 = vpop.f32.mrb[0].mxu0
      %v8636 = vadd.f32 0.0, %v8635
      %v8637 = vpop.f32.mrb[0].mxu0
      %8638 = vmatprep.mubr.f32.mxu0 0.0
      %8639 = vmatmul.mubr.f32.gmra.mrb[0].mxu0 %v8433
      %v8640 = vpop.f32.mrb[0].mxu0
      %v8641 = vadd.f32 0.0, %v8640
      %v8642 = vpop.f32.mrb[0].mxu0
      %8643 = vmatprep.mubr.f32.mxu0 0.0
      %8644 = vmatmul.mubr.f32.gmra.mrb[0].mxu0 %v8435
      %v8645 = vpop.f32.mrb[0].mxu0
      %v8646 = vadd.f32 0.0, %v8645
      %v8647 = vpop.f32.mrb[0].mxu0
      %8648 = vmatprep.mubr.f32.mxu0 0.0
      %8649 = vmatmul.mubr.f32.gmra.mrb[0].mxu0 %v8437
      %v8650 = vpop.f32.mrb[0].mxu0
      %v8651 = vadd.f32 0.0, %v8650
      %v8652 = vpop.f32.mrb[0].mxu0
      %8653 = vmatprep.mubr.f32.mxu0 0.0
      %8654 = vmatmul.mubr.f32.gmra.mrb[0].mxu0 %v8439
      %v8655 = vpop.f32.mrb[0].mxu0
      %v8656 = vadd.f32 0.0, %v8655
      %v8657 = vpop.f32.mrb[0].mxu0
      %8658 = vmatprep.mubr.f32.mxu0 0.0
      %8659 = vmatmul.mubr.f32.gmra.mrb[0].mxu0 %v8441
      %v8660 = vpop.f32.mrb[0].mxu0
      %v8661 = vadd.f32 0.0, %v8660
      %v8662 = vpop.f32.mrb[0].mxu0
      %8663 = vmatprep.mubr.f32.mxu0 0.0
      %8664 = vmatmul.mubr.f32.gmra.mrb[0].mxu0 %v8443
      %v8665 = vpop.f32.mrb[0].mxu0
      %v8666 = vadd.f32 0.0, %v8665
      %v8667 = vpop.f32.mrb[0].mxu0
      %8668 = vmatprep.mubr.f32.mxu0 0.0
      %8669 = vmatmul.mubr.f32.gmra.mrb[0].mxu0 %v8445
      %v8670 = vpop.f32.mrb[0].mxu0
      %v8671 = vadd.f32 0.0, %v8670
      %v8672 = vpop.f32.mrb[0].mxu0
      %8673 = vmatprep.mubr.f32.mxu0 0.0
      %8674 = vmatmul.mubr.f32.gmra.mrb[0].mxu0 %v8447
      %v8675 = vpop.f32.mrb[0].mxu0
      %v8676 = vadd.f32 0.0, %v8675
      %v8677 = vpop.f32.mrb[0].mxu0
      %8678 = vmatprep.mubr.f32.mxu0 0.0
      %8679 = vmatmul.mubr.f32.gmra.mrb[0].mxu0 %v8449
      %v8680 = vpop.f32.mrb[0].mxu0
      %v8681 = vadd.f32 0.0, %v8680
      %v8682 = vpop.f32.mrb[0].mxu0
      %8683 = vmatprep.mubr.f32.mxu0 0.0
      %8684 = vmatmul.mubr.f32.gmra.mrb[0].mxu0 %v8451
      %v8685 = vpop.f32.mrb[0].mxu0
      %v8686 = vadd.f32 0.0, %v8685
      %v8687 = vpop.f32.mrb[0].mxu0
      %8688 = vmatprep.mubr.f32.mxu0 0.0
      %8689 = vmatmul.mubr.f32.gmra.mrb[0].mxu0 %v8453
      %v8690 = vpop.f32.mrb[0].mxu0
      %v8691 = vadd.f32 0.0, %v8690
      %v8692 = vpop.f32.mrb[0].mxu0
      %8693 = vmatprep.mubr.f32.mxu0 0.0
      %8694 = vmatmul.mubr.f32.gmra.mrb[0].mxu0 %v8455
      %v8695 = vpop.f32.mrb[0].mxu0
      %v8696 = vadd.f32 0.0, %v8695
      %v8697 = vpop.f32.mrb[0].mxu0
      %8698 = vmatprep.mubr.f32.mxu0 0.0
      %8699 = vmatmul.mubr.f32.gmra.mrb[0].mxu0 %v8457
      %v8700 = vpop.f32.mrb[0].mxu0
      %v8701 = vadd.f32 0.0, %v8700
      %v8702 = vpop.f32.mrb[0].mxu0
      %8703 = vmatprep.mubr.f32.mxu0 0.0
      %8704 = vmatmul.mubr.f32.gmra.mrb[0].mxu0 %v8459
      %v8705 = vpop.f32.mrb[0].mxu0
      %v8706 = vadd.f32 0.0, %v8705
      %v8707 = vpop.f32.mrb[0].mxu0
      %8708 = vdwg.mxu0
      %v8709 = vadd.f32 %v7629, %v8531
      %v8710 = vadd.f32 %v7634, %v8536
      %v8711 = vadd.f32 %v7639, %v8541
      %v8712 = vadd.f32 %v7644, %v8546
      %v8713 = vadd.f32 %v7649, %v8551
      %v8714 = vadd.f32 %v7654, %v8556
      %v8715 = vadd.f32 %v7659, %v8561
      %v8716 = vadd.f32 %v7664, %v8566
      %v8717 = vadd.f32 %v7669, %v8571
      %v8718 = vadd.f32 %v7674, %v8576
      %v8719 = vadd.f32 %v7679, %v8581
      %v8720 = vadd.f32 %v7684, %v8586
      %v8721 = vadd.f32 %v7689, %v8591
      %v8722 = vadd.f32 %v7694, %v8596
      %v8723 = vadd.f32 %v7699, %v8601
      %v8724 = vadd.f32 %v7704, %v8606
      %v8725 = vadd.f32 %v7709, %v8611
      %v8726 = vadd.f32 %v7714, %v8616
      %v8727 = vadd.f32 %v7719, %v8621
      %v8728 = vadd.f32 %v7724, %v8626
      %v8729 = vadd.f32 %v7729, %v8631
      %v8730 = vadd.f32 %v7734, %v8636
      %v8731 = vadd.f32 %v7739, %v8641
      %v8732 = vadd.f32 %v7744, %v8646
      %v8733 = vadd.f32 %v7749, %v8651
      %v8734 = vadd.f32 %v7754, %v8656
      %v8735 = vadd.f32 %v7759, %v8661
      %v8736 = vadd.f32 %v7764, %v8666
      %v8737 = vadd.f32 %v7769, %v8671
      %v8738 = vadd.f32 %v7774, %v8676
      %v8739 = vadd.f32 %v7779, %v8681
      %v8740 = vadd.f32 %v7784, %v8686
      %v8741 = vadd.f32 %v7789, %v8691
      %v8742 = vadd.f32 %v7794, %v8696
      %v8743 = vadd.f32 %v7799, %v8701
      %v8744 = vadd.f32 %v7804, %v8706
      %s8745 = scalar_lea.vmem %s3, 12
      %v8746 = vld [vmem:[%s8745] sm:$0xf]
      %v8747 = vcombine.low %v6478, %v6477
      %v8748 = vcombine.low %v6479, %v6487
      %v8750 = vunpack.c.l.s4 1983009808
      %v8751 = vunpack.c.0.s8 %v8750
      %v8752 = vlaneseq
      %v8753 = vshrl.u32 %v8752, 7
      %v8754 = vsub.s32 %v8751, %v8753
      %v8755 = vrot.slane %v8747, %v8754
      %v8757 = vunpack.c.l.s4 1983009808
      %v8758 = vunpack.c.0.s8 %v8757
      %v8759 = vlaneseq
      %v8760 = vshrl.u32 %v8759, 7
      %v8761 = vsub.s32 %v8758, %v8760
      %v8762 = vrot.slane %v8748, %v8761
      %v8763 = vcombine.low %v8755, %v8762
      %v8764 = vcombine.low %v6495, %v6494
      %v8765 = vcombine.low %v6496, %v6503
      %v8767 = vunpack.c.l.s4 1983009808
      %v8768 = vunpack.c.0.s8 %v8767
      %v8769 = vlaneseq
      %v8770 = vshrl.u32 %v8769, 7
      %v8771 = vsub.s32 %v8768, %v8770
      %v8772 = vrot.slane %v8764, %v8771
      %v8774 = vunpack.c.l.s4 1983009808
      %v8775 = vunpack.c.0.s8 %v8774
      %v8776 = vlaneseq
      %v8777 = vshrl.u32 %v8776, 7
      %v8778 = vsub.s32 %v8775, %v8777
      %v8779 = vrot.slane %v8765, %v8778
      %v8780 = vcombine.low %v8772, %v8779
      %v8781 = vsel %vm459, %v8763, 0
      %v8783 = vsel %vm459, %v8780, 0
      %v8786 = vsel %vm532, %v8746, 0
      %8788 = vmatprep.subr.mxu0 0.0
      %8789 = vmatpush1.msra.mxu0 %v8786
      %8790 = vmatprep.subr.mxu0 0.0
      %8791 = vmatpush1.msra.mxu0 0.0
      %8792 = vmatprep.subr.mxu0 0.0
      %8793 = vmatpush1.msra.mxu0 0.0
      %8794 = vmatprep.subr.mxu0 0.0
      %8795 = vmatpush1.msra.mxu0 0.0
      %8796 = vmatprep.subr.mxu0 0.0
      %8797 = vmatpush1.msra.mxu0 0.0
      %8798 = vmatprep.subr.mxu0 0.0
      %8799 = vmatpush1.msra.mxu0 0.0
      %8800 = vmatprep.subr.mxu0 0.0
      %8801 = vmatpush1.msra.mxu0 0.0
      %8802 = vmatprep.subr.mxu0 0.0
      %8803 = vmatpush1.msra.mxu0 0.0
      %8804 = vmatprep.subr.mxu0 0.0
      %8805 = vmatpush1.msra.mxu0 0.0
      %8806 = vmatprep.subr.mxu0 0.0
      %8807 = vmatpush1.msra.mxu0 0.0
      %8808 = vmatprep.subr.mxu0 0.0
      %8809 = vmatpush1.msra.mxu0 0.0
      %8810 = vmatprep.subr.mxu0 0.0
      %8811 = vmatpush1.msra.mxu0 0.0
      %8812 = vmatprep.subr.mxu0 0.0
      %8813 = vmatpush1.msra.mxu0 0.0
      %8814 = vmatprep.subr.mxu0 0.0
      %8815 = vmatpush1.msra.mxu0 0.0
      %8816 = vmatprep.subr.mxu0 0.0
      %8817 = vmatpush1.msra.mxu0 0.0
      %8818 = vmatprep.subr.mxu0 0.0
      %8819 = vmatpush1.msra.mxu0 0.0
      %8820 = vmatprep.subr.mxu0 0.0
      %8821 = vmatpush1.msra.mxu0 0.0
      %8822 = vmatprep.subr.mxu0 0.0
      %8823 = vmatpush1.msra.mxu0 0.0
      %8824 = vmatprep.subr.mxu0 0.0
      %8825 = vmatpush1.msra.mxu0 0.0
      %8826 = vmatprep.subr.mxu0 0.0
      %8827 = vmatpush1.msra.mxu0 0.0
      %8828 = vmatprep.subr.mxu0 0.0
      %8829 = vmatpush1.msra.mxu0 0.0
      %8830 = vmatprep.subr.mxu0 0.0
      %8831 = vmatpush1.msra.mxu0 0.0
      %8832 = vmatprep.subr.mxu0 0.0
      %8833 = vmatpush1.msra.mxu0 0.0
      %8834 = vmatprep.subr.mxu0 0.0
      %8835 = vmatpush1.msra.mxu0 0.0
      %8836 = vmatprep.subr.mxu0 0.0
      %8837 = vmatpush1.msra.mxu0 0.0
      %8838 = vmatprep.subr.mxu0 0.0
      %8839 = vmatpush1.msra.mxu0 0.0
      %8840 = vmatprep.subr.mxu0 0.0
      %8841 = vmatpush1.msra.mxu0 0.0
      %8842 = vmatprep.subr.mxu0 0.0
      %8843 = vmatpush1.msra.mxu0 0.0
      %8844 = vmatprep.subr.mxu0 0.0
      %8845 = vmatpush1.msra.mxu0 0.0
      %8846 = vmatprep.subr.mxu0 0.0
      %8847 = vmatpush1.msra.mxu0 0.0
      %8848 = vmatprep.subr.mxu0 0.0
      %8849 = vmatpush1.msra.mxu0 0.0
      %8850 = vmatprep.subr.mxu0 0.0
      %8851 = vmatpush1.msra.mxu0 0.0
      %8852 = vmatprep.mubr.f32.mxu0 0.0
      %8853 = vmatmul.mubr.f32.gmra.mrb[0].mxu0 %v8393
      %v8854 = vpop.f32.mrb[0].mxu0
      %v8855 = vadd.f32 0.0, %v8854
      %v8856 = vpop.f32.mrb[0].mxu0
      %8857 = vmatprep.mubr.f32.mxu0 0.0
      %8858 = vmatmul.mubr.f32.gmra.mrb[0].mxu0 %v8395
      %v8859 = vpop.f32.mrb[0].mxu0
      %v8860 = vadd.f32 0.0, %v8859
      %v8861 = vpop.f32.mrb[0].mxu0
      %8862 = vmatprep.mubr.f32.mxu0 0.0
      %8863 = vmatmul.mubr.f32.gmra.mrb[0].mxu0 %v8397
      %v8864 = vpop.f32.mrb[0].mxu0
      %v8865 = vadd.f32 0.0, %v8864
      %v8866 = vpop.f32.mrb[0].mxu0
      %8867 = vmatprep.mubr.f32.mxu0 0.0
      %8868 = vmatmul.mubr.f32.gmra.mrb[0].mxu0 %v8399
      %v8869 = vpop.f32.mrb[0].mxu0
      %v8870 = vadd.f32 0.0, %v8869
      %v8871 = vpop.f32.mrb[0].mxu0
      %8872 = vmatprep.mubr.f32.mxu0 0.0
      %8873 = vmatmul.mubr.f32.gmra.mrb[0].mxu0 %v8401
      %v8874 = vpop.f32.mrb[0].mxu0
      %v8875 = vadd.f32 0.0, %v8874
      %v8876 = vpop.f32.mrb[0].mxu0
      %8877 = vmatprep.mubr.f32.mxu0 0.0
      %8878 = vmatmul.mubr.f32.gmra.mrb[0].mxu0 %v8403
      %v8879 = vpop.f32.mrb[0].mxu0
      %v8880 = vadd.f32 0.0, %v8879
      %v8881 = vpop.f32.mrb[0].mxu0
      %8882 = vmatprep.mubr.f32.mxu0 0.0
      %8883 = vmatmul.mubr.f32.gmra.mrb[0].mxu0 %v8405
      %v8884 = vpop.f32.mrb[0].mxu0
      %v8885 = vadd.f32 0.0, %v8884
      %v8886 = vpop.f32.mrb[0].mxu0
      %8887 = vmatprep.mubr.f32.mxu0 0.0
      %8888 = vmatmul.mubr.f32.gmra.mrb[0].mxu0 %v8407
      %v8889 = vpop.f32.mrb[0].mxu0
      %v8890 = vadd.f32 0.0, %v8889
      %v8891 = vpop.f32.mrb[0].mxu0
      %8892 = vmatprep.mubr.f32.mxu0 0.0
      %8893 = vmatmul.mubr.f32.gmra.mrb[0].mxu0 %v8409
      %v8894 = vpop.f32.mrb[0].mxu0
      %v8895 = vadd.f32 0.0, %v8894
      %v8896 = vpop.f32.mrb[0].mxu0
      %8897 = vmatprep.mubr.f32.mxu0 0.0
      %8898 = vmatmul.mubr.f32.gmra.mrb[0].mxu0 %v8411
      %v8899 = vpop.f32.mrb[0].mxu0
      %v8900 = vadd.f32 0.0, %v8899
      %v8901 = vpop.f32.mrb[0].mxu0
      %8902 = vmatprep.mubr.f32.mxu0 0.0
      %8903 = vmatmul.mubr.f32.gmra.mrb[0].mxu0 %v8413
      %v8904 = vpop.f32.mrb[0].mxu0
      %v8905 = vadd.f32 0.0, %v8904
      %v8906 = vpop.f32.mrb[0].mxu0
      %8907 = vmatprep.mubr.f32.mxu0 0.0
      %8908 = vmatmul.mubr.f32.gmra.mrb[0].mxu0 %v8415
      %v8909 = vpop.f32.mrb[0].mxu0
      %v8910 = vadd.f32 0.0, %v8909
      %v8911 = vpop.f32.mrb[0].mxu0
      %8912 = vmatprep.mubr.f32.mxu0 0.0
      %8913 = vmatmul.mubr.f32.gmra.mrb[0].mxu0 %v8417
      %v8914 = vpop.f32.mrb[0].mxu0
      %v8915 = vadd.f32 0.0, %v8914
      %v8916 = vpop.f32.mrb[0].mxu0
      %8917 = vmatprep.mubr.f32.mxu0 0.0
      %8918 = vmatmul.mubr.f32.gmra.mrb[0].mxu0 %v8419
      %v8919 = vpop.f32.mrb[0].mxu0
      %v8920 = vadd.f32 0.0, %v8919
      %v8921 = vpop.f32.mrb[0].mxu0
      %8922 = vmatprep.mubr.f32.mxu0 0.0
      %8923 = vmatmul.mubr.f32.gmra.mrb[0].mxu0 %v8421
      %v8924 = vpop.f32.mrb[0].mxu0
      %v8925 = vadd.f32 0.0, %v8924
      %v8926 = vpop.f32.mrb[0].mxu0
      %8927 = vmatprep.mubr.f32.mxu0 0.0
      %8928 = vmatmul.mubr.f32.gmra.mrb[0].mxu0 %v8423
      %v8929 = vpop.f32.mrb[0].mxu0
      %v8930 = vadd.f32 0.0, %v8929
      %v8931 = vpop.f32.mrb[0].mxu0
      %8932 = vmatprep.mubr.f32.mxu0 0.0
      %8933 = vmatmul.mubr.f32.gmra.mrb[0].mxu0 %v8425
      %v8934 = vpop.f32.mrb[0].mxu0
      %v8935 = vadd.f32 0.0, %v8934
      %v8936 = vpop.f32.mrb[0].mxu0
      %8937 = vmatprep.mubr.f32.mxu0 0.0
      %8938 = vmatmul.mubr.f32.gmra.mrb[0].mxu0 %v8427
      %v8939 = vpop.f32.mrb[0].mxu0
      %v8940 = vadd.f32 0.0, %v8939
      %v8941 = vpop.f32.mrb[0].mxu0
      %8942 = vmatprep.mubr.f32.mxu0 0.0
      %8943 = vmatmul.mubr.f32.gmra.mrb[0].mxu0 %v8429
      %v8944 = vpop.f32.mrb[0].mxu0
      %v8945 = vadd.f32 0.0, %v8944
      %v8946 = vpop.f32.mrb[0].mxu0
      %8947 = vmatprep.mubr.f32.mxu0 0.0
      %8948 = vmatmul.mubr.f32.gmra.mrb[0].mxu0 %v8431
      %v8949 = vpop.f32.mrb[0].mxu0
      %v8950 = vadd.f32 0.0, %v8949
      %v8951 = vpop.f32.mrb[0].mxu0
      %8952 = vmatprep.mubr.f32.mxu0 0.0
      %8953 = vmatmul.mubr.f32.gmra.mrb[0].mxu0 %v8433
      %v8954 = vpop.f32.mrb[0].mxu0
      %v8955 = vadd.f32 0.0, %v8954
      %v8956 = vpop.f32.mrb[0].mxu0
      %8957 = vmatprep.mubr.f32.mxu0 0.0
      %8958 = vmatmul.mubr.f32.gmra.mrb[0].mxu0 %v8435
      %v8959 = vpop.f32.mrb[0].mxu0
      %v8960 = vadd.f32 0.0, %v8959
      %v8961 = vpop.f32.mrb[0].mxu0
      %8962 = vmatprep.mubr.f32.mxu0 0.0
      %8963 = vmatmul.mubr.f32.gmra.mrb[0].mxu0 %v8437
      %v8964 = vpop.f32.mrb[0].mxu0
      %v8965 = vadd.f32 0.0, %v8964
      %v8966 = vpop.f32.mrb[0].mxu0
      %8967 = vmatprep.mubr.f32.mxu0 0.0
      %8968 = vmatmul.mubr.f32.gmra.mrb[0].mxu0 %v8439
      %v8969 = vpop.f32.mrb[0].mxu0
      %v8970 = vadd.f32 0.0, %v8969
      %v8971 = vpop.f32.mrb[0].mxu0
      %8972 = vmatprep.mubr.f32.mxu0 0.0
      %8973 = vmatmul.mubr.f32.gmra.mrb[0].mxu0 %v8441
      %v8974 = vpop.f32.mrb[0].mxu0
      %v8975 = vadd.f32 0.0, %v8974
      %v8976 = vpop.f32.mrb[0].mxu0
      %8977 = vmatprep.mubr.f32.mxu0 0.0
      %8978 = vmatmul.mubr.f32.gmra.mrb[0].mxu0 %v8443
      %v8979 = vpop.f32.mrb[0].mxu0
      %v8980 = vadd.f32 0.0, %v8979
      %v8981 = vpop.f32.mrb[0].mxu0
      %8982 = vmatprep.mubr.f32.mxu0 0.0
      %8983 = vmatmul.mubr.f32.gmra.mrb[0].mxu0 %v8445
      %v8984 = vpop.f32.mrb[0].mxu0
      %v8985 = vadd.f32 0.0, %v8984
      %v8986 = vpop.f32.mrb[0].mxu0
      %8987 = vmatprep.mubr.f32.mxu0 0.0
      %8988 = vmatmul.mubr.f32.gmra.mrb[0].mxu0 %v8447
      %v8989 = vpop.f32.mrb[0].mxu0
      %v8990 = vadd.f32 0.0, %v8989
      %v8991 = vpop.f32.mrb[0].mxu0
      %8992 = vmatprep.mubr.f32.mxu0 0.0
      %8993 = vmatmul.mubr.f32.gmra.mrb[0].mxu0 %v8449
      %v8994 = vpop.f32.mrb[0].mxu0
      %v8995 = vadd.f32 0.0, %v8994
      %v8996 = vpop.f32.mrb[0].mxu0
      %8997 = vmatprep.mubr.f32.mxu0 0.0
      %8998 = vmatmul.mubr.f32.gmra.mrb[0].mxu0 %v8451
      %v8999 = vpop.f32.mrb[0].mxu0
      %v9000 = vadd.f32 0.0, %v8999
      %v9001 = vpop.f32.mrb[0].mxu0
      %9002 = vmatprep.mubr.f32.mxu0 0.0
      %9003 = vmatmul.mubr.f32.gmra.mrb[0].mxu0 %v8453
      %v9004 = vpop.f32.mrb[0].mxu0
      %v9005 = vadd.f32 0.0, %v9004
      %v9006 = vpop.f32.mrb[0].mxu0
      %9007 = vmatprep.mubr.f32.mxu0 0.0
      %9008 = vmatmul.mubr.f32.gmra.mrb[0].mxu0 %v8455
      %v9009 = vpop.f32.mrb[0].mxu0
      %v9010 = vadd.f32 0.0, %v9009
      %v9011 = vpop.f32.mrb[0].mxu0
      %9012 = vmatprep.mubr.f32.mxu0 0.0
      %9013 = vmatmul.mubr.f32.gmra.mrb[0].mxu0 %v8457
      %v9014 = vpop.f32.mrb[0].mxu0
      %v9015 = vadd.f32 0.0, %v9014
      %v9016 = vpop.f32.mrb[0].mxu0
      %9017 = vmatprep.mubr.f32.mxu0 0.0
      %9018 = vmatmul.mubr.f32.gmra.mrb[0].mxu0 %v8459
      %v9019 = vpop.f32.mrb[0].mxu0
      %v9020 = vadd.f32 0.0, %v9019
      %v9021 = vpop.f32.mrb[0].mxu0
      %9022 = vmatprep.mubr.f32.mxu0 0.0
      %9023 = vmatmul.mubr.f32.gmra.mrb[0].mxu0 %v8781
      %v9024 = vpop.f32.mrb[0].mxu0
      %v9025 = vadd.f32 0.0, %v9024
      %v9026 = vpop.f32.mrb[0].mxu0
      %9027 = vmatprep.mubr.f32.mxu0 0.0
      %9028 = vmatmul.mubr.f32.gmra.mrb[0].mxu0 %v8783
      %v9029 = vpop.f32.mrb[0].mxu0
      %v9030 = vadd.f32 0.0, %v9029
      %v9031 = vpop.f32.mrb[0].mxu0
      %9032 = vdwg.mxu0
      %v9033 = vadd.f32 %v8709, %v8855
      %v9034 = vadd.f32 %v8710, %v8860
      %v9035 = vadd.f32 %v8711, %v8865
      %v9036 = vadd.f32 %v8712, %v8870
      %v9037 = vadd.f32 %v8713, %v8875
      %v9038 = vadd.f32 %v8714, %v8880
      %v9039 = vadd.f32 %v8715, %v8885
      %v9040 = vadd.f32 %v8716, %v8890
      %v9041 = vadd.f32 %v8717, %v8895
      %v9042 = vadd.f32 %v8718, %v8900
      %v9043 = vadd.f32 %v8719, %v8905
      %v9044 = vadd.f32 %v8720, %v8910
      %v9045 = vadd.f32 %v8721, %v8915
      %v9046 = vadd.f32 %v8722, %v8920
      %v9047 = vadd.f32 %v8723, %v8925
      %v9048 = vadd.f32 %v8724, %v8930
      %v9049 = vadd.f32 %v8725, %v8935
      %v9050 = vadd.f32 %v8726, %v8940
      %v9051 = vadd.f32 %v8727, %v8945
      %v9052 = vadd.f32 %v8728, %v8950
      %v9053 = vadd.f32 %v8729, %v8955
      %v9054 = vadd.f32 %v8730, %v8960
      %v9055 = vadd.f32 %v8731, %v8965
      %v9056 = vadd.f32 %v8732, %v8970
      %v9057 = vadd.f32 %v8733, %v8975
      %v9058 = vadd.f32 %v8734, %v8980
      %v9059 = vadd.f32 %v8735, %v8985
      %v9060 = vadd.f32 %v8736, %v8990
      %v9061 = vadd.f32 %v8737, %v8995
      %v9062 = vadd.f32 %v8738, %v9000
      %v9063 = vadd.f32 %v8739, %v9005
      %v9064 = vadd.f32 %v8740, %v9010
      %v9065 = vadd.f32 %v8741, %v9015
      %v9066 = vadd.f32 %v8742, %v9020
      %v9067 = vadd.f32 %v8743, %v9025
      %v9068 = vadd.f32 %v8744, %v9030
      %s9069 = scalar_lea.vmem %s3, 16
      %v9070 = vld [vmem:[%s9069] sm:$0xf]
      %v9072 = vunpack.c.l.s4 1983009808
      %v9073 = vunpack.c.0.s8 %v9072
      %v9074 = vlaneseq
      %v9075 = vshrl.u32 %v9074, 7
      %v9076 = vsub.s32 %v9073, %v9075
      %v9077 = vrot.slane %v6429, %v9076
      %v9078 = vrot.slane %v7859, 1
      %v9079 = vrot.slane %v7876, 1
      %v9080 = vsel %vm385, %v9078, %v9079
      %v9081 = vrot.slane %v7885, 1
      %v9082 = vsel %vm385, %v9079, %v9081
      %v9083 = vrot.slane %v7886, 1
      %v9084 = vsel %vm385, %v9081, %v9083
      %v9085 = vrot.slane %v7895, 1
      %v9086 = vsel %vm385, %v9083, %v9085
      %v9087 = vrot.slane %v7912, 1
      %v9088 = vsel %vm385, %v9085, %v9087
      %v9089 = vrot.slane %v7929, 1
      %v9090 = vsel %vm385, %v9087, %v9089
      %v9091 = vrot.slane %v7946, 1
      %v9092 = vsel %vm385, %v9089, %v9091
      %v9093 = vrot.slane %v7963, 1
      %v9094 = vsel %vm385, %v9091, %v9093
      %v9095 = vrot.slane %v7980, 1
      %v9096 = vsel %vm385, %v9093, %v9095
      %v9097 = vrot.slane %v7997, 1
      %v9098 = vsel %vm385, %v9095, %v9097
      %v9099 = vrot.slane %v8014, 1
      %v9100 = vsel %vm385, %v9097, %v9099
      %v9101 = vrot.slane %v8031, 1
      %v9102 = vsel %vm385, %v9099, %v9101
      %v9103 = vrot.slane %v8048, 1
      %v9104 = vsel %vm385, %v9101, %v9103
      %v9105 = vrot.slane %v8065, 1
      %v9106 = vsel %vm385, %v9103, %v9105
      %v9107 = vrot.slane %v8082, 1
      %v9108 = vsel %vm385, %v9105, %v9107
      %v9109 = vrot.slane %v8099, 1
      %v9110 = vsel %vm385, %v9107, %v9109
      %v9111 = vrot.slane %v8116, 1
      %v9112 = vsel %vm385, %v9109, %v9111
      %v9113 = vrot.slane %v8133, 1
      %v9114 = vsel %vm385, %v9111, %v9113
      %v9115 = vrot.slane %v8150, 1
      %v9116 = vsel %vm385, %v9113, %v9115
      %v9117 = vrot.slane %v8167, 1
      %v9118 = vsel %vm385, %v9115, %v9117
      %v9119 = vrot.slane %v8184, 1
      %v9120 = vsel %vm385, %v9117, %v9119
      %v9121 = vrot.slane %v8201, 1
      %v9122 = vsel %vm385, %v9119, %v9121
      %v9123 = vrot.slane %v8218, 1
      %v9124 = vsel %vm385, %v9121, %v9123
      %v9125 = vrot.slane %v8235, 1
      %v9126 = vsel %vm385, %v9123, %v9125
      %v9127 = vrot.slane %v8252, 1
      %v9128 = vsel %vm385, %v9125, %v9127
      %v9129 = vrot.slane %v8269, 1
      %v9130 = vsel %vm385, %v9127, %v9129
      %v9131 = vrot.slane %v8286, 1
      %v9132 = vsel %vm385, %v9129, %v9131
      %v9133 = vrot.slane %v8303, 1
      %v9134 = vsel %vm385, %v9131, %v9133
      %v9135 = vrot.slane %v8320, 1
      %v9136 = vsel %vm385, %v9133, %v9135
      %v9137 = vrot.slane %v8337, 1
      %v9138 = vsel %vm385, %v9135, %v9137
      %v9139 = vrot.slane %v8354, 1
      %v9140 = vsel %vm385, %v9137, %v9139
      %v9141 = vrot.slane %v8371, 1
      %v9142 = vsel %vm385, %v9139, %v9141
      %v9143 = vrot.slane %v8388, 1
      %v9144 = vsel %vm385, %v9141, %v9143
      %v9145 = vrot.slane %v8763, 1
      %v9146 = vsel %vm385, %v9143, %v9145
      %v9147 = vrot.slane %v8780, 1
      %v9148 = vsel %vm385, %v9145, %v9147
      %v9149 = vrot.slane %v9077, 1
      %v9150 = vsel %vm385, %v9147, %v9149
      %v9151 = vsel %vm459, %v9080, 0
      %v9153 = vsel %vm459, %v9082, 0
      %v9155 = vsel %vm459, %v9084, 0
      %v9157 = vsel %vm459, %v9086, 0
      %v9159 = vsel %vm459, %v9088, 0
      %v9161 = vsel %vm459, %v9090, 0
      %v9163 = vsel %vm459, %v9092, 0
      %v9165 = vsel %vm459, %v9094, 0
      %v9167 = vsel %vm459, %v9096, 0
      %v9169 = vsel %vm459, %v9098, 0
      %v9171 = vsel %vm459, %v9100, 0
      %v9173 = vsel %vm459, %v9102, 0
      %v9175 = vsel %vm459, %v9104, 0
      %v9177 = vsel %vm459, %v9106, 0
      %v9179 = vsel %vm459, %v9108, 0
      %v9181 = vsel %vm459, %v9110, 0
      %v9183 = vsel %vm459, %v9112, 0
      %v9185 = vsel %vm459, %v9114, 0
      %v9187 = vsel %vm459, %v9116, 0
      %v9189 = vsel %vm459, %v9118, 0
      %v9191 = vsel %vm459, %v9120, 0
      %v9193 = vsel %vm459, %v9122, 0
      %v9195 = vsel %vm459, %v9124, 0
      %v9197 = vsel %vm459, %v9126, 0
      %v9199 = vsel %vm459, %v9128, 0
      %v9201 = vsel %vm459, %v9130, 0
      %v9203 = vsel %vm459, %v9132, 0
      %v9205 = vsel %vm459, %v9134, 0
      %v9207 = vsel %vm459, %v9136, 0
      %v9209 = vsel %vm459, %v9138, 0
      %v9211 = vsel %vm459, %v9140, 0
      %v9213 = vsel %vm459, %v9142, 0
      %v9215 = vsel %vm459, %v9144, 0
      %v9217 = vsel %vm459, %v9146, 0
      %v9219 = vsel %vm459, %v9148, 0
      %v9221 = vsel %vm459, %v9150, 0
      %v9224 = vsel %vm532, %v9070, 0
      %9226 = vmatprep.subr.mxu0 0.0
      %9227 = vmatpush1.msra.mxu0 %v9224
      %9228 = vmatprep.subr.mxu0 0.0
      %9229 = vmatpush1.msra.mxu0 0.0
      %9230 = vmatprep.subr.mxu0 0.0
      %9231 = vmatpush1.msra.mxu0 0.0
      %9232 = vmatprep.subr.mxu0 0.0
      %9233 = vmatpush1.msra.mxu0 0.0
      %9234 = vmatprep.subr.mxu0 0.0
      %9235 = vmatpush1.msra.mxu0 0.0
      %9236 = vmatprep.subr.mxu0 0.0
      %9237 = vmatpush1.msra.mxu0 0.0
      %9238 = vmatprep.subr.mxu0 0.0
      %9239 = vmatpush1.msra.mxu0 0.0
      %9240 = vmatprep.subr.mxu0 0.0
      %9241 = vmatpush1.msra.mxu0 0.0
      %9242 = vmatprep.subr.mxu0 0.0
      %9243 = vmatpush1.msra.mxu0 0.0
      %9244 = vmatprep.subr.mxu0 0.0
      %9245 = vmatpush1.msra.mxu0 0.0
      %9246 = vmatprep.subr.mxu0 0.0
      %9247 = vmatpush1.msra.mxu0 0.0
      %9248 = vmatprep.subr.mxu0 0.0
      %9249 = vmatpush1.msra.mxu0 0.0
      %9250 = vmatprep.subr.mxu0 0.0
      %9251 = vmatpush1.msra.mxu0 0.0
      %9252 = vmatprep.subr.mxu0 0.0
      %9253 = vmatpush1.msra.mxu0 0.0
      %9254 = vmatprep.subr.mxu0 0.0
      %9255 = vmatpush1.msra.mxu0 0.0
      %9256 = vmatprep.subr.mxu0 0.0
      %9257 = vmatpush1.msra.mxu0 0.0
      %9258 = vmatprep.subr.mxu0 0.0
      %9259 = vmatpush1.msra.mxu0 0.0
      %9260 = vmatprep.subr.mxu0 0.0
      %9261 = vmatpush1.msra.mxu0 0.0
      %9262 = vmatprep.subr.mxu0 0.0
      %9263 = vmatpush1.msra.mxu0 0.0
      %9264 = vmatprep.subr.mxu0 0.0
      %9265 = vmatpush1.msra.mxu0 0.0
      %9266 = vmatprep.subr.mxu0 0.0
      %9267 = vmatpush1.msra.mxu0 0.0
      %9268 = vmatprep.subr.mxu0 0.0
      %9269 = vmatpush1.msra.mxu0 0.0
      %9270 = vmatprep.subr.mxu0 0.0
      %9271 = vmatpush1.msra.mxu0 0.0
      %9272 = vmatprep.subr.mxu0 0.0
      %9273 = vmatpush1.msra.mxu0 0.0
      %9274 = vmatprep.subr.mxu0 0.0
      %9275 = vmatpush1.msra.mxu0 0.0
      %9276 = vmatprep.subr.mxu0 0.0
      %9277 = vmatpush1.msra.mxu0 0.0
      %9278 = vmatprep.subr.mxu0 0.0
      %9279 = vmatpush1.msra.mxu0 0.0
      %9280 = vmatprep.subr.mxu0 0.0
      %9281 = vmatpush1.msra.mxu0 0.0
      %9282 = vmatprep.subr.mxu0 0.0
      %9283 = vmatpush1.msra.mxu0 0.0
      %9284 = vmatprep.subr.mxu0 0.0
      %9285 = vmatpush1.msra.mxu0 0.0
      %9286 = vmatprep.subr.mxu0 0.0
      %9287 = vmatpush1.msra.mxu0 0.0
      %9288 = vmatprep.subr.mxu0 0.0
      %9289 = vmatpush1.msra.mxu0 0.0
      %9290 = vmatprep.mubr.f32.mxu0 0.0
      %9291 = vmatmul.mubr.f32.gmra.mrb[0].mxu0 %v9151
      %v9292 = vpop.f32.mrb[0].mxu0
      %v9293 = vadd.f32 0.0, %v9292
      %v9294 = vpop.f32.mrb[0].mxu0
      %9295 = vmatprep.mubr.f32.mxu0 0.0
      %9296 = vmatmul.mubr.f32.gmra.mrb[0].mxu0 %v9153
      %v9297 = vpop.f32.mrb[0].mxu0
      %v9298 = vadd.f32 0.0, %v9297
      %v9299 = vpop.f32.mrb[0].mxu0
      %9300 = vmatprep.mubr.f32.mxu0 0.0
      %9301 = vmatmul.mubr.f32.gmra.mrb[0].mxu0 %v9155
      %v9302 = vpop.f32.mrb[0].mxu0
      %v9303 = vadd.f32 0.0, %v9302
      %v9304 = vpop.f32.mrb[0].mxu0
      %9305 = vmatprep.mubr.f32.mxu0 0.0
      %9306 = vmatmul.mubr.f32.gmra.mrb[0].mxu0 %v9157
      %v9307 = vpop.f32.mrb[0].mxu0
      %v9308 = vadd.f32 0.0, %v9307
      %v9309 = vpop.f32.mrb[0].mxu0
      %9310 = vmatprep.mubr.f32.mxu0 0.0
      %9311 = vmatmul.mubr.f32.gmra.mrb[0].mxu0 %v9159
      %v9312 = vpop.f32.mrb[0].mxu0
      %v9313 = vadd.f32 0.0, %v9312
      %v9314 = vpop.f32.mrb[0].mxu0
      %9315 = vmatprep.mubr.f32.mxu0 0.0
      %9316 = vmatmul.mubr.f32.gmra.mrb[0].mxu0 %v9161
      %v9317 = vpop.f32.mrb[0].mxu0
      %v9318 = vadd.f32 0.0, %v9317
      %v9319 = vpop.f32.mrb[0].mxu0
      %9320 = vmatprep.mubr.f32.mxu0 0.0
      %9321 = vmatmul.mubr.f32.gmra.mrb[0].mxu0 %v9163
      %v9322 = vpop.f32.mrb[0].mxu0
      %v9323 = vadd.f32 0.0, %v9322
      %v9324 = vpop.f32.mrb[0].mxu0
      %9325 = vmatprep.mubr.f32.mxu0 0.0
      %9326 = vmatmul.mubr.f32.gmra.mrb[0].mxu0 %v9165
      %v9327 = vpop.f32.mrb[0].mxu0
      %v9328 = vadd.f32 0.0, %v9327
      %v9329 = vpop.f32.mrb[0].mxu0
      %9330 = vmatprep.mubr.f32.mxu0 0.0
      %9331 = vmatmul.mubr.f32.gmra.mrb[0].mxu0 %v9167
      %v9332 = vpop.f32.mrb[0].mxu0
      %v9333 = vadd.f32 0.0, %v9332
      %v9334 = vpop.f32.mrb[0].mxu0
      %9335 = vmatprep.mubr.f32.mxu0 0.0
      %9336 = vmatmul.mubr.f32.gmra.mrb[0].mxu0 %v9169
      %v9337 = vpop.f32.mrb[0].mxu0
      %v9338 = vadd.f32 0.0, %v9337
      %v9339 = vpop.f32.mrb[0].mxu0
      %9340 = vmatprep.mubr.f32.mxu0 0.0
      %9341 = vmatmul.mubr.f32.gmra.mrb[0].mxu0 %v9171
      %v9342 = vpop.f32.mrb[0].mxu0
      %v9343 = vadd.f32 0.0, %v9342
      %v9344 = vpop.f32.mrb[0].mxu0
      %9345 = vmatprep.mubr.f32.mxu0 0.0
      %9346 = vmatmul.mubr.f32.gmra.mrb[0].mxu0 %v9173
      %v9347 = vpop.f32.mrb[0].mxu0
      %v9348 = vadd.f32 0.0, %v9347
      %v9349 = vpop.f32.mrb[0].mxu0
      %9350 = vmatprep.mubr.f32.mxu0 0.0
      %9351 = vmatmul.mubr.f32.gmra.mrb[0].mxu0 %v9175
      %v9352 = vpop.f32.mrb[0].mxu0
      %v9353 = vadd.f32 0.0, %v9352
      %v9354 = vpop.f32.mrb[0].mxu0
      %9355 = vmatprep.mubr.f32.mxu0 0.0
      %9356 = vmatmul.mubr.f32.gmra.mrb[0].mxu0 %v9177
      %v9357 = vpop.f32.mrb[0].mxu0
      %v9358 = vadd.f32 0.0, %v9357
      %v9359 = vpop.f32.mrb[0].mxu0
      %9360 = vmatprep.mubr.f32.mxu0 0.0
      %9361 = vmatmul.mubr.f32.gmra.mrb[0].mxu0 %v9179
      %v9362 = vpop.f32.mrb[0].mxu0
      %v9363 = vadd.f32 0.0, %v9362
      %v9364 = vpop.f32.mrb[0].mxu0
      %9365 = vmatprep.mubr.f32.mxu0 0.0
      %9366 = vmatmul.mubr.f32.gmra.mrb[0].mxu0 %v9181
      %v9367 = vpop.f32.mrb[0].mxu0
      %v9368 = vadd.f32 0.0, %v9367
      %v9369 = vpop.f32.mrb[0].mxu0
      %9370 = vmatprep.mubr.f32.mxu0 0.0
      %9371 = vmatmul.mubr.f32.gmra.mrb[0].mxu0 %v9183
      %v9372 = vpop.f32.mrb[0].mxu0
      %v9373 = vadd.f32 0.0, %v9372
      %v9374 = vpop.f32.mrb[0].mxu0
      %9375 = vmatprep.mubr.f32.mxu0 0.0
      %9376 = vmatmul.mubr.f32.gmra.mrb[0].mxu0 %v9185
      %v9377 = vpop.f32.mrb[0].mxu0
      %v9378 = vadd.f32 0.0, %v9377
      %v9379 = vpop.f32.mrb[0].mxu0
      %9380 = vmatprep.mubr.f32.mxu0 0.0
      %9381 = vmatmul.mubr.f32.gmra.mrb[0].mxu0 %v9187
      %v9382 = vpop.f32.mrb[0].mxu0
      %v9383 = vadd.f32 0.0, %v9382
      %v9384 = vpop.f32.mrb[0].mxu0
      %9385 = vmatprep.mubr.f32.mxu0 0.0
      %9386 = vmatmul.mubr.f32.gmra.mrb[0].mxu0 %v9189
      %v9387 = vpop.f32.mrb[0].mxu0
      %v9388 = vadd.f32 0.0, %v9387
      %v9389 = vpop.f32.mrb[0].mxu0
      %9390 = vmatprep.mubr.f32.mxu0 0.0
      %9391 = vmatmul.mubr.f32.gmra.mrb[0].mxu0 %v9191
      %v9392 = vpop.f32.mrb[0].mxu0
      %v9393 = vadd.f32 0.0, %v9392
      %v9394 = vpop.f32.mrb[0].mxu0
      %9395 = vmatprep.mubr.f32.mxu0 0.0
      %9396 = vmatmul.mubr.f32.gmra.mrb[0].mxu0 %v9193
      %v9397 = vpop.f32.mrb[0].mxu0
      %v9398 = vadd.f32 0.0, %v9397
      %v9399 = vpop.f32.mrb[0].mxu0
      %9400 = vmatprep.mubr.f32.mxu0 0.0
      %9401 = vmatmul.mubr.f32.gmra.mrb[0].mxu0 %v9195
      %v9402 = vpop.f32.mrb[0].mxu0
      %v9403 = vadd.f32 0.0, %v9402
      %v9404 = vpop.f32.mrb[0].mxu0
      %9405 = vmatprep.mubr.f32.mxu0 0.0
      %9406 = vmatmul.mubr.f32.gmra.mrb[0].mxu0 %v9197
      %v9407 = vpop.f32.mrb[0].mxu0
      %v9408 = vadd.f32 0.0, %v9407
      %v9409 = vpop.f32.mrb[0].mxu0
      %9410 = vmatprep.mubr.f32.mxu0 0.0
      %9411 = vmatmul.mubr.f32.gmra.mrb[0].mxu0 %v9199
      %v9412 = vpop.f32.mrb[0].mxu0
      %v9413 = vadd.f32 0.0, %v9412
      %v9414 = vpop.f32.mrb[0].mxu0
      %9415 = vmatprep.mubr.f32.mxu0 0.0
      %9416 = vmatmul.mubr.f32.gmra.mrb[0].mxu0 %v9201
      %v9417 = vpop.f32.mrb[0].mxu0
      %v9418 = vadd.f32 0.0, %v9417
      %v9419 = vpop.f32.mrb[0].mxu0
      %9420 = vmatprep.mubr.f32.mxu0 0.0
      %9421 = vmatmul.mubr.f32.gmra.mrb[0].mxu0 %v9203
      %v9422 = vpop.f32.mrb[0].mxu0
      %v9423 = vadd.f32 0.0, %v9422
      %v9424 = vpop.f32.mrb[0].mxu0
      %9425 = vmatprep.mubr.f32.mxu0 0.0
      %9426 = vmatmul.mubr.f32.gmra.mrb[0].mxu0 %v9205
      %v9427 = vpop.f32.mrb[0].mxu0
      %v9428 = vadd.f32 0.0, %v9427
      %v9429 = vpop.f32.mrb[0].mxu0
      %9430 = vmatprep.mubr.f32.mxu0 0.0
      %9431 = vmatmul.mubr.f32.gmra.mrb[0].mxu0 %v9207
      %v9432 = vpop.f32.mrb[0].mxu0
      %v9433 = vadd.f32 0.0, %v9432
      %v9434 = vpop.f32.mrb[0].mxu0
      %9435 = vmatprep.mubr.f32.mxu0 0.0
      %9436 = vmatmul.mubr.f32.gmra.mrb[0].mxu0 %v9209
      %v9437 = vpop.f32.mrb[0].mxu0
      %v9438 = vadd.f32 0.0, %v9437
      %v9439 = vpop.f32.mrb[0].mxu0
      %9440 = vmatprep.mubr.f32.mxu0 0.0
      %9441 = vmatmul.mubr.f32.gmra.mrb[0].mxu0 %v9211
      %v9442 = vpop.f32.mrb[0].mxu0
      %v9443 = vadd.f32 0.0, %v9442
      %v9444 = vpop.f32.mrb[0].mxu0
      %9445 = vmatprep.mubr.f32.mxu0 0.0
      %9446 = vmatmul.mubr.f32.gmra.mrb[0].mxu0 %v9213
      %v9447 = vpop.f32.mrb[0].mxu0
      %v9448 = vadd.f32 0.0, %v9447
      %v9449 = vpop.f32.mrb[0].mxu0
      %9450 = vmatprep.mubr.f32.mxu0 0.0
      %9451 = vmatmul.mubr.f32.gmra.mrb[0].mxu0 %v9215
      %v9452 = vpop.f32.mrb[0].mxu0
      %v9453 = vadd.f32 0.0, %v9452
      %v9454 = vpop.f32.mrb[0].mxu0
      %9455 = vmatprep.mubr.f32.mxu0 0.0
      %9456 = vmatmul.mubr.f32.gmra.mrb[0].mxu0 %v9217
      %v9457 = vpop.f32.mrb[0].mxu0
      %v9458 = vadd.f32 0.0, %v9457
      %v9459 = vpop.f32.mrb[0].mxu0
      %9460 = vmatprep.mubr.f32.mxu0 0.0
      %9461 = vmatmul.mubr.f32.gmra.mrb[0].mxu0 %v9219
      %v9462 = vpop.f32.mrb[0].mxu0
      %v9463 = vadd.f32 0.0, %v9462
      %v9464 = vpop.f32.mrb[0].mxu0
      %9465 = vmatprep.mubr.f32.mxu0 0.0
      %9466 = vmatmul.mubr.f32.gmra.mrb[0].mxu0 %v9221
      %v9467 = vpop.f32.mrb[0].mxu0
      %v9468 = vadd.f32 0.0, %v9467
      %v9469 = vpop.f32.mrb[0].mxu0
      %9470 = vdwg.mxu0
      %v9471 = vadd.f32 %v9033, %v9293
      %v9472 = vadd.f32 %v9034, %v9298
      %v9473 = vadd.f32 %v9035, %v9303
      %v9474 = vadd.f32 %v9036, %v9308
      %v9475 = vadd.f32 %v9037, %v9313
      %v9476 = vadd.f32 %v9038, %v9318
      %v9477 = vadd.f32 %v9039, %v9323
      %v9478 = vadd.f32 %v9040, %v9328
      %v9479 = vadd.f32 %v9041, %v9333
      %v9480 = vadd.f32 %v9042, %v9338
      %v9481 = vadd.f32 %v9043, %v9343
      %v9482 = vadd.f32 %v9044, %v9348
      %v9483 = vadd.f32 %v9045, %v9353
      %v9484 = vadd.f32 %v9046, %v9358
      %v9485 = vadd.f32 %v9047, %v9363
      %v9486 = vadd.f32 %v9048, %v9368
      %v9487 = vadd.f32 %v9049, %v9373
      %v9488 = vadd.f32 %v9050, %v9378
      %v9489 = vadd.f32 %v9051, %v9383
      %v9490 = vadd.f32 %v9052, %v9388
      %v9491 = vadd.f32 %v9053, %v9393
      %v9492 = vadd.f32 %v9054, %v9398
      %v9493 = vadd.f32 %v9055, %v9403
      %v9494 = vadd.f32 %v9056, %v9408
      %v9495 = vadd.f32 %v9057, %v9413
      %v9496 = vadd.f32 %v9058, %v9418
      %v9497 = vadd.f32 %v9059, %v9423
      %v9498 = vadd.f32 %v9060, %v9428
      %v9499 = vadd.f32 %v9061, %v9433
      %v9500 = vadd.f32 %v9062, %v9438
      %v9501 = vadd.f32 %v9063, %v9443
      %v9502 = vadd.f32 %v9064, %v9448
      %v9503 = vadd.f32 %v9065, %v9453
      %v9504 = vadd.f32 %v9066, %v9458
      %v9505 = vadd.f32 %v9067, %v9463
      %v9506 = vadd.f32 %v9068, %v9468
      %s9507 = scalar_lea.vmem %s3, 20
      %v9508 = vld [vmem:[%s9507] sm:$0xf]
      %v9509 = vcombine.low %v6556, %v6566
      %v9510 = vcombine.low %v6573, %v6582
      %v9511 = vcombine.low %v6592, %v6602
      %v9512 = vcombine.low %v6609, %v6619
      %v9513 = vcombine.low %v6626, %v6636
      %v9514 = vcombine.low %v6643, %v6653
      %v9515 = vcombine.low %v6660, %v6670
      %v9516 = vcombine.low %v6677, %v6687
      %v9517 = vcombine.low %v6694, %v6704
      %v9518 = vcombine.low %v6711, %v6721
      %v9519 = vcombine.low %v6728, %v6738
      %v9520 = vcombine.low %v6745, %v6755
      %v9521 = vcombine.low %v6762, %v6772
      %v9522 = vcombine.low %v6779, %v6789
      %v9523 = vcombine.low %v6796, %v6806
      %v9524 = vcombine.low %v6813, %v6823
      %v9525 = vcombine.low %v6830, %v6840
      %v9526 = vcombine.low %v6847, %v6857
      %v9527 = vcombine.low %v6864, %v6874
      %v9528 = vcombine.low %v6881, %v6891
      %v9529 = vcombine.low %v6898, %v6908
      %v9530 = vcombine.low %v6915, %v6925
      %v9531 = vcombine.low %v6932, %v6942
      %v9532 = vcombine.low %v6949, %v6959
      %v9533 = vcombine.low %v6966, %v6976
      %v9534 = vcombine.low %v6983, %v6993
      %v9535 = vcombine.low %v7000, %v7010
      %v9536 = vcombine.low %v7017, %v7027
      %v9537 = vcombine.low %v7034, %v7044
      %v9538 = vcombine.low %v7051, %v7061
      %v9539 = vcombine.low %v7068, %v7078
      %v9540 = vcombine.low %v6470, %v6478
      %v9542 = vunpack.c.l.s4 1983009808
      %v9543 = vunpack.c.0.s8 %v9542
      %v9544 = vlaneseq
      %v9545 = vshrl.u32 %v9544, 7
      %v9546 = vsub.s32 %v9543, %v9545
      %v9547 = vrot.slane %v9540, %v9546
      %v9548 = vcombine.low %v7085, %v9547
      %v9549 = vcombine.low %v6477, %v6479
      %v9550 = vcombine.low %v6487, %v6495
      %v9552 = vunpack.c.l.s4 1983009808
      %v9553 = vunpack.c.0.s8 %v9552
      %v9554 = vlaneseq
      %v9555 = vshrl.u32 %v9554, 7
      %v9556 = vsub.s32 %v9553, %v9555
      %v9557 = vrot.slane %v9549, %v9556
      %v9559 = vunpack.c.l.s4 1983009808
      %v9560 = vunpack.c.0.s8 %v9559
      %v9561 = vlaneseq
      %v9562 = vshrl.u32 %v9561, 7
      %v9563 = vsub.s32 %v9560, %v9562
      %v9564 = vrot.slane %v9550, %v9563
      %v9565 = vcombine.low %v9557, %v9564
      %v9566 = vcombine.low %v6494, %v6496
      %v9567 = vcombine.low %v6503, %v6429
      %v9569 = vunpack.c.l.s4 1983009808
      %v9570 = vunpack.c.0.s8 %v9569
      %v9571 = vlaneseq
      %v9572 = vshrl.u32 %v9571, 7
      %v9573 = vsub.s32 %v9570, %v9572
      %v9574 = vrot.slane %v9566, %v9573
      %v9576 = vunpack.c.l.s4 1983009808
      %v9577 = vunpack.c.0.s8 %v9576
      %v9578 = vlaneseq
      %v9579 = vshrl.u32 %v9578, 7
      %v9580 = vsub.s32 %v9577, %v9579
      %v9581 = vrot.slane %v9567, %v9580
      %v9582 = vcombine.low %v9574, %v9581
      %v9583 = vsel %vm459, %v9509, 0
      %v9585 = vsel %vm459, %v9510, 0
      %v9587 = vsel %vm459, %v9511, 0
      %v9589 = vsel %vm459, %v9512, 0
      %v9591 = vsel %vm459, %v9513, 0
      %v9593 = vsel %vm459, %v9514, 0
      %v9595 = vsel %vm459, %v9515, 0
      %v9597 = vsel %vm459, %v9516, 0
      %v9599 = vsel %vm459, %v9517, 0
      %v9601 = vsel %vm459, %v9518, 0
      %v9603 = vsel %vm459, %v9519, 0
      %v9605 = vsel %vm459, %v9520, 0
      %v9607 = vsel %vm459, %v9521, 0
      %v9609 = vsel %vm459, %v9522, 0
      %v9611 = vsel %vm459, %v9523, 0
      %v9613 = vsel %vm459, %v9524, 0
      %v9615 = vsel %vm459, %v9525, 0
      %v9617 = vsel %vm459, %v9526, 0
      %v9619 = vsel %vm459, %v9527, 0
      %v9621 = vsel %vm459, %v9528, 0
      %v9623 = vsel %vm459, %v9529, 0
      %v9625 = vsel %vm459, %v9530, 0
      %v9627 = vsel %vm459, %v9531, 0
      %v9629 = vsel %vm459, %v9532, 0
      %v9631 = vsel %vm459, %v9533, 0
      %v9633 = vsel %vm459, %v9534, 0
      %v9635 = vsel %vm459, %v9535, 0
      %v9637 = vsel %vm459, %v9536, 0
      %v9639 = vsel %vm459, %v9537, 0
      %v9641 = vsel %vm459, %v9538, 0
      %v9643 = vsel %vm459, %v9539, 0
      %v9645 = vsel %vm459, %v9548, 0
      %v9647 = vsel %vm459, %v9565, 0
      %v9649 = vsel %vm459, %v9582, 0
      %v9652 = vsel %vm532, %v9508, 0
      %9654 = vmatprep.subr.mxu0 0.0
      %9655 = vmatpush1.msra.mxu0 %v9652
      %9656 = vmatprep.subr.mxu0 0.0
      %9657 = vmatpush1.msra.mxu0 0.0
      %9658 = vmatprep.subr.mxu0 0.0
      %9659 = vmatpush1.msra.mxu0 0.0
      %9660 = vmatprep.subr.mxu0 0.0
      %9661 = vmatpush1.msra.mxu0 0.0
      %9662 = vmatprep.subr.mxu0 0.0
      %9663 = vmatpush1.msra.mxu0 0.0
      %9664 = vmatprep.subr.mxu0 0.0
      %9665 = vmatpush1.msra.mxu0 0.0
      %9666 = vmatprep.subr.mxu0 0.0
      %9667 = vmatpush1.msra.mxu0 0.0
      %9668 = vmatprep.subr.mxu0 0.0
      %9669 = vmatpush1.msra.mxu0 0.0
      %9670 = vmatprep.subr.mxu0 0.0
      %9671 = vmatpush1.msra.mxu0 0.0
      %9672 = vmatprep.subr.mxu0 0.0
      %9673 = vmatpush1.msra.mxu0 0.0
      %9674 = vmatprep.subr.mxu0 0.0
      %9675 = vmatpush1.msra.mxu0 0.0
      %9676 = vmatprep.subr.mxu0 0.0
      %9677 = vmatpush1.msra.mxu0 0.0
      %9678 = vmatprep.subr.mxu0 0.0
      %9679 = vmatpush1.msra.mxu0 0.0
      %9680 = vmatprep.subr.mxu0 0.0
      %9681 = vmatpush1.msra.mxu0 0.0
      %9682 = vmatprep.subr.mxu0 0.0
      %9683 = vmatpush1.msra.mxu0 0.0
      %9684 = vmatprep.subr.mxu0 0.0
      %9685 = vmatpush1.msra.mxu0 0.0
      %9686 = vmatprep.subr.mxu0 0.0
      %9687 = vmatpush1.msra.mxu0 0.0
      %9688 = vmatprep.subr.mxu0 0.0
      %9689 = vmatpush1.msra.mxu0 0.0
      %9690 = vmatprep.subr.mxu0 0.0
      %9691 = vmatpush1.msra.mxu0 0.0
      %9692 = vmatprep.subr.mxu0 0.0
      %9693 = vmatpush1.msra.mxu0 0.0
      %9694 = vmatprep.subr.mxu0 0.0
      %9695 = vmatpush1.msra.mxu0 0.0
      %9696 = vmatprep.subr.mxu0 0.0
      %9697 = vmatpush1.msra.mxu0 0.0
      %9698 = vmatprep.subr.mxu0 0.0
      %9699 = vmatpush1.msra.mxu0 0.0
      %9700 = vmatprep.subr.mxu0 0.0
      %9701 = vmatpush1.msra.mxu0 0.0
      %9702 = vmatprep.subr.mxu0 0.0
      %9703 = vmatpush1.msra.mxu0 0.0
      %9704 = vmatprep.subr.mxu0 0.0
      %9705 = vmatpush1.msra.mxu0 0.0
      %9706 = vmatprep.subr.mxu0 0.0
      %9707 = vmatpush1.msra.mxu0 0.0
      %9708 = vmatprep.subr.mxu0 0.0
      %9709 = vmatpush1.msra.mxu0 0.0
      %9710 = vmatprep.subr.mxu0 0.0
      %9711 = vmatpush1.msra.mxu0 0.0
      %9712 = vmatprep.subr.mxu0 0.0
      %9713 = vmatpush1.msra.mxu0 0.0
      %9714 = vmatprep.subr.mxu0 0.0
      %9715 = vmatpush1.msra.mxu0 0.0
      %9716 = vmatprep.subr.mxu0 0.0
      %9717 = vmatpush1.msra.mxu0 0.0
      %9718 = vmatprep.mubr.f32.mxu0 0.0
      %9719 = vmatmul.mubr.f32.gmra.mrb[0].mxu0 %v9583
      %v9720 = vpop.f32.mrb[0].mxu0
      %v9721 = vadd.f32 0.0, %v9720
      %v9722 = vpop.f32.mrb[0].mxu0
      %9723 = vmatprep.mubr.f32.mxu0 0.0
      %9724 = vmatmul.mubr.f32.gmra.mrb[0].mxu0 %v9585
      %v9725 = vpop.f32.mrb[0].mxu0
      %v9726 = vadd.f32 0.0, %v9725
      %v9727 = vpop.f32.mrb[0].mxu0
      %9728 = vmatprep.mubr.f32.mxu0 0.0
      %9729 = vmatmul.mubr.f32.gmra.mrb[0].mxu0 %v7487
      %v9730 = vpop.f32.mrb[0].mxu0
      %v9731 = vadd.f32 0.0, %v9730
      %v9732 = vpop.f32.mrb[0].mxu0
      %9733 = vmatprep.mubr.f32.mxu0 0.0
      %9734 = vmatmul.mubr.f32.gmra.mrb[0].mxu0 %v7489
      %v9735 = vpop.f32.mrb[0].mxu0
      %v9736 = vadd.f32 0.0, %v9735
      %v9737 = vpop.f32.mrb[0].mxu0
      %9738 = vmatprep.mubr.f32.mxu0 0.0
      %9739 = vmatmul.mubr.f32.gmra.mrb[0].mxu0 %v9587
      %v9740 = vpop.f32.mrb[0].mxu0
      %v9741 = vadd.f32 0.0, %v9740
      %v9742 = vpop.f32.mrb[0].mxu0
      %9743 = vmatprep.mubr.f32.mxu0 0.0
      %9744 = vmatmul.mubr.f32.gmra.mrb[0].mxu0 %v9589
      %v9745 = vpop.f32.mrb[0].mxu0
      %v9746 = vadd.f32 0.0, %v9745
      %v9747 = vpop.f32.mrb[0].mxu0
      %9748 = vmatprep.mubr.f32.mxu0 0.0
      %9749 = vmatmul.mubr.f32.gmra.mrb[0].mxu0 %v9591
      %v9750 = vpop.f32.mrb[0].mxu0
      %v9751 = vadd.f32 0.0, %v9750
      %v9752 = vpop.f32.mrb[0].mxu0
      %9753 = vmatprep.mubr.f32.mxu0 0.0
      %9754 = vmatmul.mubr.f32.gmra.mrb[0].mxu0 %v9593
      %v9755 = vpop.f32.mrb[0].mxu0
      %v9756 = vadd.f32 0.0, %v9755
      %v9757 = vpop.f32.mrb[0].mxu0
      %9758 = vmatprep.mubr.f32.mxu0 0.0
      %9759 = vmatmul.mubr.f32.gmra.mrb[0].mxu0 %v9595
      %v9760 = vpop.f32.mrb[0].mxu0
      %v9761 = vadd.f32 0.0, %v9760
      %v9762 = vpop.f32.mrb[0].mxu0
      %9763 = vmatprep.mubr.f32.mxu0 0.0
      %9764 = vmatmul.mubr.f32.gmra.mrb[0].mxu0 %v9597
      %v9765 = vpop.f32.mrb[0].mxu0
      %v9766 = vadd.f32 0.0, %v9765
      %v9767 = vpop.f32.mrb[0].mxu0
      %9768 = vmatprep.mubr.f32.mxu0 0.0
      %9769 = vmatmul.mubr.f32.gmra.mrb[0].mxu0 %v9599
      %v9770 = vpop.f32.mrb[0].mxu0
      %v9771 = vadd.f32 0.0, %v9770
      %v9772 = vpop.f32.mrb[0].mxu0
      %9773 = vmatprep.mubr.f32.mxu0 0.0
      %9774 = vmatmul.mubr.f32.gmra.mrb[0].mxu0 %v9601
      %v9775 = vpop.f32.mrb[0].mxu0
      %v9776 = vadd.f32 0.0, %v9775
      %v9777 = vpop.f32.mrb[0].mxu0
      %9778 = vmatprep.mubr.f32.mxu0 0.0
      %9779 = vmatmul.mubr.f32.gmra.mrb[0].mxu0 %v9603
      %v9780 = vpop.f32.mrb[0].mxu0
      %v9781 = vadd.f32 0.0, %v9780
      %v9782 = vpop.f32.mrb[0].mxu0
      %9783 = vmatprep.mubr.f32.mxu0 0.0
      %9784 = vmatmul.mubr.f32.gmra.mrb[0].mxu0 %v9605
      %v9785 = vpop.f32.mrb[0].mxu0
      %v9786 = vadd.f32 0.0, %v9785
      %v9787 = vpop.f32.mrb[0].mxu0
      %9788 = vmatprep.mubr.f32.mxu0 0.0
      %9789 = vmatmul.mubr.f32.gmra.mrb[0].mxu0 %v9607
      %v9790 = vpop.f32.mrb[0].mxu0
      %v9791 = vadd.f32 0.0, %v9790
      %v9792 = vpop.f32.mrb[0].mxu0
      %9793 = vmatprep.mubr.f32.mxu0 0.0
      %9794 = vmatmul.mubr.f32.gmra.mrb[0].mxu0 %v9609
      %v9795 = vpop.f32.mrb[0].mxu0
      %v9796 = vadd.f32 0.0, %v9795
      %v9797 = vpop.f32.mrb[0].mxu0
      %9798 = vmatprep.mubr.f32.mxu0 0.0
      %9799 = vmatmul.mubr.f32.gmra.mrb[0].mxu0 %v9611
      %v9800 = vpop.f32.mrb[0].mxu0
      %v9801 = vadd.f32 0.0, %v9800
      %v9802 = vpop.f32.mrb[0].mxu0
      %9803 = vmatprep.mubr.f32.mxu0 0.0
      %9804 = vmatmul.mubr.f32.gmra.mrb[0].mxu0 %v9613
      %v9805 = vpop.f32.mrb[0].mxu0
      %v9806 = vadd.f32 0.0, %v9805
      %v9807 = vpop.f32.mrb[0].mxu0
      %9808 = vmatprep.mubr.f32.mxu0 0.0
      %9809 = vmatmul.mubr.f32.gmra.mrb[0].mxu0 %v9615
      %v9810 = vpop.f32.mrb[0].mxu0
      %v9811 = vadd.f32 0.0, %v9810
      %v9812 = vpop.f32.mrb[0].mxu0
      %9813 = vmatprep.mubr.f32.mxu0 0.0
      %9814 = vmatmul.mubr.f32.gmra.mrb[0].mxu0 %v9617
      %v9815 = vpop.f32.mrb[0].mxu0
      %v9816 = vadd.f32 0.0, %v9815
      %v9817 = vpop.f32.mrb[0].mxu0
      %9818 = vmatprep.mubr.f32.mxu0 0.0
      %9819 = vmatmul.mubr.f32.gmra.mrb[0].mxu0 %v9619
      %v9820 = vpop.f32.mrb[0].mxu0
      %v9821 = vadd.f32 0.0, %v9820
      %v9822 = vpop.f32.mrb[0].mxu0
      %9823 = vmatprep.mubr.f32.mxu0 0.0
      %9824 = vmatmul.mubr.f32.gmra.mrb[0].mxu0 %v9621
      %v9825 = vpop.f32.mrb[0].mxu0
      %v9826 = vadd.f32 0.0, %v9825
      %v9827 = vpop.f32.mrb[0].mxu0
      %9828 = vmatprep.mubr.f32.mxu0 0.0
      %9829 = vmatmul.mubr.f32.gmra.mrb[0].mxu0 %v9623
      %v9830 = vpop.f32.mrb[0].mxu0
      %v9831 = vadd.f32 0.0, %v9830
      %v9832 = vpop.f32.mrb[0].mxu0
      %9833 = vmatprep.mubr.f32.mxu0 0.0
      %9834 = vmatmul.mubr.f32.gmra.mrb[0].mxu0 %v9625
      %v9835 = vpop.f32.mrb[0].mxu0
      %v9836 = vadd.f32 0.0, %v9835
      %v9837 = vpop.f32.mrb[0].mxu0
      %9838 = vmatprep.mubr.f32.mxu0 0.0
      %9839 = vmatmul.mubr.f32.gmra.mrb[0].mxu0 %v9627
      %v9840 = vpop.f32.mrb[0].mxu0
      %v9841 = vadd.f32 0.0, %v9840
      %v9842 = vpop.f32.mrb[0].mxu0
      %9843 = vmatprep.mubr.f32.mxu0 0.0
      %9844 = vmatmul.mubr.f32.gmra.mrb[0].mxu0 %v9629
      %v9845 = vpop.f32.mrb[0].mxu0
      %v9846 = vadd.f32 0.0, %v9845
      %v9847 = vpop.f32.mrb[0].mxu0
      %9848 = vmatprep.mubr.f32.mxu0 0.0
      %9849 = vmatmul.mubr.f32.gmra.mrb[0].mxu0 %v9631
      %v9850 = vpop.f32.mrb[0].mxu0
      %v9851 = vadd.f32 0.0, %v9850
      %v9852 = vpop.f32.mrb[0].mxu0
      %9853 = vmatprep.mubr.f32.mxu0 0.0
      %9854 = vmatmul.mubr.f32.gmra.mrb[0].mxu0 %v9633
      %v9855 = vpop.f32.mrb[0].mxu0
      %v9856 = vadd.f32 0.0, %v9855
      %v9857 = vpop.f32.mrb[0].mxu0
      %9858 = vmatprep.mubr.f32.mxu0 0.0
      %9859 = vmatmul.mubr.f32.gmra.mrb[0].mxu0 %v9635
      %v9860 = vpop.f32.mrb[0].mxu0
      %v9861 = vadd.f32 0.0, %v9860
      %v9862 = vpop.f32.mrb[0].mxu0
      %9863 = vmatprep.mubr.f32.mxu0 0.0
      %9864 = vmatmul.mubr.f32.gmra.mrb[0].mxu0 %v9637
      %v9865 = vpop.f32.mrb[0].mxu0
      %v9866 = vadd.f32 0.0, %v9865
      %v9867 = vpop.f32.mrb[0].mxu0
      %9868 = vmatprep.mubr.f32.mxu0 0.0
      %9869 = vmatmul.mubr.f32.gmra.mrb[0].mxu0 %v9639
      %v9870 = vpop.f32.mrb[0].mxu0
      %v9871 = vadd.f32 0.0, %v9870
      %v9872 = vpop.f32.mrb[0].mxu0
      %9873 = vmatprep.mubr.f32.mxu0 0.0
      %9874 = vmatmul.mubr.f32.gmra.mrb[0].mxu0 %v9641
      %v9875 = vpop.f32.mrb[0].mxu0
      %v9876 = vadd.f32 0.0, %v9875
      %v9877 = vpop.f32.mrb[0].mxu0
      %9878 = vmatprep.mubr.f32.mxu0 0.0
      %9879 = vmatmul.mubr.f32.gmra.mrb[0].mxu0 %v9643
      %v9880 = vpop.f32.mrb[0].mxu0
      %v9881 = vadd.f32 0.0, %v9880
      %v9882 = vpop.f32.mrb[0].mxu0
      %9883 = vmatprep.mubr.f32.mxu0 0.0
      %9884 = vmatmul.mubr.f32.gmra.mrb[0].mxu0 %v9645
      %v9885 = vpop.f32.mrb[0].mxu0
      %v9886 = vadd.f32 0.0, %v9885
      %v9887 = vpop.f32.mrb[0].mxu0
      %9888 = vmatprep.mubr.f32.mxu0 0.0
      %9889 = vmatmul.mubr.f32.gmra.mrb[0].mxu0 %v9647
      %v9890 = vpop.f32.mrb[0].mxu0
      %v9891 = vadd.f32 0.0, %v9890
      %v9892 = vpop.f32.mrb[0].mxu0
      %9893 = vmatprep.mubr.f32.mxu0 0.0
      %9894 = vmatmul.mubr.f32.gmra.mrb[0].mxu0 %v9649
      %v9895 = vpop.f32.mrb[0].mxu0
      %v9896 = vadd.f32 0.0, %v9895
      %v9897 = vpop.f32.mrb[0].mxu0
      %9898 = vdwg.mxu0
      %v9899 = vadd.f32 %v9471, %v9721
      %v9900 = vadd.f32 %v9472, %v9726
      %v9901 = vadd.f32 %v9473, %v9731
      %v9902 = vadd.f32 %v9474, %v9736
      %v9903 = vadd.f32 %v9475, %v9741
      %v9904 = vadd.f32 %v9476, %v9746
      %v9905 = vadd.f32 %v9477, %v9751
      %v9906 = vadd.f32 %v9478, %v9756
      %v9907 = vadd.f32 %v9479, %v9761
      %v9908 = vadd.f32 %v9480, %v9766
      %v9909 = vadd.f32 %v9481, %v9771
      %v9910 = vadd.f32 %v9482, %v9776
      %v9911 = vadd.f32 %v9483, %v9781
      %v9912 = vadd.f32 %v9484, %v9786
      %v9913 = vadd.f32 %v9485, %v9791
      %v9914 = vadd.f32 %v9486, %v9796
      %v9915 = vadd.f32 %v9487, %v9801
      %v9916 = vadd.f32 %v9488, %v9806
      %v9917 = vadd.f32 %v9489, %v9811
      %v9918 = vadd.f32 %v9490, %v9816
      %v9919 = vadd.f32 %v9491, %v9821
      %v9920 = vadd.f32 %v9492, %v9826
      %v9921 = vadd.f32 %v9493, %v9831
      %v9922 = vadd.f32 %v9494, %v9836
      %v9923 = vadd.f32 %v9495, %v9841
      %v9924 = vadd.f32 %v9496, %v9846
      %v9925 = vadd.f32 %v9497, %v9851
      %v9926 = vadd.f32 %v9498, %v9856
      %v9927 = vadd.f32 %v9499, %v9861
      %v9928 = vadd.f32 %v9500, %v9866
      %v9929 = vadd.f32 %v9501, %v9871
      %v9930 = vadd.f32 %v9502, %v9876
      %v9931 = vadd.f32 %v9503, %v9881
      %v9932 = vadd.f32 %v9504, %v9886
      %v9933 = vadd.f32 %v9505, %v9891
      %v9934 = vadd.f32 %v9506, %v9896
      %s9935 = scalar_lea.vmem %s3, 24
      %v9936 = vld [vmem:[%s9935] sm:$0xf]
      %v9938 = vsel %vm532, %v9936, 0
      %9940 = vmatprep.subr.mxu0 0.0
      %9941 = vmatpush1.msra.mxu0 %v9938
      %9942 = vmatprep.subr.mxu0 0.0
      %9943 = vmatpush1.msra.mxu0 0.0
      %9944 = vmatprep.subr.mxu0 0.0
      %9945 = vmatpush1.msra.mxu0 0.0
      %9946 = vmatprep.subr.mxu0 0.0
      %9947 = vmatpush1.msra.mxu0 0.0
      %9948 = vmatprep.subr.mxu0 0.0
      %9949 = vmatpush1.msra.mxu0 0.0
      %9950 = vmatprep.subr.mxu0 0.0
      %9951 = vmatpush1.msra.mxu0 0.0
      %9952 = vmatprep.subr.mxu0 0.0
      %9953 = vmatpush1.msra.mxu0 0.0
      %9954 = vmatprep.subr.mxu0 0.0
      %9955 = vmatpush1.msra.mxu0 0.0
      %9956 = vmatprep.subr.mxu0 0.0
      %9957 = vmatpush1.msra.mxu0 0.0
      %9958 = vmatprep.subr.mxu0 0.0
      %9959 = vmatpush1.msra.mxu0 0.0
      %9960 = vmatprep.subr.mxu0 0.0
      %9961 = vmatpush1.msra.mxu0 0.0
      %9962 = vmatprep.subr.mxu0 0.0
      %9963 = vmatpush1.msra.mxu0 0.0
      %9964 = vmatprep.subr.mxu0 0.0
      %9965 = vmatpush1.msra.mxu0 0.0
      %9966 = vmatprep.subr.mxu0 0.0
      %9967 = vmatpush1.msra.mxu0 0.0
      %9968 = vmatprep.subr.mxu0 0.0
      %9969 = vmatpush1.msra.mxu0 0.0
      %9970 = vmatprep.subr.mxu0 0.0
      %9971 = vmatpush1.msra.mxu0 0.0
      %9972 = vmatprep.subr.mxu0 0.0
      %9973 = vmatpush1.msra.mxu0 0.0
      %9974 = vmatprep.subr.mxu0 0.0
      %9975 = vmatpush1.msra.mxu0 0.0
      %9976 = vmatprep.subr.mxu0 0.0
      %9977 = vmatpush1.msra.mxu0 0.0
      %9978 = vmatprep.subr.mxu0 0.0
      %9979 = vmatpush1.msra.mxu0 0.0
      %9980 = vmatprep.subr.mxu0 0.0
      %9981 = vmatpush1.msra.mxu0 0.0
      %9982 = vmatprep.subr.mxu0 0.0
      %9983 = vmatpush1.msra.mxu0 0.0
      %9984 = vmatprep.subr.mxu0 0.0
      %9985 = vmatpush1.msra.mxu0 0.0
      %9986 = vmatprep.subr.mxu0 0.0
      %9987 = vmatpush1.msra.mxu0 0.0
      %9988 = vmatprep.subr.mxu0 0.0
      %9989 = vmatpush1.msra.mxu0 0.0
      %9990 = vmatprep.subr.mxu0 0.0
      %9991 = vmatpush1.msra.mxu0 0.0
      %9992 = vmatprep.subr.mxu0 0.0
      %9993 = vmatpush1.msra.mxu0 0.0
      %9994 = vmatprep.subr.mxu0 0.0
      %9995 = vmatpush1.msra.mxu0 0.0
      %9996 = vmatprep.subr.mxu0 0.0
      %9997 = vmatpush1.msra.mxu0 0.0
      %9998 = vmatprep.subr.mxu0 0.0
      %9999 = vmatpush1.msra.mxu0 0.0
      %10000 = vmatprep.subr.mxu0 0.0
      %10001 = vmatpush1.msra.mxu0 0.0
      %10002 = vmatprep.subr.mxu0 0.0
      %10003 = vmatpush1.msra.mxu0 0.0
      %10004 = vmatprep.mubr.f32.mxu0 0.0
      %10005 = vmatmul.mubr.f32.gmra.mrb[0].mxu0 %v7487
      %v10006 = vpop.f32.mrb[0].mxu0
      %v10007 = vadd.f32 0.0, %v10006
      %v10008 = vpop.f32.mrb[0].mxu0
      %10009 = vmatprep.mubr.f32.mxu0 0.0
      %10010 = vmatmul.mubr.f32.gmra.mrb[0].mxu0 %v7489
      %v10011 = vpop.f32.mrb[0].mxu0
      %v10012 = vadd.f32 0.0, %v10011
      %v10013 = vpop.f32.mrb[0].mxu0
      %10014 = vmatprep.mubr.f32.mxu0 0.0
      %10015 = vmatmul.mubr.f32.gmra.mrb[0].mxu0 %v9587
      %v10016 = vpop.f32.mrb[0].mxu0
      %v10017 = vadd.f32 0.0, %v10016
      %v10018 = vpop.f32.mrb[0].mxu0
      %10019 = vmatprep.mubr.f32.mxu0 0.0
      %10020 = vmatmul.mubr.f32.gmra.mrb[0].mxu0 %v9589
      %v10021 = vpop.f32.mrb[0].mxu0
      %v10022 = vadd.f32 0.0, %v10021
      %v10023 = vpop.f32.mrb[0].mxu0
      %10024 = vmatprep.mubr.f32.mxu0 0.0
      %10025 = vmatmul.mubr.f32.gmra.mrb[0].mxu0 %v9591
      %v10026 = vpop.f32.mrb[0].mxu0
      %v10027 = vadd.f32 0.0, %v10026
      %v10028 = vpop.f32.mrb[0].mxu0
      %10029 = vmatprep.mubr.f32.mxu0 0.0
      %10030 = vmatmul.mubr.f32.gmra.mrb[0].mxu0 %v9593
      %v10031 = vpop.f32.mrb[0].mxu0
      %v10032 = vadd.f32 0.0, %v10031
      %v10033 = vpop.f32.mrb[0].mxu0
      %10034 = vmatprep.mubr.f32.mxu0 0.0
      %10035 = vmatmul.mubr.f32.gmra.mrb[0].mxu0 %v9595
      %v10036 = vpop.f32.mrb[0].mxu0
      %v10037 = vadd.f32 0.0, %v10036
      %v10038 = vpop.f32.mrb[0].mxu0
      %10039 = vmatprep.mubr.f32.mxu0 0.0
      %10040 = vmatmul.mubr.f32.gmra.mrb[0].mxu0 %v9597
      %v10041 = vpop.f32.mrb[0].mxu0
      %v10042 = vadd.f32 0.0, %v10041
      %v10043 = vpop.f32.mrb[0].mxu0
      %10044 = vmatprep.mubr.f32.mxu0 0.0
      %10045 = vmatmul.mubr.f32.gmra.mrb[0].mxu0 %v9599
      %v10046 = vpop.f32.mrb[0].mxu0
      %v10047 = vadd.f32 0.0, %v10046
      %v10048 = vpop.f32.mrb[0].mxu0
      %10049 = vmatprep.mubr.f32.mxu0 0.0
      %10050 = vmatmul.mubr.f32.gmra.mrb[0].mxu0 %v9601
      %v10051 = vpop.f32.mrb[0].mxu0
      %v10052 = vadd.f32 0.0, %v10051
      %v10053 = vpop.f32.mrb[0].mxu0
      %10054 = vmatprep.mubr.f32.mxu0 0.0
      %10055 = vmatmul.mubr.f32.gmra.mrb[0].mxu0 %v9603
      %v10056 = vpop.f32.mrb[0].mxu0
      %v10057 = vadd.f32 0.0, %v10056
      %v10058 = vpop.f32.mrb[0].mxu0
      %10059 = vmatprep.mubr.f32.mxu0 0.0
      %10060 = vmatmul.mubr.f32.gmra.mrb[0].mxu0 %v9605
      %v10061 = vpop.f32.mrb[0].mxu0
      %v10062 = vadd.f32 0.0, %v10061
      %v10063 = vpop.f32.mrb[0].mxu0
      %10064 = vmatprep.mubr.f32.mxu0 0.0
      %10065 = vmatmul.mubr.f32.gmra.mrb[0].mxu0 %v9607
      %v10066 = vpop.f32.mrb[0].mxu0
      %v10067 = vadd.f32 0.0, %v10066
      %v10068 = vpop.f32.mrb[0].mxu0
      %10069 = vmatprep.mubr.f32.mxu0 0.0
      %10070 = vmatmul.mubr.f32.gmra.mrb[0].mxu0 %v9609
      %v10071 = vpop.f32.mrb[0].mxu0
      %v10072 = vadd.f32 0.0, %v10071
      %v10073 = vpop.f32.mrb[0].mxu0
      %10074 = vmatprep.mubr.f32.mxu0 0.0
      %10075 = vmatmul.mubr.f32.gmra.mrb[0].mxu0 %v9611
      %v10076 = vpop.f32.mrb[0].mxu0
      %v10077 = vadd.f32 0.0, %v10076
      %v10078 = vpop.f32.mrb[0].mxu0
      %10079 = vmatprep.mubr.f32.mxu0 0.0
      %10080 = vmatmul.mubr.f32.gmra.mrb[0].mxu0 %v9613
      %v10081 = vpop.f32.mrb[0].mxu0
      %v10082 = vadd.f32 0.0, %v10081
      %v10083 = vpop.f32.mrb[0].mxu0
      %10084 = vmatprep.mubr.f32.mxu0 0.0
      %10085 = vmatmul.mubr.f32.gmra.mrb[0].mxu0 %v9615
      %v10086 = vpop.f32.mrb[0].mxu0
      %v10087 = vadd.f32 0.0, %v10086
      %v10088 = vpop.f32.mrb[0].mxu0
      %10089 = vmatprep.mubr.f32.mxu0 0.0
      %10090 = vmatmul.mubr.f32.gmra.mrb[0].mxu0 %v9617
      %v10091 = vpop.f32.mrb[0].mxu0
      %v10092 = vadd.f32 0.0, %v10091
      %v10093 = vpop.f32.mrb[0].mxu0
      %10094 = vmatprep.mubr.f32.mxu0 0.0
      %10095 = vmatmul.mubr.f32.gmra.mrb[0].mxu0 %v9619
      %v10096 = vpop.f32.mrb[0].mxu0
      %v10097 = vadd.f32 0.0, %v10096
      %v10098 = vpop.f32.mrb[0].mxu0
      %10099 = vmatprep.mubr.f32.mxu0 0.0
      %10100 = vmatmul.mubr.f32.gmra.mrb[0].mxu0 %v9621
      %v10101 = vpop.f32.mrb[0].mxu0
      %v10102 = vadd.f32 0.0, %v10101
      %v10103 = vpop.f32.mrb[0].mxu0
      %10104 = vmatprep.mubr.f32.mxu0 0.0
      %10105 = vmatmul.mubr.f32.gmra.mrb[0].mxu0 %v9623
      %v10106 = vpop.f32.mrb[0].mxu0
      %v10107 = vadd.f32 0.0, %v10106
      %v10108 = vpop.f32.mrb[0].mxu0
      %10109 = vmatprep.mubr.f32.mxu0 0.0
      %10110 = vmatmul.mubr.f32.gmra.mrb[0].mxu0 %v9625
      %v10111 = vpop.f32.mrb[0].mxu0
      %v10112 = vadd.f32 0.0, %v10111
      %v10113 = vpop.f32.mrb[0].mxu0
      %10114 = vmatprep.mubr.f32.mxu0 0.0
      %10115 = vmatmul.mubr.f32.gmra.mrb[0].mxu0 %v9627
      %v10116 = vpop.f32.mrb[0].mxu0
      %v10117 = vadd.f32 0.0, %v10116
      %v10118 = vpop.f32.mrb[0].mxu0
      %10119 = vmatprep.mubr.f32.mxu0 0.0
      %10120 = vmatmul.mubr.f32.gmra.mrb[0].mxu0 %v9629
      %v10121 = vpop.f32.mrb[0].mxu0
      %v10122 = vadd.f32 0.0, %v10121
      %v10123 = vpop.f32.mrb[0].mxu0
      %10124 = vmatprep.mubr.f32.mxu0 0.0
      %10125 = vmatmul.mubr.f32.gmra.mrb[0].mxu0 %v9631
      %v10126 = vpop.f32.mrb[0].mxu0
      %v10127 = vadd.f32 0.0, %v10126
      %v10128 = vpop.f32.mrb[0].mxu0
      %10129 = vmatprep.mubr.f32.mxu0 0.0
      %10130 = vmatmul.mubr.f32.gmra.mrb[0].mxu0 %v9633
      %v10131 = vpop.f32.mrb[0].mxu0
      %v10132 = vadd.f32 0.0, %v10131
      %v10133 = vpop.f32.mrb[0].mxu0
      %10134 = vmatprep.mubr.f32.mxu0 0.0
      %10135 = vmatmul.mubr.f32.gmra.mrb[0].mxu0 %v9635
      %v10136 = vpop.f32.mrb[0].mxu0
      %v10137 = vadd.f32 0.0, %v10136
      %v10138 = vpop.f32.mrb[0].mxu0
      %10139 = vmatprep.mubr.f32.mxu0 0.0
      %10140 = vmatmul.mubr.f32.gmra.mrb[0].mxu0 %v9637
      %v10141 = vpop.f32.mrb[0].mxu0
      %v10142 = vadd.f32 0.0, %v10141
      %v10143 = vpop.f32.mrb[0].mxu0
      %10144 = vmatprep.mubr.f32.mxu0 0.0
      %10145 = vmatmul.mubr.f32.gmra.mrb[0].mxu0 %v9639
      %v10146 = vpop.f32.mrb[0].mxu0
      %v10147 = vadd.f32 0.0, %v10146
      %v10148 = vpop.f32.mrb[0].mxu0
      %10149 = vmatprep.mubr.f32.mxu0 0.0
      %10150 = vmatmul.mubr.f32.gmra.mrb[0].mxu0 %v9641
      %v10151 = vpop.f32.mrb[0].mxu0
      %v10152 = vadd.f32 0.0, %v10151
      %v10153 = vpop.f32.mrb[0].mxu0
      %10154 = vmatprep.mubr.f32.mxu0 0.0
      %10155 = vmatmul.mubr.f32.gmra.mrb[0].mxu0 %v9643
      %v10156 = vpop.f32.mrb[0].mxu0
      %v10157 = vadd.f32 0.0, %v10156
      %v10158 = vpop.f32.mrb[0].mxu0
      %10159 = vmatprep.mubr.f32.mxu0 0.0
      %10160 = vmatmul.mubr.f32.gmra.mrb[0].mxu0 %v9645
      %v10161 = vpop.f32.mrb[0].mxu0
      %v10162 = vadd.f32 0.0, %v10161
      %v10163 = vpop.f32.mrb[0].mxu0
      %10164 = vmatprep.mubr.f32.mxu0 0.0
      %10165 = vmatmul.mubr.f32.gmra.mrb[0].mxu0 %v9647
      %v10166 = vpop.f32.mrb[0].mxu0
      %v10167 = vadd.f32 0.0, %v10166
      %v10168 = vpop.f32.mrb[0].mxu0
      %10169 = vmatprep.mubr.f32.mxu0 0.0
      %10170 = vmatmul.mubr.f32.gmra.mrb[0].mxu0 %v9649
      %v10171 = vpop.f32.mrb[0].mxu0
      %v10172 = vadd.f32 0.0, %v10171
      %v10173 = vpop.f32.mrb[0].mxu0
      %10174 = vmatprep.mubr.f32.mxu0 0.0
      %10175 = vmatmul.mubr.f32.gmra.mrb[0].mxu0 %v7555
      %v10176 = vpop.f32.mrb[0].mxu0
      %v10177 = vadd.f32 0.0, %v10176
      %v10178 = vpop.f32.mrb[0].mxu0
      %10179 = vmatprep.mubr.f32.mxu0 0.0
      %10180 = vmatmul.mubr.f32.gmra.mrb[0].mxu0 %v7557
      %v10181 = vpop.f32.mrb[0].mxu0
      %v10182 = vadd.f32 0.0, %v10181
      %v10183 = vpop.f32.mrb[0].mxu0
      %10184 = vdwg.mxu0
      %v10185 = vadd.f32 %v9899, %v10007
      %v10186 = vadd.f32 %v9900, %v10012
      %v10187 = vadd.f32 %v9901, %v10017
      %v10188 = vadd.f32 %v9902, %v10022
      %v10189 = vadd.f32 %v9903, %v10027
      %v10190 = vadd.f32 %v9904, %v10032
      %v10191 = vadd.f32 %v9905, %v10037
      %v10192 = vadd.f32 %v9906, %v10042
      %v10193 = vadd.f32 %v9907, %v10047
      %v10194 = vadd.f32 %v9908, %v10052
      %v10195 = vadd.f32 %v9909, %v10057
      %v10196 = vadd.f32 %v9910, %v10062
      %v10197 = vadd.f32 %v9911, %v10067
      %v10198 = vadd.f32 %v9912, %v10072
      %v10199 = vadd.f32 %v9913, %v10077
      %v10200 = vadd.f32 %v9914, %v10082
      %v10201 = vadd.f32 %v9915, %v10087
      %v10202 = vadd.f32 %v9916, %v10092
      %v10203 = vadd.f32 %v9917, %v10097
      %v10204 = vadd.f32 %v9918, %v10102
      %v10205 = vadd.f32 %v9919, %v10107
      %v10206 = vadd.f32 %v9920, %v10112
      %v10207 = vadd.f32 %v9921, %v10117
      %v10208 = vadd.f32 %v9922, %v10122
      %v10209 = vadd.f32 %v9923, %v10127
      %v10210 = vadd.f32 %v9924, %v10132
      %v10211 = vadd.f32 %v9925, %v10137
      %v10212 = vadd.f32 %v9926, %v10142
      %v10213 = vadd.f32 %v9927, %v10147
      %v10214 = vadd.f32 %v9928, %v10152
      %v10215 = vadd.f32 %v9929, %v10157
      %v10216 = vadd.f32 %v9930, %v10162
      %v10217 = vadd.f32 %v9931, %v10167
      %v10218 = vadd.f32 %v9932, %v10172
      %v10219 = vadd.f32 %v9933, %v10177
      %v10220 = vadd.f32 %v9934, %v10182
      %s10221 = scalar_lea.vmem %s3, 28
      %v10222 = vld [vmem:[%s10221] sm:$0xf]
      %v10223 = vrot.slane %v9511, 1
      %v10224 = vsel %vm385, %v7095, %v10223
      %v10225 = vrot.slane %v9512, 1
      %v10226 = vsel %vm385, %v10223, %v10225
      %v10227 = vrot.slane %v9513, 1
      %v10228 = vsel %vm385, %v10225, %v10227
      %v10229 = vrot.slane %v9514, 1
      %v10230 = vsel %vm385, %v10227, %v10229
      %v10231 = vrot.slane %v9515, 1
      %v10232 = vsel %vm385, %v10229, %v10231
      %v10233 = vrot.slane %v9516, 1
      %v10234 = vsel %vm385, %v10231, %v10233
      %v10235 = vrot.slane %v9517, 1
      %v10236 = vsel %vm385, %v10233, %v10235
      %v10237 = vrot.slane %v9518, 1
      %v10238 = vsel %vm385, %v10235, %v10237
      %v10239 = vrot.slane %v9519, 1
      %v10240 = vsel %vm385, %v10237, %v10239
      %v10241 = vrot.slane %v9520, 1
      %v10242 = vsel %vm385, %v10239, %v10241
      %v10243 = vrot.slane %v9521, 1
      %v10244 = vsel %vm385, %v10241, %v10243
      %v10245 = vrot.slane %v9522, 1
      %v10246 = vsel %vm385, %v10243, %v10245
      %v10247 = vrot.slane %v9523, 1
      %v10248 = vsel %vm385, %v10245, %v10247
      %v10249 = vrot.slane %v9524, 1
      %v10250 = vsel %vm385, %v10247, %v10249
      %v10251 = vrot.slane %v9525, 1
      %v10252 = vsel %vm385, %v10249, %v10251
      %v10253 = vrot.slane %v9526, 1
      %v10254 = vsel %vm385, %v10251, %v10253
      %v10255 = vrot.slane %v9527, 1
      %v10256 = vsel %vm385, %v10253, %v10255
      %v10257 = vrot.slane %v9528, 1
      %v10258 = vsel %vm385, %v10255, %v10257
      %v10259 = vrot.slane %v9529, 1
      %v10260 = vsel %vm385, %v10257, %v10259
      %v10261 = vrot.slane %v9530, 1
      %v10262 = vsel %vm385, %v10259, %v10261
      %v10263 = vrot.slane %v9531, 1
      %v10264 = vsel %vm385, %v10261, %v10263
      %v10265 = vrot.slane %v9532, 1
      %v10266 = vsel %vm385, %v10263, %v10265
      %v10267 = vrot.slane %v9533, 1
      %v10268 = vsel %vm385, %v10265, %v10267
      %v10269 = vrot.slane %v9534, 1
      %v10270 = vsel %vm385, %v10267, %v10269
      %v10271 = vrot.slane %v9535, 1
      %v10272 = vsel %vm385, %v10269, %v10271
      %v10273 = vrot.slane %v9536, 1
      %v10274 = vsel %vm385, %v10271, %v10273
      %v10275 = vrot.slane %v9537, 1
      %v10276 = vsel %vm385, %v10273, %v10275
      %v10277 = vrot.slane %v9538, 1
      %v10278 = vsel %vm385, %v10275, %v10277
      %v10279 = vrot.slane %v9539, 1
      %v10280 = vsel %vm385, %v10277, %v10279
      %v10281 = vrot.slane %v9548, 1
      %v10282 = vsel %vm385, %v10279, %v10281
      %v10283 = vrot.slane %v9565, 1
      %v10284 = vsel %vm385, %v10281, %v10283
      %v10285 = vrot.slane %v9582, 1
      %v10286 = vsel %vm385, %v10283, %v10285
      %v10287 = vsel %vm385, %v10285, %v7161
      %v10288 = vsel %vm385, %v7163, %v9149
      %v10289 = vsel %vm459, %v10224, 0
      %v10291 = vsel %vm459, %v10226, 0
      %v10293 = vsel %vm459, %v10228, 0
      %v10295 = vsel %vm459, %v10230, 0
      %v10297 = vsel %vm459, %v10232, 0
      %v10299 = vsel %vm459, %v10234, 0
      %v10301 = vsel %vm459, %v10236, 0
      %v10303 = vsel %vm459, %v10238, 0
      %v10305 = vsel %vm459, %v10240, 0
      %v10307 = vsel %vm459, %v10242, 0
      %v10309 = vsel %vm459, %v10244, 0
      %v10311 = vsel %vm459, %v10246, 0
      %v10313 = vsel %vm459, %v10248, 0
      %v10315 = vsel %vm459, %v10250, 0
      %v10317 = vsel %vm459, %v10252, 0
      %v10319 = vsel %vm459, %v10254, 0
      %v10321 = vsel %vm459, %v10256, 0
      %v10323 = vsel %vm459, %v10258, 0
      %v10325 = vsel %vm459, %v10260, 0
      %v10327 = vsel %vm459, %v10262, 0
      %v10329 = vsel %vm459, %v10264, 0
      %v10331 = vsel %vm459, %v10266, 0
      %v10333 = vsel %vm459, %v10268, 0
      %v10335 = vsel %vm459, %v10270, 0
      %v10337 = vsel %vm459, %v10272, 0
      %v10339 = vsel %vm459, %v10274, 0
      %v10341 = vsel %vm459, %v10276, 0
      %v10343 = vsel %vm459, %v10278, 0
      %v10345 = vsel %vm459, %v10280, 0
      %v10347 = vsel %vm459, %v10282, 0
      %v10349 = vsel %vm459, %v10284, 0
      %v10351 = vsel %vm459, %v10286, 0
      %v10353 = vsel %vm459, %v10287, 0
      %v10355 = vsel %vm459, %v10288, 0
      %v10358 = vsel %vm532, %v10222, 0
      %10360 = vmatprep.subr.mxu0 0.0
      %10361 = vmatpush1.msra.mxu0 %v10358
      %10362 = vmatprep.subr.mxu0 0.0
      %10363 = vmatpush1.msra.mxu0 0.0
      %10364 = vmatprep.subr.mxu0 0.0
      %10365 = vmatpush1.msra.mxu0 0.0
      %10366 = vmatprep.subr.mxu0 0.0
      %10367 = vmatpush1.msra.mxu0 0.0
      %10368 = vmatprep.subr.mxu0 0.0
      %10369 = vmatpush1.msra.mxu0 0.0
      %10370 = vmatprep.subr.mxu0 0.0
      %10371 = vmatpush1.msra.mxu0 0.0
      %10372 = vmatprep.subr.mxu0 0.0
      %10373 = vmatpush1.msra.mxu0 0.0
      %10374 = vmatprep.subr.mxu0 0.0
      %10375 = vmatpush1.msra.mxu0 0.0
      %10376 = vmatprep.subr.mxu0 0.0
      %10377 = vmatpush1.msra.mxu0 0.0
      %10378 = vmatprep.subr.mxu0 0.0
      %10379 = vmatpush1.msra.mxu0 0.0
      %10380 = vmatprep.subr.mxu0 0.0
      %10381 = vmatpush1.msra.mxu0 0.0
      %10382 = vmatprep.subr.mxu0 0.0
      %10383 = vmatpush1.msra.mxu0 0.0
      %10384 = vmatprep.subr.mxu0 0.0
      %10385 = vmatpush1.msra.mxu0 0.0
      %10386 = vmatprep.subr.mxu0 0.0
      %10387 = vmatpush1.msra.mxu0 0.0
      %10388 = vmatprep.subr.mxu0 0.0
      %10389 = vmatpush1.msra.mxu0 0.0
      %10390 = vmatprep.subr.mxu0 0.0
      %10391 = vmatpush1.msra.mxu0 0.0
      %10392 = vmatprep.subr.mxu0 0.0
      %10393 = vmatpush1.msra.mxu0 0.0
      %10394 = vmatprep.subr.mxu0 0.0
      %10395 = vmatpush1.msra.mxu0 0.0
      %10396 = vmatprep.subr.mxu0 0.0
      %10397 = vmatpush1.msra.mxu0 0.0
      %10398 = vmatprep.subr.mxu0 0.0
      %10399 = vmatpush1.msra.mxu0 0.0
      %10400 = vmatprep.subr.mxu0 0.0
      %10401 = vmatpush1.msra.mxu0 0.0
      %10402 = vmatprep.subr.mxu0 0.0
      %10403 = vmatpush1.msra.mxu0 0.0
      %10404 = vmatprep.subr.mxu0 0.0
      %10405 = vmatpush1.msra.mxu0 0.0
      %10406 = vmatprep.subr.mxu0 0.0
      %10407 = vmatpush1.msra.mxu0 0.0
      %10408 = vmatprep.subr.mxu0 0.0
      %10409 = vmatpush1.msra.mxu0 0.0
      %10410 = vmatprep.subr.mxu0 0.0
      %10411 = vmatpush1.msra.mxu0 0.0
      %10412 = vmatprep.subr.mxu0 0.0
      %10413 = vmatpush1.msra.mxu0 0.0
      %10414 = vmatprep.subr.mxu0 0.0
      %10415 = vmatpush1.msra.mxu0 0.0
      %10416 = vmatprep.subr.mxu0 0.0
      %10417 = vmatpush1.msra.mxu0 0.0
      %10418 = vmatprep.subr.mxu0 0.0
      %10419 = vmatpush1.msra.mxu0 0.0
      %10420 = vmatprep.subr.mxu0 0.0
      %10421 = vmatpush1.msra.mxu0 0.0
      %10422 = vmatprep.subr.mxu0 0.0
      %10423 = vmatpush1.msra.mxu0 0.0
      %10424 = vmatprep.mubr.f32.mxu0 0.0
      %10425 = vmatmul.mubr.f32.gmra.mrb[0].mxu0 %v7167
      %v10426 = vpop.f32.mrb[0].mxu0
      %v10427 = vadd.f32 0.0, %v10426
      %v10428 = vpop.f32.mrb[0].mxu0
      %10429 = vmatprep.mubr.f32.mxu0 0.0
      %10430 = vmatmul.mubr.f32.gmra.mrb[0].mxu0 %v10289
      %v10431 = vpop.f32.mrb[0].mxu0
      %v10432 = vadd.f32 0.0, %v10431
      %v10433 = vpop.f32.mrb[0].mxu0
      %10434 = vmatprep.mubr.f32.mxu0 0.0
      %10435 = vmatmul.mubr.f32.gmra.mrb[0].mxu0 %v10291
      %v10436 = vpop.f32.mrb[0].mxu0
      %v10437 = vadd.f32 0.0, %v10436
      %v10438 = vpop.f32.mrb[0].mxu0
      %10439 = vmatprep.mubr.f32.mxu0 0.0
      %10440 = vmatmul.mubr.f32.gmra.mrb[0].mxu0 %v10293
      %v10441 = vpop.f32.mrb[0].mxu0
      %v10442 = vadd.f32 0.0, %v10441
      %v10443 = vpop.f32.mrb[0].mxu0
      %10444 = vmatprep.mubr.f32.mxu0 0.0
      %10445 = vmatmul.mubr.f32.gmra.mrb[0].mxu0 %v10295
      %v10446 = vpop.f32.mrb[0].mxu0
      %v10447 = vadd.f32 0.0, %v10446
      %v10448 = vpop.f32.mrb[0].mxu0
      %10449 = vmatprep.mubr.f32.mxu0 0.0
      %10450 = vmatmul.mubr.f32.gmra.mrb[0].mxu0 %v10297
      %v10451 = vpop.f32.mrb[0].mxu0
      %v10452 = vadd.f32 0.0, %v10451
      %v10453 = vpop.f32.mrb[0].mxu0
      %10454 = vmatprep.mubr.f32.mxu0 0.0
      %10455 = vmatmul.mubr.f32.gmra.mrb[0].mxu0 %v10299
      %v10456 = vpop.f32.mrb[0].mxu0
      %v10457 = vadd.f32 0.0, %v10456
      %v10458 = vpop.f32.mrb[0].mxu0
      %10459 = vmatprep.mubr.f32.mxu0 0.0
      %10460 = vmatmul.mubr.f32.gmra.mrb[0].mxu0 %v10301
      %v10461 = vpop.f32.mrb[0].mxu0
      %v10462 = vadd.f32 0.0, %v10461
      %v10463 = vpop.f32.mrb[0].mxu0
      %10464 = vmatprep.mubr.f32.mxu0 0.0
      %10465 = vmatmul.mubr.f32.gmra.mrb[0].mxu0 %v10303
      %v10466 = vpop.f32.mrb[0].mxu0
      %v10467 = vadd.f32 0.0, %v10466
      %v10468 = vpop.f32.mrb[0].mxu0
      %10469 = vmatprep.mubr.f32.mxu0 0.0
      %10470 = vmatmul.mubr.f32.gmra.mrb[0].mxu0 %v10305
      %v10471 = vpop.f32.mrb[0].mxu0
      %v10472 = vadd.f32 0.0, %v10471
      %v10473 = vpop.f32.mrb[0].mxu0
      %10474 = vmatprep.mubr.f32.mxu0 0.0
      %10475 = vmatmul.mubr.f32.gmra.mrb[0].mxu0 %v10307
      %v10476 = vpop.f32.mrb[0].mxu0
      %v10477 = vadd.f32 0.0, %v10476
      %v10478 = vpop.f32.mrb[0].mxu0
      %10479 = vmatprep.mubr.f32.mxu0 0.0
      %10480 = vmatmul.mubr.f32.gmra.mrb[0].mxu0 %v10309
      %v10481 = vpop.f32.mrb[0].mxu0
      %v10482 = vadd.f32 0.0, %v10481
      %v10483 = vpop.f32.mrb[0].mxu0
      %10484 = vmatprep.mubr.f32.mxu0 0.0
      %10485 = vmatmul.mubr.f32.gmra.mrb[0].mxu0 %v10311
      %v10486 = vpop.f32.mrb[0].mxu0
      %v10487 = vadd.f32 0.0, %v10486
      %v10488 = vpop.f32.mrb[0].mxu0
      %10489 = vmatprep.mubr.f32.mxu0 0.0
      %10490 = vmatmul.mubr.f32.gmra.mrb[0].mxu0 %v10313
      %v10491 = vpop.f32.mrb[0].mxu0
      %v10492 = vadd.f32 0.0, %v10491
      %v10493 = vpop.f32.mrb[0].mxu0
      %10494 = vmatprep.mubr.f32.mxu0 0.0
      %10495 = vmatmul.mubr.f32.gmra.mrb[0].mxu0 %v10315
      %v10496 = vpop.f32.mrb[0].mxu0
      %v10497 = vadd.f32 0.0, %v10496
      %v10498 = vpop.f32.mrb[0].mxu0
      %10499 = vmatprep.mubr.f32.mxu0 0.0
      %10500 = vmatmul.mubr.f32.gmra.mrb[0].mxu0 %v10317
      %v10501 = vpop.f32.mrb[0].mxu0
      %v10502 = vadd.f32 0.0, %v10501
      %v10503 = vpop.f32.mrb[0].mxu0
      %10504 = vmatprep.mubr.f32.mxu0 0.0
      %10505 = vmatmul.mubr.f32.gmra.mrb[0].mxu0 %v10319
      %v10506 = vpop.f32.mrb[0].mxu0
      %v10507 = vadd.f32 0.0, %v10506
      %v10508 = vpop.f32.mrb[0].mxu0
      %10509 = vmatprep.mubr.f32.mxu0 0.0
      %10510 = vmatmul.mubr.f32.gmra.mrb[0].mxu0 %v10321
      %v10511 = vpop.f32.mrb[0].mxu0
      %v10512 = vadd.f32 0.0, %v10511
      %v10513 = vpop.f32.mrb[0].mxu0
      %10514 = vmatprep.mubr.f32.mxu0 0.0
      %10515 = vmatmul.mubr.f32.gmra.mrb[0].mxu0 %v10323
      %v10516 = vpop.f32.mrb[0].mxu0
      %v10517 = vadd.f32 0.0, %v10516
      %v10518 = vpop.f32.mrb[0].mxu0
      %10519 = vmatprep.mubr.f32.mxu0 0.0
      %10520 = vmatmul.mubr.f32.gmra.mrb[0].mxu0 %v10325
      %v10521 = vpop.f32.mrb[0].mxu0
      %v10522 = vadd.f32 0.0, %v10521
      %v10523 = vpop.f32.mrb[0].mxu0
      %10524 = vmatprep.mubr.f32.mxu0 0.0
      %10525 = vmatmul.mubr.f32.gmra.mrb[0].mxu0 %v10327
      %v10526 = vpop.f32.mrb[0].mxu0
      %v10527 = vadd.f32 0.0, %v10526
      %v10528 = vpop.f32.mrb[0].mxu0
      %10529 = vmatprep.mubr.f32.mxu0 0.0
      %10530 = vmatmul.mubr.f32.gmra.mrb[0].mxu0 %v10329
      %v10531 = vpop.f32.mrb[0].mxu0
      %v10532 = vadd.f32 0.0, %v10531
      %v10533 = vpop.f32.mrb[0].mxu0
      %10534 = vmatprep.mubr.f32.mxu0 0.0
      %10535 = vmatmul.mubr.f32.gmra.mrb[0].mxu0 %v10331
      %v10536 = vpop.f32.mrb[0].mxu0
      %v10537 = vadd.f32 0.0, %v10536
      %v10538 = vpop.f32.mrb[0].mxu0
      %10539 = vmatprep.mubr.f32.mxu0 0.0
      %10540 = vmatmul.mubr.f32.gmra.mrb[0].mxu0 %v10333
      %v10541 = vpop.f32.mrb[0].mxu0
      %v10542 = vadd.f32 0.0, %v10541
      %v10543 = vpop.f32.mrb[0].mxu0
      %10544 = vmatprep.mubr.f32.mxu0 0.0
      %10545 = vmatmul.mubr.f32.gmra.mrb[0].mxu0 %v10335
      %v10546 = vpop.f32.mrb[0].mxu0
      %v10547 = vadd.f32 0.0, %v10546
      %v10548 = vpop.f32.mrb[0].mxu0
      %10549 = vmatprep.mubr.f32.mxu0 0.0
      %10550 = vmatmul.mubr.f32.gmra.mrb[0].mxu0 %v10337
      %v10551 = vpop.f32.mrb[0].mxu0
      %v10552 = vadd.f32 0.0, %v10551
      %v10553 = vpop.f32.mrb[0].mxu0
      %10554 = vmatprep.mubr.f32.mxu0 0.0
      %10555 = vmatmul.mubr.f32.gmra.mrb[0].mxu0 %v10339
      %v10556 = vpop.f32.mrb[0].mxu0
      %v10557 = vadd.f32 0.0, %v10556
      %v10558 = vpop.f32.mrb[0].mxu0
      %10559 = vmatprep.mubr.f32.mxu0 0.0
      %10560 = vmatmul.mubr.f32.gmra.mrb[0].mxu0 %v10341
      %v10561 = vpop.f32.mrb[0].mxu0
      %v10562 = vadd.f32 0.0, %v10561
      %v10563 = vpop.f32.mrb[0].mxu0
      %10564 = vmatprep.mubr.f32.mxu0 0.0
      %10565 = vmatmul.mubr.f32.gmra.mrb[0].mxu0 %v10343
      %v10566 = vpop.f32.mrb[0].mxu0
      %v10567 = vadd.f32 0.0, %v10566
      %v10568 = vpop.f32.mrb[0].mxu0
      %10569 = vmatprep.mubr.f32.mxu0 0.0
      %10570 = vmatmul.mubr.f32.gmra.mrb[0].mxu0 %v10345
      %v10571 = vpop.f32.mrb[0].mxu0
      %v10572 = vadd.f32 0.0, %v10571
      %v10573 = vpop.f32.mrb[0].mxu0
      %10574 = vmatprep.mubr.f32.mxu0 0.0
      %10575 = vmatmul.mubr.f32.gmra.mrb[0].mxu0 %v10347
      %v10576 = vpop.f32.mrb[0].mxu0
      %v10577 = vadd.f32 0.0, %v10576
      %v10578 = vpop.f32.mrb[0].mxu0
      %10579 = vmatprep.mubr.f32.mxu0 0.0
      %10580 = vmatmul.mubr.f32.gmra.mrb[0].mxu0 %v10349
      %v10581 = vpop.f32.mrb[0].mxu0
      %v10582 = vadd.f32 0.0, %v10581
      %v10583 = vpop.f32.mrb[0].mxu0
      %10584 = vmatprep.mubr.f32.mxu0 0.0
      %10585 = vmatmul.mubr.f32.gmra.mrb[0].mxu0 %v10351
      %v10586 = vpop.f32.mrb[0].mxu0
      %v10587 = vadd.f32 0.0, %v10586
      %v10588 = vpop.f32.mrb[0].mxu0
      %10589 = vmatprep.mubr.f32.mxu0 0.0
      %10590 = vmatmul.mubr.f32.gmra.mrb[0].mxu0 %v10353
      %v10591 = vpop.f32.mrb[0].mxu0
      %v10592 = vadd.f32 0.0, %v10591
      %v10593 = vpop.f32.mrb[0].mxu0
      %10594 = vmatprep.mubr.f32.mxu0 0.0
      %10595 = vmatmul.mubr.f32.gmra.mrb[0].mxu0 %v7235
      %v10596 = vpop.f32.mrb[0].mxu0
      %v10597 = vadd.f32 0.0, %v10596
      %v10598 = vpop.f32.mrb[0].mxu0
      %10599 = vmatprep.mubr.f32.mxu0 0.0
      %10600 = vmatmul.mubr.f32.gmra.mrb[0].mxu0 %v10355
      %v10601 = vpop.f32.mrb[0].mxu0
      %v10602 = vadd.f32 0.0, %v10601
      %v10603 = vpop.f32.mrb[0].mxu0
      %10604 = vdwg.mxu0
      %v10605 = vadd.f32 %v10185, %v10427
      %v10606 = vadd.f32 %v10186, %v10432
      %v10607 = vadd.f32 %v10187, %v10437
      %v10608 = vadd.f32 %v10188, %v10442
      %v10609 = vadd.f32 %v10189, %v10447
      %v10610 = vadd.f32 %v10190, %v10452
      %v10611 = vadd.f32 %v10191, %v10457
      %v10612 = vadd.f32 %v10192, %v10462
      %v10613 = vadd.f32 %v10193, %v10467
      %v10614 = vadd.f32 %v10194, %v10472
      %v10615 = vadd.f32 %v10195, %v10477
      %v10616 = vadd.f32 %v10196, %v10482
      %v10617 = vadd.f32 %v10197, %v10487
      %v10618 = vadd.f32 %v10198, %v10492
      %v10619 = vadd.f32 %v10199, %v10497
      %v10620 = vadd.f32 %v10200, %v10502
      %v10621 = vadd.f32 %v10201, %v10507
      %v10622 = vadd.f32 %v10202, %v10512
      %v10623 = vadd.f32 %v10203, %v10517
      %v10624 = vadd.f32 %v10204, %v10522
      %v10625 = vadd.f32 %v10205, %v10527
      %v10626 = vadd.f32 %v10206, %v10532
      %v10627 = vadd.f32 %v10207, %v10537
      %v10628 = vadd.f32 %v10208, %v10542
      %v10629 = vadd.f32 %v10209, %v10547
      %v10630 = vadd.f32 %v10210, %v10552
      %v10631 = vadd.f32 %v10211, %v10557
      %v10632 = vadd.f32 %v10212, %v10562
      %v10633 = vadd.f32 %v10213, %v10567
      %v10634 = vadd.f32 %v10214, %v10572
      %v10635 = vadd.f32 %v10215, %v10577
      %v10636 = vadd.f32 %v10216, %v10582
      %v10637 = vadd.f32 %v10217, %v10587
      %v10638 = vadd.f32 %v10218, %v10592
      %v10639 = vadd.f32 %v10219, %v10597
      %v10640 = vadd.f32 %v10220, %v10602
      %s10641 = scalar_lea.vmem %s3, 32
      %v10642 = vld [vmem:[%s10641] sm:$0xf]
      %v10643 = vcombine.low %v7894, %v7904
      %v10644 = vcombine.low %v7911, %v7921
      %v10645 = vcombine.low %v7928, %v7938
      %v10646 = vcombine.low %v7945, %v7955
      %v10647 = vcombine.low %v7962, %v7972
      %v10648 = vcombine.low %v7979, %v7989
      %v10649 = vcombine.low %v7996, %v8006
      %v10650 = vcombine.low %v8013, %v8023
      %v10651 = vcombine.low %v8030, %v8040
      %v10652 = vcombine.low %v8047, %v8057
      %v10653 = vcombine.low %v8064, %v8074
      %v10654 = vcombine.low %v8081, %v8091
      %v10655 = vcombine.low %v8098, %v8108
      %v10656 = vcombine.low %v8115, %v8125
      %v10657 = vcombine.low %v8132, %v8142
      %v10658 = vcombine.low %v8149, %v8159
      %v10659 = vcombine.low %v8166, %v8176
      %v10660 = vcombine.low %v8183, %v8193
      %v10661 = vcombine.low %v8200, %v8210
      %v10662 = vcombine.low %v8217, %v8227
      %v10663 = vcombine.low %v8234, %v8244
      %v10664 = vcombine.low %v8251, %v8261
      %v10665 = vcombine.low %v8268, %v8278
      %v10666 = vcombine.low %v8285, %v8295
      %v10667 = vcombine.low %v8302, %v8312
      %v10668 = vcombine.low %v8319, %v8329
      %v10669 = vcombine.low %v8336, %v8346
      %v10670 = vcombine.low %v8353, %v8363
      %v10671 = vcombine.low %v8370, %v8380
      %v10672 = vcombine.low %v8387, %v8755
      %v10673 = vcombine.low %v8762, %v8772
      %v10674 = vcombine.low %v8779, %v8353
      %v10675 = vcombine.low %v6462, %v6429
      %v10677 = vunpack.c.l.s4 1983009808
      %v10678 = vunpack.c.0.s8 %v10677
      %v10679 = vlaneseq
      %v10680 = vshrl.u32 %v10679, 7
      %v10681 = vsub.s32 %v10678, %v10680
      %v10682 = vrot.slane %v10675, %v10681
      %v10683 = vcombine.low %v8380, %v10682
      %v10684 = vsel %vm459, %v10643, 0
      %v10686 = vsel %vm459, %v10644, 0
      %v10688 = vsel %vm459, %v10645, 0
      %v10690 = vsel %vm459, %v10646, 0
      %v10692 = vsel %vm459, %v10647, 0
      %v10694 = vsel %vm459, %v10648, 0
      %v10696 = vsel %vm459, %v10649, 0
      %v10698 = vsel %vm459, %v10650, 0
      %v10700 = vsel %vm459, %v10651, 0
      %v10702 = vsel %vm459, %v10652, 0
      %v10704 = vsel %vm459, %v10653, 0
      %v10706 = vsel %vm459, %v10654, 0
      %v10708 = vsel %vm459, %v10655, 0
      %v10710 = vsel %vm459, %v10656, 0
      %v10712 = vsel %vm459, %v10657, 0
      %v10714 = vsel %vm459, %v10658, 0
      %v10716 = vsel %vm459, %v10659, 0
      %v10718 = vsel %vm459, %v10660, 0
      %v10720 = vsel %vm459, %v10661, 0
      %v10722 = vsel %vm459, %v10662, 0
      %v10724 = vsel %vm459, %v10663, 0
      %v10726 = vsel %vm459, %v10664, 0
      %v10728 = vsel %vm459, %v10665, 0
      %v10730 = vsel %vm459, %v10666, 0
      %v10732 = vsel %vm459, %v10667, 0
      %v10734 = vsel %vm459, %v10668, 0
      %v10736 = vsel %vm459, %v10669, 0
      %v10738 = vsel %vm459, %v10670, 0
      %v10740 = vsel %vm459, %v10671, 0
      %v10742 = vsel %vm459, %v10672, 0
      %v10744 = vsel %vm459, %v10673, 0
      %v10746 = vsel %vm459, %v10674, 0
      %v10748 = vsel %vm459, %v10683, 0
      %v10751 = vsel %vm532, %v10642, 0
      %10753 = vmatprep.subr.mxu0 0.0
      %10754 = vmatpush1.msra.mxu0 %v10751
      %10755 = vmatprep.subr.mxu0 0.0
      %10756 = vmatpush1.msra.mxu0 0.0
      %10757 = vmatprep.subr.mxu0 0.0
      %10758 = vmatpush1.msra.mxu0 0.0
      %10759 = vmatprep.subr.mxu0 0.0
      %10760 = vmatpush1.msra.mxu0 0.0
      %10761 = vmatprep.subr.mxu0 0.0
      %10762 = vmatpush1.msra.mxu0 0.0
      %10763 = vmatprep.subr.mxu0 0.0
      %10764 = vmatpush1.msra.mxu0 0.0
      %10765 = vmatprep.subr.mxu0 0.0
      %10766 = vmatpush1.msra.mxu0 0.0
      %10767 = vmatprep.subr.mxu0 0.0
      %10768 = vmatpush1.msra.mxu0 0.0
      %10769 = vmatprep.subr.mxu0 0.0
      %10770 = vmatpush1.msra.mxu0 0.0
      %10771 = vmatprep.subr.mxu0 0.0
      %10772 = vmatpush1.msra.mxu0 0.0
      %10773 = vmatprep.subr.mxu0 0.0
      %10774 = vmatpush1.msra.mxu0 0.0
      %10775 = vmatprep.subr.mxu0 0.0
      %10776 = vmatpush1.msra.mxu0 0.0
      %10777 = vmatprep.subr.mxu0 0.0
      %10778 = vmatpush1.msra.mxu0 0.0
      %10779 = vmatprep.subr.mxu0 0.0
      %10780 = vmatpush1.msra.mxu0 0.0
      %10781 = vmatprep.subr.mxu0 0.0
      %10782 = vmatpush1.msra.mxu0 0.0
      %10783 = vmatprep.subr.mxu0 0.0
      %10784 = vmatpush1.msra.mxu0 0.0
      %10785 = vmatprep.subr.mxu0 0.0
      %10786 = vmatpush1.msra.mxu0 0.0
      %10787 = vmatprep.subr.mxu0 0.0
      %10788 = vmatpush1.msra.mxu0 0.0
      %10789 = vmatprep.subr.mxu0 0.0
      %10790 = vmatpush1.msra.mxu0 0.0
      %10791 = vmatprep.subr.mxu0 0.0
      %10792 = vmatpush1.msra.mxu0 0.0
      %10793 = vmatprep.subr.mxu0 0.0
      %10794 = vmatpush1.msra.mxu0 0.0
      %10795 = vmatprep.subr.mxu0 0.0
      %10796 = vmatpush1.msra.mxu0 0.0
      %10797 = vmatprep.subr.mxu0 0.0
      %10798 = vmatpush1.msra.mxu0 0.0
      %10799 = vmatprep.subr.mxu0 0.0
      %10800 = vmatpush1.msra.mxu0 0.0
      %10801 = vmatprep.subr.mxu0 0.0
      %10802 = vmatpush1.msra.mxu0 0.0
      %10803 = vmatprep.subr.mxu0 0.0
      %10804 = vmatpush1.msra.mxu0 0.0
      %10805 = vmatprep.subr.mxu0 0.0
      %10806 = vmatpush1.msra.mxu0 0.0
      %10807 = vmatprep.subr.mxu0 0.0
      %10808 = vmatpush1.msra.mxu0 0.0
      %10809 = vmatprep.subr.mxu0 0.0
      %10810 = vmatpush1.msra.mxu0 0.0
      %10811 = vmatprep.subr.mxu0 0.0
      %10812 = vmatpush1.msra.mxu0 0.0
      %10813 = vmatprep.subr.mxu0 0.0
      %10814 = vmatpush1.msra.mxu0 0.0
      %10815 = vmatprep.subr.mxu0 0.0
      %10816 = vmatpush1.msra.mxu0 0.0
      %10817 = vmatprep.mubr.f32.mxu0 0.0
      %10818 = vmatmul.mubr.f32.gmra.mrb[0].mxu0 %v8389
      %v10819 = vpop.f32.mrb[0].mxu0
      %v10820 = vadd.f32 0.0, %v10819
      %v10821 = vpop.f32.mrb[0].mxu0
      %10822 = vmatprep.mubr.f32.mxu0 0.0
      %10823 = vmatmul.mubr.f32.gmra.mrb[0].mxu0 %v8391
      %v10824 = vpop.f32.mrb[0].mxu0
      %v10825 = vadd.f32 0.0, %v10824
      %v10826 = vpop.f32.mrb[0].mxu0
      %10827 = vmatprep.mubr.f32.mxu0 0.0
      %10828 = vmatmul.mubr.f32.gmra.mrb[0].mxu0 %v10684
      %v10829 = vpop.f32.mrb[0].mxu0
      %v10830 = vadd.f32 0.0, %v10829
      %v10831 = vpop.f32.mrb[0].mxu0
      %10832 = vmatprep.mubr.f32.mxu0 0.0
      %10833 = vmatmul.mubr.f32.gmra.mrb[0].mxu0 %v10686
      %v10834 = vpop.f32.mrb[0].mxu0
      %v10835 = vadd.f32 0.0, %v10834
      %v10836 = vpop.f32.mrb[0].mxu0
      %10837 = vmatprep.mubr.f32.mxu0 0.0
      %10838 = vmatmul.mubr.f32.gmra.mrb[0].mxu0 %v10688
      %v10839 = vpop.f32.mrb[0].mxu0
      %v10840 = vadd.f32 0.0, %v10839
      %v10841 = vpop.f32.mrb[0].mxu0
      %10842 = vmatprep.mubr.f32.mxu0 0.0
      %10843 = vmatmul.mubr.f32.gmra.mrb[0].mxu0 %v10690
      %v10844 = vpop.f32.mrb[0].mxu0
      %v10845 = vadd.f32 0.0, %v10844
      %v10846 = vpop.f32.mrb[0].mxu0
      %10847 = vmatprep.mubr.f32.mxu0 0.0
      %10848 = vmatmul.mubr.f32.gmra.mrb[0].mxu0 %v10692
      %v10849 = vpop.f32.mrb[0].mxu0
      %v10850 = vadd.f32 0.0, %v10849
      %v10851 = vpop.f32.mrb[0].mxu0
      %10852 = vmatprep.mubr.f32.mxu0 0.0
      %10853 = vmatmul.mubr.f32.gmra.mrb[0].mxu0 %v10694
      %v10854 = vpop.f32.mrb[0].mxu0
      %v10855 = vadd.f32 0.0, %v10854
      %v10856 = vpop.f32.mrb[0].mxu0
      %10857 = vmatprep.mubr.f32.mxu0 0.0
      %10858 = vmatmul.mubr.f32.gmra.mrb[0].mxu0 %v10696
      %v10859 = vpop.f32.mrb[0].mxu0
      %v10860 = vadd.f32 0.0, %v10859
      %v10861 = vpop.f32.mrb[0].mxu0
      %10862 = vmatprep.mubr.f32.mxu0 0.0
      %10863 = vmatmul.mubr.f32.gmra.mrb[0].mxu0 %v10698
      %v10864 = vpop.f32.mrb[0].mxu0
      %v10865 = vadd.f32 0.0, %v10864
      %v10866 = vpop.f32.mrb[0].mxu0
      %10867 = vmatprep.mubr.f32.mxu0 0.0
      %10868 = vmatmul.mubr.f32.gmra.mrb[0].mxu0 %v10700
      %v10869 = vpop.f32.mrb[0].mxu0
      %v10870 = vadd.f32 0.0, %v10869
      %v10871 = vpop.f32.mrb[0].mxu0
      %10872 = vmatprep.mubr.f32.mxu0 0.0
      %10873 = vmatmul.mubr.f32.gmra.mrb[0].mxu0 %v10702
      %v10874 = vpop.f32.mrb[0].mxu0
      %v10875 = vadd.f32 0.0, %v10874
      %v10876 = vpop.f32.mrb[0].mxu0
      %10877 = vmatprep.mubr.f32.mxu0 0.0
      %10878 = vmatmul.mubr.f32.gmra.mrb[0].mxu0 %v10704
      %v10879 = vpop.f32.mrb[0].mxu0
      %v10880 = vadd.f32 0.0, %v10879
      %v10881 = vpop.f32.mrb[0].mxu0
      %10882 = vmatprep.mubr.f32.mxu0 0.0
      %10883 = vmatmul.mubr.f32.gmra.mrb[0].mxu0 %v10706
      %v10884 = vpop.f32.mrb[0].mxu0
      %v10885 = vadd.f32 0.0, %v10884
      %v10886 = vpop.f32.mrb[0].mxu0
      %10887 = vmatprep.mubr.f32.mxu0 0.0
      %10888 = vmatmul.mubr.f32.gmra.mrb[0].mxu0 %v10708
      %v10889 = vpop.f32.mrb[0].mxu0
      %v10890 = vadd.f32 0.0, %v10889
      %v10891 = vpop.f32.mrb[0].mxu0
      %10892 = vmatprep.mubr.f32.mxu0 0.0
      %10893 = vmatmul.mubr.f32.gmra.mrb[0].mxu0 %v10710
      %v10894 = vpop.f32.mrb[0].mxu0
      %v10895 = vadd.f32 0.0, %v10894
      %v10896 = vpop.f32.mrb[0].mxu0
      %10897 = vmatprep.mubr.f32.mxu0 0.0
      %10898 = vmatmul.mubr.f32.gmra.mrb[0].mxu0 %v10712
      %v10899 = vpop.f32.mrb[0].mxu0
      %v10900 = vadd.f32 0.0, %v10899
      %v10901 = vpop.f32.mrb[0].mxu0
      %10902 = vmatprep.mubr.f32.mxu0 0.0
      %10903 = vmatmul.mubr.f32.gmra.mrb[0].mxu0 %v10714
      %v10904 = vpop.f32.mrb[0].mxu0
      %v10905 = vadd.f32 0.0, %v10904
      %v10906 = vpop.f32.mrb[0].mxu0
      %10907 = vmatprep.mubr.f32.mxu0 0.0
      %10908 = vmatmul.mubr.f32.gmra.mrb[0].mxu0 %v10716
      %v10909 = vpop.f32.mrb[0].mxu0
      %v10910 = vadd.f32 0.0, %v10909
      %v10911 = vpop.f32.mrb[0].mxu0
      %10912 = vmatprep.mubr.f32.mxu0 0.0
      %10913 = vmatmul.mubr.f32.gmra.mrb[0].mxu0 %v10718
      %v10914 = vpop.f32.mrb[0].mxu0
      %v10915 = vadd.f32 0.0, %v10914
      %v10916 = vpop.f32.mrb[0].mxu0
      %10917 = vmatprep.mubr.f32.mxu0 0.0
      %10918 = vmatmul.mubr.f32.gmra.mrb[0].mxu0 %v10720
      %v10919 = vpop.f32.mrb[0].mxu0
      %v10920 = vadd.f32 0.0, %v10919
      %v10921 = vpop.f32.mrb[0].mxu0
      %10922 = vmatprep.mubr.f32.mxu0 0.0
      %10923 = vmatmul.mubr.f32.gmra.mrb[0].mxu0 %v10722
      %v10924 = vpop.f32.mrb[0].mxu0
      %v10925 = vadd.f32 0.0, %v10924
      %v10926 = vpop.f32.mrb[0].mxu0
      %10927 = vmatprep.mubr.f32.mxu0 0.0
      %10928 = vmatmul.mubr.f32.gmra.mrb[0].mxu0 %v10724
      %v10929 = vpop.f32.mrb[0].mxu0
      %v10930 = vadd.f32 0.0, %v10929
      %v10931 = vpop.f32.mrb[0].mxu0
      %10932 = vmatprep.mubr.f32.mxu0 0.0
      %10933 = vmatmul.mubr.f32.gmra.mrb[0].mxu0 %v10726
      %v10934 = vpop.f32.mrb[0].mxu0
      %v10935 = vadd.f32 0.0, %v10934
      %v10936 = vpop.f32.mrb[0].mxu0
      %10937 = vmatprep.mubr.f32.mxu0 0.0
      %10938 = vmatmul.mubr.f32.gmra.mrb[0].mxu0 %v10728
      %v10939 = vpop.f32.mrb[0].mxu0
      %v10940 = vadd.f32 0.0, %v10939
      %v10941 = vpop.f32.mrb[0].mxu0
      %10942 = vmatprep.mubr.f32.mxu0 0.0
      %10943 = vmatmul.mubr.f32.gmra.mrb[0].mxu0 %v10730
      %v10944 = vpop.f32.mrb[0].mxu0
      %v10945 = vadd.f32 0.0, %v10944
      %v10946 = vpop.f32.mrb[0].mxu0
      %10947 = vmatprep.mubr.f32.mxu0 0.0
      %10948 = vmatmul.mubr.f32.gmra.mrb[0].mxu0 %v10732
      %v10949 = vpop.f32.mrb[0].mxu0
      %v10950 = vadd.f32 0.0, %v10949
      %v10951 = vpop.f32.mrb[0].mxu0
      %10952 = vmatprep.mubr.f32.mxu0 0.0
      %10953 = vmatmul.mubr.f32.gmra.mrb[0].mxu0 %v10734
      %v10954 = vpop.f32.mrb[0].mxu0
      %v10955 = vadd.f32 0.0, %v10954
      %v10956 = vpop.f32.mrb[0].mxu0
      %10957 = vmatprep.mubr.f32.mxu0 0.0
      %10958 = vmatmul.mubr.f32.gmra.mrb[0].mxu0 %v10736
      %v10959 = vpop.f32.mrb[0].mxu0
      %v10960 = vadd.f32 0.0, %v10959
      %v10961 = vpop.f32.mrb[0].mxu0
      %10962 = vmatprep.mubr.f32.mxu0 0.0
      %10963 = vmatmul.mubr.f32.gmra.mrb[0].mxu0 %v10738
      %v10964 = vpop.f32.mrb[0].mxu0
      %v10965 = vadd.f32 0.0, %v10964
      %v10966 = vpop.f32.mrb[0].mxu0
      %10967 = vmatprep.mubr.f32.mxu0 0.0
      %10968 = vmatmul.mubr.f32.gmra.mrb[0].mxu0 %v10740
      %v10969 = vpop.f32.mrb[0].mxu0
      %v10970 = vadd.f32 0.0, %v10969
      %v10971 = vpop.f32.mrb[0].mxu0
      %10972 = vmatprep.mubr.f32.mxu0 0.0
      %10973 = vmatmul.mubr.f32.gmra.mrb[0].mxu0 %v10742
      %v10974 = vpop.f32.mrb[0].mxu0
      %v10975 = vadd.f32 0.0, %v10974
      %v10976 = vpop.f32.mrb[0].mxu0
      %10977 = vmatprep.mubr.f32.mxu0 0.0
      %10978 = vmatmul.mubr.f32.gmra.mrb[0].mxu0 %v10744
      %v10979 = vpop.f32.mrb[0].mxu0
      %v10980 = vadd.f32 0.0, %v10979
      %v10981 = vpop.f32.mrb[0].mxu0
      %10982 = vmatprep.mubr.f32.mxu0 0.0
      %10983 = vmatmul.mubr.f32.gmra.mrb[0].mxu0 %v10746
      %v10984 = vpop.f32.mrb[0].mxu0
      %v10985 = vadd.f32 0.0, %v10984
      %v10986 = vpop.f32.mrb[0].mxu0
      %10987 = vmatprep.mubr.f32.mxu0 0.0
      %10988 = vmatmul.mubr.f32.gmra.mrb[0].mxu0 %v8457
      %v10989 = vpop.f32.mrb[0].mxu0
      %v10990 = vadd.f32 0.0, %v10989
      %v10991 = vpop.f32.mrb[0].mxu0
      %10992 = vmatprep.mubr.f32.mxu0 0.0
      %10993 = vmatmul.mubr.f32.gmra.mrb[0].mxu0 %v10748
      %v10994 = vpop.f32.mrb[0].mxu0
      %v10995 = vadd.f32 0.0, %v10994
      %v10996 = vpop.f32.mrb[0].mxu0
      %10997 = vdwg.mxu0
      %v10998 = vadd.f32 %v10605, %v10820
      %v10999 = vadd.f32 %v10606, %v10825
      %v11000 = vadd.f32 %v10607, %v10830
      %v11001 = vadd.f32 %v10608, %v10835
      %v11002 = vadd.f32 %v10609, %v10840
      %v11003 = vadd.f32 %v10610, %v10845
      %v11004 = vadd.f32 %v10611, %v10850
      %v11005 = vadd.f32 %v10612, %v10855
      %v11006 = vadd.f32 %v10613, %v10860
      %v11007 = vadd.f32 %v10614, %v10865
      %v11008 = vadd.f32 %v10615, %v10870
      %v11009 = vadd.f32 %v10616, %v10875
      %v11010 = vadd.f32 %v10617, %v10880
      %v11011 = vadd.f32 %v10618, %v10885
      %v11012 = vadd.f32 %v10619, %v10890
      %v11013 = vadd.f32 %v10620, %v10895
      %v11014 = vadd.f32 %v10621, %v10900
      %v11015 = vadd.f32 %v10622, %v10905
      %v11016 = vadd.f32 %v10623, %v10910
      %v11017 = vadd.f32 %v10624, %v10915
      %v11018 = vadd.f32 %v10625, %v10920
      %v11019 = vadd.f32 %v10626, %v10925
      %v11020 = vadd.f32 %v10627, %v10930
      %v11021 = vadd.f32 %v10628, %v10935
      %v11022 = vadd.f32 %v10629, %v10940
      %v11023 = vadd.f32 %v10630, %v10945
      %v11024 = vadd.f32 %v10631, %v10950
      %v11025 = vadd.f32 %v10632, %v10955
      %v11026 = vadd.f32 %v10633, %v10960
      %v11027 = vadd.f32 %v10634, %v10965
      %v11028 = vadd.f32 %v10635, %v10970
      %v11029 = vadd.f32 %v10636, %v10975
      %v11030 = vadd.f32 %v10637, %v10980
      %v11031 = vadd.f32 %v10638, %v10985
      %v11032 = vadd.f32 %v10639, %v10990
      %v11033 = vadd.f32 %v10640, %v10995
      %v11034 = vld [vmem:[%s4] sm:$0x1]
      %v11036 = vlaneseq
      %v11037 = vshrl.u32 %v11036, 7
      %v11038 = vsub.s32 0, %v11037
      %v11039 = vrot.slane %v11034, %v11038
      %v11041 = vadd.f32 %v10998, %v11039
      %v11042 = vadd.f32 %v10999, %v11039
      %v11043 = vadd.f32 %v11000, %v11039
      %v11044 = vadd.f32 %v11001, %v11039
      %v11045 = vadd.f32 %v11002, %v11039
      %v11046 = vadd.f32 %v11003, %v11039
      %v11047 = vadd.f32 %v11004, %v11039
      %v11048 = vadd.f32 %v11005, %v11039
      %v11049 = vadd.f32 %v11006, %v11039
      %v11050 = vadd.f32 %v11007, %v11039
      %v11051 = vadd.f32 %v11008, %v11039
      %v11052 = vadd.f32 %v11009, %v11039
      %v11053 = vadd.f32 %v11010, %v11039
      %v11054 = vadd.f32 %v11011, %v11039
      %v11055 = vadd.f32 %v11012, %v11039
      %v11056 = vadd.f32 %v11013, %v11039
      %v11057 = vadd.f32 %v11014, %v11039
      %v11058 = vadd.f32 %v11015, %v11039
      %v11059 = vadd.f32 %v11016, %v11039
      %v11060 = vadd.f32 %v11017, %v11039
      %v11061 = vadd.f32 %v11018, %v11039
      %v11062 = vadd.f32 %v11019, %v11039
      %v11063 = vadd.f32 %v11020, %v11039
      %v11064 = vadd.f32 %v11021, %v11039
      %v11065 = vadd.f32 %v11022, %v11039
      %v11066 = vadd.f32 %v11023, %v11039
      %v11067 = vadd.f32 %v11024, %v11039
      %v11068 = vadd.f32 %v11025, %v11039
      %v11069 = vadd.f32 %v11026, %v11039
      %v11070 = vadd.f32 %v11027, %v11039
      %v11071 = vadd.f32 %v11028, %v11039
      %v11072 = vadd.f32 %v11029, %v11039
      %v11073 = vadd.f32 %v11030, %v11039
      %v11074 = vadd.f32 %v11031, %v11039
      %v11075 = vadd.f32 %v11032, %v11039
      %v11076 = vadd.f32 %v11033, %v11039
      %v11077 = vmul.f32 %v11041, %v3911
      %v11078 = vmul.f32 %v11042, %v3928
      %v11079 = vmul.f32 %v11043, %v3945
      %v11080 = vmul.f32 %v11044, %v3962
      %v11081 = vmul.f32 %v11045, %v3971
      %v11082 = vmul.f32 %v11046, %v3972
      %v11083 = vmul.f32 %v11047, %v3973
      %v11084 = vmul.f32 %v11048, %v3974
      %v11085 = vmul.f32 %v11049, %v3975
      %v11086 = vmul.f32 %v11050, %v3911
      %v11087 = vmul.f32 %v11051, %v3928
      %v11088 = vmul.f32 %v11052, %v3945
      %v11089 = vmul.f32 %v11053, %v3962
      %v11090 = vmul.f32 %v11054, %v3971
      %v11091 = vmul.f32 %v11055, %v3972
      %v11092 = vmul.f32 %v11056, %v3973
      %v11093 = vmul.f32 %v11057, %v3974
      %v11094 = vmul.f32 %v11058, %v3975
      %v11095 = vmul.f32 %v11059, %v3911
      %v11096 = vmul.f32 %v11060, %v3928
      %v11097 = vmul.f32 %v11061, %v3945
      %v11098 = vmul.f32 %v11062, %v3962
      %v11099 = vmul.f32 %v11063, %v3971
      %v11100 = vmul.f32 %v11064, %v3972
      %v11101 = vmul.f32 %v11065, %v3973
      %v11102 = vmul.f32 %v11066, %v3974
      %v11103 = vmul.f32 %v11067, %v3975
      %v11104 = vmul.f32 %v11068, %v3911
      %v11105 = vmul.f32 %v11069, %v3928
      %v11106 = vmul.f32 %v11070, %v3945
      %v11107 = vmul.f32 %v11071, %v3962
      %v11108 = vmul.f32 %v11072, %v3971
      %v11109 = vmul.f32 %v11073, %v3972
      %v11110 = vmul.f32 %v11074, %v3973
      %v11111 = vmul.f32 %v11075, %v3974
      %v11112 = vmul.f32 %v11076, %v3975
      %v11113 = vsel %vm459, %v11077, 0.0
      %v11114 = vsel %vm459, %v11078, 0.0
      %v11115 = vadd.f32 %v11113, %v11114
      %v11116 = vsel %vm459, %v11079, 0.0
      %v11117 = vadd.f32 %v11115, %v11116
      %v11118 = vsel %vm459, %v11080, 0.0
      %v11119 = vadd.f32 %v11117, %v11118
      %v11120 = vsel %vm459, %v11081, 0.0
      %v11121 = vadd.f32 %v11119, %v11120
      %v11122 = vsel %vm459, %v11082, 0.0
      %v11123 = vadd.f32 %v11121, %v11122
      %v11124 = vsel %vm459, %v11083, 0.0
      %v11125 = vadd.f32 %v11123, %v11124
      %v11126 = vsel %vm459, %v11084, 0.0
      %v11127 = vadd.f32 %v11125, %v11126
      %v11128 = vsel %vm459, %v11085, 0.0
      %v11129 = vadd.f32 %v11127, %v11128
      %v11130 = vsel %vm459, %v11086, 0.0
      %v11131 = vadd.f32 %v11129, %v11130
      %v11132 = vsel %vm459, %v11087, 0.0
      %v11133 = vadd.f32 %v11131, %v11132
      %v11134 = vsel %vm459, %v11088, 0.0
      %v11135 = vadd.f32 %v11133, %v11134
      %v11136 = vsel %vm459, %v11089, 0.0
      %v11137 = vadd.f32 %v11135, %v11136
      %v11138 = vsel %vm459, %v11090, 0.0
      %v11139 = vadd.f32 %v11137, %v11138
      %v11140 = vsel %vm459, %v11091, 0.0
      %v11141 = vadd.f32 %v11139, %v11140
      %v11142 = vsel %vm459, %v11092, 0.0
      %v11143 = vadd.f32 %v11141, %v11142
      %v11144 = vsel %vm459, %v11093, 0.0
      %v11145 = vadd.f32 %v11143, %v11144
      %v11146 = vsel %vm459, %v11094, 0.0
      %v11147 = vadd.f32 %v11145, %v11146
      %v11148 = vsel %vm459, %v11095, 0.0
      %v11149 = vadd.f32 %v11147, %v11148
      %v11150 = vsel %vm459, %v11096, 0.0
      %v11151 = vadd.f32 %v11149, %v11150
      %v11152 = vsel %vm459, %v11097, 0.0
      %v11153 = vadd.f32 %v11151, %v11152
      %v11154 = vsel %vm459, %v11098, 0.0
      %v11155 = vadd.f32 %v11153, %v11154
      %v11156 = vsel %vm459, %v11099, 0.0
      %v11157 = vadd.f32 %v11155, %v11156
      %v11158 = vsel %vm459, %v11100, 0.0
      %v11159 = vadd.f32 %v11157, %v11158
      %v11160 = vsel %vm459, %v11101, 0.0
      %v11161 = vadd.f32 %v11159, %v11160
      %v11162 = vsel %vm459, %v11102, 0.0
      %v11163 = vadd.f32 %v11161, %v11162
      %v11164 = vsel %vm459, %v11103, 0.0
      %v11165 = vadd.f32 %v11163, %v11164
      %v11166 = vsel %vm459, %v11104, 0.0
      %v11167 = vadd.f32 %v11165, %v11166
      %v11168 = vsel %vm459, %v11105, 0.0
      %v11169 = vadd.f32 %v11167, %v11168
      %v11170 = vsel %vm459, %v11106, 0.0
      %v11171 = vadd.f32 %v11169, %v11170
      %v11172 = vsel %vm459, %v11107, 0.0
      %v11173 = vadd.f32 %v11171, %v11172
      %v11174 = vsel %vm459, %v11108, 0.0
      %v11175 = vadd.f32 %v11173, %v11174
      %v11176 = vsel %vm459, %v11109, 0.0
      %v11177 = vadd.f32 %v11175, %v11176
      %v11178 = vsel %vm459, %v11110, 0.0
      %v11179 = vadd.f32 %v11177, %v11178
      %v11180 = vsel %vm459, %v11111, 0.0
      %v11181 = vadd.f32 %v11179, %v11180
      %v11182 = vsel %vm459, %v11112, 0.0
      %v11183 = vadd.f32 %v11181, %v11182
      %v11184 = vrot.slane %v11183, 4
      %v11185 = vadd.f32 %v11183, %v11184
      %v11186 = vrot.slane %v11185, 2
      %v11187 = vadd.f32 %v11185, %v11186
      %v11188 = vrot.slane %v11187, 1
      %v11189 = vadd.f32 %v11187, %v11188
      %v11190 = vmul.f32 %v11189, 0.00390625
      %v11191 = vsub.f32 %v11041, %v11190
      %v11192 = vsub.f32 %v11042, %v11190
      %v11193 = vsub.f32 %v11043, %v11190
      %v11194 = vsub.f32 %v11044, %v11190
      %v11195 = vsub.f32 %v11045, %v11190
      %v11196 = vsub.f32 %v11046, %v11190
      %v11197 = vsub.f32 %v11047, %v11190
      %v11198 = vsub.f32 %v11048, %v11190
      %v11199 = vsub.f32 %v11049, %v11190
      %v11200 = vsub.f32 %v11050, %v11190
      %v11201 = vsub.f32 %v11051, %v11190
      %v11202 = vsub.f32 %v11052, %v11190
      %v11203 = vsub.f32 %v11053, %v11190
      %v11204 = vsub.f32 %v11054, %v11190
      %v11205 = vsub.f32 %v11055, %v11190
      %v11206 = vsub.f32 %v11056, %v11190
      %v11207 = vsub.f32 %v11057, %v11190
      %v11208 = vsub.f32 %v11058, %v11190
      %v11209 = vsub.f32 %v11059, %v11190
      %v11210 = vsub.f32 %v11060, %v11190
      %v11211 = vsub.f32 %v11061, %v11190
      %v11212 = vsub.f32 %v11062, %v11190
      %v11213 = vsub.f32 %v11063, %v11190
      %v11214 = vsub.f32 %v11064, %v11190
      %v11215 = vsub.f32 %v11065, %v11190
      %v11216 = vsub.f32 %v11066, %v11190
      %v11217 = vsub.f32 %v11067, %v11190
      %v11218 = vsub.f32 %v11068, %v11190
      %v11219 = vsub.f32 %v11069, %v11190
      %v11220 = vsub.f32 %v11070, %v11190
      %v11221 = vsub.f32 %v11071, %v11190
      %v11222 = vsub.f32 %v11072, %v11190
      %v11223 = vsub.f32 %v11073, %v11190
      %v11224 = vsub.f32 %v11074, %v11190
      %v11225 = vsub.f32 %v11075, %v11190
      %v11226 = vsub.f32 %v11076, %v11190
      %v11227 = vmul.f32 %v11191, %v11191
      %v11228 = vmul.f32 %v11192, %v11192
      %v11229 = vmul.f32 %v11193, %v11193
      %v11230 = vmul.f32 %v11194, %v11194
      %v11231 = vmul.f32 %v11195, %v11195
      %v11232 = vmul.f32 %v11196, %v11196
      %v11233 = vmul.f32 %v11197, %v11197
      %v11234 = vmul.f32 %v11198, %v11198
      %v11235 = vmul.f32 %v11199, %v11199
      %v11236 = vmul.f32 %v11200, %v11200
      %v11237 = vmul.f32 %v11201, %v11201
      %v11238 = vmul.f32 %v11202, %v11202
      %v11239 = vmul.f32 %v11203, %v11203
      %v11240 = vmul.f32 %v11204, %v11204
      %v11241 = vmul.f32 %v11205, %v11205
      %v11242 = vmul.f32 %v11206, %v11206
      %v11243 = vmul.f32 %v11207, %v11207
      %v11244 = vmul.f32 %v11208, %v11208
      %v11245 = vmul.f32 %v11209, %v11209
      %v11246 = vmul.f32 %v11210, %v11210
      %v11247 = vmul.f32 %v11211, %v11211
      %v11248 = vmul.f32 %v11212, %v11212
      %v11249 = vmul.f32 %v11213, %v11213
      %v11250 = vmul.f32 %v11214, %v11214
      %v11251 = vmul.f32 %v11215, %v11215
      %v11252 = vmul.f32 %v11216, %v11216
      %v11253 = vmul.f32 %v11217, %v11217
      %v11254 = vmul.f32 %v11218, %v11218
      %v11255 = vmul.f32 %v11219, %v11219
      %v11256 = vmul.f32 %v11220, %v11220
      %v11257 = vmul.f32 %v11221, %v11221
      %v11258 = vmul.f32 %v11222, %v11222
      %v11259 = vmul.f32 %v11223, %v11223
      %v11260 = vmul.f32 %v11224, %v11224
      %v11261 = vmul.f32 %v11225, %v11225
      %v11262 = vmul.f32 %v11226, %v11226
      %v11263 = vmul.f32 %v11227, %v3911
      %v11264 = vmul.f32 %v11228, %v3928
      %v11265 = vmul.f32 %v11229, %v3945
      %v11266 = vmul.f32 %v11230, %v3962
      %v11267 = vmul.f32 %v11231, %v3971
      %v11268 = vmul.f32 %v11232, %v3972
      %v11269 = vmul.f32 %v11233, %v3973
      %v11270 = vmul.f32 %v11234, %v3974
      %v11271 = vmul.f32 %v11235, %v3975
      %v11272 = vmul.f32 %v11236, %v3911
      %v11273 = vmul.f32 %v11237, %v3928
      %v11274 = vmul.f32 %v11238, %v3945
      %v11275 = vmul.f32 %v11239, %v3962
      %v11276 = vmul.f32 %v11240, %v3971
      %v11277 = vmul.f32 %v11241, %v3972
      %v11278 = vmul.f32 %v11242, %v3973
      %v11279 = vmul.f32 %v11243, %v3974
      %v11280 = vmul.f32 %v11244, %v3975
      %v11281 = vmul.f32 %v11245, %v3911
      %v11282 = vmul.f32 %v11246, %v3928
      %v11283 = vmul.f32 %v11247, %v3945
      %v11284 = vmul.f32 %v11248, %v3962
      %v11285 = vmul.f32 %v11249, %v3971
      %v11286 = vmul.f32 %v11250, %v3972
      %v11287 = vmul.f32 %v11251, %v3973
      %v11288 = vmul.f32 %v11252, %v3974
      %v11289 = vmul.f32 %v11253, %v3975
      %v11290 = vmul.f32 %v11254, %v3911
      %v11291 = vmul.f32 %v11255, %v3928
      %v11292 = vmul.f32 %v11256, %v3945
      %v11293 = vmul.f32 %v11257, %v3962
      %v11294 = vmul.f32 %v11258, %v3971
      %v11295 = vmul.f32 %v11259, %v3972
      %v11296 = vmul.f32 %v11260, %v3973
      %v11297 = vmul.f32 %v11261, %v3974
      %v11298 = vmul.f32 %v11262, %v3975
      %v11299 = vsel %vm459, %v11263, 0.0
      %v11300 = vsel %vm459, %v11264, 0.0
      %v11301 = vadd.f32 %v11299, %v11300
      %v11302 = vsel %vm459, %v11265, 0.0
      %v11303 = vadd.f32 %v11301, %v11302
      %v11304 = vsel %vm459, %v11266, 0.0
      %v11305 = vadd.f32 %v11303, %v11304
      %v11306 = vsel %vm459, %v11267, 0.0
      %v11307 = vadd.f32 %v11305, %v11306
      %v11308 = vsel %vm459, %v11268, 0.0
      %v11309 = vadd.f32 %v11307, %v11308
      %v11310 = vsel %vm459, %v11269, 0.0
      %v11311 = vadd.f32 %v11309, %v11310
      %v11312 = vsel %vm459, %v11270, 0.0
      %v11313 = vadd.f32 %v11311, %v11312
      %v11314 = vsel %vm459, %v11271, 0.0
      %v11315 = vadd.f32 %v11313, %v11314
      %v11316 = vsel %vm459, %v11272, 0.0
      %v11317 = vadd.f32 %v11315, %v11316
      %v11318 = vsel %vm459, %v11273, 0.0
      %v11319 = vadd.f32 %v11317, %v11318
      %v11320 = vsel %vm459, %v11274, 0.0
      %v11321 = vadd.f32 %v11319, %v11320
      %v11322 = vsel %vm459, %v11275, 0.0
      %v11323 = vadd.f32 %v11321, %v11322
      %v11324 = vsel %vm459, %v11276, 0.0
      %v11325 = vadd.f32 %v11323, %v11324
      %v11326 = vsel %vm459, %v11277, 0.0
      %v11327 = vadd.f32 %v11325, %v11326
      %v11328 = vsel %vm459, %v11278, 0.0
      %v11329 = vadd.f32 %v11327, %v11328
      %v11330 = vsel %vm459, %v11279, 0.0
      %v11331 = vadd.f32 %v11329, %v11330
      %v11332 = vsel %vm459, %v11280, 0.0
      %v11333 = vadd.f32 %v11331, %v11332
      %v11334 = vsel %vm459, %v11281, 0.0
      %v11335 = vadd.f32 %v11333, %v11334
      %v11336 = vsel %vm459, %v11282, 0.0
      %v11337 = vadd.f32 %v11335, %v11336
      %v11338 = vsel %vm459, %v11283, 0.0
      %v11339 = vadd.f32 %v11337, %v11338
      %v11340 = vsel %vm459, %v11284, 0.0
      %v11341 = vadd.f32 %v11339, %v11340
      %v11342 = vsel %vm459, %v11285, 0.0
      %v11343 = vadd.f32 %v11341, %v11342
      %v11344 = vsel %vm459, %v11286, 0.0
      %v11345 = vadd.f32 %v11343, %v11344
      %v11346 = vsel %vm459, %v11287, 0.0
      %v11347 = vadd.f32 %v11345, %v11346
      %v11348 = vsel %vm459, %v11288, 0.0
      %v11349 = vadd.f32 %v11347, %v11348
      %v11350 = vsel %vm459, %v11289, 0.0
      %v11351 = vadd.f32 %v11349, %v11350
      %v11352 = vsel %vm459, %v11290, 0.0
      %v11353 = vadd.f32 %v11351, %v11352
      %v11354 = vsel %vm459, %v11291, 0.0
      %v11355 = vadd.f32 %v11353, %v11354
      %v11356 = vsel %vm459, %v11292, 0.0
      %v11357 = vadd.f32 %v11355, %v11356
      %v11358 = vsel %vm459, %v11293, 0.0
      %v11359 = vadd.f32 %v11357, %v11358
      %v11360 = vsel %vm459, %v11294, 0.0
      %v11361 = vadd.f32 %v11359, %v11360
      %v11362 = vsel %vm459, %v11295, 0.0
      %v11363 = vadd.f32 %v11361, %v11362
      %v11364 = vsel %vm459, %v11296, 0.0
      %v11365 = vadd.f32 %v11363, %v11364
      %v11366 = vsel %vm459, %v11297, 0.0
      %v11367 = vadd.f32 %v11365, %v11366
      %v11368 = vsel %vm459, %v11298, 0.0
      %v11369 = vadd.f32 %v11367, %v11368
      %v11370 = vrot.slane %v11369, 4
      %v11371 = vadd.f32 %v11369, %v11370
      %v11372 = vrot.slane %v11371, 2
      %v11373 = vadd.f32 %v11371, %v11372
      %v11374 = vrot.slane %v11373, 1
      %v11375 = vadd.f32 %v11373, %v11374
      %v11376 = vmul.f32 %v11375, 0.00390625
      %v11377 = vadd.f32 %v11376, 1e-05
      %v11378 = vrsqrt.pop %v11377
      %v11379 = vmul.f32 %v11191, %v11378
      %v11380 = vmul.f32 %v11192, %v11378
      %v11381 = vmul.f32 %v11193, %v11378
      %v11382 = vmul.f32 %v11194, %v11378
      %v11383 = vmul.f32 %v11195, %v11378
      %v11384 = vmul.f32 %v11196, %v11378
      %v11385 = vmul.f32 %v11197, %v11378
      %v11386 = vmul.f32 %v11198, %v11378
      %v11387 = vmul.f32 %v11199, %v11378
      %v11388 = vmul.f32 %v11200, %v11378
      %v11389 = vmul.f32 %v11201, %v11378
      %v11390 = vmul.f32 %v11202, %v11378
      %v11391 = vmul.f32 %v11203, %v11378
      %v11392 = vmul.f32 %v11204, %v11378
      %v11393 = vmul.f32 %v11205, %v11378
      %v11394 = vmul.f32 %v11206, %v11378
      %v11395 = vmul.f32 %v11207, %v11378
      %v11396 = vmul.f32 %v11208, %v11378
      %v11397 = vmul.f32 %v11209, %v11378
      %v11398 = vmul.f32 %v11210, %v11378
      %v11399 = vmul.f32 %v11211, %v11378
      %v11400 = vmul.f32 %v11212, %v11378
      %v11401 = vmul.f32 %v11213, %v11378
      %v11402 = vmul.f32 %v11214, %v11378
      %v11403 = vmul.f32 %v11215, %v11378
      %v11404 = vmul.f32 %v11216, %v11378
      %v11405 = vmul.f32 %v11217, %v11378
      %v11406 = vmul.f32 %v11218, %v11378
      %v11407 = vmul.f32 %v11219, %v11378
      %v11408 = vmul.f32 %v11220, %v11378
      %v11409 = vmul.f32 %v11221, %v11378
      %v11410 = vmul.f32 %v11222, %v11378
      %v11411 = vmul.f32 %v11223, %v11378
      %v11412 = vmul.f32 %v11224, %v11378
      %v11413 = vmul.f32 %v11225, %v11378
      %v11414 = vmul.f32 %v11226, %v11378
      %v11451 = vadd.f32 %v11379, %v1834
      %v11452 = vadd.f32 %v11380, %v1836
      %v11453 = vadd.f32 %v11381, %v1838
      %v11454 = vadd.f32 %v11382, %v1840
      %v11455 = vadd.f32 %v11383, %v1842
      %v11456 = vadd.f32 %v11384, %v1844
      %v11457 = vadd.f32 %v11385, %v1846
      %v11458 = vadd.f32 %v11386, %v1848
      %v11459 = vadd.f32 %v11387, %v1850
      %v11460 = vadd.f32 %v11388, %v1852
      %v11461 = vadd.f32 %v11389, %v1854
      %v11462 = vadd.f32 %v11390, %v1856
      %v11463 = vadd.f32 %v11391, %v1858
      %v11464 = vadd.f32 %v11392, %v1860
      %v11465 = vadd.f32 %v11393, %v1862
      %v11466 = vadd.f32 %v11394, %v1864
      %v11467 = vadd.f32 %v11395, %v1866
      %v11468 = vadd.f32 %v11396, %v1868
      %v11469 = vadd.f32 %v11397, %v1870
      %v11470 = vadd.f32 %v11398, %v1872
      %v11471 = vadd.f32 %v11399, %v1874
      %v11472 = vadd.f32 %v11400, %v1876
      %v11473 = vadd.f32 %v11401, %v1878
      %v11474 = vadd.f32 %v11402, %v1880
      %v11475 = vadd.f32 %v11403, %v1882
      %v11476 = vadd.f32 %v11404, %v1884
      %v11477 = vadd.f32 %v11405, %v1886
      %v11478 = vadd.f32 %v11406, %v1888
      %v11479 = vadd.f32 %v11407, %v1890
      %v11480 = vadd.f32 %v11408, %v1892
      %v11481 = vadd.f32 %v11409, %v1894
      %v11482 = vadd.f32 %v11410, %v1896
      %v11483 = vadd.f32 %v11411, %v1898
      %v11484 = vadd.f32 %v11412, %v1900
      %v11485 = vadd.f32 %v11413, %v1902
      %v11486 = vadd.f32 %v11414, %v1904
      %11487 = vst.msk [vmem:[%s224] sm:$0xff] %vm459, %v11451
      %11488 = vst.msk [vmem:[%s224 + $0x8] sm:$0xff] %vm459, %v11452
      %11489 = vst.msk [vmem:[%s224 + $0x10] sm:$0xff] %vm459, %v11453
      %11490 = vst.msk [vmem:[%s224 + $0x18] sm:$0xff] %vm459, %v11454
      %11491 = vst.msk [vmem:[%s224 + $0x20] sm:$0xff] %vm459, %v11455
      %11492 = vst.msk [vmem:[%s224 + $0x28] sm:$0xff] %vm459, %v11456
      %11493 = vst.msk [vmem:[%s224 + $0x30] sm:$0xff] %vm459, %v11457
      %11494 = vst.msk [vmem:[%s224 + $0x38] sm:$0xff] %vm459, %v11458
      %11495 = vst.msk [vmem:[%s224 + $0x40] sm:$0xff] %vm459, %v11459
      %11496 = vst.msk [vmem:[%s224 + $0x48] sm:$0xff] %vm459, %v11460
      %11497 = vst.msk [vmem:[%s224 + $0x50] sm:$0xff] %vm459, %v11461
      %11498 = vst.msk [vmem:[%s224 + $0x58] sm:$0xff] %vm459, %v11462
      %11499 = vst.msk [vmem:[%s224 + $0x60] sm:$0xff] %vm459, %v11463
      %11500 = vst.msk [vmem:[%s224 + $0x68] sm:$0xff] %vm459, %v11464
      %11501 = vst.msk [vmem:[%s224 + $0x70] sm:$0xff] %vm459, %v11465
      %11502 = vst.msk [vmem:[%s224 + $0x78] sm:$0xff] %vm459, %v11466
      %11503 = vst.msk [vmem:[%s224 + $0x80] sm:$0xff] %vm459, %v11467
      %11504 = vst.msk [vmem:[%s224 + $0x88] sm:$0xff] %vm459, %v11468
      %11505 = vst.msk [vmem:[%s224 + $0x90] sm:$0xff] %vm459, %v11469
      %11506 = vst.msk [vmem:[%s224 + $0x98] sm:$0xff] %vm459, %v11470
      %11507 = vst.msk [vmem:[%s224 + $0xa0] sm:$0xff] %vm459, %v11471
      %11508 = vst.msk [vmem:[%s224 + $0xa8] sm:$0xff] %vm459, %v11472
      %11509 = vst.msk [vmem:[%s224 + $0xb0] sm:$0xff] %vm459, %v11473
      %11510 = vst.msk [vmem:[%s224 + $0xb8] sm:$0xff] %vm459, %v11474
      %11511 = vst.msk [vmem:[%s224 + $0xc0] sm:$0xff] %vm459, %v11475
      %11512 = vst.msk [vmem:[%s224 + $0xc8] sm:$0xff] %vm459, %v11476
      %11513 = vst.msk [vmem:[%s224 + $0xd0] sm:$0xff] %vm459, %v11477
      %11514 = vst.msk [vmem:[%s224 + $0xd8] sm:$0xff] %vm459, %v11478
      %11515 = vst.msk [vmem:[%s224 + $0xe0] sm:$0xff] %vm459, %v11479
      %11516 = vst.msk [vmem:[%s224 + $0xe8] sm:$0xff] %vm459, %v11480
      %11517 = vst.msk [vmem:[%s224 + $0xf0] sm:$0xff] %vm459, %v11481
      %11518 = vst.msk [vmem:[%s224 + $0xf8] sm:$0xff] %vm459, %v11482
      %11519 = vst.msk [vmem:[%s224 + $0x100] sm:$0xff] %vm459, %v11483
      %11520 = vst.msk [vmem:[%s224 + $0x108] sm:$0xff] %vm459, %v11484
      %11521 = vst.msk [vmem:[%s224 + $0x110] sm:$0xff] %vm459, %v11485
      %11522 = vst.msk [vmem:[%s224 + $0x118] sm:$0xff] %vm459, %v11486
      %p11523 = scmp.lt.s32.totalorder %s16, 1
      %s11524 = scalar_select %p11523, %s16, 1
      %s11525 = smul.addr %s11524, 36
      %s11526 = smul.addr %s11525, 8
      %s11527 = scalar_lea.vmem %s5, %s11526
      // Predicated region
      $region41: #{tpu_custom_call.1} parent=39 // pred_check
        %p11528 = pneg %p144
      $region42: #{tpu_custom_call.1} parent=39 // pred_check_branch
        %11530 = sbr.rel (%p11528) target = $region44
      $region43: #{tpu_custom_call.1} parent=39 // pred_region
        _
      $region44: #{tpu_custom_call.1} parent=39 // pred_fallthru
        _
    $region40: #{tpu_custom_call.1} parent=5 // pred_fallthru
      _
    %p11531 = scmp.le.s32.totalorder 2, %s11
    // Predicated region
    $region45: #{tpu_custom_call.1} parent=5 // pred_check
      %p11532 = pneg %p11531
    $region46: #{tpu_custom_call.1} parent=5 // pred_check_branch
      %11534 = sbr.rel (%p11532) target = $region48
    $region47: #{tpu_custom_call.1} parent=5 // pred_region
      %s11535 = ssub.s32 %s11, 2
      // Predicated region
      $region49: #{tpu_custom_call.1} parent=47 // pred_check
        %p11536 = pneg %p150
      $region50: #{tpu_custom_call.1} parent=47 // pred_check_branch
        %11538 = sbr.rel (%p11536) target = $region52
      $region51: #{tpu_custom_call.1} parent=47 // pred_region
        %p11539 = scmp.lt.s32.totalorder %s17, 1
        %s11540 = scalar_select %p11539, %s17, 1
        %s11541 = smul.addr %s11540, 36
        %s11542 = smul.addr %s11541, 8
        %s11543 = scalar_lea.vmem %s5, %s11542
      $region52: #{tpu_custom_call.1} parent=47 // pred_fallthru
        _
    $region48: #{tpu_custom_call.1} parent=5 // pred_fallthru
      _
  $region6: #{tpu_custom_call.1} parent=0 // loop_footer
    %s15 = sadd.s32 1, %s11
  $region7: #{tpu_custom_call.1} parent=0 // loop_footer_branch
    %10 = sbr.rel target = $region3
  $region8: #{tpu_custom_call.1} parent=0 // loop_exit
    _

</llo_original>
